<compile_context>
chip_gen: v7x
topology: tpu7x:2x2x1
jax: 0.10.0
libtpu: 0.0.40
codegen_flags: <defaults>
</compile_context>

<pallas_src>
import functools

import jax
import jax.numpy as jnp
from jax.experimental import pallas as pl
from jax.experimental.pallas import tpu as pltpu


# ----------------------------------------------------------------------------
# helpers
# ----------------------------------------------------------------------------

def _layernorm(x, g, b, eps=1e-5):
    mu = jnp.mean(x, axis=-1, keepdims=True)
    var = jnp.mean((x - mu) ** 2, axis=-1, keepdims=True)
    return (x - mu) * jax.lax.rsqrt(var + eps) * g + b


# ----------------------------------------------------------------------------
# Fused transformer-encoder stack: one pallas_call, grid over layers
# ----------------------------------------------------------------------------

def _encoder_stack_kernel(x_ref,
                          wqkv_ref, bqkv_ref, wo_ref, bo_ref,
                          g1_ref, be1_ref,
                          wf1_ref, bf1_ref, wf2t_ref, bf2_ref,
                          g2_ref, be2_ref,
                          o_ref, xs_ref, *, num_heads):
    """One grid step == one PyTorch TransformerEncoderLayer (batch_first, post-norm,
    relu, eval).  Sequence state is carried in xs_ref (VMEM scratch)."""
    l = pl.program_id(0)

    @pl.when(l == 0)
    def _():
        xs_ref[...] = x_ref[...]

    x = xs_ref[...]                               # (S, W) f32
    S, W = x.shape
    dh = W // num_heads
    scale = 1.0 / float(dh) ** 0.5

    xb = x.astype(jnp.bfloat16)
    # fused qkv projection: (S, W) @ (W, 3W) -> (S, 3W), f32 accumulate
    qkv = jnp.dot(xb, wqkv_ref[0], preferred_element_type=jnp.float32) + bqkv_ref[0]
    q = qkv[:, :W]
    k = qkv[:, W:2 * W]
    v = qkv[:, 2 * W:]

    wo = wo_ref[0]                                # (W, W) bf16, rows = input dims
    attn = jnp.zeros((S, W), jnp.float32)
    for h in range(num_heads):                    # static loop over heads
        qh = q[:, h * dh:(h + 1) * dh]
        kh = k[:, h * dh:(h + 1) * dh]
        vh = v[:, h * dh:(h + 1) * dh]
        # scores = qh @ kh.T  (contract on feature axis, no explicit transpose)
        s = jax.lax.dot_general(qh, kh, (((1,), (1,)), ((), ())),
                                preferred_element_type=jnp.float32) * scale
        s = s - jnp.max(s, axis=-1, keepdims=True)
        p = jnp.exp(s)
        p = p * pl.reciprocal(jnp.sum(p, axis=-1, keepdims=True), approx=True)
        ph = jnp.dot(p, vh, preferred_element_type=jnp.float32)      # (S, dh)
        # fold the output projection into the head loop (no lane-sparse concat)
        attn = attn + jnp.dot(ph.astype(jnp.bfloat16),
                              wo[h * dh:(h + 1) * dh, :],
                              preferred_element_type=jnp.float32)
    attn = attn + bo_ref[0]

    # residual + LayerNorm1 (post-norm), f32
    y = _layernorm(x + attn, g1_ref[0], be1_ref[0])

    # feed-forward: Linear(W, dff) -> ReLU -> Linear(dff, W)
    h1 = jnp.maximum(
        jnp.dot(y.astype(jnp.bfloat16), wf1_ref[0],
                preferred_element_type=jnp.float32) + bf1_ref[0], 0.0)
    # wf2 stored transposed (W, dff) so dff stays lane-dense; contract last dims
    ff = jax.lax.dot_general(h1.astype(jnp.bfloat16), wf2t_ref[0],
                             (((1,), (1,)), ((), ())),
                             preferred_element_type=jnp.float32) + bf2_ref[0]

    out = _layernorm(y + ff, g2_ref[0], be2_ref[0])
    xs_ref[...] = out

    @pl.when(l == pl.num_programs(0) - 1)
    def _():
        o_ref[...] = out


def encoder_stack(x, sp, num_heads):
    """x: (S, W) f32.  sp: dict of (layers, ...) stacked per-layer params."""
    S, W = x.shape
    L = sp["wqkv"].shape[0]

    def _stacked_spec(a):
        return pl.BlockSpec((1,) + a.shape[1:], lambda l: (l, 0, 0))

    args = (x, sp["wqkv"], sp["bqkv"], sp["wo"], sp["bo"],
            sp["g1"], sp["be1"], sp["wf1"], sp["bf1"],
            sp["wf2t"], sp["bf2"], sp["g2"], sp["be2"])
    in_specs = ([pl.BlockSpec((S, W), lambda l: (0, 0))]
                + [_stacked_spec(a) for a in args[1:]])

    kern = functools.partial(_encoder_stack_kernel, num_heads=num_heads)
    return pl.pallas_call(
        kern,
        out_shape=jax.ShapeDtypeStruct((S, W), jnp.float32),
        grid_spec=pltpu.PrefetchScalarGridSpec(
            num_scalar_prefetch=0,
            grid=(L,),
            in_specs=in_specs,
            out_specs=pl.BlockSpec((S, W), lambda l: (0, 0)),
            scratch_shapes=[pltpu.VMEM((S, W), jnp.float32)]),
        compiler_params=pltpu.CompilerParams(
            dimension_semantics=("arbitrary",),
            vmem_limit_bytes=32 * 1024 * 1024),
    )(*args)


# ----------------------------------------------------------------------------
# Fused "small heads" kernel: f_unary + f_binary + action_emb in one launch
# ----------------------------------------------------------------------------

def _heads_kernel(objs_ref, cat_ref, act_ref,
                  fu_w1_ref, fu_b1_ref, fu_w2_ref, fu_b2_ref,
                  fb_w1_ref, fb_b1_ref, fb_w2_ref, fb_b2_ref, fb_w3_ref, fb_b3_ref,
                  ae_w1_ref, ae_b1_ref, ae_w2_ref, ae_b2_ref,
                  z_ref, y_ref, a_ref):
    # f_unary: Linear -> ReLU -> Linear
    objs = objs_ref[...]
    h = jnp.maximum(
        jnp.dot(objs, fu_w1_ref[...], preferred_element_type=jnp.float32)
        + fu_b1_ref[...], 0.0)
    z_ref[...] = (jnp.dot(h, fu_w2_ref[...], preferred_element_type=jnp.float32)
                  + fu_b2_ref[...])

    # f_binary: Linear -> ReLU -> Linear -> ReLU -> Linear -> Sigmoid
    cx = cat_ref[...]
    h1 = jnp.maximum(
        jnp.dot(cx, fb_w1_ref[...], preferred_element_type=jnp.float32)
        + fb_b1_ref[...], 0.0)
    h2 = jnp.maximum(
        jnp.dot(h1, fb_w2_ref[...], preferred_element_type=jnp.float32)
        + fb_b2_ref[...], 0.0)
    y_ref[...] = jax.nn.sigmoid(
        jnp.dot(h2, fb_w3_ref[...], preferred_element_type=jnp.float32)
        + fb_b3_ref[...])

    # action_emb: Linear -> ReLU -> Linear
    a = act_ref[...]
    ha = jnp.maximum(
        jnp.dot(a, ae_w1_ref[...], preferred_element_type=jnp.float32)
        + ae_b1_ref[...], 0.0)
    a_ref[...] = (jnp.dot(ha, ae_w2_ref[...], preferred_element_type=jnp.float32)
                  + ae_b2_ref[...])


_VMEM_SPEC = pl.BlockSpec(memory_space=pltpu.MemorySpace.VMEM)


def fused_heads(objs, concat_x, act_row, hp):
    n_obj = objs.shape[0]
    n_edges = concat_x.shape[0]
    n_unary = hp["fu_w2"].shape[1]
    n_binary = hp["fb_w3"].shape[1]
    width = hp["ae_w2"].shape[1]
    args = (objs, concat_x, act_row,
            hp["fu_w1"], hp["fu_b1"], hp["fu_w2"], hp["fu_b2"],
            hp["fb_w1"], hp["fb_b1"], hp["fb_w2"], hp["fb_b2"],
            hp["fb_w3"], hp["fb_b3"],
            hp["ae_w1"], hp["ae_b1"], hp["ae_w2"], hp["ae_b2"])
    out_shapes = (jax.ShapeDtypeStruct((n_obj, n_unary), jnp.float32),
                  jax.ShapeDtypeStruct((n_edges, n_binary), jnp.float32),
                  jax.ShapeDtypeStruct((1, width), jnp.float32))
    return pl.pallas_call(
        _heads_kernel,
        out_shape=out_shapes,
        in_specs=[_VMEM_SPEC] * len(args),
        out_specs=(_VMEM_SPEC,) * 3,
    )(*args)


# ----------------------------------------------------------------------------
# Deterministic synthetic parameters (shapes follow __init__ defaults)
# ----------------------------------------------------------------------------

def _lin(key, d_in, d_out, scale=0.05):
    w = scale * jax.random.normal(key, (d_in, d_out), jnp.float32)   # (in, out)
    return w, jnp.zeros((1, d_out), jnp.float32)


def _stacked_encoder_params(key, layers, width, dff, scale=0.05):
    ks = jax.random.split(key, 4)

    def w(k, shape):   # bf16 weights in HBM, f32 MXU accumulation in-kernel
        return (scale * jax.random.normal(k, (layers,) + shape, jnp.float32)
                ).astype(jnp.bfloat16)

    def zeros(d):
        return jnp.zeros((layers, 1, d), jnp.float32)

    def ones(d):
        return jnp.ones((layers, 1, d), jnp.float32)

    return dict(
        wqkv=w(ks[0], (width, 3 * width)), bqkv=zeros(3 * width),
        wo=w(ks[1], (width, width)), bo=zeros(width),
        g1=ones(width), be1=zeros(width),
        wf1=w(ks[2], (width, dff)), bf1=zeros(dff),
        wf2t=w(ks[3], (width, dff)), bf2=zeros(width),   # wf2 stored transposed
        g2=ones(width), be2=zeros(width),
    )


def init_params(key, *, width, layers, input_feature_num, d_hidden,
                n_unary, n_binary, dff=2048):
    keys = jax.random.split(key, 8)
    # f_unary: Linear(width, d_hidden) -> ReLU -> Linear(d_hidden, n_unary)
    fu_w1, fu_b1 = _lin(keys[0], width, d_hidden)
    fu_w2, fu_b2 = _lin(keys[1], d_hidden, n_unary)
    # f_binary: Linear(2W, d_hidden) -> ReLU -> Linear -> ReLU -> Linear -> Sigmoid
    fb_k = jax.random.split(keys[2], 3)
    fb_w1, fb_b1 = _lin(fb_k[0], 2 * width, d_hidden)
    fb_w2, fb_b2 = _lin(fb_k[1], d_hidden, d_hidden)
    fb_w3, fb_b3 = _lin(fb_k[2], d_hidden, n_binary)
    # action_emb: Linear(input_feature_num, width) -> ReLU -> Linear(width, width)
    ae_w1, ae_b1 = _lin(keys[3], input_feature_num, width)
    ae_w2, ae_b2 = _lin(keys[4], width, width)
    heads_params = dict(
        fu_w1=fu_w1, fu_b1=fu_b1, fu_w2=fu_w2, fu_b2=fu_b2,
        fb_w1=fb_w1, fb_b1=fb_b1, fb_w2=fb_w2, fb_b2=fb_b2,
        fb_w3=fb_w3, fb_b3=fb_b3,
        ae_w1=ae_w1, ae_b1=ae_b1, ae_w2=ae_w2, ae_b2=ae_b2,
    )
    return dict(
        heads=heads_params,
        transformer=_stacked_encoder_params(keys[5], layers, width, dff),
        graph_dynamics_0=_stacked_encoder_params(keys[6], layers, width, dff),
    )


# ----------------------------------------------------------------------------
# Forward pass (default-config EmbeddingNetTorch.forward)
# ----------------------------------------------------------------------------

def embedding_net_forward(params, objs, edge_index, edge_attr, actions,
                          *, skill_label, heads):
    # objs: (n_obj, width) -> PyTorch views it as (1, n_obj, width); batch=1 squeezed.
    del edge_attr                 # unused by the PyTorch forward
    assert skill_label == 0       # graph_dynamics_0 branch

    # gather edge endpoints (JAX glue) + slice the action row (direct_transformer)
    x1 = jnp.take(objs, edge_index[0], axis=0)
    x2 = jnp.take(objs, edge_index[1], axis=0)
    concat_x = jnp.concatenate([x1, x2], axis=-1)        # (n_edges, 2*width)
    act_row = actions[0:1, 1:]                           # (1, input_feature_num)

    # one launch for all three small MLP heads
    z, y, action_embedding = fused_heads(objs, concat_x, act_row, params["heads"])

    # encoder transformer over objects: one launch, grid over layers
    x = encoder_stack(objs, params["transformer"], heads)            # (n_obj, width)

    # cat along the sequence axis, run skill-0 dynamics transformer, drop action token
    action_x = jnp.concatenate([x, action_embedding], axis=0)        # (n_obj+1, width)
    next_predict = encoder_stack(action_x, params["graph_dynamics_0"], heads)
    next_predict = next_predict[:-1, :]                              # (n_obj, width)

    return {
        "pred": z,                             # (n_obj, n_unary)
        "current_embed": x[None],              # (1, n_obj, width)
        "pred_embedding": next_predict[None],  # (1, n_obj, width)
        "pred_sigmoid": y,                     # (n_edges, n_binary)
    }


# TODO(synk): on v7x the independent heads / transformer branches could be sharded
# across the two TensorCores (core_map); not done here to keep one portable kernel.


# ----------------------------------------------------------------------------
# main
# ----------------------------------------------------------------------------

if __name__ == "__main__":
    # small, module-consistent shapes
    n_objects = 8
    width = 32
    layers = 2
    heads = 4
    input_feature_num = 16
    d_hidden = 32
    n_unary = 5
    n_binary = 3

    n_obj = 8
    n_edges = 6

    key = jax.random.PRNGKey(0)
    k_par, k_obj, k_act, k_edge = jax.random.split(key, 4)

    params = init_params(k_par, width=width, layers=layers,
                         input_feature_num=input_feature_num, d_hidden=d_hidden,
                         n_unary=n_unary, n_binary=n_binary)

    objs = jax.random.normal(k_obj, (n_obj, width), jnp.float32)
    edge_index = jax.random.randint(k_edge, (2, n_edges), 0, n_obj, jnp.int32)
    edge_attr = jnp.zeros((n_edges, 4), jnp.float32)                 # unused in forward
    actions = jax.random.normal(k_act, (1, input_feature_num + 1), jnp.float32)

    fwd = jax.jit(embedding_net_forward, static_argnames=("skill_label", "heads"))
    out = fwd(params, objs, edge_index, edge_attr, actions,
              skill_label=0, heads=heads)
    jax.block_until_ready(out)

    assert out["pred"].shape == (n_obj, n_unary)
    assert out["pred_sigmoid"].shape == (n_edges, n_binary)
    assert out["current_embed"].shape == (1, n_obj, width)
    assert out["pred_embedding"].shape == (1, n_obj, width)
    print("KERNEL_OK")
</pallas_src>

<mosaic_0001>
module attributes {stable_mosaic.version = 11 : i64} {
  func.func @_heads_kernel(%arg0: memref<8x32xf32, #tpu.memory_space<vmem>>, %arg1: memref<6x64xf32, #tpu.memory_space<vmem>>, %arg2: memref<1x16xf32, #tpu.memory_space<vmem>>, %arg3: memref<32x32xf32, #tpu.memory_space<vmem>>, %arg4: memref<1x32xf32, #tpu.memory_space<vmem>>, %arg5: memref<32x5xf32, #tpu.memory_space<vmem>>, %arg6: memref<1x5xf32, #tpu.memory_space<vmem>>, %arg7: memref<64x32xf32, #tpu.memory_space<vmem>>, %arg8: memref<1x32xf32, #tpu.memory_space<vmem>>, %arg9: memref<32x32xf32, #tpu.memory_space<vmem>>, %arg10: memref<1x32xf32, #tpu.memory_space<vmem>>, %arg11: memref<32x3xf32, #tpu.memory_space<vmem>>, %arg12: memref<1x3xf32, #tpu.memory_space<vmem>>, %arg13: memref<16x32xf32, #tpu.memory_space<vmem>>, %arg14: memref<1x32xf32, #tpu.memory_space<vmem>>, %arg15: memref<32x32xf32, #tpu.memory_space<vmem>>, %arg16: memref<1x32xf32, #tpu.memory_space<vmem>>, %arg17: memref<8x5xf32, #tpu.memory_space<vmem>>, %arg18: memref<6x3xf32, #tpu.memory_space<vmem>>, %arg19: memref<1x32xf32, #tpu.memory_space<vmem>>) attributes {dimension_semantics = [], scalar_prefetch = 0 : i64, scratch_operands = 0 : i64, tpu.core_type = #tpu.core_type<tc>} {
    %c0 = arith.constant 0 : index
    %c0_0 = arith.constant 0 : index
    %0 = vector.load %arg0[%c0, %c0_0] : memref<8x32xf32, #tpu.memory_space<vmem>>, vector<8x32xf32>
    %c0_1 = arith.constant 0 : index
    %c0_2 = arith.constant 0 : index
    %1 = vector.load %arg3[%c0_1, %c0_2] : memref<32x32xf32, #tpu.memory_space<vmem>>, vector<32x32xf32>
    %cst = arith.constant dense<0.000000e+00> : vector<8x32xf32>
    %2 = tpu.matmul %0, %1, %cst {dimension_numbers = #tpu.dot_dimension_numbers<[1], [0], [0], [1], [0, 0, 1, 1], [], []>} : vector<8x32xf32>, vector<32x32xf32>, vector<8x32xf32> -> vector<8x32xf32>
    %c0_3 = arith.constant 0 : index
    %c0_4 = arith.constant 0 : index
    %3 = vector.load %arg4[%c0_3, %c0_4] : memref<1x32xf32, #tpu.memory_space<vmem>>, vector<1x32xf32>
    %4 = vector.broadcast %3 : vector<1x32xf32> to vector<8x32xf32>
    %5 = arith.addf %2, %4 : vector<8x32xf32>
    %cst_5 = arith.constant 0.000000e+00 : f32
    %6 = vector.broadcast %cst_5 : f32 to vector<8x32xf32>
    %7 = arith.maximumf %5, %6 : vector<8x32xf32>
    %c0_6 = arith.constant 0 : index
    %c0_7 = arith.constant 0 : index
    %8 = vector.load %arg5[%c0_6, %c0_7] : memref<32x5xf32, #tpu.memory_space<vmem>>, vector<32x5xf32>
    %cst_8 = arith.constant dense<0.000000e+00> : vector<8x5xf32>
    %9 = tpu.matmul %7, %8, %cst_8 {dimension_numbers = #tpu.dot_dimension_numbers<[1], [0], [0], [1], [0, 0, 1, 1], [], []>} : vector<8x32xf32>, vector<32x5xf32>, vector<8x5xf32> -> vector<8x5xf32>
    %c0_9 = arith.constant 0 : index
    %c0_10 = arith.constant 0 : index
    %10 = vector.load %arg6[%c0_9, %c0_10] : memref<1x5xf32, #tpu.memory_space<vmem>>, vector<1x5xf32>
    %11 = vector.broadcast %10 : vector<1x5xf32> to vector<8x5xf32>
    %12 = arith.addf %9, %11 : vector<8x5xf32>
    %c0_11 = arith.constant 0 : index
    %c0_12 = arith.constant 0 : index
    %13 = vector.load %arg17[%c0_11, %c0_12] : memref<8x5xf32, #tpu.memory_space<vmem>>, vector<8x5xf32>
    tpu.vector_store %arg17[%c0_11, %c0_12], %12 {strides = array<i32>} : memref<8x5xf32, #tpu.memory_space<vmem>>, vector<8x5xf32>,
    %c0_13 = arith.constant 0 : index
    %c0_14 = arith.constant 0 : index
    %14 = vector.load %arg1[%c0_13, %c0_14] : memref<6x64xf32, #tpu.memory_space<vmem>>, vector<6x64xf32>
    %c0_15 = arith.constant 0 : index
    %c0_16 = arith.constant 0 : index
    %15 = vector.load %arg7[%c0_15, %c0_16] : memref<64x32xf32, #tpu.memory_space<vmem>>, vector<64x32xf32>
    %cst_17 = arith.constant dense<0.000000e+00> : vector<6x32xf32>
    %16 = tpu.matmul %14, %15, %cst_17 {dimension_numbers = #tpu.dot_dimension_numbers<[1], [0], [0], [1], [0, 0, 1, 1], [], []>} : vector<6x64xf32>, vector<64x32xf32>, vector<6x32xf32> -> vector<6x32xf32>
    %c0_18 = arith.constant 0 : index
    %c0_19 = arith.constant 0 : index
    %17 = vector.load %arg8[%c0_18, %c0_19] : memref<1x32xf32, #tpu.memory_space<vmem>>, vector<1x32xf32>
    %18 = vector.broadcast %17 : vector<1x32xf32> to vector<6x32xf32>
    %19 = arith.addf %16, %18 : vector<6x32xf32>
    %cst_20 = arith.constant 0.000000e+00 : f32
    %20 = vector.broadcast %cst_20 : f32 to vector<6x32xf32>
    %21 = arith.maximumf %19, %20 : vector<6x32xf32>
    %c0_21 = arith.constant 0 : index
    %c0_22 = arith.constant 0 : index
    %22 = vector.load %arg9[%c0_21, %c0_22] : memref<32x32xf32, #tpu.memory_space<vmem>>, vector<32x32xf32>
    %cst_23 = arith.constant dense<0.000000e+00> : vector<6x32xf32>
    %23 = tpu.matmul %21, %22, %cst_23 {dimension_numbers = #tpu.dot_dimension_numbers<[1], [0], [0], [1], [0, 0, 1, 1], [], []>} : vector<6x32xf32>, vector<32x32xf32>, vector<6x32xf32> -> vector<6x32xf32>
    %c0_24 = arith.constant 0 : index
    %c0_25 = arith.constant 0 : index
    %24 = vector.load %arg10[%c0_24, %c0_25] : memref<1x32xf32, #tpu.memory_space<vmem>>, vector<1x32xf32>
    %25 = vector.broadcast %24 : vector<1x32xf32> to vector<6x32xf32>
    %26 = arith.addf %23, %25 : vector<6x32xf32>
    %cst_26 = arith.constant 0.000000e+00 : f32
    %27 = vector.broadcast %cst_26 : f32 to vector<6x32xf32>
    %28 = arith.maximumf %26, %27 : vector<6x32xf32>
    %c0_27 = arith.constant 0 : index
    %c0_28 = arith.constant 0 : index
    %29 = vector.load %arg11[%c0_27, %c0_28] : memref<32x3xf32, #tpu.memory_space<vmem>>, vector<32x3xf32>
    %cst_29 = arith.constant dense<0.000000e+00> : vector<6x3xf32>
    %30 = tpu.matmul %28, %29, %cst_29 {dimension_numbers = #tpu.dot_dimension_numbers<[1], [0], [0], [1], [0, 0, 1, 1], [], []>} : vector<6x32xf32>, vector<32x3xf32>, vector<6x3xf32> -> vector<6x3xf32>
    %c0_30 = arith.constant 0 : index
    %c0_31 = arith.constant 0 : index
    %31 = vector.load %arg12[%c0_30, %c0_31] : memref<1x3xf32, #tpu.memory_space<vmem>>, vector<1x3xf32>
    %32 = vector.broadcast %31 : vector<1x3xf32> to vector<6x3xf32>
    %33 = arith.addf %30, %32 : vector<6x3xf32>
    %34 = arith.negf %33 : vector<6x3xf32>
    %35 = math.exp %34 : vector<6x3xf32>
    %cst_32 = arith.constant 1.000000e+00 : f32
    %36 = vector.broadcast %cst_32 : f32 to vector<6x3xf32>
    %37 = arith.addf %36, %35 : vector<6x3xf32>
    %38 = arith.divf %36, %37 : vector<6x3xf32>
    %c0_33 = arith.constant 0 : index
    %c0_34 = arith.constant 0 : index
    %39 = vector.load %arg18[%c0_33, %c0_34] : memref<6x3xf32, #tpu.memory_space<vmem>>, vector<6x3xf32>
    tpu.vector_store %arg18[%c0_33, %c0_34], %38 {strides = array<i32>} : memref<6x3xf32, #tpu.memory_space<vmem>>, vector<6x3xf32>,
    %c0_35 = arith.constant 0 : index
    %c0_36 = arith.constant 0 : index
    %40 = vector.load %arg2[%c0_35, %c0_36] : memref<1x16xf32, #tpu.memory_space<vmem>>, vector<1x16xf32>
    %c0_37 = arith.constant 0 : index
    %c0_38 = arith.constant 0 : index
    %41 = vector.load %arg13[%c0_37, %c0_38] : memref<16x32xf32, #tpu.memory_space<vmem>>, vector<16x32xf32>
    %cst_39 = arith.constant dense<0.000000e+00> : vector<1x32xf32>
    %42 = tpu.matmul %40, %41, %cst_39 {dimension_numbers = #tpu.dot_dimension_numbers<[1], [0], [0], [1], [0, 0, 1, 1], [], []>} : vector<1x16xf32>, vector<16x32xf32>, vector<1x32xf32> -> vector<1x32xf32>
    %c0_40 = arith.constant 0 : index
    %c0_41 = arith.constant 0 : index
    %43 = vector.load %arg14[%c0_40, %c0_41] : memref<1x32xf32, #tpu.memory_space<vmem>>, vector<1x32xf32>
    %44 = arith.addf %42, %43 : vector<1x32xf32>
    %cst_42 = arith.constant 0.000000e+00 : f32
    %45 = vector.broadcast %cst_42 : f32 to vector<1x32xf32>
    %46 = arith.maximumf %44, %45 : vector<1x32xf32>
    %c0_43 = arith.constant 0 : index
    %c0_44 = arith.constant 0 : index
    %47 = vector.load %arg15[%c0_43, %c0_44] : memref<32x32xf32, #tpu.memory_space<vmem>>, vector<32x32xf32>
    %cst_45 = arith.constant dense<0.000000e+00> : vector<1x32xf32>
    %48 = tpu.matmul %46, %47, %cst_45 {dimension_numbers = #tpu.dot_dimension_numbers<[1], [0], [0], [1], [0, 0, 1, 1], [], []>} : vector<1x32xf32>, vector<32x32xf32>, vector<1x32xf32> -> vector<1x32xf32>
    %c0_46 = arith.constant 0 : index
    %c0_47 = arith.constant 0 : index
    %49 = vector.load %arg16[%c0_46, %c0_47] : memref<1x32xf32, #tpu.memory_space<vmem>>, vector<1x32xf32>
    %50 = arith.addf %48, %49 : vector<1x32xf32>
    %c0_48 = arith.constant 0 : index
    %c0_49 = arith.constant 0 : index
    %51 = vector.load %arg19[%c0_48, %c0_49] : memref<1x32xf32, #tpu.memory_space<vmem>>, vector<1x32xf32>
    tpu.vector_store %arg19[%c0_48, %c0_49], %50 {strides = array<i32>} : memref<1x32xf32, #tpu.memory_space<vmem>>, vector<1x32xf32>,
    return
  }
}

module attributes {stable_mosaic.version = 11 : i64} {
  func.func @_encoder_stack_kernel(%arg0: i32, %arg1: memref<8x32xf32, #tpu.memory_space<vmem>>, %arg2: memref<1x32x96xbf16, #tpu.memory_space<vmem>>, %arg3: memref<1x1x96xf32, #tpu.memory_space<vmem>>, %arg4: memref<1x32x32xbf16, #tpu.memory_space<vmem>>, %arg5: memref<1x1x32xf32, #tpu.memory_space<vmem>>, %arg6: memref<1x1x32xf32, #tpu.memory_space<vmem>>, %arg7: memref<1x1x32xf32, #tpu.memory_space<vmem>>, %arg8: memref<1x32x2048xbf16, #tpu.memory_space<vmem>>, %arg9: memref<1x1x2048xf32, #tpu.memory_space<vmem>>, %arg10: memref<1x32x2048xbf16, #tpu.memory_space<vmem>>, %arg11: memref<1x1x32xf32, #tpu.memory_space<vmem>>, %arg12: memref<1x1x32xf32, #tpu.memory_space<vmem>>, %arg13: memref<1x1x32xf32, #tpu.memory_space<vmem>>, %arg14: memref<8x32xf32, #tpu.memory_space<vmem>>, %arg15: memref<8x32xf32, #tpu.memory_space<vmem>>) attributes {dimension_semantics = [#tpu.dimension_semantics<arbitrary>], iteration_bounds = array<i64: 2>, scalar_prefetch = 0 : i64, scratch_operands = 1 : i64, tpu.core_type = #tpu.core_type<tc>, window_params = [{pipeline_mode = #tpu.pipeline_mode<synchronous>, transform_indices = @transform_0, window_bounds = array<i64: 8, 32>}, {transform_indices = @transform_1, window_bounds = array<i64: 1, 32, 96>}, {transform_indices = @transform_2, window_bounds = array<i64: 1, 1, 96>}, {transform_indices = @transform_3, window_bounds = array<i64: 1, 32, 32>}, {transform_indices = @transform_4, window_bounds = array<i64: 1, 1, 32>}, {transform_indices = @transform_5, window_bounds = array<i64: 1, 1, 32>}, {transform_indices = @transform_6, window_bounds = array<i64: 1, 1, 32>}, {transform_indices = @transform_7, window_bounds = array<i64: 1, 32, 2048>}, {transform_indices = @transform_8, window_bounds = array<i64: 1, 1, 2048>}, {transform_indices = @transform_9, window_bounds = array<i64: 1, 32, 2048>}, {transform_indices = @transform_10, window_bounds = array<i64: 1, 1, 32>}, {transform_indices = @transform_11, window_bounds = array<i64: 1, 1, 32>}, {transform_indices = @transform_12, window_bounds = array<i64: 1, 1, 32>}, {pipeline_mode = #tpu.pipeline_mode<synchronous>, transform_indices = @transform_13, window_bounds = array<i64: 8, 32>}]} {
    %c0_i32 = arith.constant 0 : i32
    %0 = arith.cmpi eq, %arg0, %c0_i32 : i32
    %1 = arith.extui %0 : i1 to i32
    %c0_i32_0 = arith.constant 0 : i32
    %2 = arith.cmpi ne, %1, %c0_i32_0 : i32
    scf.if %2 {
      %c0_79 = arith.constant 0 : index
      %c0_80 = arith.constant 0 : index
      %182 = vector.load %arg1[%c0_79, %c0_80] : memref<8x32xf32, #tpu.memory_space<vmem>>, vector<8x32xf32>
      %c0_81 = arith.constant 0 : index
      %c0_82 = arith.constant 0 : index
      %183 = vector.load %arg15[%c0_81, %c0_82] : memref<8x32xf32, #tpu.memory_space<vmem>>, vector<8x32xf32>
      tpu.vector_store %arg15[%c0_81, %c0_82], %182 {strides = array<i32>} : memref<8x32xf32, #tpu.memory_space<vmem>>, vector<8x32xf32>,
    } else {
    }
    %c0 = arith.constant 0 : index
    %c0_1 = arith.constant 0 : index
    %3 = vector.load %arg15[%c0, %c0_1] : memref<8x32xf32, #tpu.memory_space<vmem>>, vector<8x32xf32>
    %4 = arith.truncf %3 : vector<8x32xf32> to vector<8x32xbf16>
    %c0_2 = arith.constant 0 : index
    %c0_3 = arith.constant 0 : index
    %c0_4 = arith.constant 0 : index
    %5 = vector.load %arg2[%c0_2, %c0_3, %c0_4] : memref<1x32x96xbf16, #tpu.memory_space<vmem>>, vector<1x32x96xbf16>
    %6 = vector.shape_cast %5 : vector<1x32x96xbf16> to vector<32x96xbf16>
    %cst = arith.constant dense<0.000000e+00> : vector<8x96xf32>
    %7 = tpu.matmul %4, %6, %cst {dimension_numbers = #tpu.dot_dimension_numbers<[1], [0], [0], [1], [0, 0, 1, 1], [], []>} : vector<8x32xbf16>, vector<32x96xbf16>, vector<8x96xf32> -> vector<8x96xf32>
    %c0_5 = arith.constant 0 : index
    %c0_6 = arith.constant 0 : index
    %c0_7 = arith.constant 0 : index
    %8 = vector.load %arg3[%c0_5, %c0_6, %c0_7] : memref<1x1x96xf32, #tpu.memory_space<vmem>>, vector<1x1x96xf32>
    %9 = vector.shape_cast %8 : vector<1x1x96xf32> to vector<1x96xf32>
    %10 = vector.broadcast %9 : vector<1x96xf32> to vector<8x96xf32>
    %11 = arith.addf %7, %10 : vector<8x96xf32>
    %12 = vector.extract_strided_slice %11 {offsets = [0, 0], sizes = [8, 32], strides = [1, 1]} : vector<8x96xf32> to vector<8x32xf32>
    %13 = vector.extract_strided_slice %11 {offsets = [0, 32], sizes = [8, 32], strides = [1, 1]} : vector<8x96xf32> to vector<8x32xf32>
    %14 = vector.extract_strided_slice %11 {offsets = [0, 64], sizes = [8, 32], strides = [1, 1]} : vector<8x96xf32> to vector<8x32xf32>
    %c0_8 = arith.constant 0 : index
    %c0_9 = arith.constant 0 : index
    %c0_10 = arith.constant 0 : index
    %15 = vector.load %arg4[%c0_8, %c0_9, %c0_10] : memref<1x32x32xbf16, #tpu.memory_space<vmem>>, vector<1x32x32xbf16>
    %16 = vector.shape_cast %15 : vector<1x32x32xbf16> to vector<32x32xbf16>
    %cst_11 = arith.constant 0.000000e+00 : f32
    %17 = vector.broadcast %cst_11 : f32 to vector<8x32xf32>
    %18 = vector.extract_strided_slice %12 {offsets = [0, 0], sizes = [8, 8], strides = [1, 1]} : vector<8x32xf32> to vector<8x8xf32>
    %19 = vector.extract_strided_slice %13 {offsets = [0, 0], sizes = [8, 8], strides = [1, 1]} : vector<8x32xf32> to vector<8x8xf32>
    %20 = vector.extract_strided_slice %14 {offsets = [0, 0], sizes = [8, 8], strides = [1, 1]} : vector<8x32xf32> to vector<8x8xf32>
    %cst_12 = arith.constant dense<0.000000e+00> : vector<8x8xf32>
    %21 = tpu.matmul %18, %19, %cst_12 {dimension_numbers = #tpu.dot_dimension_numbers<[1], [1], [0], [0], [0, 0, 1, 0], [], []>} : vector<8x8xf32>, vector<8x8xf32>, vector<8x8xf32> -> vector<8x8xf32>
    %cst_13 = arith.constant 0.353553385 : f32
    %22 = vector.broadcast %cst_13 : f32 to vector<8x8xf32>
    %23 = arith.mulf %21, %22 : vector<8x8xf32>
    %cst_14 = arith.constant dense<0xFF800000> : vector<8xf32>
    %24 = vector.multi_reduction <maximumf>, %23, %cst_14 [1] : vector<8x8xf32> to vector<8xf32>
    %25 = vector.shape_cast %24 : vector<8xf32> to vector<8x1xf32>
    %26 = vector.broadcast %25 : vector<8x1xf32> to vector<8x8xf32>
    %27 = arith.subf %23, %26 : vector<8x8xf32>
    %28 = math.exp %27 : vector<8x8xf32>
    %cst_15 = arith.constant dense<0.000000e+00> : vector<8xf32>
    %29 = vector.multi_reduction <add>, %28, %cst_15 [1] : vector<8x8xf32> to vector<8xf32>
    %30 = vector.shape_cast %29 : vector<8xf32> to vector<8x1xf32>
    %31 = tpu.reciprocal %30 {approx = true} : vector<8x1xf32> -> vector<8x1xf32>
    %32 = vector.broadcast %31 : vector<8x1xf32> to vector<8x8xf32>
    %33 = arith.mulf %28, %32 : vector<8x8xf32>
    %cst_16 = arith.constant dense<0.000000e+00> : vector<8x8xf32>
    %34 = tpu.matmul %33, %20, %cst_16 {dimension_numbers = #tpu.dot_dimension_numbers<[1], [0], [0], [1], [0, 0, 1, 1], [], []>} : vector<8x8xf32>, vector<8x8xf32>, vector<8x8xf32> -> vector<8x8xf32>
    %35 = arith.truncf %34 : vector<8x8xf32> to vector<8x8xbf16>
    %36 = vector.extract_strided_slice %16 {offsets = [0, 0], sizes = [8, 32], strides = [1, 1]} : vector<32x32xbf16> to vector<8x32xbf16>
    %cst_17 = arith.constant dense<0.000000e+00> : vector<8x32xf32>
    %37 = tpu.matmul %35, %36, %cst_17 {dimension_numbers = #tpu.dot_dimension_numbers<[1], [0], [0], [1], [0, 0, 1, 1], [], []>} : vector<8x8xbf16>, vector<8x32xbf16>, vector<8x32xf32> -> vector<8x32xf32>
    %38 = arith.addf %17, %37 : vector<8x32xf32>
    %39 = vector.extract_strided_slice %12 {offsets = [0, 8], sizes = [8, 8], strides = [1, 1]} : vector<8x32xf32> to vector<8x8xf32>
    %40 = vector.extract_strided_slice %13 {offsets = [0, 8], sizes = [8, 8], strides = [1, 1]} : vector<8x32xf32> to vector<8x8xf32>
    %41 = vector.extract_strided_slice %14 {offsets = [0, 8], sizes = [8, 8], strides = [1, 1]} : vector<8x32xf32> to vector<8x8xf32>
    %cst_18 = arith.constant dense<0.000000e+00> : vector<8x8xf32>
    %42 = tpu.matmul %39, %40, %cst_18 {dimension_numbers = #tpu.dot_dimension_numbers<[1], [1], [0], [0], [0, 0, 1, 0], [], []>} : vector<8x8xf32>, vector<8x8xf32>, vector<8x8xf32> -> vector<8x8xf32>
    %cst_19 = arith.constant 0.353553385 : f32
    %43 = vector.broadcast %cst_19 : f32 to vector<8x8xf32>
    %44 = arith.mulf %42, %43 : vector<8x8xf32>
    %cst_20 = arith.constant dense<0xFF800000> : vector<8xf32>
    %45 = vector.multi_reduction <maximumf>, %44, %cst_20 [1] : vector<8x8xf32> to vector<8xf32>
    %46 = vector.shape_cast %45 : vector<8xf32> to vector<8x1xf32>
    %47 = vector.broadcast %46 : vector<8x1xf32> to vector<8x8xf32>
    %48 = arith.subf %44, %47 : vector<8x8xf32>
    %49 = math.exp %48 : vector<8x8xf32>
    %cst_21 = arith.constant dense<0.000000e+00> : vector<8xf32>
    %50 = vector.multi_reduction <add>, %49, %cst_21 [1] : vector<8x8xf32> to vector<8xf32>
    %51 = vector.shape_cast %50 : vector<8xf32> to vector<8x1xf32>
    %52 = tpu.reciprocal %51 {approx = true} : vector<8x1xf32> -> vector<8x1xf32>
    %53 = vector.broadcast %52 : vector<8x1xf32> to vector<8x8xf32>
    %54 = arith.mulf %49, %53 : vector<8x8xf32>
    %cst_22 = arith.constant dense<0.000000e+00> : vector<8x8xf32>
    %55 = tpu.matmul %54, %41, %cst_22 {dimension_numbers = #tpu.dot_dimension_numbers<[1], [0], [0], [1], [0, 0, 1, 1], [], []>} : vector<8x8xf32>, vector<8x8xf32>, vector<8x8xf32> -> vector<8x8xf32>
    %56 = arith.truncf %55 : vector<8x8xf32> to vector<8x8xbf16>
    %57 = vector.extract_strided_slice %16 {offsets = [8, 0], sizes = [8, 32], strides = [1, 1]} : vector<32x32xbf16> to vector<8x32xbf16>
    %cst_23 = arith.constant dense<0.000000e+00> : vector<8x32xf32>
    %58 = tpu.matmul %56, %57, %cst_23 {dimension_numbers = #tpu.dot_dimension_numbers<[1], [0], [0], [1], [0, 0, 1, 1], [], []>} : vector<8x8xbf16>, vector<8x32xbf16>, vector<8x32xf32> -> vector<8x32xf32>
    %59 = arith.addf %38, %58 : vector<8x32xf32>
    %60 = vector.extract_strided_slice %12 {offsets = [0, 16], sizes = [8, 8], strides = [1, 1]} : vector<8x32xf32> to vector<8x8xf32>
    %61 = vector.extract_strided_slice %13 {offsets = [0, 16], sizes = [8, 8], strides = [1, 1]} : vector<8x32xf32> to vector<8x8xf32>
    %62 = vector.extract_strided_slice %14 {offsets = [0, 16], sizes = [8, 8], strides = [1, 1]} : vector<8x32xf32> to vector<8x8xf32>
    %cst_24 = arith.constant dense<0.000000e+00> : vector<8x8xf32>
    %63 = tpu.matmul %60, %61, %cst_24 {dimension_numbers = #tpu.dot_dimension_numbers<[1], [1], [0], [0], [0, 0, 1, 0], [], []>} : vector<8x8xf32>, vector<8x8xf32>, vector<8x8xf32> -> vector<8x8xf32>
    %cst_25 = arith.constant 0.353553385 : f32
    %64 = vector.broadcast %cst_25 : f32 to vector<8x8xf32>
    %65 = arith.mulf %63, %64 : vector<8x8xf32>
    %cst_26 = arith.constant dense<0xFF800000> : vector<8xf32>
    %66 = vector.multi_reduction <maximumf>, %65, %cst_26 [1] : vector<8x8xf32> to vector<8xf32>
    %67 = vector.shape_cast %66 : vector<8xf32> to vector<8x1xf32>
    %68 = vector.broadcast %67 : vector<8x1xf32> to vector<8x8xf32>
    %69 = arith.subf %65, %68 : vector<8x8xf32>
    %70 = math.exp %69 : vector<8x8xf32>
    %cst_27 = arith.constant dense<0.000000e+00> : vector<8xf32>
    %71 = vector.multi_reduction <add>, %70, %cst_27 [1] : vector<8x8xf32> to vector<8xf32>
    %72 = vector.shape_cast %71 : vector<8xf32> to vector<8x1xf32>
    %73 = tpu.reciprocal %72 {approx = true} : vector<8x1xf32> -> vector<8x1xf32>
    %74 = vector.broadcast %73 : vector<8x1xf32> to vector<8x8xf32>
    %75 = arith.mulf %70, %74 : vector<8x8xf32>
    %cst_28 = arith.constant dense<0.000000e+00> : vector<8x8xf32>
    %76 = tpu.matmul %75, %62, %cst_28 {dimension_numbers = #tpu.dot_dimension_numbers<[1], [0], [0], [1], [0, 0, 1, 1], [], []>} : vector<8x8xf32>, vector<8x8xf32>, vector<8x8xf32> -> vector<8x8xf32>
    %77 = arith.truncf %76 : vector<8x8xf32> to vector<8x8xbf16>
    %78 = vector.extract_strided_slice %16 {offsets = [16, 0], sizes = [8, 32], strides = [1, 1]} : vector<32x32xbf16> to vector<8x32xbf16>
    %cst_29 = arith.constant dense<0.000000e+00> : vector<8x32xf32>
    %79 = tpu.matmul %77, %78, %cst_29 {dimension_numbers = #tpu.dot_dimension_numbers<[1], [0], [0], [1], [0, 0, 1, 1], [], []>} : vector<8x8xbf16>, vector<8x32xbf16>, vector<8x32xf32> -> vector<8x32xf32>
    %80 = arith.addf %59, %79 : vector<8x32xf32>
    %81 = vector.extract_strided_slice %12 {offsets = [0, 24], sizes = [8, 8], strides = [1, 1]} : vector<8x32xf32> to vector<8x8xf32>
    %82 = vector.extract_strided_slice %13 {offsets = [0, 24], sizes = [8, 8], strides = [1, 1]} : vector<8x32xf32> to vector<8x8xf32>
    %83 = vector.extract_strided_slice %14 {offsets = [0, 24], sizes = [8, 8], strides = [1, 1]} : vector<8x32xf32> to vector<8x8xf32>
    %cst_30 = arith.constant dense<0.000000e+00> : vector<8x8xf32>
    %84 = tpu.matmul %81, %82, %cst_30 {dimension_numbers = #tpu.dot_dimension_numbers<[1], [1], [0], [0], [0, 0, 1, 0], [], []>} : vector<8x8xf32>, vector<8x8xf32>, vector<8x8xf32> -> vector<8x8xf32>
    %cst_31 = arith.constant 0.353553385 : f32
    %85 = vector.broadcast %cst_31 : f32 to vector<8x8xf32>
    %86 = arith.mulf %84, %85 : vector<8x8xf32>
    %cst_32 = arith.constant dense<0xFF800000> : vector<8xf32>
    %87 = vector.multi_reduction <maximumf>, %86, %cst_32 [1] : vector<8x8xf32> to vector<8xf32>
    %88 = vector.shape_cast %87 : vector<8xf32> to vector<8x1xf32>
    %89 = vector.broadcast %88 : vector<8x1xf32> to vector<8x8xf32>
    %90 = arith.subf %86, %89 : vector<8x8xf32>
    %91 = math.exp %90 : vector<8x8xf32>
    %cst_33 = arith.constant dense<0.000000e+00> : vector<8xf32>
    %92 = vector.multi_reduction <add>, %91, %cst_33 [1] : vector<8x8xf32> to vector<8xf32>
    %93 = vector.shape_cast %92 : vector<8xf32> to vector<8x1xf32>
    %94 = tpu.reciprocal %93 {approx = true} : vector<8x1xf32> -> vector<8x1xf32>
    %95 = vector.broadcast %94 : vector<8x1xf32> to vector<8x8xf32>
    %96 = arith.mulf %91, %95 : vector<8x8xf32>
    %cst_34 = arith.constant dense<0.000000e+00> : vector<8x8xf32>
    %97 = tpu.matmul %96, %83, %cst_34 {dimension_numbers = #tpu.dot_dimension_numbers<[1], [0], [0], [1], [0, 0, 1, 1], [], []>} : vector<8x8xf32>, vector<8x8xf32>, vector<8x8xf32> -> vector<8x8xf32>
    %98 = arith.truncf %97 : vector<8x8xf32> to vector<8x8xbf16>
    %99 = vector.extract_strided_slice %16 {offsets = [24, 0], sizes = [8, 32], strides = [1, 1]} : vector<32x32xbf16> to vector<8x32xbf16>
    %cst_35 = arith.constant dense<0.000000e+00> : vector<8x32xf32>
    %100 = tpu.matmul %98, %99, %cst_35 {dimension_numbers = #tpu.dot_dimension_numbers<[1], [0], [0], [1], [0, 0, 1, 1], [], []>} : vector<8x8xbf16>, vector<8x32xbf16>, vector<8x32xf32> -> vector<8x32xf32>
    %101 = arith.addf %80, %100 : vector<8x32xf32>
    %c0_36 = arith.constant 0 : index
    %c0_37 = arith.constant 0 : index
    %c0_38 = arith.constant 0 : index
    %102 = vector.load %arg5[%c0_36, %c0_37, %c0_38] : memref<1x1x32xf32, #tpu.memory_space<vmem>>, vector<1x1x32xf32>
    %103 = vector.shape_cast %102 : vector<1x1x32xf32> to vector<1x32xf32>
    %104 = vector.broadcast %103 : vector<1x32xf32> to vector<8x32xf32>
    %105 = arith.addf %101, %104 : vector<8x32xf32>
    %106 = arith.addf %3, %105 : vector<8x32xf32>
    %c0_39 = arith.constant 0 : index
    %c0_40 = arith.constant 0 : index
    %c0_41 = arith.constant 0 : index
    %107 = vector.load %arg6[%c0_39, %c0_40, %c0_41] : memref<1x1x32xf32, #tpu.memory_space<vmem>>, vector<1x1x32xf32>
    %108 = vector.shape_cast %107 : vector<1x1x32xf32> to vector<1x32xf32>
    %c0_42 = arith.constant 0 : index
    %c0_43 = arith.constant 0 : index
    %c0_44 = arith.constant 0 : index
    %109 = vector.load %arg7[%c0_42, %c0_43, %c0_44] : memref<1x1x32xf32, #tpu.memory_space<vmem>>, vector<1x1x32xf32>
    %110 = vector.shape_cast %109 : vector<1x1x32xf32> to vector<1x32xf32>
    %cst_45 = arith.constant dense<0.000000e+00> : vector<8xf32>
    %111 = vector.multi_reduction <add>, %106, %cst_45 [1] : vector<8x32xf32> to vector<8xf32>
    %112 = vector.shape_cast %111 : vector<8xf32> to vector<8x1xf32>
    %cst_46 = arith.constant 3.200000e+01 : f32
    %113 = vector.broadcast %cst_46 : f32 to vector<8x1xf32>
    %114 = arith.divf %112, %113 : vector<8x1xf32>
    %115 = vector.broadcast %114 : vector<8x1xf32> to vector<8x32xf32>
    %116 = arith.subf %106, %115 : vector<8x32xf32>
    %117 = arith.mulf %116, %116 : vector<8x32xf32>
    %cst_47 = arith.constant dense<0.000000e+00> : vector<8xf32>
    %118 = vector.multi_reduction <add>, %117, %cst_47 [1] : vector<8x32xf32> to vector<8xf32>
    %119 = vector.shape_cast %118 : vector<8xf32> to vector<8x1xf32>
    %cst_48 = arith.constant 3.200000e+01 : f32
    %120 = vector.broadcast %cst_48 : f32 to vector<8x1xf32>
    %121 = arith.divf %119, %120 : vector<8x1xf32>
    %122 = vector.broadcast %114 : vector<8x1xf32> to vector<8x32xf32>
    %123 = arith.subf %106, %122 : vector<8x32xf32>
    %cst_49 = arith.constant 9.99999974E-6 : f32
    %124 = vector.broadcast %cst_49 : f32 to vector<8x1xf32>
    %125 = arith.addf %121, %124 : vector<8x1xf32>
    %126 = math.rsqrt %125 : vector<8x1xf32>
    %127 = vector.broadcast %126 : vector<8x1xf32> to vector<8x32xf32>
    %128 = arith.mulf %123, %127 : vector<8x32xf32>
    %129 = vector.broadcast %108 : vector<1x32xf32> to vector<8x32xf32>
    %130 = arith.mulf %128, %129 : vector<8x32xf32>
    %131 = vector.broadcast %110 : vector<1x32xf32> to vector<8x32xf32>
    %132 = arith.addf %130, %131 : vector<8x32xf32>
    %133 = arith.truncf %132 : vector<8x32xf32> to vector<8x32xbf16>
    %c0_50 = arith.constant 0 : index
    %c0_51 = arith.constant 0 : index
    %c0_52 = arith.constant 0 : index
    %134 = vector.load %arg8[%c0_50, %c0_51, %c0_52] : memref<1x32x2048xbf16, #tpu.memory_space<vmem>>, vector<1x32x2048xbf16>
    %135 = vector.shape_cast %134 : vector<1x32x2048xbf16> to vector<32x2048xbf16>
    %cst_53 = arith.constant dense<0.000000e+00> : vector<8x2048xf32>
    %136 = tpu.matmul %133, %135, %cst_53 {dimension_numbers = #tpu.dot_dimension_numbers<[1], [0], [0], [1], [0, 0, 1, 1], [], []>} : vector<8x32xbf16>, vector<32x2048xbf16>, vector<8x2048xf32> -> vector<8x2048xf32>
    %c0_54 = arith.constant 0 : index
    %c0_55 = arith.constant 0 : index
    %c0_56 = arith.constant 0 : index
    %137 = vector.load %arg9[%c0_54, %c0_55, %c0_56] : memref<1x1x2048xf32, #tpu.memory_space<vmem>>, vector<1x1x2048xf32>
    %138 = vector.shape_cast %137 : vector<1x1x2048xf32> to vector<1x2048xf32>
    %139 = vector.broadcast %138 : vector<1x2048xf32> to vector<8x2048xf32>
    %140 = arith.addf %136, %139 : vector<8x2048xf32>
    %cst_57 = arith.constant 0.000000e+00 : f32
    %141 = vector.broadcast %cst_57 : f32 to vector<8x2048xf32>
    %142 = arith.maximumf %140, %141 : vector<8x2048xf32>
    %143 = arith.truncf %142 : vector<8x2048xf32> to vector<8x2048xbf16>
    %c0_58 = arith.constant 0 : index
    %c0_59 = arith.constant 0 : index
    %c0_60 = arith.constant 0 : index
    %144 = vector.load %arg10[%c0_58, %c0_59, %c0_60] : memref<1x32x2048xbf16, #tpu.memory_space<vmem>>, vector<1x32x2048xbf16>
    %145 = vector.shape_cast %144 : vector<1x32x2048xbf16> to vector<32x2048xbf16>
    %cst_61 = arith.constant dense<0.000000e+00> : vector<8x32xf32>
    %146 = tpu.matmul %143, %145, %cst_61 {dimension_numbers = #tpu.dot_dimension_numbers<[1], [1], [0], [0], [0, 0, 1, 0], [], []>} : vector<8x2048xbf16>, vector<32x2048xbf16>, vector<8x32xf32> -> vector<8x32xf32>
    %c0_62 = arith.constant 0 : index
    %c0_63 = arith.constant 0 : index
    %c0_64 = arith.constant 0 : index
    %147 = vector.load %arg11[%c0_62, %c0_63, %c0_64] : memref<1x1x32xf32, #tpu.memory_space<vmem>>, vector<1x1x32xf32>
    %148 = vector.shape_cast %147 : vector<1x1x32xf32> to vector<1x32xf32>
    %149 = vector.broadcast %148 : vector<1x32xf32> to vector<8x32xf32>
    %150 = arith.addf %146, %149 : vector<8x32xf32>
    %151 = arith.addf %132, %150 : vector<8x32xf32>
    %c0_65 = arith.constant 0 : index
    %c0_66 = arith.constant 0 : index
    %c0_67 = arith.constant 0 : index
    %152 = vector.load %arg12[%c0_65, %c0_66, %c0_67] : memref<1x1x32xf32, #tpu.memory_space<vmem>>, vector<1x1x32xf32>
    %153 = vector.shape_cast %152 : vector<1x1x32xf32> to vector<1x32xf32>
    %c0_68 = arith.constant 0 : index
    %c0_69 = arith.constant 0 : index
    %c0_70 = arith.constant 0 : index
    %154 = vector.load %arg13[%c0_68, %c0_69, %c0_70] : memref<1x1x32xf32, #tpu.memory_space<vmem>>, vector<1x1x32xf32>
    %155 = vector.shape_cast %154 : vector<1x1x32xf32> to vector<1x32xf32>
    %cst_71 = arith.constant dense<0.000000e+00> : vector<8xf32>
    %156 = vector.multi_reduction <add>, %151, %cst_71 [1] : vector<8x32xf32> to vector<8xf32>
    %157 = vector.shape_cast %156 : vector<8xf32> to vector<8x1xf32>
    %cst_72 = arith.constant 3.200000e+01 : f32
    %158 = vector.broadcast %cst_72 : f32 to vector<8x1xf32>
    %159 = arith.divf %157, %158 : vector<8x1xf32>
    %160 = vector.broadcast %159 : vector<8x1xf32> to vector<8x32xf32>
    %161 = arith.subf %151, %160 : vector<8x32xf32>
    %162 = arith.mulf %161, %161 : vector<8x32xf32>
    %cst_73 = arith.constant dense<0.000000e+00> : vector<8xf32>
    %163 = vector.multi_reduction <add>, %162, %cst_73 [1] : vector<8x32xf32> to vector<8xf32>
    %164 = vector.shape_cast %163 : vector<8xf32> to vector<8x1xf32>
    %cst_74 = arith.constant 3.200000e+01 : f32
    %165 = vector.broadcast %cst_74 : f32 to vector<8x1xf32>
    %166 = arith.divf %164, %165 : vector<8x1xf32>
    %167 = vector.broadcast %159 : vector<8x1xf32> to vector<8x32xf32>
    %168 = arith.subf %151, %167 : vector<8x32xf32>
    %cst_75 = arith.constant 9.99999974E-6 : f32
    %169 = vector.broadcast %cst_75 : f32 to vector<8x1xf32>
    %170 = arith.addf %166, %169 : vector<8x1xf32>
    %171 = math.rsqrt %170 : vector<8x1xf32>
    %172 = vector.broadcast %171 : vector<8x1xf32> to vector<8x32xf32>
    %173 = arith.mulf %168, %172 : vector<8x32xf32>
    %174 = vector.broadcast %153 : vector<1x32xf32> to vector<8x32xf32>
    %175 = arith.mulf %173, %174 : vector<8x32xf32>
    %176 = vector.broadcast %155 : vector<1x32xf32> to vector<8x32xf32>
    %177 = arith.addf %175, %176 : vector<8x32xf32>
    %c0_76 = arith.constant 0 : index
    %c0_77 = arith.constant 0 : index
    %178 = vector.load %arg15[%c0_76, %c0_77] : memref<8x32xf32, #tpu.memory_space<vmem>>, vector<8x32xf32>
    tpu.vector_store %arg15[%c0_76, %c0_77], %177 {strides = array<i32>} : memref<8x32xf32, #tpu.memory_space<vmem>>, vector<8x32xf32>,
    %c1_i32 = arith.constant 1 : i32
    %179 = arith.cmpi eq, %arg0, %c1_i32 : i32
    %180 = arith.extui %179 : i1 to i32
    %c0_i32_78 = arith.constant 0 : i32
    %181 = arith.cmpi ne, %180, %c0_i32_78 : i32
    scf.if %181 {
      %c0_79 = arith.constant 0 : index
      %c0_80 = arith.constant 0 : index
      %182 = vector.load %arg14[%c0_79, %c0_80] : memref<8x32xf32, #tpu.memory_space<vmem>>, vector<8x32xf32>
      tpu.vector_store %arg14[%c0_79, %c0_80], %177 {strides = array<i32>} : memref<8x32xf32, #tpu.memory_space<vmem>>, vector<8x32xf32>,
    } else {
    }
    return
  }
  func.func @transform_0(%arg0: i32) -> (i32, i32) {
    %c0_i32 = arith.constant 0 : i32
    %c0_i32_0 = arith.constant 0 : i32
    %c0_i32_1 = arith.constant 0 : i32
    return %c0_i32, %c0_i32_0 : i32, i32
  }
  func.func @transform_1(%arg0: i32) -> (i32, i32, i32) {
    %c0_i32 = arith.constant 0 : i32
    %c0_i32_0 = arith.constant 0 : i32
    %c0_i32_1 = arith.constant 0 : i32
    return %arg0, %c0_i32, %c0_i32_0 : i32, i32, i32
  }
  func.func @transform_2(%arg0: i32) -> (i32, i32, i32) {
    %c0_i32 = arith.constant 0 : i32
    %c0_i32_0 = arith.constant 0 : i32
    %c0_i32_1 = arith.constant 0 : i32
    return %arg0, %c0_i32, %c0_i32_0 : i32, i32, i32
  }
  func.func @transform_3(%arg0: i32) -> (i32, i32, i32) {
    %c0_i32 = arith.constant 0 : i32
    %c0_i32_0 = arith.constant 0 : i32
    %c0_i32_1 = arith.constant 0 : i32
    return %arg0, %c0_i32, %c0_i32_0 : i32, i32, i32
  }
  func.func @transform_4(%arg0: i32) -> (i32, i32, i32) {
    %c0_i32 = arith.constant 0 : i32
    %c0_i32_0 = arith.constant 0 : i32
    %c0_i32_1 = arith.constant 0 : i32
    return %arg0, %c0_i32, %c0_i32_0 : i32, i32, i32
  }
  func.func @transform_5(%arg0: i32) -> (i32, i32, i32) {
    %c0_i32 = arith.constant 0 : i32
    %c0_i32_0 = arith.constant 0 : i32
    %c0_i32_1 = arith.constant 0 : i32
    return %arg0, %c0_i32, %c0_i32_0 : i32, i32, i32
  }
  func.func @transform_6(%arg0: i32) -> (i32, i32, i32) {
    %c0_i32 = arith.constant 0 : i32
    %c0_i32_0 = arith.constant 0 : i32
    %c0_i32_1 = arith.constant 0 : i32
    return %arg0, %c0_i32, %c0_i32_0 : i32, i32, i32
  }
  func.func @transform_7(%arg0: i32) -> (i32, i32, i32) {
    %c0_i32 = arith.constant 0 : i32
    %c0_i32_0 = arith.constant 0 : i32
    %c0_i32_1 = arith.constant 0 : i32
    return %arg0, %c0_i32, %c0_i32_0 : i32, i32, i32
  }
  func.func @transform_8(%arg0: i32) -> (i32, i32, i32) {
    %c0_i32 = arith.constant 0 : i32
    %c0_i32_0 = arith.constant 0 : i32
    %c0_i32_1 = arith.constant 0 : i32
    return %arg0, %c0_i32, %c0_i32_0 : i32, i32, i32
  }
  func.func @transform_9(%arg0: i32) -> (i32, i32, i32) {
    %c0_i32 = arith.constant 0 : i32
    %c0_i32_0 = arith.constant 0 : i32
    %c0_i32_1 = arith.constant 0 : i32
    return %arg0, %c0_i32, %c0_i32_0 : i32, i32, i32
  }
  func.func @transform_10(%arg0: i32) -> (i32, i32, i32) {
    %c0_i32 = arith.constant 0 : i32
    %c0_i32_0 = arith.constant 0 : i32
    %c0_i32_1 = arith.constant 0 : i32
    return %arg0, %c0_i32, %c0_i32_0 : i32, i32, i32
  }
  func.func @transform_11(%arg0: i32) -> (i32, i32, i32) {
    %c0_i32 = arith.constant 0 : i32
    %c0_i32_0 = arith.constant 0 : i32
    %c0_i32_1 = arith.constant 0 : i32
    return %arg0, %c0_i32, %c0_i32_0 : i32, i32, i32
  }
  func.func @transform_12(%arg0: i32) -> (i32, i32, i32) {
    %c0_i32 = arith.constant 0 : i32
    %c0_i32_0 = arith.constant 0 : i32
    %c0_i32_1 = arith.constant 0 : i32
    return %arg0, %c0_i32, %c0_i32_0 : i32, i32, i32
  }
  func.func @transform_13(%arg0: i32) -> (i32, i32) {
    %c0_i32 = arith.constant 0 : i32
    %c0_i32_0 = arith.constant 0 : i32
    %c0_i32_1 = arith.constant 0 : i32
    return %c0_i32, %c0_i32_0 : i32, i32
  }
}

module attributes {stable_mosaic.version = 11 : i64} {
  func.func @_encoder_stack_kernel(%arg0: i32, %arg1: memref<9x32xf32, #tpu.memory_space<vmem>>, %arg2: memref<1x32x96xbf16, #tpu.memory_space<vmem>>, %arg3: memref<1x1x96xf32, #tpu.memory_space<vmem>>, %arg4: memref<1x32x32xbf16, #tpu.memory_space<vmem>>, %arg5: memref<1x1x32xf32, #tpu.memory_space<vmem>>, %arg6: memref<1x1x32xf32, #tpu.memory_space<vmem>>, %arg7: memref<1x1x32xf32, #tpu.memory_space<vmem>>, %arg8: memref<1x32x2048xbf16, #tpu.memory_space<vmem>>, %arg9: memref<1x1x2048xf32, #tpu.memory_space<vmem>>, %arg10: memref<1x32x2048xbf16, #tpu.memory_space<vmem>>, %arg11: memref<1x1x32xf32, #tpu.memory_space<vmem>>, %arg12: memref<1x1x32xf32, #tpu.memory_space<vmem>>, %arg13: memref<1x1x32xf32, #tpu.memory_space<vmem>>, %arg14: memref<9x32xf32, #tpu.memory_space<vmem>>, %arg15: memref<9x32xf32, #tpu.memory_space<vmem>>) attributes {dimension_semantics = [#tpu.dimension_semantics<arbitrary>], iteration_bounds = array<i64: 2>, scalar_prefetch = 0 : i64, scratch_operands = 1 : i64, tpu.core_type = #tpu.core_type<tc>, window_params = [{pipeline_mode = #tpu.pipeline_mode<synchronous>, transform_indices = @transform_0, window_bounds = array<i64: 9, 32>}, {transform_indices = @transform_1, window_bounds = array<i64: 1, 32, 96>}, {transform_indices = @transform_2, window_bounds = array<i64: 1, 1, 96>}, {transform_indices = @transform_3, window_bounds = array<i64: 1, 32, 32>}, {transform_indices = @transform_4, window_bounds = array<i64: 1, 1, 32>}, {transform_indices = @transform_5, window_bounds = array<i64: 1, 1, 32>}, {transform_indices = @transform_6, window_bounds = array<i64: 1, 1, 32>}, {transform_indices = @transform_7, window_bounds = array<i64: 1, 32, 2048>}, {transform_indices = @transform_8, window_bounds = array<i64: 1, 1, 2048>}, {transform_indices = @transform_9, window_bounds = array<i64: 1, 32, 2048>}, {transform_indices = @transform_10, window_bounds = array<i64: 1, 1, 32>}, {transform_indices = @transform_11, window_bounds = array<i64: 1, 1, 32>}, {transform_indices = @transform_12, window_bounds = array<i64: 1, 1, 32>}, {pipeline_mode = #tpu.pipeline_mode<synchronous>, transform_indices = @transform_13, window_bounds = array<i64: 9, 32>}]} {
    %c0_i32 = arith.constant 0 : i32
    %0 = arith.cmpi eq, %arg0, %c0_i32 : i32
    %1 = arith.extui %0 : i1 to i32
    %c0_i32_0 = arith.constant 0 : i32
    %2 = arith.cmpi ne, %1, %c0_i32_0 : i32
    scf.if %2 {
      %c0_79 = arith.constant 0 : index
      %c0_80 = arith.constant 0 : index
      %182 = vector.load %arg1[%c0_79, %c0_80] : memref<9x32xf32, #tpu.memory_space<vmem>>, vector<9x32xf32>
      %c0_81 = arith.constant 0 : index
      %c0_82 = arith.constant 0 : index
      %183 = vector.load %arg15[%c0_81, %c0_82] : memref<9x32xf32, #tpu.memory_space<vmem>>, vector<9x32xf32>
      tpu.vector_store %arg15[%c0_81, %c0_82], %182 {strides = array<i32>} : memref<9x32xf32, #tpu.memory_space<vmem>>, vector<9x32xf32>,
    } else {
    }
    %c0 = arith.constant 0 : index
    %c0_1 = arith.constant 0 : index
    %3 = vector.load %arg15[%c0, %c0_1] : memref<9x32xf32, #tpu.memory_space<vmem>>, vector<9x32xf32>
    %4 = arith.truncf %3 : vector<9x32xf32> to vector<9x32xbf16>
    %c0_2 = arith.constant 0 : index
    %c0_3 = arith.constant 0 : index
    %c0_4 = arith.constant 0 : index
    %5 = vector.load %arg2[%c0_2, %c0_3, %c0_4] : memref<1x32x96xbf16, #tpu.memory_space<vmem>>, vector<1x32x96xbf16>
    %6 = vector.shape_cast %5 : vector<1x32x96xbf16> to vector<32x96xbf16>
    %cst = arith.constant dense<0.000000e+00> : vector<9x96xf32>
    %7 = tpu.matmul %4, %6, %cst {dimension_numbers = #tpu.dot_dimension_numbers<[1], [0], [0], [1], [0, 0, 1, 1], [], []>} : vector<9x32xbf16>, vector<32x96xbf16>, vector<9x96xf32> -> vector<9x96xf32>
    %c0_5 = arith.constant 0 : index
    %c0_6 = arith.constant 0 : index
    %c0_7 = arith.constant 0 : index
    %8 = vector.load %arg3[%c0_5, %c0_6, %c0_7] : memref<1x1x96xf32, #tpu.memory_space<vmem>>, vector<1x1x96xf32>
    %9 = vector.shape_cast %8 : vector<1x1x96xf32> to vector<1x96xf32>
    %10 = vector.broadcast %9 : vector<1x96xf32> to vector<9x96xf32>
    %11 = arith.addf %7, %10 : vector<9x96xf32>
    %12 = vector.extract_strided_slice %11 {offsets = [0, 0], sizes = [9, 32], strides = [1, 1]} : vector<9x96xf32> to vector<9x32xf32>
    %13 = vector.extract_strided_slice %11 {offsets = [0, 32], sizes = [9, 32], strides = [1, 1]} : vector<9x96xf32> to vector<9x32xf32>
    %14 = vector.extract_strided_slice %11 {offsets = [0, 64], sizes = [9, 32], strides = [1, 1]} : vector<9x96xf32> to vector<9x32xf32>
    %c0_8 = arith.constant 0 : index
    %c0_9 = arith.constant 0 : index
    %c0_10 = arith.constant 0 : index
    %15 = vector.load %arg4[%c0_8, %c0_9, %c0_10] : memref<1x32x32xbf16, #tpu.memory_space<vmem>>, vector<1x32x32xbf16>
    %16 = vector.shape_cast %15 : vector<1x32x32xbf16> to vector<32x32xbf16>
    %cst_11 = arith.constant 0.000000e+00 : f32
    %17 = vector.broadcast %cst_11 : f32 to vector<9x32xf32>
    %18 = vector.extract_strided_slice %12 {offsets = [0, 0], sizes = [9, 8], strides = [1, 1]} : vector<9x32xf32> to vector<9x8xf32>
    %19 = vector.extract_strided_slice %13 {offsets = [0, 0], sizes = [9, 8], strides = [1, 1]} : vector<9x32xf32> to vector<9x8xf32>
    %20 = vector.extract_strided_slice %14 {offsets = [0, 0], sizes = [9, 8], strides = [1, 1]} : vector<9x32xf32> to vector<9x8xf32>
    %cst_12 = arith.constant dense<0.000000e+00> : vector<9x9xf32>
    %21 = tpu.matmul %18, %19, %cst_12 {dimension_numbers = #tpu.dot_dimension_numbers<[1], [1], [0], [0], [0, 0, 1, 0], [], []>} : vector<9x8xf32>, vector<9x8xf32>, vector<9x9xf32> -> vector<9x9xf32>
    %cst_13 = arith.constant 0.353553385 : f32
    %22 = vector.broadcast %cst_13 : f32 to vector<9x9xf32>
    %23 = arith.mulf %21, %22 : vector<9x9xf32>
    %cst_14 = arith.constant dense<0xFF800000> : vector<9xf32>
    %24 = vector.multi_reduction <maximumf>, %23, %cst_14 [1] : vector<9x9xf32> to vector<9xf32>
    %25 = vector.shape_cast %24 : vector<9xf32> to vector<9x1xf32>
    %26 = vector.broadcast %25 : vector<9x1xf32> to vector<9x9xf32>
    %27 = arith.subf %23, %26 : vector<9x9xf32>
    %28 = math.exp %27 : vector<9x9xf32>
    %cst_15 = arith.constant dense<0.000000e+00> : vector<9xf32>
    %29 = vector.multi_reduction <add>, %28, %cst_15 [1] : vector<9x9xf32> to vector<9xf32>
    %30 = vector.shape_cast %29 : vector<9xf32> to vector<9x1xf32>
    %31 = tpu.reciprocal %30 {approx = true} : vector<9x1xf32> -> vector<9x1xf32>
    %32 = vector.broadcast %31 : vector<9x1xf32> to vector<9x9xf32>
    %33 = arith.mulf %28, %32 : vector<9x9xf32>
    %cst_16 = arith.constant dense<0.000000e+00> : vector<9x8xf32>
    %34 = tpu.matmul %33, %20, %cst_16 {dimension_numbers = #tpu.dot_dimension_numbers<[1], [0], [0], [1], [0, 0, 1, 1], [], []>} : vector<9x9xf32>, vector<9x8xf32>, vector<9x8xf32> -> vector<9x8xf32>
    %35 = arith.truncf %34 : vector<9x8xf32> to vector<9x8xbf16>
    %36 = vector.extract_strided_slice %16 {offsets = [0, 0], sizes = [8, 32], strides = [1, 1]} : vector<32x32xbf16> to vector<8x32xbf16>
    %cst_17 = arith.constant dense<0.000000e+00> : vector<9x32xf32>
    %37 = tpu.matmul %35, %36, %cst_17 {dimension_numbers = #tpu.dot_dimension_numbers<[1], [0], [0], [1], [0, 0, 1, 1], [], []>} : vector<9x8xbf16>, vector<8x32xbf16>, vector<9x32xf32> -> vector<9x32xf32>
    %38 = arith.addf %17, %37 : vector<9x32xf32>
    %39 = vector.extract_strided_slice %12 {offsets = [0, 8], sizes = [9, 8], strides = [1, 1]} : vector<9x32xf32> to vector<9x8xf32>
    %40 = vector.extract_strided_slice %13 {offsets = [0, 8], sizes = [9, 8], strides = [1, 1]} : vector<9x32xf32> to vector<9x8xf32>
    %41 = vector.extract_strided_slice %14 {offsets = [0, 8], sizes = [9, 8], strides = [1, 1]} : vector<9x32xf32> to vector<9x8xf32>
    %cst_18 = arith.constant dense<0.000000e+00> : vector<9x9xf32>
    %42 = tpu.matmul %39, %40, %cst_18 {dimension_numbers = #tpu.dot_dimension_numbers<[1], [1], [0], [0], [0, 0, 1, 0], [], []>} : vector<9x8xf32>, vector<9x8xf32>, vector<9x9xf32> -> vector<9x9xf32>
    %cst_19 = arith.constant 0.353553385 : f32
    %43 = vector.broadcast %cst_19 : f32 to vector<9x9xf32>
    %44 = arith.mulf %42, %43 : vector<9x9xf32>
    %cst_20 = arith.constant dense<0xFF800000> : vector<9xf32>
    %45 = vector.multi_reduction <maximumf>, %44, %cst_20 [1] : vector<9x9xf32> to vector<9xf32>
    %46 = vector.shape_cast %45 : vector<9xf32> to vector<9x1xf32>
    %47 = vector.broadcast %46 : vector<9x1xf32> to vector<9x9xf32>
    %48 = arith.subf %44, %47 : vector<9x9xf32>
    %49 = math.exp %48 : vector<9x9xf32>
    %cst_21 = arith.constant dense<0.000000e+00> : vector<9xf32>
    %50 = vector.multi_reduction <add>, %49, %cst_21 [1] : vector<9x9xf32> to vector<9xf32>
    %51 = vector.shape_cast %50 : vector<9xf32> to vector<9x1xf32>
    %52 = tpu.reciprocal %51 {approx = true} : vector<9x1xf32> -> vector<9x1xf32>
    %53 = vector.broadcast %52 : vector<9x1xf32> to vector<9x9xf32>
    %54 = arith.mulf %49, %53 : vector<9x9xf32>
    %cst_22 = arith.constant dense<0.000000e+00> : vector<9x8xf32>
    %55 = tpu.matmul %54, %41, %cst_22 {dimension_numbers = #tpu.dot_dimension_numbers<[1], [0], [0], [1], [0, 0, 1, 1], [], []>} : vector<9x9xf32>, vector<9x8xf32>, vector<9x8xf32> -> vector<9x8xf32>
    %56 = arith.truncf %55 : vector<9x8xf32> to vector<9x8xbf16>
    %57 = vector.extract_strided_slice %16 {offsets = [8, 0], sizes = [8, 32], strides = [1, 1]} : vector<32x32xbf16> to vector<8x32xbf16>
    %cst_23 = arith.constant dense<0.000000e+00> : vector<9x32xf32>
    %58 = tpu.matmul %56, %57, %cst_23 {dimension_numbers = #tpu.dot_dimension_numbers<[1], [0], [0], [1], [0, 0, 1, 1], [], []>} : vector<9x8xbf16>, vector<8x32xbf16>, vector<9x32xf32> -> vector<9x32xf32>
    %59 = arith.addf %38, %58 : vector<9x32xf32>
    %60 = vector.extract_strided_slice %12 {offsets = [0, 16], sizes = [9, 8], strides = [1, 1]} : vector<9x32xf32> to vector<9x8xf32>
    %61 = vector.extract_strided_slice %13 {offsets = [0, 16], sizes = [9, 8], strides = [1, 1]} : vector<9x32xf32> to vector<9x8xf32>
    %62 = vector.extract_strided_slice %14 {offsets = [0, 16], sizes = [9, 8], strides = [1, 1]} : vector<9x32xf32> to vector<9x8xf32>
    %cst_24 = arith.constant dense<0.000000e+00> : vector<9x9xf32>
    %63 = tpu.matmul %60, %61, %cst_24 {dimension_numbers = #tpu.dot_dimension_numbers<[1], [1], [0], [0], [0, 0, 1, 0], [], []>} : vector<9x8xf32>, vector<9x8xf32>, vector<9x9xf32> -> vector<9x9xf32>
    %cst_25 = arith.constant 0.353553385 : f32
    %64 = vector.broadcast %cst_25 : f32 to vector<9x9xf32>
    %65 = arith.mulf %63, %64 : vector<9x9xf32>
    %cst_26 = arith.constant dense<0xFF800000> : vector<9xf32>
    %66 = vector.multi_reduction <maximumf>, %65, %cst_26 [1] : vector<9x9xf32> to vector<9xf32>
    %67 = vector.shape_cast %66 : vector<9xf32> to vector<9x1xf32>
    %68 = vector.broadcast %67 : vector<9x1xf32> to vector<9x9xf32>
    %69 = arith.subf %65, %68 : vector<9x9xf32>
    %70 = math.exp %69 : vector<9x9xf32>
    %cst_27 = arith.constant dense<0.000000e+00> : vector<9xf32>
    %71 = vector.multi_reduction <add>, %70, %cst_27 [1] : vector<9x9xf32> to vector<9xf32>
    %72 = vector.shape_cast %71 : vector<9xf32> to vector<9x1xf32>
    %73 = tpu.reciprocal %72 {approx = true} : vector<9x1xf32> -> vector<9x1xf32>
    %74 = vector.broadcast %73 : vector<9x1xf32> to vector<9x9xf32>
    %75 = arith.mulf %70, %74 : vector<9x9xf32>
    %cst_28 = arith.constant dense<0.000000e+00> : vector<9x8xf32>
    %76 = tpu.matmul %75, %62, %cst_28 {dimension_numbers = #tpu.dot_dimension_numbers<[1], [0], [0], [1], [0, 0, 1, 1], [], []>} : vector<9x9xf32>, vector<9x8xf32>, vector<9x8xf32> -> vector<9x8xf32>
    %77 = arith.truncf %76 : vector<9x8xf32> to vector<9x8xbf16>
    %78 = vector.extract_strided_slice %16 {offsets = [16, 0], sizes = [8, 32], strides = [1, 1]} : vector<32x32xbf16> to vector<8x32xbf16>
    %cst_29 = arith.constant dense<0.000000e+00> : vector<9x32xf32>
    %79 = tpu.matmul %77, %78, %cst_29 {dimension_numbers = #tpu.dot_dimension_numbers<[1], [0], [0], [1], [0, 0, 1, 1], [], []>} : vector<9x8xbf16>, vector<8x32xbf16>, vector<9x32xf32> -> vector<9x32xf32>
    %80 = arith.addf %59, %79 : vector<9x32xf32>
    %81 = vector.extract_strided_slice %12 {offsets = [0, 24], sizes = [9, 8], strides = [1, 1]} : vector<9x32xf32> to vector<9x8xf32>
    %82 = vector.extract_strided_slice %13 {offsets = [0, 24], sizes = [9, 8], strides = [1, 1]} : vector<9x32xf32> to vector<9x8xf32>
    %83 = vector.extract_strided_slice %14 {offsets = [0, 24], sizes = [9, 8], strides = [1, 1]} : vector<9x32xf32> to vector<9x8xf32>
    %cst_30 = arith.constant dense<0.000000e+00> : vector<9x9xf32>
    %84 = tpu.matmul %81, %82, %cst_30 {dimension_numbers = #tpu.dot_dimension_numbers<[1], [1], [0], [0], [0, 0, 1, 0], [], []>} : vector<9x8xf32>, vector<9x8xf32>, vector<9x9xf32> -> vector<9x9xf32>
    %cst_31 = arith.constant 0.353553385 : f32
    %85 = vector.broadcast %cst_31 : f32 to vector<9x9xf32>
    %86 = arith.mulf %84, %85 : vector<9x9xf32>
    %cst_32 = arith.constant dense<0xFF800000> : vector<9xf32>
    %87 = vector.multi_reduction <maximumf>, %86, %cst_32 [1] : vector<9x9xf32> to vector<9xf32>
    %88 = vector.shape_cast %87 : vector<9xf32> to vector<9x1xf32>
    %89 = vector.broadcast %88 : vector<9x1xf32> to vector<9x9xf32>
    %90 = arith.subf %86, %89 : vector<9x9xf32>
    %91 = math.exp %90 : vector<9x9xf32>
    %cst_33 = arith.constant dense<0.000000e+00> : vector<9xf32>
    %92 = vector.multi_reduction <add>, %91, %cst_33 [1] : vector<9x9xf32> to vector<9xf32>
    %93 = vector.shape_cast %92 : vector<9xf32> to vector<9x1xf32>
    %94 = tpu.reciprocal %93 {approx = true} : vector<9x1xf32> -> vector<9x1xf32>
    %95 = vector.broadcast %94 : vector<9x1xf32> to vector<9x9xf32>
    %96 = arith.mulf %91, %95 : vector<9x9xf32>
    %cst_34 = arith.constant dense<0.000000e+00> : vector<9x8xf32>
    %97 = tpu.matmul %96, %83, %cst_34 {dimension_numbers = #tpu.dot_dimension_numbers<[1], [0], [0], [1], [0, 0, 1, 1], [], []>} : vector<9x9xf32>, vector<9x8xf32>, vector<9x8xf32> -> vector<9x8xf32>
    %98 = arith.truncf %97 : vector<9x8xf32> to vector<9x8xbf16>
    %99 = vector.extract_strided_slice %16 {offsets = [24, 0], sizes = [8, 32], strides = [1, 1]} : vector<32x32xbf16> to vector<8x32xbf16>
    %cst_35 = arith.constant dense<0.000000e+00> : vector<9x32xf32>
    %100 = tpu.matmul %98, %99, %cst_35 {dimension_numbers = #tpu.dot_dimension_numbers<[1], [0], [0], [1], [0, 0, 1, 1], [], []>} : vector<9x8xbf16>, vector<8x32xbf16>, vector<9x32xf32> -> vector<9x32xf32>
    %101 = arith.addf %80, %100 : vector<9x32xf32>
    %c0_36 = arith.constant 0 : index
    %c0_37 = arith.constant 0 : index
    %c0_38 = arith.constant 0 : index
    %102 = vector.load %arg5[%c0_36, %c0_37, %c0_38] : memref<1x1x32xf32, #tpu.memory_space<vmem>>, vector<1x1x32xf32>
    %103 = vector.shape_cast %102 : vector<1x1x32xf32> to vector<1x32xf32>
    %104 = vector.broadcast %103 : vector<1x32xf32> to vector<9x32xf32>
    %105 = arith.addf %101, %104 : vector<9x32xf32>
    %106 = arith.addf %3, %105 : vector<9x32xf32>
    %c0_39 = arith.constant 0 : index
    %c0_40 = arith.constant 0 : index
    %c0_41 = arith.constant 0 : index
    %107 = vector.load %arg6[%c0_39, %c0_40, %c0_41] : memref<1x1x32xf32, #tpu.memory_space<vmem>>, vector<1x1x32xf32>
    %108 = vector.shape_cast %107 : vector<1x1x32xf32> to vector<1x32xf32>
    %c0_42 = arith.constant 0 : index
    %c0_43 = arith.constant 0 : index
    %c0_44 = arith.constant 0 : index
    %109 = vector.load %arg7[%c0_42, %c0_43, %c0_44] : memref<1x1x32xf32, #tpu.memory_space<vmem>>, vector<1x1x32xf32>
    %110 = vector.shape_cast %109 : vector<1x1x32xf32> to vector<1x32xf32>
    %cst_45 = arith.constant dense<0.000000e+00> : vector<9xf32>
    %111 = vector.multi_reduction <add>, %106, %cst_45 [1] : vector<9x32xf32> to vector<9xf32>
    %112 = vector.shape_cast %111 : vector<9xf32> to vector<9x1xf32>
    %cst_46 = arith.constant 3.200000e+01 : f32
    %113 = vector.broadcast %cst_46 : f32 to vector<9x1xf32>
    %114 = arith.divf %112, %113 : vector<9x1xf32>
    %115 = vector.broadcast %114 : vector<9x1xf32> to vector<9x32xf32>
    %116 = arith.subf %106, %115 : vector<9x32xf32>
    %117 = arith.mulf %116, %116 : vector<9x32xf32>
    %cst_47 = arith.constant dense<0.000000e+00> : vector<9xf32>
    %118 = vector.multi_reduction <add>, %117, %cst_47 [1] : vector<9x32xf32> to vector<9xf32>
    %119 = vector.shape_cast %118 : vector<9xf32> to vector<9x1xf32>
    %cst_48 = arith.constant 3.200000e+01 : f32
    %120 = vector.broadcast %cst_48 : f32 to vector<9x1xf32>
    %121 = arith.divf %119, %120 : vector<9x1xf32>
    %122 = vector.broadcast %114 : vector<9x1xf32> to vector<9x32xf32>
    %123 = arith.subf %106, %122 : vector<9x32xf32>
    %cst_49 = arith.constant 9.99999974E-6 : f32
    %124 = vector.broadcast %cst_49 : f32 to vector<9x1xf32>
    %125 = arith.addf %121, %124 : vector<9x1xf32>
    %126 = math.rsqrt %125 : vector<9x1xf32>
    %127 = vector.broadcast %126 : vector<9x1xf32> to vector<9x32xf32>
    %128 = arith.mulf %123, %127 : vector<9x32xf32>
    %129 = vector.broadcast %108 : vector<1x32xf32> to vector<9x32xf32>
    %130 = arith.mulf %128, %129 : vector<9x32xf32>
    %131 = vector.broadcast %110 : vector<1x32xf32> to vector<9x32xf32>
    %132 = arith.addf %130, %131 : vector<9x32xf32>
    %133 = arith.truncf %132 : vector<9x32xf32> to vector<9x32xbf16>
    %c0_50 = arith.constant 0 : index
    %c0_51 = arith.constant 0 : index
    %c0_52 = arith.constant 0 : index
    %134 = vector.load %arg8[%c0_50, %c0_51, %c0_52] : memref<1x32x2048xbf16, #tpu.memory_space<vmem>>, vector<1x32x2048xbf16>
    %135 = vector.shape_cast %134 : vector<1x32x2048xbf16> to vector<32x2048xbf16>
    %cst_53 = arith.constant dense<0.000000e+00> : vector<9x2048xf32>
    %136 = tpu.matmul %133, %135, %cst_53 {dimension_numbers = #tpu.dot_dimension_numbers<[1], [0], [0], [1], [0, 0, 1, 1], [], []>} : vector<9x32xbf16>, vector<32x2048xbf16>, vector<9x2048xf32> -> vector<9x2048xf32>
    %c0_54 = arith.constant 0 : index
    %c0_55 = arith.constant 0 : index
    %c0_56 = arith.constant 0 : index
    %137 = vector.load %arg9[%c0_54, %c0_55, %c0_56] : memref<1x1x2048xf32, #tpu.memory_space<vmem>>, vector<1x1x2048xf32>
    %138 = vector.shape_cast %137 : vector<1x1x2048xf32> to vector<1x2048xf32>
    %139 = vector.broadcast %138 : vector<1x2048xf32> to vector<9x2048xf32>
    %140 = arith.addf %136, %139 : vector<9x2048xf32>
    %cst_57 = arith.constant 0.000000e+00 : f32
    %141 = vector.broadcast %cst_57 : f32 to vector<9x2048xf32>
    %142 = arith.maximumf %140, %141 : vector<9x2048xf32>
    %143 = arith.truncf %142 : vector<9x2048xf32> to vector<9x2048xbf16>
    %c0_58 = arith.constant 0 : index
    %c0_59 = arith.constant 0 : index
    %c0_60 = arith.constant 0 : index
    %144 = vector.load %arg10[%c0_58, %c0_59, %c0_60] : memref<1x32x2048xbf16, #tpu.memory_space<vmem>>, vector<1x32x2048xbf16>
    %145 = vector.shape_cast %144 : vector<1x32x2048xbf16> to vector<32x2048xbf16>
    %cst_61 = arith.constant dense<0.000000e+00> : vector<9x32xf32>
    %146 = tpu.matmul %143, %145, %cst_61 {dimension_numbers = #tpu.dot_dimension_numbers<[1], [1], [0], [0], [0, 0, 1, 0], [], []>} : vector<9x2048xbf16>, vector<32x2048xbf16>, vector<9x32xf32> -> vector<9x32xf32>
    %c0_62 = arith.constant 0 : index
    %c0_63 = arith.constant 0 : index
    %c0_64 = arith.constant 0 : index
    %147 = vector.load %arg11[%c0_62, %c0_63, %c0_64] : memref<1x1x32xf32, #tpu.memory_space<vmem>>, vector<1x1x32xf32>
    %148 = vector.shape_cast %147 : vector<1x1x32xf32> to vector<1x32xf32>
    %149 = vector.broadcast %148 : vector<1x32xf32> to vector<9x32xf32>
    %150 = arith.addf %146, %149 : vector<9x32xf32>
    %151 = arith.addf %132, %150 : vector<9x32xf32>
    %c0_65 = arith.constant 0 : index
    %c0_66 = arith.constant 0 : index
    %c0_67 = arith.constant 0 : index
    %152 = vector.load %arg12[%c0_65, %c0_66, %c0_67] : memref<1x1x32xf32, #tpu.memory_space<vmem>>, vector<1x1x32xf32>
    %153 = vector.shape_cast %152 : vector<1x1x32xf32> to vector<1x32xf32>
    %c0_68 = arith.constant 0 : index
    %c0_69 = arith.constant 0 : index
    %c0_70 = arith.constant 0 : index
    %154 = vector.load %arg13[%c0_68, %c0_69, %c0_70] : memref<1x1x32xf32, #tpu.memory_space<vmem>>, vector<1x1x32xf32>
    %155 = vector.shape_cast %154 : vector<1x1x32xf32> to vector<1x32xf32>
    %cst_71 = arith.constant dense<0.000000e+00> : vector<9xf32>
    %156 = vector.multi_reduction <add>, %151, %cst_71 [1] : vector<9x32xf32> to vector<9xf32>
    %157 = vector.shape_cast %156 : vector<9xf32> to vector<9x1xf32>
    %cst_72 = arith.constant 3.200000e+01 : f32
    %158 = vector.broadcast %cst_72 : f32 to vector<9x1xf32>
    %159 = arith.divf %157, %158 : vector<9x1xf32>
    %160 = vector.broadcast %159 : vector<9x1xf32> to vector<9x32xf32>
    %161 = arith.subf %151, %160 : vector<9x32xf32>
    %162 = arith.mulf %161, %161 : vector<9x32xf32>
    %cst_73 = arith.constant dense<0.000000e+00> : vector<9xf32>
    %163 = vector.multi_reduction <add>, %162, %cst_73 [1] : vector<9x32xf32> to vector<9xf32>
    %164 = vector.shape_cast %163 : vector<9xf32> to vector<9x1xf32>
    %cst_74 = arith.constant 3.200000e+01 : f32
    %165 = vector.broadcast %cst_74 : f32 to vector<9x1xf32>
    %166 = arith.divf %164, %165 : vector<9x1xf32>
    %167 = vector.broadcast %159 : vector<9x1xf32> to vector<9x32xf32>
    %168 = arith.subf %151, %167 : vector<9x32xf32>
    %cst_75 = arith.constant 9.99999974E-6 : f32
    %169 = vector.broadcast %cst_75 : f32 to vector<9x1xf32>
    %170 = arith.addf %166, %169 : vector<9x1xf32>
    %171 = math.rsqrt %170 : vector<9x1xf32>
    %172 = vector.broadcast %171 : vector<9x1xf32> to vector<9x32xf32>
    %173 = arith.mulf %168, %172 : vector<9x32xf32>
    %174 = vector.broadcast %153 : vector<1x32xf32> to vector<9x32xf32>
    %175 = arith.mulf %173, %174 : vector<9x32xf32>
    %176 = vector.broadcast %155 : vector<1x32xf32> to vector<9x32xf32>
    %177 = arith.addf %175, %176 : vector<9x32xf32>
    %c0_76 = arith.constant 0 : index
    %c0_77 = arith.constant 0 : index
    %178 = vector.load %arg15[%c0_76, %c0_77] : memref<9x32xf32, #tpu.memory_space<vmem>>, vector<9x32xf32>
    tpu.vector_store %arg15[%c0_76, %c0_77], %177 {strides = array<i32>} : memref<9x32xf32, #tpu.memory_space<vmem>>, vector<9x32xf32>,
    %c1_i32 = arith.constant 1 : i32
    %179 = arith.cmpi eq, %arg0, %c1_i32 : i32
    %180 = arith.extui %179 : i1 to i32
    %c0_i32_78 = arith.constant 0 : i32
    %181 = arith.cmpi ne, %180, %c0_i32_78 : i32
    scf.if %181 {
      %c0_79 = arith.constant 0 : index
      %c0_80 = arith.constant 0 : index
      %182 = vector.load %arg14[%c0_79, %c0_80] : memref<9x32xf32, #tpu.memory_space<vmem>>, vector<9x32xf32>
      tpu.vector_store %arg14[%c0_79, %c0_80], %177 {strides = array<i32>} : memref<9x32xf32, #tpu.memory_space<vmem>>, vector<9x32xf32>,
    } else {
    }
    return
  }
  func.func @transform_0(%arg0: i32) -> (i32, i32) {
    %c0_i32 = arith.constant 0 : i32
    %c0_i32_0 = arith.constant 0 : i32
    %c0_i32_1 = arith.constant 0 : i32
    return %c0_i32, %c0_i32_0 : i32, i32
  }
  func.func @transform_1(%arg0: i32) -> (i32, i32, i32) {
    %c0_i32 = arith.constant 0 : i32
    %c0_i32_0 = arith.constant 0 : i32
    %c0_i32_1 = arith.constant 0 : i32
    return %arg0, %c0_i32, %c0_i32_0 : i32, i32, i32
  }
  func.func @transform_2(%arg0: i32) -> (i32, i32, i32) {
    %c0_i32 = arith.constant 0 : i32
    %c0_i32_0 = arith.constant 0 : i32
    %c0_i32_1 = arith.constant 0 : i32
    return %arg0, %c0_i32, %c0_i32_0 : i32, i32, i32
  }
  func.func @transform_3(%arg0: i32) -> (i32, i32, i32) {
    %c0_i32 = arith.constant 0 : i32
    %c0_i32_0 = arith.constant 0 : i32
    %c0_i32_1 = arith.constant 0 : i32
    return %arg0, %c0_i32, %c0_i32_0 : i32, i32, i32
  }
  func.func @transform_4(%arg0: i32) -> (i32, i32, i32) {
    %c0_i32 = arith.constant 0 : i32
    %c0_i32_0 = arith.constant 0 : i32
    %c0_i32_1 = arith.constant 0 : i32
    return %arg0, %c0_i32, %c0_i32_0 : i32, i32, i32
  }
  func.func @transform_5(%arg0: i32) -> (i32, i32, i32) {
    %c0_i32 = arith.constant 0 : i32
    %c0_i32_0 = arith.constant 0 : i32
    %c0_i32_1 = arith.constant 0 : i32
    return %arg0, %c0_i32, %c0_i32_0 : i32, i32, i32
  }
  func.func @transform_6(%arg0: i32) -> (i32, i32, i32) {
    %c0_i32 = arith.constant 0 : i32
    %c0_i32_0 = arith.constant 0 : i32
    %c0_i32_1 = arith.constant 0 : i32
    return %arg0, %c0_i32, %c0_i32_0 : i32, i32, i32
  }
  func.func @transform_7(%arg0: i32) -> (i32, i32, i32) {
    %c0_i32 = arith.constant 0 : i32
    %c0_i32_0 = arith.constant 0 : i32
    %c0_i32_1 = arith.constant 0 : i32
    return %arg0, %c0_i32, %c0_i32_0 : i32, i32, i32
  }
  func.func @transform_8(%arg0: i32) -> (i32, i32, i32) {
    %c0_i32 = arith.constant 0 : i32
    %c0_i32_0 = arith.constant 0 : i32
    %c0_i32_1 = arith.constant 0 : i32
    return %arg0, %c0_i32, %c0_i32_0 : i32, i32, i32
  }
  func.func @transform_9(%arg0: i32) -> (i32, i32, i32) {
    %c0_i32 = arith.constant 0 : i32
    %c0_i32_0 = arith.constant 0 : i32
    %c0_i32_1 = arith.constant 0 : i32
    return %arg0, %c0_i32, %c0_i32_0 : i32, i32, i32
  }
  func.func @transform_10(%arg0: i32) -> (i32, i32, i32) {
    %c0_i32 = arith.constant 0 : i32
    %c0_i32_0 = arith.constant 0 : i32
    %c0_i32_1 = arith.constant 0 : i32
    return %arg0, %c0_i32, %c0_i32_0 : i32, i32, i32
  }
  func.func @transform_11(%arg0: i32) -> (i32, i32, i32) {
    %c0_i32 = arith.constant 0 : i32
    %c0_i32_0 = arith.constant 0 : i32
    %c0_i32_1 = arith.constant 0 : i32
    return %arg0, %c0_i32, %c0_i32_0 : i32, i32, i32
  }
  func.func @transform_12(%arg0: i32) -> (i32, i32, i32) {
    %c0_i32 = arith.constant 0 : i32
    %c0_i32_0 = arith.constant 0 : i32
    %c0_i32_1 = arith.constant 0 : i32
    return %arg0, %c0_i32, %c0_i32_0 : i32, i32, i32
  }
  func.func @transform_13(%arg0: i32) -> (i32, i32) {
    %c0_i32 = arith.constant 0 : i32
    %c0_i32_0 = arith.constant 0 : i32
    %c0_i32_1 = arith.constant 0 : i32
    return %c0_i32, %c0_i32_0 : i32, i32
  }
}

</mosaic_0001>

<llo_original>
// kernel: embedding_net_forward.3
$region0: #{embedding_net_forward.3}
  #allocation0 [shape = 'u32[]', space=smem, size = 0x4, offset = 0x4, fixed_abs, tag = 'smem constant byte address 0x4 - core index']
  #allocation1 [shape = 'u32[144,128]{1,0:T(1,128)}', space=vmem, size = 0x12000, scoped, tag = 'internal scratch']
  %s0 = inlined_call_operand.vmem [shape: f32[8,32], index: 0, kind: input, shape index: {}]
  %s1 = inlined_call_operand.vmem [shape: f32[6,64], index: 1, kind: input, shape index: {}]
  %s2 = inlined_call_operand.vmem [shape: f32[1,16], index: 2, kind: input, shape index: {}]
  %s3 = inlined_call_operand.vmem [shape: f32[32,32], index: 3, kind: input, shape index: {}]
  %s4 = inlined_call_operand.hbm [shape: f32[1,32], index: 4, kind: input, shape index: {}]
  %s5 = inlined_call_operand.vmem [shape: f32[32,5], index: 5, kind: input, shape index: {}]
  %s6 = inlined_call_operand.hbm [shape: f32[1,5], index: 6, kind: input, shape index: {}]
  %s7 = inlined_call_operand.vmem [shape: f32[64,32], index: 7, kind: input, shape index: {}]
  %s8 = inlined_call_operand.hbm [shape: f32[1,32], index: 8, kind: input, shape index: {}]
  %s9 = inlined_call_operand.vmem [shape: f32[32,32], index: 9, kind: input, shape index: {}]
  %s10 = inlined_call_operand.hbm [shape: f32[1,32], index: 10, kind: input, shape index: {}]
  %s11 = inlined_call_operand.vmem [shape: f32[32,3], index: 11, kind: input, shape index: {}]
  %s12 = inlined_call_operand.hbm [shape: f32[1,3], index: 12, kind: input, shape index: {}]
  %s13 = inlined_call_operand.vmem [shape: f32[16,32], index: 13, kind: input, shape index: {}]
  %s14 = inlined_call_operand.hbm [shape: f32[1,32], index: 14, kind: input, shape index: {}]
  %s15 = inlined_call_operand.vmem [shape: f32[32,32], index: 15, kind: input, shape index: {}]
  %s16 = inlined_call_operand.hbm [shape: f32[1,32], index: 16, kind: input, shape index: {}]
  %s17 = inlined_call_operand.hbm [shape: f32[8,5], index: 17, kind: output, shape index: {0}]
  %s18 = inlined_call_operand.vmem [shape: f32[6,3], index: 18, kind: output, shape index: {1}]
  %s19 = inlined_call_operand.vmem [shape: f32[1,32], index: 19, kind: output, shape index: {2}]
  %20 = xla_tuple %s17, %s18, %s19
  %s21 = sld [smem:[#allocation0]]
  $region122: #{embedding_net_forward.3} parent=0
    _
  %s23 = ssub.s32 1, %s21
  %s24 = scalar_select 0, %s23, %s21
  $region1: #{embedding_net_forward.3} parent=0
    #allocation2 [shape = 'u8[512]{0}', space=vmem, size = 0x400, scoped, tag = 'input window, operand 4, single buffered']
    #allocation3 [shape = 's32[1]{0}', space=sflag, size = 0x4, scoped, tag = 'scoped memory for embedding_net_forward.3']
    #allocation4 [shape = 's32[1]{0}', space=sflag, size = 0x4, scoped, tag = 'scoped memory for embedding_net_forward.3']
    #allocation5 [shape = 'u8[512]{0}', space=vmem, size = 0x400, scoped, tag = 'input window, operand 6, single buffered']
    #allocation6 [shape = 's32[1]{0}', space=sflag, size = 0x4, scoped, tag = 'scoped memory for embedding_net_forward.3']
    #allocation7 [shape = 'u8[512]{0}', space=vmem, size = 0x400, scoped, tag = 'input window, operand 8, single buffered']
    #allocation8 [shape = 'u8[512]{0}', space=vmem, size = 0x400, scoped, tag = 'input window, operand 10, single buffered']
    #allocation9 [shape = 's32[1]{0}', space=sflag, size = 0x4, scoped, tag = 'scoped memory for embedding_net_forward.3']
    #allocation10 [shape = 'u8[512]{0}', space=vmem, size = 0x400, scoped, tag = 'input window, operand 12, single buffered']
    #allocation11 [shape = 'u8[512]{0}', space=vmem, size = 0x400, scoped, tag = 'input window, operand 14, single buffered']
    #allocation12 [shape = 's32[1]{0}', space=sflag, size = 0x4, scoped, tag = 'scoped memory for embedding_net_forward.3']
    #allocation13 [shape = 'u8[512]{0}', space=vmem, size = 0x400, scoped, tag = 'input window, operand 16, single buffered']
    #allocation14 [shape = 'u8[4096]{0}', space=vmem, size = 0x1000, scoped, tag = 'output window, operand 0, single buffered']
    %25 = vsyncpa [#allocation3], 0
    %26 = vsyncpa [#allocation6], 0
    %27 = vsyncpa [#allocation9], 0
    %28 = vsyncpa [#allocation12], 0
    %29 = vsyncpa [#allocation4], 0
    // Predicated region
    $region2: #{embedding_net_forward.3} parent=1 // pred_check
      _
    $region3: #{embedding_net_forward.3} parent=1 // pred_check_branch
      %31 = sbr.rel (0) target = $region5
    $region4: #{embedding_net_forward.3} parent=1 // pred_region
      _
    $region5: #{embedding_net_forward.3} parent=1 // pred_fallthru
      _
    // Predicated region
    $region6: #{embedding_net_forward.3} parent=1 // pred_check
      _
    $region7: #{embedding_net_forward.3} parent=1 // pred_check_branch
      %33 = sbr.rel (0) target = $region9
    $region8: #{embedding_net_forward.3} parent=1 // pred_region
      _
    $region9: #{embedding_net_forward.3} parent=1 // pred_fallthru
      _
    // Predicated region
    $region10: #{embedding_net_forward.3} parent=1 // pred_check
      _
    $region11: #{embedding_net_forward.3} parent=1 // pred_check_branch
      %35 = sbr.rel (0) target = $region13
    $region12: #{embedding_net_forward.3} parent=1 // pred_region
      _
    $region13: #{embedding_net_forward.3} parent=1 // pred_fallthru
      _
    // Predicated region
    $region14: #{embedding_net_forward.3} parent=1 // pred_check
      _
    $region15: #{embedding_net_forward.3} parent=1 // pred_check_branch
      %37 = sbr.rel (0) target = $region17
    $region16: #{embedding_net_forward.3} parent=1 // pred_region
      _
    $region17: #{embedding_net_forward.3} parent=1 // pred_fallthru
      _
    // Predicated region
    $region18: #{embedding_net_forward.3} parent=1 // pred_check
      _
    $region19: #{embedding_net_forward.3} parent=1 // pred_check_branch
      %39 = sbr.rel (0) target = $region21
    $region20: #{embedding_net_forward.3} parent=1 // pred_region
      %s41 = ssub.s32 16, 16
      %42 = vsyncadd [#allocation3], %s41
      %s44 = sshll.u32 [#allocation2], 4
      %s45 = int_to_ptr.vmem [resolvable:$true] %s44
      %47 = dma.hbm_to_vmem [thread:$0]  %s4, 16, %s45, [#allocation3]
    $region21: #{embedding_net_forward.3} parent=1 // pred_fallthru
      _
    // Predicated region
    $region22: #{embedding_net_forward.3} parent=1 // pred_check
      _
    $region23: #{embedding_net_forward.3} parent=1 // pred_check_branch
      %49 = sbr.rel (0) target = $region25
    $region24: #{embedding_net_forward.3} parent=1 // pred_region
      _
    $region25: #{embedding_net_forward.3} parent=1 // pred_fallthru
      _
    // Predicated region
    $region26: #{embedding_net_forward.3} parent=1 // pred_check
      _
    $region27: #{embedding_net_forward.3} parent=1 // pred_check_branch
      %51 = sbr.rel (0) target = $region29
    $region28: #{embedding_net_forward.3} parent=1 // pred_region
      %s53 = ssub.s32 16, 16
      %54 = vsyncadd [#allocation6], %s53
      %s56 = sshll.u32 [#allocation5], 4
      %s57 = int_to_ptr.vmem [resolvable:$true] %s56
      %59 = dma.hbm_to_vmem [thread:$0]  %s6, 16, %s57, [#allocation6]
    $region29: #{embedding_net_forward.3} parent=1 // pred_fallthru
      _
    // Predicated region
    $region30: #{embedding_net_forward.3} parent=1 // pred_check
      _
    $region31: #{embedding_net_forward.3} parent=1 // pred_check_branch
      %61 = sbr.rel (0) target = $region33
    $region32: #{embedding_net_forward.3} parent=1 // pred_region
      _
    $region33: #{embedding_net_forward.3} parent=1 // pred_fallthru
      _
    // Predicated region
    $region34: #{embedding_net_forward.3} parent=1 // pred_check
      _
    $region35: #{embedding_net_forward.3} parent=1 // pred_check_branch
      %63 = sbr.rel (0) target = $region37
    $region36: #{embedding_net_forward.3} parent=1 // pred_region
      %s65 = ssub.s32 16, 16
      %66 = vsyncadd [#allocation6], %s65
      %s68 = sshll.u32 [#allocation7], 4
      %s69 = int_to_ptr.vmem [resolvable:$true] %s68
      %71 = dma.hbm_to_vmem [thread:$0]  %s8, 16, %s69, [#allocation6]
    $region37: #{embedding_net_forward.3} parent=1 // pred_fallthru
      _
    // Predicated region
    $region38: #{embedding_net_forward.3} parent=1 // pred_check
      _
    $region39: #{embedding_net_forward.3} parent=1 // pred_check_branch
      %73 = sbr.rel (0) target = $region41
    $region40: #{embedding_net_forward.3} parent=1 // pred_region
      _
    $region41: #{embedding_net_forward.3} parent=1 // pred_fallthru
      _
    // Predicated region
    $region42: #{embedding_net_forward.3} parent=1 // pred_check
      _
    $region43: #{embedding_net_forward.3} parent=1 // pred_check_branch
      %75 = sbr.rel (0) target = $region45
    $region44: #{embedding_net_forward.3} parent=1 // pred_region
      %s77 = ssub.s32 16, 16
      %78 = vsyncadd [#allocation9], %s77
      %s80 = sshll.u32 [#allocation8], 4
      %s81 = int_to_ptr.vmem [resolvable:$true] %s80
      %83 = dma.hbm_to_vmem [thread:$0]  %s10, 16, %s81, [#allocation9]
    $region45: #{embedding_net_forward.3} parent=1 // pred_fallthru
      _
    // Predicated region
    $region46: #{embedding_net_forward.3} parent=1 // pred_check
      _
    $region47: #{embedding_net_forward.3} parent=1 // pred_check_branch
      %85 = sbr.rel (0) target = $region49
    $region48: #{embedding_net_forward.3} parent=1 // pred_region
      _
    $region49: #{embedding_net_forward.3} parent=1 // pred_fallthru
      _
    // Predicated region
    $region50: #{embedding_net_forward.3} parent=1 // pred_check
      _
    $region51: #{embedding_net_forward.3} parent=1 // pred_check_branch
      %87 = sbr.rel (0) target = $region53
    $region52: #{embedding_net_forward.3} parent=1 // pred_region
      %s89 = ssub.s32 16, 16
      %90 = vsyncadd [#allocation9], %s89
      %s92 = sshll.u32 [#allocation10], 4
      %s93 = int_to_ptr.vmem [resolvable:$true] %s92
      %95 = dma.hbm_to_vmem [thread:$0]  %s12, 16, %s93, [#allocation9]
    $region53: #{embedding_net_forward.3} parent=1 // pred_fallthru
      _
    // Predicated region
    $region54: #{embedding_net_forward.3} parent=1 // pred_check
      _
    $region55: #{embedding_net_forward.3} parent=1 // pred_check_branch
      %97 = sbr.rel (0) target = $region57
    $region56: #{embedding_net_forward.3} parent=1 // pred_region
      _
    $region57: #{embedding_net_forward.3} parent=1 // pred_fallthru
      _
    // Predicated region
    $region58: #{embedding_net_forward.3} parent=1 // pred_check
      _
    $region59: #{embedding_net_forward.3} parent=1 // pred_check_branch
      %99 = sbr.rel (0) target = $region61
    $region60: #{embedding_net_forward.3} parent=1 // pred_region
      %s101 = ssub.s32 16, 16
      %102 = vsyncadd [#allocation12], %s101
      %s104 = sshll.u32 [#allocation11], 4
      %s105 = int_to_ptr.vmem [resolvable:$true] %s104
      %107 = dma.hbm_to_vmem [thread:$0]  %s14, 16, %s105, [#allocation12]
    $region61: #{embedding_net_forward.3} parent=1 // pred_fallthru
      _
    // Predicated region
    $region62: #{embedding_net_forward.3} parent=1 // pred_check
      _
    $region63: #{embedding_net_forward.3} parent=1 // pred_check_branch
      %109 = sbr.rel (0) target = $region65
    $region64: #{embedding_net_forward.3} parent=1 // pred_region
      _
    $region65: #{embedding_net_forward.3} parent=1 // pred_fallthru
      _
    // Predicated region
    $region66: #{embedding_net_forward.3} parent=1 // pred_check
      _
    $region67: #{embedding_net_forward.3} parent=1 // pred_check_branch
      %111 = sbr.rel (0) target = $region69
    $region68: #{embedding_net_forward.3} parent=1 // pred_region
      %s113 = ssub.s32 16, 16
      %114 = vsyncadd [#allocation12], %s113
      %s116 = sshll.u32 [#allocation13], 4
      %s117 = int_to_ptr.vmem [resolvable:$true] %s116
      %119 = dma.hbm_to_vmem [thread:$0]  %s16, 16, %s117, [#allocation12]
    $region69: #{embedding_net_forward.3} parent=1 // pred_fallthru
      _
    // Predicated region
    $region70: #{embedding_net_forward.3} parent=1 // pred_check
      _
    $region71: #{embedding_net_forward.3} parent=1 // pred_check_branch
      %121 = sbr.rel (0) target = $region73
    $region72: #{embedding_net_forward.3} parent=1 // pred_region
      %122 = dma.done [#allocation3], 16
    $region73: #{embedding_net_forward.3} parent=1 // pred_fallthru
      _
    // Predicated region
    $region74: #{embedding_net_forward.3} parent=1 // pred_check
      _
    $region75: #{embedding_net_forward.3} parent=1 // pred_check_branch
      %124 = sbr.rel (0) target = $region77
    $region76: #{embedding_net_forward.3} parent=1 // pred_region
      %125 = dma.done [#allocation6], 16
    $region77: #{embedding_net_forward.3} parent=1 // pred_fallthru
      _
    // Predicated region
    $region78: #{embedding_net_forward.3} parent=1 // pred_check
      _
    $region79: #{embedding_net_forward.3} parent=1 // pred_check_branch
      %127 = sbr.rel (0) target = $region81
    $region80: #{embedding_net_forward.3} parent=1 // pred_region
      %128 = dma.done [#allocation6], 16
    $region81: #{embedding_net_forward.3} parent=1 // pred_fallthru
      _
    // Predicated region
    $region82: #{embedding_net_forward.3} parent=1 // pred_check
      _
    $region83: #{embedding_net_forward.3} parent=1 // pred_check_branch
      %130 = sbr.rel (0) target = $region85
    $region84: #{embedding_net_forward.3} parent=1 // pred_region
      %131 = dma.done [#allocation9], 16
    $region85: #{embedding_net_forward.3} parent=1 // pred_fallthru
      _
    // Predicated region
    $region86: #{embedding_net_forward.3} parent=1 // pred_check
      _
    $region87: #{embedding_net_forward.3} parent=1 // pred_check_branch
      %133 = sbr.rel (0) target = $region89
    $region88: #{embedding_net_forward.3} parent=1 // pred_region
      %134 = dma.done [#allocation9], 16
    $region89: #{embedding_net_forward.3} parent=1 // pred_fallthru
      _
    // Predicated region
    $region90: #{embedding_net_forward.3} parent=1 // pred_check
      _
    $region91: #{embedding_net_forward.3} parent=1 // pred_check_branch
      %136 = sbr.rel (0) target = $region93
    $region92: #{embedding_net_forward.3} parent=1 // pred_region
      %137 = dma.done [#allocation12], 16
    $region93: #{embedding_net_forward.3} parent=1 // pred_fallthru
      _
    // Predicated region
    $region94: #{embedding_net_forward.3} parent=1 // pred_check
      _
    $region95: #{embedding_net_forward.3} parent=1 // pred_check_branch
      %139 = sbr.rel (0) target = $region97
    $region96: #{embedding_net_forward.3} parent=1 // pred_region
      %140 = dma.done [#allocation12], 16
    $region97: #{embedding_net_forward.3} parent=1 // pred_fallthru
      _
    %v141 = vld [vmem:[%s0] sm:$0xff]
    %v142 = vld [vmem:[%s3] sm:$0xff]
    %v143 = vld [vmem:[%s3 + $0x8] sm:$0xff]
    %v144 = vld [vmem:[%s3 + $0x10] sm:$0xff]
    %v145 = vld [vmem:[%s3 + $0x18] sm:$0xff]
    %v146 = vld [vmem:[#allocation2] sm:$0x1]
    %v148 = vlaneseq
    %v149 = vshrl.u32 %v148, 7
    %v150 = vsub.s32 0, %v149
    %v151 = vrot.slane %v146, %v150
    %vm153 = vcmask 261120
    %v155 = vsel %vm153, %v141, 0
    %157 = vmatprep.subr.mxu0 0.0
    %158 = vmatpush1.msra.mxu0 %v142
    %159 = vmatprep.subr.mxu0 0.0
    %160 = vmatpush1.msra.mxu0 %v143
    %161 = vmatprep.subr.mxu0 0.0
    %162 = vmatpush1.msra.mxu0 %v144
    %163 = vmatprep.subr.mxu0 0.0
    %164 = vmatpush1.msra.mxu0 %v145
    %165 = vmatprep.subr.mxu0 0.0
    %166 = vmatpush1.msra.mxu0 0.0
    %167 = vmatprep.subr.mxu0 0.0
    %168 = vmatpush1.msra.mxu0 0.0
    %169 = vmatprep.subr.mxu0 0.0
    %170 = vmatpush1.msra.mxu0 0.0
    %171 = vmatprep.subr.mxu0 0.0
    %172 = vmatpush1.msra.mxu0 0.0
    %173 = vmatprep.subr.mxu0 0.0
    %174 = vmatpush1.msra.mxu0 0.0
    %175 = vmatprep.subr.mxu0 0.0
    %176 = vmatpush1.msra.mxu0 0.0
    %177 = vmatprep.subr.mxu0 0.0
    %178 = vmatpush1.msra.mxu0 0.0
    %179 = vmatprep.subr.mxu0 0.0
    %180 = vmatpush1.msra.mxu0 0.0
    %181 = vmatprep.subr.mxu0 0.0
    %182 = vmatpush1.msra.mxu0 0.0
    %183 = vmatprep.subr.mxu0 0.0
    %184 = vmatpush1.msra.mxu0 0.0
    %185 = vmatprep.subr.mxu0 0.0
    %186 = vmatpush1.msra.mxu0 0.0
    %187 = vmatprep.subr.mxu0 0.0
    %188 = vmatpush1.msra.mxu0 0.0
    %189 = vmatprep.subr.mxu0 0.0
    %190 = vmatpush1.msra.mxu0 0.0
    %191 = vmatprep.subr.mxu0 0.0
    %192 = vmatpush1.msra.mxu0 0.0
    %193 = vmatprep.subr.mxu0 0.0
    %194 = vmatpush1.msra.mxu0 0.0
    %195 = vmatprep.subr.mxu0 0.0
    %196 = vmatpush1.msra.mxu0 0.0
    %197 = vmatprep.subr.mxu0 0.0
    %198 = vmatpush1.msra.mxu0 0.0
    %199 = vmatprep.subr.mxu0 0.0
    %200 = vmatpush1.msra.mxu0 0.0
    %201 = vmatprep.subr.mxu0 0.0
    %202 = vmatpush1.msra.mxu0 0.0
    %203 = vmatprep.subr.mxu0 0.0
    %204 = vmatpush1.msra.mxu0 0.0
    %205 = vmatprep.subr.mxu0 0.0
    %206 = vmatpush1.msra.mxu0 0.0
    %207 = vmatprep.subr.mxu0 0.0
    %208 = vmatpush1.msra.mxu0 0.0
    %209 = vmatprep.subr.mxu0 0.0
    %210 = vmatpush1.msra.mxu0 0.0
    %211 = vmatprep.subr.mxu0 0.0
    %212 = vmatpush1.msra.mxu0 0.0
    %213 = vmatprep.subr.mxu0 0.0
    %214 = vmatpush1.msra.mxu0 0.0
    %215 = vmatprep.subr.mxu0 0.0
    %216 = vmatpush1.msra.mxu0 0.0
    %217 = vmatprep.subr.mxu0 0.0
    %218 = vmatpush1.msra.mxu0 0.0
    %219 = vmatprep.subr.mxu0 0.0
    %220 = vmatpush1.msra.mxu0 0.0
    %221 = vmatprep.mubr.f32.mxu0 0.0
    %222 = vmatmul.mubr.f32.gmra.mrb[0].mxu0 %v155
    %v223 = vpop.f32.mrb[0].mxu0
    %v224 = vadd.f32 %v151, %v223
    %v225 = vpop.f32.mrb[0].mxu0
    %226 = vdwg.mxu0
    %v227 = vmax.f32 %v224, 0.0
    %v228 = vld [vmem:[%s5] sm:$0xff]
    %v229 = vld [vmem:[%s5 + $0x8] sm:$0xff]
    %v230 = vld [vmem:[%s5 + $0x10] sm:$0xff]
    %v231 = vld [vmem:[%s5 + $0x18] sm:$0xff]
    %v232 = vld [vmem:[#allocation5] sm:$0x1]
    %v234 = vlaneseq
    %v235 = vshrl.u32 %v234, 7
    %v236 = vsub.s32 0, %v235
    %v237 = vrot.slane %v232, %v236
    %v240 = vsel %vm153, %v227, 0
    %242 = vmatprep.subr.mxu0 0.0
    %243 = vmatpush1.msra.mxu0 %v228
    %244 = vmatprep.subr.mxu0 0.0
    %245 = vmatpush1.msra.mxu0 %v229
    %246 = vmatprep.subr.mxu0 0.0
    %247 = vmatpush1.msra.mxu0 %v230
    %248 = vmatprep.subr.mxu0 0.0
    %249 = vmatpush1.msra.mxu0 %v231
    %250 = vmatprep.subr.mxu0 0.0
    %251 = vmatpush1.msra.mxu0 0.0
    %252 = vmatprep.subr.mxu0 0.0
    %253 = vmatpush1.msra.mxu0 0.0
    %254 = vmatprep.subr.mxu0 0.0
    %255 = vmatpush1.msra.mxu0 0.0
    %256 = vmatprep.subr.mxu0 0.0
    %257 = vmatpush1.msra.mxu0 0.0
    %258 = vmatprep.subr.mxu0 0.0
    %259 = vmatpush1.msra.mxu0 0.0
    %260 = vmatprep.subr.mxu0 0.0
    %261 = vmatpush1.msra.mxu0 0.0
    %262 = vmatprep.subr.mxu0 0.0
    %263 = vmatpush1.msra.mxu0 0.0
    %264 = vmatprep.subr.mxu0 0.0
    %265 = vmatpush1.msra.mxu0 0.0
    %266 = vmatprep.subr.mxu0 0.0
    %267 = vmatpush1.msra.mxu0 0.0
    %268 = vmatprep.subr.mxu0 0.0
    %269 = vmatpush1.msra.mxu0 0.0
    %270 = vmatprep.subr.mxu0 0.0
    %271 = vmatpush1.msra.mxu0 0.0
    %272 = vmatprep.subr.mxu0 0.0
    %273 = vmatpush1.msra.mxu0 0.0
    %274 = vmatprep.subr.mxu0 0.0
    %275 = vmatpush1.msra.mxu0 0.0
    %276 = vmatprep.subr.mxu0 0.0
    %277 = vmatpush1.msra.mxu0 0.0
    %278 = vmatprep.subr.mxu0 0.0
    %279 = vmatpush1.msra.mxu0 0.0
    %280 = vmatprep.subr.mxu0 0.0
    %281 = vmatpush1.msra.mxu0 0.0
    %282 = vmatprep.subr.mxu0 0.0
    %283 = vmatpush1.msra.mxu0 0.0
    %284 = vmatprep.subr.mxu0 0.0
    %285 = vmatpush1.msra.mxu0 0.0
    %286 = vmatprep.subr.mxu0 0.0
    %287 = vmatpush1.msra.mxu0 0.0
    %288 = vmatprep.subr.mxu0 0.0
    %289 = vmatpush1.msra.mxu0 0.0
    %290 = vmatprep.subr.mxu0 0.0
    %291 = vmatpush1.msra.mxu0 0.0
    %292 = vmatprep.subr.mxu0 0.0
    %293 = vmatpush1.msra.mxu0 0.0
    %294 = vmatprep.subr.mxu0 0.0
    %295 = vmatpush1.msra.mxu0 0.0
    %296 = vmatprep.subr.mxu0 0.0
    %297 = vmatpush1.msra.mxu0 0.0
    %298 = vmatprep.subr.mxu0 0.0
    %299 = vmatpush1.msra.mxu0 0.0
    %300 = vmatprep.subr.mxu0 0.0
    %301 = vmatpush1.msra.mxu0 0.0
    %302 = vmatprep.subr.mxu0 0.0
    %303 = vmatpush1.msra.mxu0 0.0
    %304 = vmatprep.subr.mxu0 0.0
    %305 = vmatpush1.msra.mxu0 0.0
    %306 = vmatprep.mubr.f32.mxu0 0.0
    %307 = vmatmul.mubr.f32.gmra.mrb[0].mxu0 %v240
    %v308 = vpop.f32.mrb[0].mxu0
    %v309 = vadd.f32 %v237, %v308
    %v310 = vpop.f32.mrb[0].mxu0
    %311 = vdwg.mxu0
    %vm312 = vcmask 39936
    %313 = vst.msk [vmem:[#allocation14] sm:$0xff] %vm312, %v309
    %v314 = vld [vmem:[%s1] sm:$0x3f]
    %v315 = vld [vmem:[%s7] sm:$0xff]
    %v316 = vld [vmem:[%s7 + $0x8] sm:$0xff]
    %v317 = vld [vmem:[%s7 + $0x10] sm:$0xff]
    %v318 = vld [vmem:[%s7 + $0x18] sm:$0xff]
    %v319 = vld [vmem:[%s7 + $0x20] sm:$0xff]
    %v320 = vld [vmem:[%s7 + $0x28] sm:$0xff]
    %v321 = vld [vmem:[%s7 + $0x30] sm:$0xff]
    %v322 = vld [vmem:[%s7 + $0x38] sm:$0xff]
    %v323 = vld [vmem:[#allocation7] sm:$0x1]
    %v325 = vlaneseq
    %v326 = vshrl.u32 %v325, 7
    %v327 = vsub.s32 0, %v326
    %v328 = vrot.slane %v323, %v327
    %vm330 = vcmask 523264
    %v332 = vsel %vm330, %v314, 0
    %334 = vmatprep.subr.mxu0 0.0
    %335 = vmatpush1.msra.mxu0 %v315
    %336 = vmatprep.subr.mxu0 0.0
    %337 = vmatpush1.msra.mxu0 %v316
    %338 = vmatprep.subr.mxu0 0.0
    %339 = vmatpush1.msra.mxu0 %v317
    %340 = vmatprep.subr.mxu0 0.0
    %341 = vmatpush1.msra.mxu0 %v318
    %342 = vmatprep.subr.mxu0 0.0
    %343 = vmatpush1.msra.mxu0 %v319
    %344 = vmatprep.subr.mxu0 0.0
    %345 = vmatpush1.msra.mxu0 %v320
    %346 = vmatprep.subr.mxu0 0.0
    %347 = vmatpush1.msra.mxu0 %v321
    %348 = vmatprep.subr.mxu0 0.0
    %349 = vmatpush1.msra.mxu0 %v322
    %350 = vmatprep.subr.mxu0 0.0
    %351 = vmatpush1.msra.mxu0 0.0
    %352 = vmatprep.subr.mxu0 0.0
    %353 = vmatpush1.msra.mxu0 0.0
    %354 = vmatprep.subr.mxu0 0.0
    %355 = vmatpush1.msra.mxu0 0.0
    %356 = vmatprep.subr.mxu0 0.0
    %357 = vmatpush1.msra.mxu0 0.0
    %358 = vmatprep.subr.mxu0 0.0
    %359 = vmatpush1.msra.mxu0 0.0
    %360 = vmatprep.subr.mxu0 0.0
    %361 = vmatpush1.msra.mxu0 0.0
    %362 = vmatprep.subr.mxu0 0.0
    %363 = vmatpush1.msra.mxu0 0.0
    %364 = vmatprep.subr.mxu0 0.0
    %365 = vmatpush1.msra.mxu0 0.0
    %366 = vmatprep.subr.mxu0 0.0
    %367 = vmatpush1.msra.mxu0 0.0
    %368 = vmatprep.subr.mxu0 0.0
    %369 = vmatpush1.msra.mxu0 0.0
    %370 = vmatprep.subr.mxu0 0.0
    %371 = vmatpush1.msra.mxu0 0.0
    %372 = vmatprep.subr.mxu0 0.0
    %373 = vmatpush1.msra.mxu0 0.0
    %374 = vmatprep.subr.mxu0 0.0
    %375 = vmatpush1.msra.mxu0 0.0
    %376 = vmatprep.subr.mxu0 0.0
    %377 = vmatpush1.msra.mxu0 0.0
    %378 = vmatprep.subr.mxu0 0.0
    %379 = vmatpush1.msra.mxu0 0.0
    %380 = vmatprep.subr.mxu0 0.0
    %381 = vmatpush1.msra.mxu0 0.0
    %382 = vmatprep.subr.mxu0 0.0
    %383 = vmatpush1.msra.mxu0 0.0
    %384 = vmatprep.subr.mxu0 0.0
    %385 = vmatpush1.msra.mxu0 0.0
    %386 = vmatprep.subr.mxu0 0.0
    %387 = vmatpush1.msra.mxu0 0.0
    %388 = vmatprep.subr.mxu0 0.0
    %389 = vmatpush1.msra.mxu0 0.0
    %390 = vmatprep.subr.mxu0 0.0
    %391 = vmatpush1.msra.mxu0 0.0
    %392 = vmatprep.subr.mxu0 0.0
    %393 = vmatpush1.msra.mxu0 0.0
    %394 = vmatprep.subr.mxu0 0.0
    %395 = vmatpush1.msra.mxu0 0.0
    %396 = vmatprep.subr.mxu0 0.0
    %397 = vmatpush1.msra.mxu0 0.0
    %398 = vmatprep.mubr.f32.mxu0 0.0
    %399 = vmatmul.mubr.f32.gmra.mrb[0].mxu0 %v332
    %v400 = vpop.f32.mrb[0].mxu0
    %v401 = vadd.f32 %v328, %v400
    %v402 = vpop.f32.mrb[0].mxu0
    %403 = vdwg.mxu0
    %v404 = vmax.f32 %v401, 0.0
    %v405 = vld [vmem:[%s9] sm:$0xff]
    %v406 = vld [vmem:[%s9 + $0x8] sm:$0xff]
    %v407 = vld [vmem:[%s9 + $0x10] sm:$0xff]
    %v408 = vld [vmem:[%s9 + $0x18] sm:$0xff]
    %v409 = vld [vmem:[#allocation8] sm:$0x1]
    %v411 = vlaneseq
    %v412 = vshrl.u32 %v411, 7
    %v413 = vsub.s32 0, %v412
    %v414 = vrot.slane %v409, %v413
    %v417 = vsel %vm153, %v404, 0
    %419 = vmatprep.subr.mxu0 0.0
    %420 = vmatpush1.msra.mxu0 %v405
    %421 = vmatprep.subr.mxu0 0.0
    %422 = vmatpush1.msra.mxu0 %v406
    %423 = vmatprep.subr.mxu0 0.0
    %424 = vmatpush1.msra.mxu0 %v407
    %425 = vmatprep.subr.mxu0 0.0
    %426 = vmatpush1.msra.mxu0 %v408
    %427 = vmatprep.subr.mxu0 0.0
    %428 = vmatpush1.msra.mxu0 0.0
    %429 = vmatprep.subr.mxu0 0.0
    %430 = vmatpush1.msra.mxu0 0.0
    %431 = vmatprep.subr.mxu0 0.0
    %432 = vmatpush1.msra.mxu0 0.0
    %433 = vmatprep.subr.mxu0 0.0
    %434 = vmatpush1.msra.mxu0 0.0
    %435 = vmatprep.subr.mxu0 0.0
    %436 = vmatpush1.msra.mxu0 0.0
    %437 = vmatprep.subr.mxu0 0.0
    %438 = vmatpush1.msra.mxu0 0.0
    %439 = vmatprep.subr.mxu0 0.0
    %440 = vmatpush1.msra.mxu0 0.0
    %441 = vmatprep.subr.mxu0 0.0
    %442 = vmatpush1.msra.mxu0 0.0
    %443 = vmatprep.subr.mxu0 0.0
    %444 = vmatpush1.msra.mxu0 0.0
    %445 = vmatprep.subr.mxu0 0.0
    %446 = vmatpush1.msra.mxu0 0.0
    %447 = vmatprep.subr.mxu0 0.0
    %448 = vmatpush1.msra.mxu0 0.0
    %449 = vmatprep.subr.mxu0 0.0
    %450 = vmatpush1.msra.mxu0 0.0
    %451 = vmatprep.subr.mxu0 0.0
    %452 = vmatpush1.msra.mxu0 0.0
    %453 = vmatprep.subr.mxu0 0.0
    %454 = vmatpush1.msra.mxu0 0.0
    %455 = vmatprep.subr.mxu0 0.0
    %456 = vmatpush1.msra.mxu0 0.0
    %457 = vmatprep.subr.mxu0 0.0
    %458 = vmatpush1.msra.mxu0 0.0
    %459 = vmatprep.subr.mxu0 0.0
    %460 = vmatpush1.msra.mxu0 0.0
    %461 = vmatprep.subr.mxu0 0.0
    %462 = vmatpush1.msra.mxu0 0.0
    %463 = vmatprep.subr.mxu0 0.0
    %464 = vmatpush1.msra.mxu0 0.0
    %465 = vmatprep.subr.mxu0 0.0
    %466 = vmatpush1.msra.mxu0 0.0
    %467 = vmatprep.subr.mxu0 0.0
    %468 = vmatpush1.msra.mxu0 0.0
    %469 = vmatprep.subr.mxu0 0.0
    %470 = vmatpush1.msra.mxu0 0.0
    %471 = vmatprep.subr.mxu0 0.0
    %472 = vmatpush1.msra.mxu0 0.0
    %473 = vmatprep.subr.mxu0 0.0
    %474 = vmatpush1.msra.mxu0 0.0
    %475 = vmatprep.subr.mxu0 0.0
    %476 = vmatpush1.msra.mxu0 0.0
    %477 = vmatprep.subr.mxu0 0.0
    %478 = vmatpush1.msra.mxu0 0.0
    %479 = vmatprep.subr.mxu0 0.0
    %480 = vmatpush1.msra.mxu0 0.0
    %481 = vmatprep.subr.mxu0 0.0
    %482 = vmatpush1.msra.mxu0 0.0
    %483 = vmatprep.mubr.f32.mxu0 0.0
    %484 = vmatmul.mubr.f32.gmra.mrb[0].mxu0 %v417
    %v485 = vpop.f32.mrb[0].mxu0
    %v486 = vadd.f32 %v414, %v485
    %v487 = vpop.f32.mrb[0].mxu0
    %488 = vdwg.mxu0
    %v489 = vmax.f32 %v486, 0.0
    %v490 = vld [vmem:[%s11] sm:$0xff]
    %v491 = vld [vmem:[%s11 + $0x8] sm:$0xff]
    %v492 = vld [vmem:[%s11 + $0x10] sm:$0xff]
    %v493 = vld [vmem:[%s11 + $0x18] sm:$0xff]
    %v494 = vld [vmem:[#allocation10] sm:$0x1]
    %v496 = vlaneseq
    %v497 = vshrl.u32 %v496, 7
    %v498 = vsub.s32 0, %v497
    %v499 = vrot.slane %v494, %v498
    %v502 = vsel %vm153, %v489, 0
    %504 = vmatprep.subr.mxu0 0.0
    %505 = vmatpush1.msra.mxu0 %v490
    %506 = vmatprep.subr.mxu0 0.0
    %507 = vmatpush1.msra.mxu0 %v491
    %508 = vmatprep.subr.mxu0 0.0
    %509 = vmatpush1.msra.mxu0 %v492
    %510 = vmatprep.subr.mxu0 0.0
    %511 = vmatpush1.msra.mxu0 %v493
    %512 = vmatprep.subr.mxu0 0.0
    %513 = vmatpush1.msra.mxu0 0.0
    %514 = vmatprep.subr.mxu0 0.0
    %515 = vmatpush1.msra.mxu0 0.0
    %516 = vmatprep.subr.mxu0 0.0
    %517 = vmatpush1.msra.mxu0 0.0
    %518 = vmatprep.subr.mxu0 0.0
    %519 = vmatpush1.msra.mxu0 0.0
    %520 = vmatprep.subr.mxu0 0.0
    %521 = vmatpush1.msra.mxu0 0.0
    %522 = vmatprep.subr.mxu0 0.0
    %523 = vmatpush1.msra.mxu0 0.0
    %524 = vmatprep.subr.mxu0 0.0
    %525 = vmatpush1.msra.mxu0 0.0
    %526 = vmatprep.subr.mxu0 0.0
    %527 = vmatpush1.msra.mxu0 0.0
    %528 = vmatprep.subr.mxu0 0.0
    %529 = vmatpush1.msra.mxu0 0.0
    %530 = vmatprep.subr.mxu0 0.0
    %531 = vmatpush1.msra.mxu0 0.0
    %532 = vmatprep.subr.mxu0 0.0
    %533 = vmatpush1.msra.mxu0 0.0
    %534 = vmatprep.subr.mxu0 0.0
    %535 = vmatpush1.msra.mxu0 0.0
    %536 = vmatprep.subr.mxu0 0.0
    %537 = vmatpush1.msra.mxu0 0.0
    %538 = vmatprep.subr.mxu0 0.0
    %539 = vmatpush1.msra.mxu0 0.0
    %540 = vmatprep.subr.mxu0 0.0
    %541 = vmatpush1.msra.mxu0 0.0
    %542 = vmatprep.subr.mxu0 0.0
    %543 = vmatpush1.msra.mxu0 0.0
    %544 = vmatprep.subr.mxu0 0.0
    %545 = vmatpush1.msra.mxu0 0.0
    %546 = vmatprep.subr.mxu0 0.0
    %547 = vmatpush1.msra.mxu0 0.0
    %548 = vmatprep.subr.mxu0 0.0
    %549 = vmatpush1.msra.mxu0 0.0
    %550 = vmatprep.subr.mxu0 0.0
    %551 = vmatpush1.msra.mxu0 0.0
    %552 = vmatprep.subr.mxu0 0.0
    %553 = vmatpush1.msra.mxu0 0.0
    %554 = vmatprep.subr.mxu0 0.0
    %555 = vmatpush1.msra.mxu0 0.0
    %556 = vmatprep.subr.mxu0 0.0
    %557 = vmatpush1.msra.mxu0 0.0
    %558 = vmatprep.subr.mxu0 0.0
    %559 = vmatpush1.msra.mxu0 0.0
    %560 = vmatprep.subr.mxu0 0.0
    %561 = vmatpush1.msra.mxu0 0.0
    %562 = vmatprep.subr.mxu0 0.0
    %563 = vmatpush1.msra.mxu0 0.0
    %564 = vmatprep.subr.mxu0 0.0
    %565 = vmatpush1.msra.mxu0 0.0
    %566 = vmatprep.subr.mxu0 0.0
    %567 = vmatpush1.msra.mxu0 0.0
    %568 = vmatprep.mubr.f32.mxu0 0.0
    %569 = vmatmul.mubr.f32.gmra.mrb[0].mxu0 %v502
    %v570 = vpop.f32.mrb[0].mxu0
    %v571 = vadd.f32 %v499, %v570
    %v572 = vpop.f32.mrb[0].mxu0
    %573 = vdwg.mxu0
    %v574 = vxor.u32 %v571, 2147483648
    %v575 = vmul.f32 %v574, 1.442695
    %v576 = vpow.pop %v575
    %v577 = vadd.f32 %v576, 1.0
    %v578 = vrcp.pop %v577
    %v579 = vmul.f32 1.0, %v578
    %vm580 = vcmask 21504
    %581 = vst.msk [vmem:[%s18] sm:$0x3f] %vm580, %v579
    %v582 = vld [vmem:[%s2] sm:$0x1]
    %v583 = vld [vmem:[%s13] sm:$0xff]
    %v584 = vld [vmem:[%s13 + $0x8] sm:$0xff]
    %v585 = vld [vmem:[#allocation11] sm:$0x1]
    %vm586 = vcmask 130048
    %v588 = vsel %vm586, %v582, 0
    %590 = vmatprep.subr.mxu0 0.0
    %591 = vmatpush1.msra.mxu0 %v583
    %592 = vmatprep.subr.mxu0 0.0
    %593 = vmatpush1.msra.mxu0 %v584
    %594 = vmatprep.subr.mxu0 0.0
    %595 = vmatpush1.msra.mxu0 0.0
    %596 = vmatprep.subr.mxu0 0.0
    %597 = vmatpush1.msra.mxu0 0.0
    %598 = vmatprep.subr.mxu0 0.0
    %599 = vmatpush1.msra.mxu0 0.0
    %600 = vmatprep.subr.mxu0 0.0
    %601 = vmatpush1.msra.mxu0 0.0
    %602 = vmatprep.subr.mxu0 0.0
    %603 = vmatpush1.msra.mxu0 0.0
    %604 = vmatprep.subr.mxu0 0.0
    %605 = vmatpush1.msra.mxu0 0.0
    %606 = vmatprep.subr.mxu0 0.0
    %607 = vmatpush1.msra.mxu0 0.0
    %608 = vmatprep.subr.mxu0 0.0
    %609 = vmatpush1.msra.mxu0 0.0
    %610 = vmatprep.subr.mxu0 0.0
    %611 = vmatpush1.msra.mxu0 0.0
    %612 = vmatprep.subr.mxu0 0.0
    %613 = vmatpush1.msra.mxu0 0.0
    %614 = vmatprep.subr.mxu0 0.0
    %615 = vmatpush1.msra.mxu0 0.0
    %616 = vmatprep.subr.mxu0 0.0
    %617 = vmatpush1.msra.mxu0 0.0
    %618 = vmatprep.subr.mxu0 0.0
    %619 = vmatpush1.msra.mxu0 0.0
    %620 = vmatprep.subr.mxu0 0.0
    %621 = vmatpush1.msra.mxu0 0.0
    %622 = vmatprep.subr.mxu0 0.0
    %623 = vmatpush1.msra.mxu0 0.0
    %624 = vmatprep.subr.mxu0 0.0
    %625 = vmatpush1.msra.mxu0 0.0
    %626 = vmatprep.subr.mxu0 0.0
    %627 = vmatpush1.msra.mxu0 0.0
    %628 = vmatprep.subr.mxu0 0.0
    %629 = vmatpush1.msra.mxu0 0.0
    %630 = vmatprep.subr.mxu0 0.0
    %631 = vmatpush1.msra.mxu0 0.0
    %632 = vmatprep.subr.mxu0 0.0
    %633 = vmatpush1.msra.mxu0 0.0
    %634 = vmatprep.subr.mxu0 0.0
    %635 = vmatpush1.msra.mxu0 0.0
    %636 = vmatprep.subr.mxu0 0.0
    %637 = vmatpush1.msra.mxu0 0.0
    %638 = vmatprep.subr.mxu0 0.0
    %639 = vmatpush1.msra.mxu0 0.0
    %640 = vmatprep.subr.mxu0 0.0
    %641 = vmatpush1.msra.mxu0 0.0
    %642 = vmatprep.subr.mxu0 0.0
    %643 = vmatpush1.msra.mxu0 0.0
    %644 = vmatprep.subr.mxu0 0.0
    %645 = vmatpush1.msra.mxu0 0.0
    %646 = vmatprep.subr.mxu0 0.0
    %647 = vmatpush1.msra.mxu0 0.0
    %648 = vmatprep.subr.mxu0 0.0
    %649 = vmatpush1.msra.mxu0 0.0
    %650 = vmatprep.subr.mxu0 0.0
    %651 = vmatpush1.msra.mxu0 0.0
    %652 = vmatprep.subr.mxu0 0.0
    %653 = vmatpush1.msra.mxu0 0.0
    %654 = vmatprep.mubr.f32.mxu0 0.0
    %655 = vmatmul.mubr.f32.gmra.mrb[0].mxu0 %v588
    %v656 = vpop.f32.mrb[0].mxu0
    %v657 = vadd.f32 %v585, %v656
    %v658 = vpop.f32.mrb[0].mxu0
    %659 = vdwg.mxu0
    %v660 = vmax.f32 %v657, 0.0
    %v661 = vld [vmem:[%s15] sm:$0xff]
    %v662 = vld [vmem:[%s15 + $0x8] sm:$0xff]
    %v663 = vld [vmem:[%s15 + $0x10] sm:$0xff]
    %v664 = vld [vmem:[%s15 + $0x18] sm:$0xff]
    %v665 = vld [vmem:[#allocation13] sm:$0x1]
    %v667 = vsel %vm153, %v660, 0
    %669 = vmatprep.subr.mxu0 0.0
    %670 = vmatpush1.msra.mxu0 %v661
    %671 = vmatprep.subr.mxu0 0.0
    %672 = vmatpush1.msra.mxu0 %v662
    %673 = vmatprep.subr.mxu0 0.0
    %674 = vmatpush1.msra.mxu0 %v663
    %675 = vmatprep.subr.mxu0 0.0
    %676 = vmatpush1.msra.mxu0 %v664
    %677 = vmatprep.subr.mxu0 0.0
    %678 = vmatpush1.msra.mxu0 0.0
    %679 = vmatprep.subr.mxu0 0.0
    %680 = vmatpush1.msra.mxu0 0.0
    %681 = vmatprep.subr.mxu0 0.0
    %682 = vmatpush1.msra.mxu0 0.0
    %683 = vmatprep.subr.mxu0 0.0
    %684 = vmatpush1.msra.mxu0 0.0
    %685 = vmatprep.subr.mxu0 0.0
    %686 = vmatpush1.msra.mxu0 0.0
    %687 = vmatprep.subr.mxu0 0.0
    %688 = vmatpush1.msra.mxu0 0.0
    %689 = vmatprep.subr.mxu0 0.0
    %690 = vmatpush1.msra.mxu0 0.0
    %691 = vmatprep.subr.mxu0 0.0
    %692 = vmatpush1.msra.mxu0 0.0
    %693 = vmatprep.subr.mxu0 0.0
    %694 = vmatpush1.msra.mxu0 0.0
    %695 = vmatprep.subr.mxu0 0.0
    %696 = vmatpush1.msra.mxu0 0.0
    %697 = vmatprep.subr.mxu0 0.0
    %698 = vmatpush1.msra.mxu0 0.0
    %699 = vmatprep.subr.mxu0 0.0
    %700 = vmatpush1.msra.mxu0 0.0
    %701 = vmatprep.subr.mxu0 0.0
    %702 = vmatpush1.msra.mxu0 0.0
    %703 = vmatprep.subr.mxu0 0.0
    %704 = vmatpush1.msra.mxu0 0.0
    %705 = vmatprep.subr.mxu0 0.0
    %706 = vmatpush1.msra.mxu0 0.0
    %707 = vmatprep.subr.mxu0 0.0
    %708 = vmatpush1.msra.mxu0 0.0
    %709 = vmatprep.subr.mxu0 0.0
    %710 = vmatpush1.msra.mxu0 0.0
    %711 = vmatprep.subr.mxu0 0.0
    %712 = vmatpush1.msra.mxu0 0.0
    %713 = vmatprep.subr.mxu0 0.0
    %714 = vmatpush1.msra.mxu0 0.0
    %715 = vmatprep.subr.mxu0 0.0
    %716 = vmatpush1.msra.mxu0 0.0
    %717 = vmatprep.subr.mxu0 0.0
    %718 = vmatpush1.msra.mxu0 0.0
    %719 = vmatprep.subr.mxu0 0.0
    %720 = vmatpush1.msra.mxu0 0.0
    %721 = vmatprep.subr.mxu0 0.0
    %722 = vmatpush1.msra.mxu0 0.0
    %723 = vmatprep.subr.mxu0 0.0
    %724 = vmatpush1.msra.mxu0 0.0
    %725 = vmatprep.subr.mxu0 0.0
    %726 = vmatpush1.msra.mxu0 0.0
    %727 = vmatprep.subr.mxu0 0.0
    %728 = vmatpush1.msra.mxu0 0.0
    %729 = vmatprep.subr.mxu0 0.0
    %730 = vmatpush1.msra.mxu0 0.0
    %731 = vmatprep.subr.mxu0 0.0
    %732 = vmatpush1.msra.mxu0 0.0
    %733 = vmatprep.mubr.f32.mxu0 0.0
    %734 = vmatmul.mubr.f32.gmra.mrb[0].mxu0 %v667
    %v735 = vpop.f32.mrb[0].mxu0
    %v736 = vadd.f32 %v665, %v735
    %v737 = vpop.f32.mrb[0].mxu0
    %738 = vdwg.mxu0
    %vm739 = vcmask 253952
    %740 = vst.msk [vmem:[%s19] sm:$0x1] %vm739, %v736
    // Predicated region
    $region98: #{embedding_net_forward.3} parent=1 // pred_check
      _
    $region99: #{embedding_net_forward.3} parent=1 // pred_check_branch
      %742 = sbr.rel (0) target = $region101
    $region100: #{embedding_net_forward.3} parent=1 // pred_region
      %s744 = ssub.s32 128, 128
      %745 = vsyncadd [#allocation4], %s744
      %s747 = sshll.u32 [#allocation14], 4
      %s748 = int_to_ptr.vmem [resolvable:$true] %s747
      %750 = dma.vmem_to_hbm [thread:$0]  %s748, 128, %s17, [#allocation4]
    $region101: #{embedding_net_forward.3} parent=1 // pred_fallthru
      _
    // Predicated region
    $region102: #{embedding_net_forward.3} parent=1 // pred_check
      _
    $region103: #{embedding_net_forward.3} parent=1 // pred_check_branch
      %752 = sbr.rel (0) target = $region105
    $region104: #{embedding_net_forward.3} parent=1 // pred_region
      _
    $region105: #{embedding_net_forward.3} parent=1 // pred_fallthru
      _
    // Predicated region
    $region106: #{embedding_net_forward.3} parent=1 // pred_check
      _
    $region107: #{embedding_net_forward.3} parent=1 // pred_check_branch
      %754 = sbr.rel (0) target = $region109
    $region108: #{embedding_net_forward.3} parent=1 // pred_region
      _
    $region109: #{embedding_net_forward.3} parent=1 // pred_fallthru
      _
    // Predicated region
    $region110: #{embedding_net_forward.3} parent=1 // pred_check
      _
    $region111: #{embedding_net_forward.3} parent=1 // pred_check_branch
      %756 = sbr.rel (0) target = $region113
    $region112: #{embedding_net_forward.3} parent=1 // pred_region
      %757 = dma.done [#allocation4], 128
    $region113: #{embedding_net_forward.3} parent=1 // pred_fallthru
      _
    // Predicated region
    $region114: #{embedding_net_forward.3} parent=1 // pred_check
      _
    $region115: #{embedding_net_forward.3} parent=1 // pred_check_branch
      %759 = sbr.rel (0) target = $region117
    $region116: #{embedding_net_forward.3} parent=1 // pred_region
      _
    $region117: #{embedding_net_forward.3} parent=1 // pred_fallthru
      _
    // Predicated region
    $region118: #{embedding_net_forward.3} parent=1 // pred_check
      _
    $region119: #{embedding_net_forward.3} parent=1 // pred_check_branch
      %761 = sbr.rel (0) target = $region121
    $region120: #{embedding_net_forward.3} parent=1 // pred_region
      _
    $region121: #{embedding_net_forward.3} parent=1 // pred_fallthru
      _
    %762 = vsyncpa [#allocation3], 1
    %763 = vsyncpa [#allocation6], 1
    %764 = vsyncpa [#allocation9], 1
    %765 = vsyncpa [#allocation12], 1
    %766 = vsyncpa [#allocation4], 1

// kernel: embedding_net_forward.4
$region0: #{embedding_net_forward.4}
  #allocation0 [shape = 'u32[]', space=smem, size = 0x4, offset = 0x4, fixed_abs, tag = 'smem constant byte address 0x4 - core index']
  #allocation1 [shape = 'u32[144,128]{1,0:T(1,128)}', space=vmem, size = 0x12000, scoped, tag = 'internal scratch']
  #allocation2 [shape = 'f32[8,32]{1,0:T(8,128)}', space=vmem, size = 0x1000, scoped, tag = 'scratch operand']
  %s0 = inlined_call_operand.vmem [shape: f32[8,32], index: 0, kind: input, shape index: {}]
  %s1 = inlined_call_operand.vmem [shape: bf16[2,32,96], index: 1, kind: input, shape index: {}]
  %s2 = inlined_call_operand.vmem [shape: f32[2,1,96], index: 2, kind: input, shape index: {}]
  %s3 = inlined_call_operand.vmem [shape: bf16[2,32,32], index: 3, kind: input, shape index: {}]
  %s4 = inlined_call_operand.vmem [shape: f32[2,1,32], index: 4, kind: input, shape index: {}]
  %s5 = inlined_call_operand.vmem [shape: f32[2,1,32], index: 5, kind: input, shape index: {}]
  %s6 = inlined_call_operand.vmem [shape: f32[2,1,32], index: 6, kind: input, shape index: {}]
  %s7 = inlined_call_operand.vmem [shape: bf16[2,32,2048], index: 7, kind: input, shape index: {}]
  %s8 = inlined_call_operand.vmem [shape: f32[2,1,2048], index: 8, kind: input, shape index: {}]
  %s9 = inlined_call_operand.hbm [shape: bf16[2,32,2048], index: 9, kind: input, shape index: {}]
  %s10 = inlined_call_operand.vmem [shape: f32[2,1,32], index: 10, kind: input, shape index: {}]
  %s11 = inlined_call_operand.vmem [shape: f32[2,1,32], index: 11, kind: input, shape index: {}]
  %s12 = inlined_call_operand.vmem [shape: f32[2,1,32], index: 12, kind: input, shape index: {}]
  %s13 = inlined_call_operand.vmem [shape: f32[8,32], index: 13, kind: output, shape index: {}]
  %s14 = sld [smem:[#allocation0]]
  $region97: #{embedding_net_forward.4} parent=0
    _
  %s16 = ssub.s32 1, %s14
  %s17 = scalar_select 0, %s16, %s14
  $region1: #{embedding_net_forward.4} parent=0
    #allocation3 [shape = 'u8[262144]{0}', space=vmem, size = 0x40000, scoped, tag = 'input window, operand 9']
    #allocation4 [shape = 's32[2]{0}', space=sflag, size = 0x8, scoped, tag = 'scoped memory for embedding_net_forward.4']
    %18 = vsyncpa [#allocation4], 0
    %s19 = scalar_lea.sflag [#allocation4], 1
    %20 = vsyncpa %s19, 0
    loop: start=0, step=1, limit=4
    $region2: #{embedding_net_forward.4} parent=1 // loop_pre_header
      _
    $region3: #{embedding_net_forward.4} parent=1 // loop_header
      %s22 = sphi 0, %s26
      %p23 = scmp.ge.s32.totalorder %s22, 4
      %s30 = sphi 0, %s30
      %s32 = sphi 0, %s30
      %s33 = sphi 0, %s32
      %s47 = sphi 0, %s33
      %s53 = sphi 0, %s55
      %s56 = sphi 0, %s53
      %s57 = sphi 0, %s56
      %s73 = sphi 0, %s57
      %s79 = sphi 0, %s81
      %s82 = sphi 0, %s79
      %s83 = sphi 0, %s82
      %s99 = sphi 0, %s83
      %s105 = sphi 0, %s107
      %s108 = sphi 0, %s105
      %s109 = sphi 0, %s108
      %s125 = sphi 0, %s109
      %s131 = sphi 0, %s133
      %s134 = sphi 0, %s131
      %s135 = sphi 0, %s134
      %s151 = sphi 0, %s135
      %s157 = sphi 0, %s159
      %s160 = sphi 0, %s157
      %s161 = sphi 0, %s160
      %s177 = sphi 0, %s161
      %s183 = sphi 0, %s185
      %s186 = sphi 0, %s183
      %s187 = sphi 0, %s186
      %s203 = sphi 0, %s187
      %s209 = sphi 0, %s211
      %s212 = sphi 0, %s209
      %s213 = sphi 0, %s212
      %s229 = sphi 0, %s213
      %s235 = sphi 0, %s237
      %s238 = sphi 0, %s235
      %s239 = sphi 0, %s238
      %s255 = sphi 0, %s239
      %s261 = sphi 0, %s263
      %s264 = sphi 0, %s261
      %s265 = sphi 0, %s264
      %s281 = sphi 0, %s265
      %s287 = sphi 0, %s289
      %s290 = sphi 0, %s287
      %s291 = sphi 0, %s290
      %s307 = sphi 0, %s291
      %s313 = sphi 0, %s315
      %s316 = sphi 0, %s313
      %s317 = sphi 0, %s316
      %s333 = sphi 0, %s317
      %s339 = sphi 0, %s341
      %s342 = sphi 0, %s339
      %s343 = sphi 0, %s342
      %s359 = sphi 0, %s343
      %s363 = sphi 0, %s363
      %s365 = sphi 0, %s363
      %s366 = sphi 0, %s365
      %s380 = sphi 0, %s366
    $region4: #{embedding_net_forward.4} parent=1 // loop_header_branch
      %25 = sbr.rel (%p23) target = $region8
    $region5: #{embedding_net_forward.4} parent=1 // loop_body
      %s27 = ssub.s32 %s22, 1
      %s28 = ssub.s32 %s22, 2
      %s29 = sadd.s32 %s22, 1
      %s31 = sadd.s32 %s30, 1
      %p34 = scmp.eq.s32.totalorder %s22, 1
      %p35 = scmp.ne.s32.totalorder %s30, %s32
      %p36 = scmp.eq.s32.totalorder %s22, 0
      %p37 = por %p35, %p36
      %p38 = scmp.ne.s32.totalorder %s30, %s32
      %p39 = scmp.eq.s32.totalorder %s27, 1
      %p40 = por %p38, %p39
      %p41 = scmp.ne.s32.totalorder %s32, %s33
      %p42 = scmp.eq.s32.totalorder %s27, 0
      %p43 = por %p41, %p42
      %p44 = scmp.ne.s32.totalorder %s32, %s33
      %p45 = scmp.eq.s32.totalorder %s28, 1
      %p46 = por %p44, %p45
      %p48 = scmp.ne.s32.totalorder %s33, %s47
      %p49 = scmp.eq.s32.totalorder %s28, 0
      %p50 = por %p48, %p49
      %s51 = ssub.s32 %s22, %s29
      %p52 = scmp.eq.s32.totalorder %s51, 0
      %s54 = sadd.s32 %s53, 1
      %s55 = scalar_select %p52, %s53, %s54
      %p58 = pneg %p52
      %p59 = scmp.eq.s32.totalorder %s22, 1
      %p60 = por %p58, %p59
      %p61 = scmp.ne.s32.totalorder %s53, %s56
      %p62 = scmp.eq.s32.totalorder %s22, 0
      %p63 = por %p61, %p62
      %p64 = scmp.ne.s32.totalorder %s53, %s56
      %p65 = scmp.eq.s32.totalorder %s27, 1
      %p66 = por %p64, %p65
      %p67 = scmp.ne.s32.totalorder %s56, %s57
      %p68 = scmp.eq.s32.totalorder %s27, 0
      %p69 = por %p67, %p68
      %p70 = scmp.ne.s32.totalorder %s56, %s57
      %p71 = scmp.eq.s32.totalorder %s28, 1
      %p72 = por %p70, %p71
      %p74 = scmp.ne.s32.totalorder %s57, %s73
      %p75 = scmp.eq.s32.totalorder %s28, 0
      %p76 = por %p74, %p75
      %s77 = ssub.s32 %s22, %s29
      %p78 = scmp.eq.s32.totalorder %s77, 0
      %s80 = sadd.s32 %s79, 1
      %s81 = scalar_select %p78, %s79, %s80
      %p84 = pneg %p78
      %p85 = scmp.eq.s32.totalorder %s22, 1
      %p86 = por %p84, %p85
      %p87 = scmp.ne.s32.totalorder %s79, %s82
      %p88 = scmp.eq.s32.totalorder %s22, 0
      %p89 = por %p87, %p88
      %p90 = scmp.ne.s32.totalorder %s79, %s82
      %p91 = scmp.eq.s32.totalorder %s27, 1
      %p92 = por %p90, %p91
      %p93 = scmp.ne.s32.totalorder %s82, %s83
      %p94 = scmp.eq.s32.totalorder %s27, 0
      %p95 = por %p93, %p94
      %p96 = scmp.ne.s32.totalorder %s82, %s83
      %p97 = scmp.eq.s32.totalorder %s28, 1
      %p98 = por %p96, %p97
      %p100 = scmp.ne.s32.totalorder %s83, %s99
      %p101 = scmp.eq.s32.totalorder %s28, 0
      %p102 = por %p100, %p101
      %s103 = ssub.s32 %s22, %s29
      %p104 = scmp.eq.s32.totalorder %s103, 0
      %s106 = sadd.s32 %s105, 1
      %s107 = scalar_select %p104, %s105, %s106
      %p110 = pneg %p104
      %p111 = scmp.eq.s32.totalorder %s22, 1
      %p112 = por %p110, %p111
      %p113 = scmp.ne.s32.totalorder %s105, %s108
      %p114 = scmp.eq.s32.totalorder %s22, 0
      %p115 = por %p113, %p114
      %p116 = scmp.ne.s32.totalorder %s105, %s108
      %p117 = scmp.eq.s32.totalorder %s27, 1
      %p118 = por %p116, %p117
      %p119 = scmp.ne.s32.totalorder %s108, %s109
      %p120 = scmp.eq.s32.totalorder %s27, 0
      %p121 = por %p119, %p120
      %p122 = scmp.ne.s32.totalorder %s108, %s109
      %p123 = scmp.eq.s32.totalorder %s28, 1
      %p124 = por %p122, %p123
      %p126 = scmp.ne.s32.totalorder %s109, %s125
      %p127 = scmp.eq.s32.totalorder %s28, 0
      %p128 = por %p126, %p127
      %s129 = ssub.s32 %s22, %s29
      %p130 = scmp.eq.s32.totalorder %s129, 0
      %s132 = sadd.s32 %s131, 1
      %s133 = scalar_select %p130, %s131, %s132
      %p136 = pneg %p130
      %p137 = scmp.eq.s32.totalorder %s22, 1
      %p138 = por %p136, %p137
      %p139 = scmp.ne.s32.totalorder %s131, %s134
      %p140 = scmp.eq.s32.totalorder %s22, 0
      %p141 = por %p139, %p140
      %p142 = scmp.ne.s32.totalorder %s131, %s134
      %p143 = scmp.eq.s32.totalorder %s27, 1
      %p144 = por %p142, %p143
      %p145 = scmp.ne.s32.totalorder %s134, %s135
      %p146 = scmp.eq.s32.totalorder %s27, 0
      %p147 = por %p145, %p146
      %p148 = scmp.ne.s32.totalorder %s134, %s135
      %p149 = scmp.eq.s32.totalorder %s28, 1
      %p150 = por %p148, %p149
      %p152 = scmp.ne.s32.totalorder %s135, %s151
      %p153 = scmp.eq.s32.totalorder %s28, 0
      %p154 = por %p152, %p153
      %s155 = ssub.s32 %s22, %s29
      %p156 = scmp.eq.s32.totalorder %s155, 0
      %s158 = sadd.s32 %s157, 1
      %s159 = scalar_select %p156, %s157, %s158
      %p162 = pneg %p156
      %p163 = scmp.eq.s32.totalorder %s22, 1
      %p164 = por %p162, %p163
      %p165 = scmp.ne.s32.totalorder %s157, %s160
      %p166 = scmp.eq.s32.totalorder %s22, 0
      %p167 = por %p165, %p166
      %p168 = scmp.ne.s32.totalorder %s157, %s160
      %p169 = scmp.eq.s32.totalorder %s27, 1
      %p170 = por %p168, %p169
      %p171 = scmp.ne.s32.totalorder %s160, %s161
      %p172 = scmp.eq.s32.totalorder %s27, 0
      %p173 = por %p171, %p172
      %p174 = scmp.ne.s32.totalorder %s160, %s161
      %p175 = scmp.eq.s32.totalorder %s28, 1
      %p176 = por %p174, %p175
      %p178 = scmp.ne.s32.totalorder %s161, %s177
      %p179 = scmp.eq.s32.totalorder %s28, 0
      %p180 = por %p178, %p179
      %s181 = ssub.s32 %s22, %s29
      %p182 = scmp.eq.s32.totalorder %s181, 0
      %s184 = sadd.s32 %s183, 1
      %s185 = scalar_select %p182, %s183, %s184
      %p188 = pneg %p182
      %p189 = scmp.eq.s32.totalorder %s22, 1
      %p190 = por %p188, %p189
      %p191 = scmp.ne.s32.totalorder %s183, %s186
      %p192 = scmp.eq.s32.totalorder %s22, 0
      %p193 = por %p191, %p192
      %p194 = scmp.ne.s32.totalorder %s183, %s186
      %p195 = scmp.eq.s32.totalorder %s27, 1
      %p196 = por %p194, %p195
      %p197 = scmp.ne.s32.totalorder %s186, %s187
      %p198 = scmp.eq.s32.totalorder %s27, 0
      %p199 = por %p197, %p198
      %p200 = scmp.ne.s32.totalorder %s186, %s187
      %p201 = scmp.eq.s32.totalorder %s28, 1
      %p202 = por %p200, %p201
      %p204 = scmp.ne.s32.totalorder %s187, %s203
      %p205 = scmp.eq.s32.totalorder %s28, 0
      %p206 = por %p204, %p205
      %s207 = ssub.s32 %s22, %s29
      %p208 = scmp.eq.s32.totalorder %s207, 0
      %s210 = sadd.s32 %s209, 1
      %s211 = scalar_select %p208, %s209, %s210
      %p214 = pneg %p208
      %p215 = scmp.eq.s32.totalorder %s22, 1
      %p216 = por %p214, %p215
      %p217 = scmp.ne.s32.totalorder %s209, %s212
      %p218 = scmp.eq.s32.totalorder %s22, 0
      %p219 = por %p217, %p218
      %p220 = scmp.ne.s32.totalorder %s209, %s212
      %p221 = scmp.eq.s32.totalorder %s27, 1
      %p222 = por %p220, %p221
      %p223 = scmp.ne.s32.totalorder %s212, %s213
      %p224 = scmp.eq.s32.totalorder %s27, 0
      %p225 = por %p223, %p224
      %p226 = scmp.ne.s32.totalorder %s212, %s213
      %p227 = scmp.eq.s32.totalorder %s28, 1
      %p228 = por %p226, %p227
      %p230 = scmp.ne.s32.totalorder %s213, %s229
      %p231 = scmp.eq.s32.totalorder %s28, 0
      %p232 = por %p230, %p231
      %s233 = ssub.s32 %s22, %s29
      %p234 = scmp.eq.s32.totalorder %s233, 0
      %s236 = sadd.s32 %s235, 1
      %s237 = scalar_select %p234, %s235, %s236
      %p240 = pneg %p234
      %p241 = scmp.eq.s32.totalorder %s22, 1
      %p242 = por %p240, %p241
      %p243 = scmp.ne.s32.totalorder %s235, %s238
      %p244 = scmp.eq.s32.totalorder %s22, 0
      %p245 = por %p243, %p244
      %p246 = scmp.ne.s32.totalorder %s235, %s238
      %p247 = scmp.eq.s32.totalorder %s27, 1
      %p248 = por %p246, %p247
      %p249 = scmp.ne.s32.totalorder %s238, %s239
      %p250 = scmp.eq.s32.totalorder %s27, 0
      %p251 = por %p249, %p250
      %p252 = scmp.ne.s32.totalorder %s238, %s239
      %p253 = scmp.eq.s32.totalorder %s28, 1
      %p254 = por %p252, %p253
      %p256 = scmp.ne.s32.totalorder %s239, %s255
      %p257 = scmp.eq.s32.totalorder %s28, 0
      %p258 = por %p256, %p257
      %s259 = ssub.s32 %s22, %s29
      %p260 = scmp.eq.s32.totalorder %s259, 0
      %s262 = sadd.s32 %s261, 1
      %s263 = scalar_select %p260, %s261, %s262
      %p266 = pneg %p260
      %p267 = scmp.eq.s32.totalorder %s22, 1
      %p268 = por %p266, %p267
      %p269 = scmp.ne.s32.totalorder %s261, %s264
      %p270 = scmp.eq.s32.totalorder %s22, 0
      %p271 = por %p269, %p270
      %p272 = scmp.ne.s32.totalorder %s261, %s264
      %p273 = scmp.eq.s32.totalorder %s27, 1
      %p274 = por %p272, %p273
      %p275 = scmp.ne.s32.totalorder %s264, %s265
      %p276 = scmp.eq.s32.totalorder %s27, 0
      %p277 = por %p275, %p276
      %p278 = scmp.ne.s32.totalorder %s264, %s265
      %p279 = scmp.eq.s32.totalorder %s28, 1
      %p280 = por %p278, %p279
      %p282 = scmp.ne.s32.totalorder %s265, %s281
      %p283 = scmp.eq.s32.totalorder %s28, 0
      %p284 = por %p282, %p283
      %s285 = ssub.s32 %s22, %s29
      %p286 = scmp.eq.s32.totalorder %s285, 0
      %s288 = sadd.s32 %s287, 1
      %s289 = scalar_select %p286, %s287, %s288
      %p292 = pneg %p286
      %p293 = scmp.eq.s32.totalorder %s22, 1
      %p294 = por %p292, %p293
      %p295 = scmp.ne.s32.totalorder %s287, %s290
      %p296 = scmp.eq.s32.totalorder %s22, 0
      %p297 = por %p295, %p296
      %p298 = scmp.ne.s32.totalorder %s287, %s290
      %p299 = scmp.eq.s32.totalorder %s27, 1
      %p300 = por %p298, %p299
      %p301 = scmp.ne.s32.totalorder %s290, %s291
      %p302 = scmp.eq.s32.totalorder %s27, 0
      %p303 = por %p301, %p302
      %p304 = scmp.ne.s32.totalorder %s290, %s291
      %p305 = scmp.eq.s32.totalorder %s28, 1
      %p306 = por %p304, %p305
      %p308 = scmp.ne.s32.totalorder %s291, %s307
      %p309 = scmp.eq.s32.totalorder %s28, 0
      %p310 = por %p308, %p309
      %s311 = ssub.s32 %s22, %s29
      %p312 = scmp.eq.s32.totalorder %s311, 0
      %s314 = sadd.s32 %s313, 1
      %s315 = scalar_select %p312, %s313, %s314
      %p318 = pneg %p312
      %p319 = scmp.eq.s32.totalorder %s22, 1
      %p320 = por %p318, %p319
      %p321 = scmp.ne.s32.totalorder %s313, %s316
      %p322 = scmp.eq.s32.totalorder %s22, 0
      %p323 = por %p321, %p322
      %p324 = scmp.ne.s32.totalorder %s313, %s316
      %p325 = scmp.eq.s32.totalorder %s27, 1
      %p326 = por %p324, %p325
      %p327 = scmp.ne.s32.totalorder %s316, %s317
      %p328 = scmp.eq.s32.totalorder %s27, 0
      %p329 = por %p327, %p328
      %p330 = scmp.ne.s32.totalorder %s316, %s317
      %p331 = scmp.eq.s32.totalorder %s28, 1
      %p332 = por %p330, %p331
      %p334 = scmp.ne.s32.totalorder %s317, %s333
      %p335 = scmp.eq.s32.totalorder %s28, 0
      %p336 = por %p334, %p335
      %s337 = ssub.s32 %s22, %s29
      %p338 = scmp.eq.s32.totalorder %s337, 0
      %s340 = sadd.s32 %s339, 1
      %s341 = scalar_select %p338, %s339, %s340
      %p344 = pneg %p338
      %p345 = scmp.eq.s32.totalorder %s22, 1
      %p346 = por %p344, %p345
      %p347 = scmp.ne.s32.totalorder %s339, %s342
      %p348 = scmp.eq.s32.totalorder %s22, 0
      %p349 = por %p347, %p348
      %p350 = scmp.ne.s32.totalorder %s339, %s342
      %p351 = scmp.eq.s32.totalorder %s27, 1
      %p352 = por %p350, %p351
      %p353 = scmp.ne.s32.totalorder %s342, %s343
      %p354 = scmp.eq.s32.totalorder %s27, 0
      %p355 = por %p353, %p354
      %p356 = scmp.ne.s32.totalorder %s342, %s343
      %p357 = scmp.eq.s32.totalorder %s28, 1
      %p358 = por %p356, %p357
      %p360 = scmp.ne.s32.totalorder %s343, %s359
      %p361 = scmp.eq.s32.totalorder %s28, 0
      %p362 = por %p360, %p361
      %s364 = sadd.s32 %s363, 1
      %p367 = scmp.eq.s32.totalorder %s22, 1
      %p368 = scmp.ne.s32.totalorder %s363, %s365
      %p369 = scmp.eq.s32.totalorder %s22, 0
      %p370 = por %p368, %p369
      %p371 = scmp.ne.s32.totalorder %s363, %s365
      %p372 = scmp.eq.s32.totalorder %s27, 1
      %p373 = por %p371, %p372
      %p374 = scmp.ne.s32.totalorder %s365, %s366
      %p375 = scmp.eq.s32.totalorder %s27, 0
      %p376 = por %p374, %p375
      %p377 = scmp.ne.s32.totalorder %s365, %s366
      %p378 = scmp.eq.s32.totalorder %s28, 1
      %p379 = por %p377, %p378
      %p381 = scmp.ne.s32.totalorder %s366, %s380
      %p382 = scmp.eq.s32.totalorder %s28, 0
      %p383 = por %p381, %p382
      %p384 = scmp.le.s32.totalorder 1, %s22
      %p385 = scmp.lt.s32.totalorder %s22, 3
      %p386 = pnand %p384, %p385
      %p387 = pneg %p386
      // Predicated region
      $region9: #{embedding_net_forward.4} parent=5 // pred_check
        _
      $region10: #{embedding_net_forward.4} parent=5 // pred_check_branch
        %389 = sbr.rel (%p386) target = $region12
      $region11: #{embedding_net_forward.4} parent=5 // pred_region
        %s390 = ssub.s32 %s22, 1
        // Predicated region
        $region13: #{embedding_net_forward.4} parent=11 // pred_check
          %p391 = pneg %p43
        $region14: #{embedding_net_forward.4} parent=11 // pred_check_branch
          %393 = sbr.rel (%p391) target = $region16
        $region15: #{embedding_net_forward.4} parent=11 // pred_region
          _
        $region16: #{embedding_net_forward.4} parent=11 // pred_fallthru
          _
      $region12: #{embedding_net_forward.4} parent=5 // pred_fallthru
        _
      %p394 = scmp.lt.s32.totalorder %s22, 2
      // Predicated region
      $region17: #{embedding_net_forward.4} parent=5 // pred_check
        %p395 = pneg %p394
      $region18: #{embedding_net_forward.4} parent=5 // pred_check_branch
        %397 = sbr.rel (%p395) target = $region20
      $region19: #{embedding_net_forward.4} parent=5 // pred_region
        // Predicated region
        $region21: #{embedding_net_forward.4} parent=19 // pred_check
          %p398 = pneg %p63
        $region22: #{embedding_net_forward.4} parent=19 // pred_check_branch
          %400 = sbr.rel (%p398) target = $region24
        $region23: #{embedding_net_forward.4} parent=19 // pred_region
          %p401 = scmp.lt.s32.totalorder %s22, 1
          %s402 = scalar_select %p401, %s22, 1
          %s403 = smul.addr %s402, 4
          %s404 = smul.addr %s403, 4
          %s405 = scalar_lea.vmem %s1, %s404
        $region24: #{embedding_net_forward.4} parent=19 // pred_fallthru
          _
        // Predicated region
        $region25: #{embedding_net_forward.4} parent=19 // pred_check
          %p406 = pneg %p89
        $region26: #{embedding_net_forward.4} parent=19 // pred_check_branch
          %408 = sbr.rel (%p406) target = $region28
        $region27: #{embedding_net_forward.4} parent=19 // pred_region
          %p409 = scmp.lt.s32.totalorder %s22, 1
          %s410 = scalar_select %p409, %s22, 1
          %s411 = scalar_lea.vmem %s2, %s410
        $region28: #{embedding_net_forward.4} parent=19 // pred_fallthru
          _
        // Predicated region
        $region29: #{embedding_net_forward.4} parent=19 // pred_check
          %p412 = pneg %p115
        $region30: #{embedding_net_forward.4} parent=19 // pred_check_branch
          %414 = sbr.rel (%p412) target = $region32
        $region31: #{embedding_net_forward.4} parent=19 // pred_region
          %p415 = scmp.lt.s32.totalorder %s22, 1
          %s416 = scalar_select %p415, %s22, 1
          %s417 = smul.addr %s416, 4
          %s418 = smul.addr %s417, 4
          %s419 = scalar_lea.vmem %s3, %s418
        $region32: #{embedding_net_forward.4} parent=19 // pred_fallthru
          _
        // Predicated region
        $region33: #{embedding_net_forward.4} parent=19 // pred_check
          %p420 = pneg %p141
        $region34: #{embedding_net_forward.4} parent=19 // pred_check_branch
          %422 = sbr.rel (%p420) target = $region36
        $region35: #{embedding_net_forward.4} parent=19 // pred_region
          %p423 = scmp.lt.s32.totalorder %s22, 1
          %s424 = scalar_select %p423, %s22, 1
          %s425 = scalar_lea.vmem %s4, %s424
        $region36: #{embedding_net_forward.4} parent=19 // pred_fallthru
          _
        // Predicated region
        $region37: #{embedding_net_forward.4} parent=19 // pred_check
          %p426 = pneg %p167
        $region38: #{embedding_net_forward.4} parent=19 // pred_check_branch
          %428 = sbr.rel (%p426) target = $region40
        $region39: #{embedding_net_forward.4} parent=19 // pred_region
          %p429 = scmp.lt.s32.totalorder %s22, 1
          %s430 = scalar_select %p429, %s22, 1
          %s431 = scalar_lea.vmem %s5, %s430
        $region40: #{embedding_net_forward.4} parent=19 // pred_fallthru
          _
        // Predicated region
        $region41: #{embedding_net_forward.4} parent=19 // pred_check
          %p432 = pneg %p193
        $region42: #{embedding_net_forward.4} parent=19 // pred_check_branch
          %434 = sbr.rel (%p432) target = $region44
        $region43: #{embedding_net_forward.4} parent=19 // pred_region
          %p435 = scmp.lt.s32.totalorder %s22, 1
          %s436 = scalar_select %p435, %s22, 1
          %s437 = scalar_lea.vmem %s6, %s436
        $region44: #{embedding_net_forward.4} parent=19 // pred_fallthru
          _
        // Predicated region
        $region45: #{embedding_net_forward.4} parent=19 // pred_check
          %p438 = pneg %p219
        $region46: #{embedding_net_forward.4} parent=19 // pred_check_branch
          %440 = sbr.rel (%p438) target = $region48
        $region47: #{embedding_net_forward.4} parent=19 // pred_region
          %p441 = scmp.lt.s32.totalorder %s22, 1
          %s442 = scalar_select %p441, %s22, 1
          %s443 = smul.addr %s442, 64
          %s444 = smul.addr %s443, 4
          %s445 = scalar_lea.vmem %s7, %s444
        $region48: #{embedding_net_forward.4} parent=19 // pred_fallthru
          _
        // Predicated region
        $region49: #{embedding_net_forward.4} parent=19 // pred_check
          %p446 = pneg %p245
        $region50: #{embedding_net_forward.4} parent=19 // pred_check_branch
          %448 = sbr.rel (%p446) target = $region52
        $region51: #{embedding_net_forward.4} parent=19 // pred_region
          %p449 = scmp.lt.s32.totalorder %s22, 1
          %s450 = scalar_select %p449, %s22, 1
          %s451 = smul.addr %s450, 16
          %s452 = scalar_lea.vmem %s8, %s451
        $region52: #{embedding_net_forward.4} parent=19 // pred_fallthru
          _
        // Predicated region
        $region53: #{embedding_net_forward.4} parent=19 // pred_check
          %p453 = pneg %p271
        $region54: #{embedding_net_forward.4} parent=19 // pred_check_branch
          %455 = sbr.rel (%p453) target = $region56
        $region55: #{embedding_net_forward.4} parent=19 // pred_region
          %s456 = sand.u32 %s261, 1
          %s457 = scalar_lea.sflag [#allocation4], %s456
          %s458 = sand.u32 %s261, 1
          %s459 = smul.addr %s458, 256
          %s460 = scalar_lea.vmem [#allocation3], %s459
          %s462 = ssub.s32 4096, 4096
          %463 = vsyncadd %s457, %s462
          %s464 = smul.addr %s22, 64
          %s465 = smul.addr %s464, 64
          %s466 = scalar_lea.hbm %s9, %s465
          %s467 = sshll.u32 %s460, 4
          %s468 = int_to_ptr.vmem [resolvable:$true] %s467
          %473 = dma.hbm_to_vmem [thread:$0]  %s466, 4096, %s468, %s457, 1024, 1024, 64
        $region56: #{embedding_net_forward.4} parent=19 // pred_fallthru
          _
        // Predicated region
        $region57: #{embedding_net_forward.4} parent=19 // pred_check
          %p474 = pneg %p297
        $region58: #{embedding_net_forward.4} parent=19 // pred_check_branch
          %476 = sbr.rel (%p474) target = $region60
        $region59: #{embedding_net_forward.4} parent=19 // pred_region
          %p477 = scmp.lt.s32.totalorder %s22, 1
          %s478 = scalar_select %p477, %s22, 1
          %s479 = scalar_lea.vmem %s10, %s478
        $region60: #{embedding_net_forward.4} parent=19 // pred_fallthru
          _
        // Predicated region
        $region61: #{embedding_net_forward.4} parent=19 // pred_check
          %p480 = pneg %p323
        $region62: #{embedding_net_forward.4} parent=19 // pred_check_branch
          %482 = sbr.rel (%p480) target = $region64
        $region63: #{embedding_net_forward.4} parent=19 // pred_region
          %p483 = scmp.lt.s32.totalorder %s22, 1
          %s484 = scalar_select %p483, %s22, 1
          %s485 = scalar_lea.vmem %s11, %s484
        $region64: #{embedding_net_forward.4} parent=19 // pred_fallthru
          _
        // Predicated region
        $region65: #{embedding_net_forward.4} parent=19 // pred_check
          %p486 = pneg %p349
        $region66: #{embedding_net_forward.4} parent=19 // pred_check_branch
          %488 = sbr.rel (%p486) target = $region68
        $region67: #{embedding_net_forward.4} parent=19 // pred_region
          %p489 = scmp.lt.s32.totalorder %s22, 1
          %s490 = scalar_select %p489, %s22, 1
          %s491 = scalar_lea.vmem %s12, %s490
        $region68: #{embedding_net_forward.4} parent=19 // pred_fallthru
          _
      $region20: #{embedding_net_forward.4} parent=5 // pred_fallthru
        _
      %p492 = scmp.le.s32.totalorder 1, %s22
      %p493 = scmp.lt.s32.totalorder %s22, 3
      %p494 = pnand %p492, %p493
      %p495 = pneg %p494
      // Predicated region
      $region69: #{embedding_net_forward.4} parent=5 // pred_check
        _
      $region70: #{embedding_net_forward.4} parent=5 // pred_check_branch
        %497 = sbr.rel (%p494) target = $region72
      $region71: #{embedding_net_forward.4} parent=5 // pred_region
        %s498 = ssub.s32 %s22, 1
        %s499 = sand.u32 %s264, 1
        %s500 = scalar_lea.sflag [#allocation4], %s499
        %s501 = sand.u32 %s264, 1
        %s502 = smul.addr %s501, 256
        %s503 = scalar_lea.vmem [#allocation3], %s502
        // Predicated region
        $region73: #{embedding_net_forward.4} parent=71 // pred_check
          %p504 = pneg %p277
        $region74: #{embedding_net_forward.4} parent=71 // pred_check_branch
          %506 = sbr.rel (%p504) target = $region76
        $region75: #{embedding_net_forward.4} parent=71 // pred_region
          %507 = dma.done %s500, 4096
        $region76: #{embedding_net_forward.4} parent=71 // pred_fallthru
          _
        %p508 = pneg %p43
        %p509 = pneg %p40
        %p510 = scmp.lt.s32.totalorder %s27, 1
        %s511 = scalar_select %p510, %s27, 1
        %s512 = smul.addr %s511, 4
        %s513 = smul.addr %s512, 4
        %s514 = scalar_lea.vmem %s1, %s513
        %p515 = pneg %p69
        %p516 = pneg %p66
        %p517 = scmp.lt.s32.totalorder %s27, 1
        %s518 = scalar_select %p517, %s27, 1
        %s519 = scalar_lea.vmem %s2, %s518
        %p520 = pneg %p95
        %p521 = pneg %p92
        %p522 = scmp.lt.s32.totalorder %s27, 1
        %s523 = scalar_select %p522, %s27, 1
        %s524 = smul.addr %s523, 4
        %s525 = smul.addr %s524, 4
        %s526 = scalar_lea.vmem %s3, %s525
        %p527 = pneg %p121
        %p528 = pneg %p118
        %p529 = scmp.lt.s32.totalorder %s27, 1
        %s530 = scalar_select %p529, %s27, 1
        %s531 = scalar_lea.vmem %s4, %s530
        %p532 = pneg %p147
        %p533 = pneg %p144
        %p534 = scmp.lt.s32.totalorder %s27, 1
        %s535 = scalar_select %p534, %s27, 1
        %s536 = scalar_lea.vmem %s5, %s535
        %p537 = pneg %p173
        %p538 = pneg %p170
        %p539 = scmp.lt.s32.totalorder %s27, 1
        %s540 = scalar_select %p539, %s27, 1
        %s541 = scalar_lea.vmem %s6, %s540
        %p542 = pneg %p199
        %p543 = pneg %p196
        %p544 = scmp.lt.s32.totalorder %s27, 1
        %s545 = scalar_select %p544, %s27, 1
        %s546 = smul.addr %s545, 64
        %s547 = smul.addr %s546, 4
        %s548 = scalar_lea.vmem %s7, %s547
        %p549 = pneg %p225
        %p550 = pneg %p222
        %p551 = scmp.lt.s32.totalorder %s27, 1
        %s552 = scalar_select %p551, %s27, 1
        %s553 = smul.addr %s552, 16
        %s554 = scalar_lea.vmem %s8, %s553
        %p555 = pneg %p251
        %p556 = pneg %p248
        %s557 = sand.u32 %s264, 1
        %s558 = scalar_lea.sflag [#allocation4], %s557
        %s559 = sand.u32 %s264, 1
        %s560 = smul.addr %s559, 256
        %s561 = scalar_lea.vmem [#allocation3], %s560
        %p562 = pneg %p277
        %p563 = pneg %p274
        %p564 = scmp.lt.s32.totalorder %s27, 1
        %s565 = scalar_select %p564, %s27, 1
        %s566 = scalar_lea.vmem %s10, %s565
        %p567 = pneg %p303
        %p568 = pneg %p300
        %p569 = scmp.lt.s32.totalorder %s27, 1
        %s570 = scalar_select %p569, %s27, 1
        %s571 = scalar_lea.vmem %s11, %s570
        %p572 = pneg %p329
        %p573 = pneg %p326
        %p574 = scmp.lt.s32.totalorder %s27, 1
        %s575 = scalar_select %p574, %s27, 1
        %s576 = scalar_lea.vmem %s12, %s575
        %p577 = pneg %p355
        %p578 = pneg %p352
        %p579 = pneg %p376
        %p580 = pneg %p373
        %p581 = scmp.lt.s32.totalorder %s27, 1
        %s582 = scalar_select %p581, %s27, 1
        %s583 = smul.addr %s582, 4
        %s584 = smul.addr %s583, 4
        %s585 = scalar_lea.vmem %s1, %s584
        %p586 = scmp.lt.s32.totalorder %s27, 1
        %s587 = scalar_select %p586, %s27, 1
        %s588 = scalar_lea.vmem %s2, %s587
        %p589 = scmp.lt.s32.totalorder %s27, 1
        %s590 = scalar_select %p589, %s27, 1
        %s591 = smul.addr %s590, 4
        %s592 = smul.addr %s591, 4
        %s593 = scalar_lea.vmem %s3, %s592
        %p594 = scmp.lt.s32.totalorder %s27, 1
        %s595 = scalar_select %p594, %s27, 1
        %s596 = scalar_lea.vmem %s4, %s595
        %p597 = scmp.lt.s32.totalorder %s27, 1
        %s598 = scalar_select %p597, %s27, 1
        %s599 = scalar_lea.vmem %s5, %s598
        %p600 = scmp.lt.s32.totalorder %s27, 1
        %s601 = scalar_select %p600, %s27, 1
        %s602 = scalar_lea.vmem %s6, %s601
        %p603 = scmp.lt.s32.totalorder %s27, 1
        %s604 = scalar_select %p603, %s27, 1
        %s605 = smul.addr %s604, 64
        %s606 = smul.addr %s605, 4
        %s607 = scalar_lea.vmem %s7, %s606
        %p608 = scmp.lt.s32.totalorder %s27, 1
        %s609 = scalar_select %p608, %s27, 1
        %s610 = smul.addr %s609, 16
        %s611 = scalar_lea.vmem %s8, %s610
        %p612 = scmp.lt.s32.totalorder %s27, 1
        %s613 = scalar_select %p612, %s27, 1
        %s614 = scalar_lea.vmem %s10, %s613
        %p615 = scmp.lt.s32.totalorder %s27, 1
        %s616 = scalar_select %p615, %s27, 1
        %s617 = scalar_lea.vmem %s11, %s616
        %p618 = scmp.lt.s32.totalorder %s27, 1
        %s619 = scalar_select %p618, %s27, 1
        %s620 = scalar_lea.vmem %s12, %s619
        %p622 = scmp.eq.s32.totalorder %s27, 0
        // Predicated region
        $region77: #{embedding_net_forward.4} parent=71 // pred_check
          %p623 = pneg %p622
        $region78: #{embedding_net_forward.4} parent=71 // pred_check_branch
          %625 = sbr.rel (%p623) target = $region80
        $region79: #{embedding_net_forward.4} parent=71 // pred_region
          %v626 = vld [vmem:[%s0] sm:$0xff]
          %vm627 = vcmask 261120
          %628 = vst.msk [vmem:[#allocation2] sm:$0xff] %vm627, %v626
        $region80: #{embedding_net_forward.4} parent=71 // pred_fallthru
          _
        %v629 = vld [vmem:[#allocation2] sm:$0xff]
        %v630 = vpack.c.bf16 %v629, %v629
        %v631 = vld [vmem:[%s585] sm:$0xf]
        %v632 = vld [vmem:[%s585 + $0x4] sm:$0xf]
        %v633 = vld [vmem:[%s585 + $0x8] sm:$0xf]
        %v634 = vld [vmem:[%s585 + $0xc] sm:$0xf]
        %v635 = vld [vmem:[%s588] sm:$0x1]
        %v637 = vlaneseq
        %v638 = vshrl.u32 %v637, 7
        %v639 = vsub.s32 0, %v638
        %v640 = vrot.slane %v635, %v639
        %v646 = vunpack.c.l.b16 %v631
        %v647 = vunpack.c.l.b16 %v632
        %v648 = vunpack.c.l.b16 %v633
        %v649 = vunpack.c.l.b16 %v634
        %v650 = vpack.c.b16 %v647, %v646
        %v651 = vpack.c.b16 %v649, %v648
        %vm654 = vcmask 261120
        %v656 = vsel %vm654, %v630, 0
        %658 = vmatprep.subr.bf16.mxu0 0
        %659 = vmatpush1.bf16.msra.mxu0 %v650
        %660 = vmatprep.subr.bf16.mxu0 0
        %661 = vmatpush1.bf16.msra.mxu0 %v651
        %662 = vmatprep.subr.bf16.mxu0 0
        %663 = vmatpush1.bf16.msra.mxu0 0
        %664 = vmatprep.subr.bf16.mxu0 0
        %665 = vmatpush1.bf16.msra.mxu0 0
        %666 = vmatprep.subr.bf16.mxu0 0
        %667 = vmatpush1.bf16.msra.mxu0 0
        %668 = vmatprep.subr.bf16.mxu0 0
        %669 = vmatpush1.bf16.msra.mxu0 0
        %670 = vmatprep.subr.bf16.mxu0 0
        %671 = vmatpush1.bf16.msra.mxu0 0
        %672 = vmatprep.subr.bf16.mxu0 0
        %673 = vmatpush1.bf16.msra.mxu0 0
        %674 = vmatprep.subr.bf16.mxu0 0
        %675 = vmatpush1.bf16.msra.mxu0 0
        %676 = vmatprep.subr.bf16.mxu0 0
        %677 = vmatpush1.bf16.msra.mxu0 0
        %678 = vmatprep.subr.bf16.mxu0 0
        %679 = vmatpush1.bf16.msra.mxu0 0
        %680 = vmatprep.subr.bf16.mxu0 0
        %681 = vmatpush1.bf16.msra.mxu0 0
        %682 = vmatprep.subr.bf16.mxu0 0
        %683 = vmatpush1.bf16.msra.mxu0 0
        %684 = vmatprep.subr.bf16.mxu0 0
        %685 = vmatpush1.bf16.msra.mxu0 0
        %686 = vmatprep.subr.bf16.mxu0 0
        %687 = vmatpush1.bf16.msra.mxu0 0
        %688 = vmatprep.subr.bf16.mxu0 0
        %689 = vmatpush1.bf16.msra.mxu0 0
        %690 = vmatprep.mubr.bf16.mxu0 0
        %691 = vmatmul.mubr.bf16.gmra.mrb[0].mxu0 %v656
        %v692 = vpop.f32.mrb[0].mxu0
        %v693 = vadd.f32 %v640, %v692
        %v694 = vpop.f32.mrb[0].mxu0
        %v695 = vpop.f32.mrb[0].mxu0
        %v696 = vpop.f32.mrb[0].mxu0
        %697 = vdwg.mxu0
        %v698 = vld [vmem:[%s593] sm:$0xf]
        %v699 = vld [vmem:[%s593 + $0x4] sm:$0xf]
        %v700 = vld [vmem:[%s593 + $0x8] sm:$0xf]
        %v701 = vld [vmem:[%s593 + $0xc] sm:$0xf]
        %703 = vrot.lane.b32.xlu0 %v693, 96
        %v704 = vpop.permute.xlu0 %703
        %vm705 = vcmask 64512
        %v706 = vsel %vm705, %v693, 0
        %v708 = vsel %vm705, %v704, 0
        %710 = vmatprep.subr.mxu0 0.0
        %711 = vmatpush1.xpose.msra.mxu0 %v708
        %712 = vmatprep.subr.mxu0 0.0
        %713 = vmatpush1.xpose.msra.mxu0 0.0
        %714 = vmatprep.subr.mxu0 0.0
        %715 = vmatpush1.xpose.msra.mxu0 0.0
        %716 = vmatprep.subr.mxu0 0.0
        %717 = vmatpush1.xpose.msra.mxu0 0.0
        %718 = vmatprep.subr.mxu0 0.0
        %719 = vmatpush1.xpose.msra.mxu0 0.0
        %720 = vmatprep.subr.mxu0 0.0
        %721 = vmatpush1.xpose.msra.mxu0 0.0
        %722 = vmatprep.subr.mxu0 0.0
        %723 = vmatpush1.xpose.msra.mxu0 0.0
        %724 = vmatprep.subr.mxu0 0.0
        %725 = vmatpush1.xpose.msra.mxu0 0.0
        %726 = vmatprep.subr.mxu0 0.0
        %727 = vmatpush1.xpose.msra.mxu0 0.0
        %728 = vmatprep.subr.mxu0 0.0
        %729 = vmatpush1.xpose.msra.mxu0 0.0
        %730 = vmatprep.subr.mxu0 0.0
        %731 = vmatpush1.xpose.msra.mxu0 0.0
        %732 = vmatprep.subr.mxu0 0.0
        %733 = vmatpush1.xpose.msra.mxu0 0.0
        %734 = vmatprep.subr.mxu0 0.0
        %735 = vmatpush1.xpose.msra.mxu0 0.0
        %736 = vmatprep.subr.mxu0 0.0
        %737 = vmatpush1.xpose.msra.mxu0 0.0
        %738 = vmatprep.subr.mxu0 0.0
        %739 = vmatpush1.xpose.msra.mxu0 0.0
        %740 = vmatprep.subr.mxu0 0.0
        %741 = vmatpush1.xpose.msra.mxu0 0.0
        %742 = vmatprep.subr.mxu0 0.0
        %743 = vmatpush1.xpose.msra.mxu0 0.0
        %744 = vmatprep.subr.mxu0 0.0
        %745 = vmatpush1.xpose.msra.mxu0 0.0
        %746 = vmatprep.subr.mxu0 0.0
        %747 = vmatpush1.xpose.msra.mxu0 0.0
        %748 = vmatprep.subr.mxu0 0.0
        %749 = vmatpush1.xpose.msra.mxu0 0.0
        %750 = vmatprep.subr.mxu0 0.0
        %751 = vmatpush1.xpose.msra.mxu0 0.0
        %752 = vmatprep.subr.mxu0 0.0
        %753 = vmatpush1.xpose.msra.mxu0 0.0
        %754 = vmatprep.subr.mxu0 0.0
        %755 = vmatpush1.xpose.msra.mxu0 0.0
        %756 = vmatprep.subr.mxu0 0.0
        %757 = vmatpush1.xpose.msra.mxu0 0.0
        %758 = vmatprep.subr.mxu0 0.0
        %759 = vmatpush1.xpose.msra.mxu0 0.0
        %760 = vmatprep.subr.mxu0 0.0
        %761 = vmatpush1.xpose.msra.mxu0 0.0
        %762 = vmatprep.subr.mxu0 0.0
        %763 = vmatpush1.xpose.msra.mxu0 0.0
        %764 = vmatprep.subr.mxu0 0.0
        %765 = vmatpush1.xpose.msra.mxu0 0.0
        %766 = vmatprep.subr.mxu0 0.0
        %767 = vmatpush1.xpose.msra.mxu0 0.0
        %768 = vmatprep.subr.mxu0 0.0
        %769 = vmatpush1.xpose.msra.mxu0 0.0
        %770 = vmatprep.subr.mxu0 0.0
        %771 = vmatpush1.xpose.msra.mxu0 0.0
        %772 = vmatprep.subr.mxu0 0.0
        %773 = vmatpush1.xpose.msra.mxu0 0.0
        %774 = vmatprep.mubr.f32.mxu0 0.0
        %775 = vmatmul.mubr.f32.gmra.mrb[0].mxu0 %v706
        %v776 = vpop.f32.mrb[0].mxu0
        %v777 = vadd.f32 0.0, %v776
        %v778 = vpop.f32.mrb[0].mxu0
        %779 = vdwg.mxu0
        %v780 = vmul.f32 %v777, 0.35355338
        %v781 = vsel %vm705, %v780, -inf
        %782 = vmax.xlane.f32.xlu0 %v781
        %v783 = vpop.xlane.xlu0 %782
        %v784 = vsub.f32 %v780, %v783
        %v785 = vmul.f32 %v784, 1.442695
        %v786 = vpow.pop %v785
        %v787 = vsel %vm705, %v786, 0.0
        %788 = vadd.xlane.f32.xlu0 %v787
        %v789 = vpop.xlane.xlu0 %788
        %v790 = vrcp.pop %v789
        %v791 = vmul.f32 %v786, %v790
        %792 = vrot.lane.b32.xlu0 %v693, 64
        %v793 = vpop.permute.xlu0 %792
        %v796 = vsel %vm705, %v791, 0
        %798 = vmatprep.subr.mxu0 0.0
        %799 = vmatpush1.msra.mxu0 %v793
        %800 = vmatprep.subr.mxu0 0.0
        %801 = vmatpush1.msra.mxu0 0.0
        %802 = vmatprep.subr.mxu0 0.0
        %803 = vmatpush1.msra.mxu0 0.0
        %804 = vmatprep.subr.mxu0 0.0
        %805 = vmatpush1.msra.mxu0 0.0
        %806 = vmatprep.subr.mxu0 0.0
        %807 = vmatpush1.msra.mxu0 0.0
        %808 = vmatprep.subr.mxu0 0.0
        %809 = vmatpush1.msra.mxu0 0.0
        %810 = vmatprep.subr.mxu0 0.0
        %811 = vmatpush1.msra.mxu0 0.0
        %812 = vmatprep.subr.mxu0 0.0
        %813 = vmatpush1.msra.mxu0 0.0
        %814 = vmatprep.subr.mxu0 0.0
        %815 = vmatpush1.msra.mxu0 0.0
        %816 = vmatprep.subr.mxu0 0.0
        %817 = vmatpush1.msra.mxu0 0.0
        %818 = vmatprep.subr.mxu0 0.0
        %819 = vmatpush1.msra.mxu0 0.0
        %820 = vmatprep.subr.mxu0 0.0
        %821 = vmatpush1.msra.mxu0 0.0
        %822 = vmatprep.subr.mxu0 0.0
        %823 = vmatpush1.msra.mxu0 0.0
        %824 = vmatprep.subr.mxu0 0.0
        %825 = vmatpush1.msra.mxu0 0.0
        %826 = vmatprep.subr.mxu0 0.0
        %827 = vmatpush1.msra.mxu0 0.0
        %828 = vmatprep.subr.mxu0 0.0
        %829 = vmatpush1.msra.mxu0 0.0
        %830 = vmatprep.subr.mxu0 0.0
        %831 = vmatpush1.msra.mxu0 0.0
        %832 = vmatprep.subr.mxu0 0.0
        %833 = vmatpush1.msra.mxu0 0.0
        %834 = vmatprep.subr.mxu0 0.0
        %835 = vmatpush1.msra.mxu0 0.0
        %836 = vmatprep.subr.mxu0 0.0
        %837 = vmatpush1.msra.mxu0 0.0
        %838 = vmatprep.subr.mxu0 0.0
        %839 = vmatpush1.msra.mxu0 0.0
        %840 = vmatprep.subr.mxu0 0.0
        %841 = vmatpush1.msra.mxu0 0.0
        %842 = vmatprep.subr.mxu0 0.0
        %843 = vmatpush1.msra.mxu0 0.0
        %844 = vmatprep.subr.mxu0 0.0
        %845 = vmatpush1.msra.mxu0 0.0
        %846 = vmatprep.subr.mxu0 0.0
        %847 = vmatpush1.msra.mxu0 0.0
        %848 = vmatprep.subr.mxu0 0.0
        %849 = vmatpush1.msra.mxu0 0.0
        %850 = vmatprep.subr.mxu0 0.0
        %851 = vmatpush1.msra.mxu0 0.0
        %852 = vmatprep.subr.mxu0 0.0
        %853 = vmatpush1.msra.mxu0 0.0
        %854 = vmatprep.subr.mxu0 0.0
        %855 = vmatpush1.msra.mxu0 0.0
        %856 = vmatprep.subr.mxu0 0.0
        %857 = vmatpush1.msra.mxu0 0.0
        %858 = vmatprep.subr.mxu0 0.0
        %859 = vmatpush1.msra.mxu0 0.0
        %860 = vmatprep.subr.mxu0 0.0
        %861 = vmatpush1.msra.mxu0 0.0
        %862 = vmatprep.mubr.f32.mxu0 0.0
        %863 = vmatmul.mubr.f32.gmra.mrb[0].mxu0 %v796
        %v864 = vpop.f32.mrb[0].mxu0
        %v865 = vadd.f32 0.0, %v864
        %v866 = vpop.f32.mrb[0].mxu0
        %867 = vdwg.mxu0
        %v868 = vpack.c.bf16 %v865, %v865
        %869 = vrot.lane.b32.xlu0 %v693, 120
        %v870 = vpop.permute.xlu0 %869
        %871 = vrot.lane.b32.xlu0 %v693, 88
        %v872 = vpop.permute.xlu0 %871
        %v873 = vsel %vm705, %v870, 0
        %v875 = vsel %vm705, %v872, 0
        %877 = vmatprep.subr.mxu0 0.0
        %878 = vmatpush1.xpose.msra.mxu0 %v875
        %879 = vmatprep.subr.mxu0 0.0
        %880 = vmatpush1.xpose.msra.mxu0 0.0
        %881 = vmatprep.subr.mxu0 0.0
        %882 = vmatpush1.xpose.msra.mxu0 0.0
        %883 = vmatprep.subr.mxu0 0.0
        %884 = vmatpush1.xpose.msra.mxu0 0.0
        %885 = vmatprep.subr.mxu0 0.0
        %886 = vmatpush1.xpose.msra.mxu0 0.0
        %887 = vmatprep.subr.mxu0 0.0
        %888 = vmatpush1.xpose.msra.mxu0 0.0
        %889 = vmatprep.subr.mxu0 0.0
        %890 = vmatpush1.xpose.msra.mxu0 0.0
        %891 = vmatprep.subr.mxu0 0.0
        %892 = vmatpush1.xpose.msra.mxu0 0.0
        %893 = vmatprep.subr.mxu0 0.0
        %894 = vmatpush1.xpose.msra.mxu0 0.0
        %895 = vmatprep.subr.mxu0 0.0
        %896 = vmatpush1.xpose.msra.mxu0 0.0
        %897 = vmatprep.subr.mxu0 0.0
        %898 = vmatpush1.xpose.msra.mxu0 0.0
        %899 = vmatprep.subr.mxu0 0.0
        %900 = vmatpush1.xpose.msra.mxu0 0.0
        %901 = vmatprep.subr.mxu0 0.0
        %902 = vmatpush1.xpose.msra.mxu0 0.0
        %903 = vmatprep.subr.mxu0 0.0
        %904 = vmatpush1.xpose.msra.mxu0 0.0
        %905 = vmatprep.subr.mxu0 0.0
        %906 = vmatpush1.xpose.msra.mxu0 0.0
        %907 = vmatprep.subr.mxu0 0.0
        %908 = vmatpush1.xpose.msra.mxu0 0.0
        %909 = vmatprep.subr.mxu0 0.0
        %910 = vmatpush1.xpose.msra.mxu0 0.0
        %911 = vmatprep.subr.mxu0 0.0
        %912 = vmatpush1.xpose.msra.mxu0 0.0
        %913 = vmatprep.subr.mxu0 0.0
        %914 = vmatpush1.xpose.msra.mxu0 0.0
        %915 = vmatprep.subr.mxu0 0.0
        %916 = vmatpush1.xpose.msra.mxu0 0.0
        %917 = vmatprep.subr.mxu0 0.0
        %918 = vmatpush1.xpose.msra.mxu0 0.0
        %919 = vmatprep.subr.mxu0 0.0
        %920 = vmatpush1.xpose.msra.mxu0 0.0
        %921 = vmatprep.subr.mxu0 0.0
        %922 = vmatpush1.xpose.msra.mxu0 0.0
        %923 = vmatprep.subr.mxu0 0.0
        %924 = vmatpush1.xpose.msra.mxu0 0.0
        %925 = vmatprep.subr.mxu0 0.0
        %926 = vmatpush1.xpose.msra.mxu0 0.0
        %927 = vmatprep.subr.mxu0 0.0
        %928 = vmatpush1.xpose.msra.mxu0 0.0
        %929 = vmatprep.subr.mxu0 0.0
        %930 = vmatpush1.xpose.msra.mxu0 0.0
        %931 = vmatprep.subr.mxu0 0.0
        %932 = vmatpush1.xpose.msra.mxu0 0.0
        %933 = vmatprep.subr.mxu0 0.0
        %934 = vmatpush1.xpose.msra.mxu0 0.0
        %935 = vmatprep.subr.mxu0 0.0
        %936 = vmatpush1.xpose.msra.mxu0 0.0
        %937 = vmatprep.subr.mxu0 0.0
        %938 = vmatpush1.xpose.msra.mxu0 0.0
        %939 = vmatprep.subr.mxu0 0.0
        %940 = vmatpush1.xpose.msra.mxu0 0.0
        %941 = vmatprep.mubr.f32.mxu0 0.0
        %942 = vmatmul.mubr.f32.gmra.mrb[0].mxu0 %v873
        %v943 = vpop.f32.mrb[0].mxu0
        %v944 = vadd.f32 0.0, %v943
        %v945 = vpop.f32.mrb[0].mxu0
        %946 = vdwg.mxu0
        %v947 = vmul.f32 %v944, 0.35355338
        %v948 = vsel %vm705, %v947, -inf
        %949 = vmax.xlane.f32.xlu0 %v948
        %v950 = vpop.xlane.xlu0 %949
        %v951 = vsub.f32 %v947, %v950
        %v952 = vmul.f32 %v951, 1.442695
        %v953 = vpow.pop %v952
        %v954 = vsel %vm705, %v953, 0.0
        %955 = vadd.xlane.f32.xlu0 %v954
        %v956 = vpop.xlane.xlu0 %955
        %v957 = vrcp.pop %v956
        %v958 = vmul.f32 %v953, %v957
        %959 = vrot.lane.b32.xlu0 %v693, 56
        %v960 = vpop.permute.xlu0 %959
        %v963 = vsel %vm705, %v958, 0
        %965 = vmatprep.subr.mxu0 0.0
        %966 = vmatpush1.msra.mxu0 %v960
        %967 = vmatprep.subr.mxu0 0.0
        %968 = vmatpush1.msra.mxu0 0.0
        %969 = vmatprep.subr.mxu0 0.0
        %970 = vmatpush1.msra.mxu0 0.0
        %971 = vmatprep.subr.mxu0 0.0
        %972 = vmatpush1.msra.mxu0 0.0
        %973 = vmatprep.subr.mxu0 0.0
        %974 = vmatpush1.msra.mxu0 0.0
        %975 = vmatprep.subr.mxu0 0.0
        %976 = vmatpush1.msra.mxu0 0.0
        %977 = vmatprep.subr.mxu0 0.0
        %978 = vmatpush1.msra.mxu0 0.0
        %979 = vmatprep.subr.mxu0 0.0
        %980 = vmatpush1.msra.mxu0 0.0
        %981 = vmatprep.subr.mxu0 0.0
        %982 = vmatpush1.msra.mxu0 0.0
        %983 = vmatprep.subr.mxu0 0.0
        %984 = vmatpush1.msra.mxu0 0.0
        %985 = vmatprep.subr.mxu0 0.0
        %986 = vmatpush1.msra.mxu0 0.0
        %987 = vmatprep.subr.mxu0 0.0
        %988 = vmatpush1.msra.mxu0 0.0
        %989 = vmatprep.subr.mxu0 0.0
        %990 = vmatpush1.msra.mxu0 0.0
        %991 = vmatprep.subr.mxu0 0.0
        %992 = vmatpush1.msra.mxu0 0.0
        %993 = vmatprep.subr.mxu0 0.0
        %994 = vmatpush1.msra.mxu0 0.0
        %995 = vmatprep.subr.mxu0 0.0
        %996 = vmatpush1.msra.mxu0 0.0
        %997 = vmatprep.subr.mxu0 0.0
        %998 = vmatpush1.msra.mxu0 0.0
        %999 = vmatprep.subr.mxu0 0.0
        %1000 = vmatpush1.msra.mxu0 0.0
        %1001 = vmatprep.subr.mxu0 0.0
        %1002 = vmatpush1.msra.mxu0 0.0
        %1003 = vmatprep.subr.mxu0 0.0
        %1004 = vmatpush1.msra.mxu0 0.0
        %1005 = vmatprep.subr.mxu0 0.0
        %1006 = vmatpush1.msra.mxu0 0.0
        %1007 = vmatprep.subr.mxu0 0.0
        %1008 = vmatpush1.msra.mxu0 0.0
        %1009 = vmatprep.subr.mxu0 0.0
        %1010 = vmatpush1.msra.mxu0 0.0
        %1011 = vmatprep.subr.mxu0 0.0
        %1012 = vmatpush1.msra.mxu0 0.0
        %1013 = vmatprep.subr.mxu0 0.0
        %1014 = vmatpush1.msra.mxu0 0.0
        %1015 = vmatprep.subr.mxu0 0.0
        %1016 = vmatpush1.msra.mxu0 0.0
        %1017 = vmatprep.subr.mxu0 0.0
        %1018 = vmatpush1.msra.mxu0 0.0
        %1019 = vmatprep.subr.mxu0 0.0
        %1020 = vmatpush1.msra.mxu0 0.0
        %1021 = vmatprep.subr.mxu0 0.0
        %1022 = vmatpush1.msra.mxu0 0.0
        %1023 = vmatprep.subr.mxu0 0.0
        %1024 = vmatpush1.msra.mxu0 0.0
        %1025 = vmatprep.subr.mxu0 0.0
        %1026 = vmatpush1.msra.mxu0 0.0
        %1027 = vmatprep.subr.mxu0 0.0
        %1028 = vmatpush1.msra.mxu0 0.0
        %1029 = vmatprep.mubr.f32.mxu0 0.0
        %1030 = vmatmul.mubr.f32.gmra.mrb[0].mxu0 %v963
        %v1031 = vpop.f32.mrb[0].mxu0
        %v1032 = vadd.f32 0.0, %v1031
        %v1033 = vpop.f32.mrb[0].mxu0
        %1034 = vdwg.mxu0
        %v1035 = vpack.c.bf16 %v1032, %v1032
        %v1037 = vsel %vm705, %v1035, 0
        %vm1039 = vcmask 1043456
        %v1041 = vsel %vm1039, %v699, 0
        %1043 = vmatprep.subr.bf16.mxu0 0
        %1044 = vmatpush1.bf16.msra.mxu0 %v1041
        %1045 = vmatprep.subr.bf16.mxu0 0
        %1046 = vmatpush1.bf16.msra.mxu0 0
        %1047 = vmatprep.subr.bf16.mxu0 0
        %1048 = vmatpush1.bf16.msra.mxu0 0
        %1049 = vmatprep.subr.bf16.mxu0 0
        %1050 = vmatpush1.bf16.msra.mxu0 0
        %1051 = vmatprep.subr.bf16.mxu0 0
        %1052 = vmatpush1.bf16.msra.mxu0 0
        %1053 = vmatprep.subr.bf16.mxu0 0
        %1054 = vmatpush1.bf16.msra.mxu0 0
        %1055 = vmatprep.subr.bf16.mxu0 0
        %1056 = vmatpush1.bf16.msra.mxu0 0
        %1057 = vmatprep.subr.bf16.mxu0 0
        %1058 = vmatpush1.bf16.msra.mxu0 0
        %1059 = vmatprep.subr.bf16.mxu0 0
        %1060 = vmatpush1.bf16.msra.mxu0 0
        %1061 = vmatprep.subr.bf16.mxu0 0
        %1062 = vmatpush1.bf16.msra.mxu0 0
        %1063 = vmatprep.subr.bf16.mxu0 0
        %1064 = vmatpush1.bf16.msra.mxu0 0
        %1065 = vmatprep.subr.bf16.mxu0 0
        %1066 = vmatpush1.bf16.msra.mxu0 0
        %1067 = vmatprep.subr.bf16.mxu0 0
        %1068 = vmatpush1.bf16.msra.mxu0 0
        %1069 = vmatprep.subr.bf16.mxu0 0
        %1070 = vmatpush1.bf16.msra.mxu0 0
        %1071 = vmatprep.subr.bf16.mxu0 0
        %1072 = vmatpush1.bf16.msra.mxu0 0
        %1073 = vmatprep.subr.bf16.mxu0 0
        %1074 = vmatpush1.bf16.msra.mxu0 0
        %1075 = vmatprep.mubr.bf16.mxu0 0
        %1076 = vmatmul.mubr.bf16.gmra.mrb[0].mxu0 %v1037
        %v1077 = vpop.f32.mrb[0].mxu0
        %v1078 = vadd.f32 0.0, %v1077
        %v1079 = vpop.f32.mrb[0].mxu0
        %v1080 = vpop.f32.mrb[0].mxu0
        %v1081 = vpop.f32.mrb[0].mxu0
        %1082 = vdwg.mxu0
        %v1084 = vsel %vm705, %v868, 0
        %v1087 = vsel %vm1039, %v698, 0
        %1089 = vmatprep.subr.bf16.mxu0 0
        %1090 = vmatpush1.bf16.msra.mxu0 %v1087
        %1091 = vmatprep.subr.bf16.mxu0 0
        %1092 = vmatpush1.bf16.msra.mxu0 0
        %1093 = vmatprep.subr.bf16.mxu0 0
        %1094 = vmatpush1.bf16.msra.mxu0 0
        %1095 = vmatprep.subr.bf16.mxu0 0
        %1096 = vmatpush1.bf16.msra.mxu0 0
        %1097 = vmatprep.subr.bf16.mxu0 0
        %1098 = vmatpush1.bf16.msra.mxu0 0
        %1099 = vmatprep.subr.bf16.mxu0 0
        %1100 = vmatpush1.bf16.msra.mxu0 0
        %1101 = vmatprep.subr.bf16.mxu0 0
        %1102 = vmatpush1.bf16.msra.mxu0 0
        %1103 = vmatprep.subr.bf16.mxu0 0
        %1104 = vmatpush1.bf16.msra.mxu0 0
        %1105 = vmatprep.subr.bf16.mxu0 0
        %1106 = vmatpush1.bf16.msra.mxu0 0
        %1107 = vmatprep.subr.bf16.mxu0 0
        %1108 = vmatpush1.bf16.msra.mxu0 0
        %1109 = vmatprep.subr.bf16.mxu0 0
        %1110 = vmatpush1.bf16.msra.mxu0 0
        %1111 = vmatprep.subr.bf16.mxu0 0
        %1112 = vmatpush1.bf16.msra.mxu0 0
        %1113 = vmatprep.subr.bf16.mxu0 0
        %1114 = vmatpush1.bf16.msra.mxu0 0
        %1115 = vmatprep.subr.bf16.mxu0 0
        %1116 = vmatpush1.bf16.msra.mxu0 0
        %1117 = vmatprep.subr.bf16.mxu0 0
        %1118 = vmatpush1.bf16.msra.mxu0 0
        %1119 = vmatprep.subr.bf16.mxu0 0
        %1120 = vmatpush1.bf16.msra.mxu0 0
        %1121 = vmatprep.mubr.bf16.mxu0 0
        %1122 = vmatmul.mubr.bf16.gmra.mrb[0].mxu0 %v1084
        %v1123 = vpop.f32.mrb[0].mxu0
        %v1124 = vadd.f32 %v1078, %v1123
        %v1125 = vpop.f32.mrb[0].mxu0
        %v1126 = vpop.f32.mrb[0].mxu0
        %v1127 = vpop.f32.mrb[0].mxu0
        %1128 = vdwg.mxu0
        %1129 = vrot.lane.b32.xlu0 %v693, 112
        %v1130 = vpop.permute.xlu0 %1129
        %1131 = vrot.lane.b32.xlu0 %v693, 80
        %v1132 = vpop.permute.xlu0 %1131
        %v1133 = vsel %vm705, %v1130, 0
        %v1135 = vsel %vm705, %v1132, 0
        %1137 = vmatprep.subr.mxu0 0.0
        %1138 = vmatpush1.xpose.msra.mxu0 %v1135
        %1139 = vmatprep.subr.mxu0 0.0
        %1140 = vmatpush1.xpose.msra.mxu0 0.0
        %1141 = vmatprep.subr.mxu0 0.0
        %1142 = vmatpush1.xpose.msra.mxu0 0.0
        %1143 = vmatprep.subr.mxu0 0.0
        %1144 = vmatpush1.xpose.msra.mxu0 0.0
        %1145 = vmatprep.subr.mxu0 0.0
        %1146 = vmatpush1.xpose.msra.mxu0 0.0
        %1147 = vmatprep.subr.mxu0 0.0
        %1148 = vmatpush1.xpose.msra.mxu0 0.0
        %1149 = vmatprep.subr.mxu0 0.0
        %1150 = vmatpush1.xpose.msra.mxu0 0.0
        %1151 = vmatprep.subr.mxu0 0.0
        %1152 = vmatpush1.xpose.msra.mxu0 0.0
        %1153 = vmatprep.subr.mxu0 0.0
        %1154 = vmatpush1.xpose.msra.mxu0 0.0
        %1155 = vmatprep.subr.mxu0 0.0
        %1156 = vmatpush1.xpose.msra.mxu0 0.0
        %1157 = vmatprep.subr.mxu0 0.0
        %1158 = vmatpush1.xpose.msra.mxu0 0.0
        %1159 = vmatprep.subr.mxu0 0.0
        %1160 = vmatpush1.xpose.msra.mxu0 0.0
        %1161 = vmatprep.subr.mxu0 0.0
        %1162 = vmatpush1.xpose.msra.mxu0 0.0
        %1163 = vmatprep.subr.mxu0 0.0
        %1164 = vmatpush1.xpose.msra.mxu0 0.0
        %1165 = vmatprep.subr.mxu0 0.0
        %1166 = vmatpush1.xpose.msra.mxu0 0.0
        %1167 = vmatprep.subr.mxu0 0.0
        %1168 = vmatpush1.xpose.msra.mxu0 0.0
        %1169 = vmatprep.subr.mxu0 0.0
        %1170 = vmatpush1.xpose.msra.mxu0 0.0
        %1171 = vmatprep.subr.mxu0 0.0
        %1172 = vmatpush1.xpose.msra.mxu0 0.0
        %1173 = vmatprep.subr.mxu0 0.0
        %1174 = vmatpush1.xpose.msra.mxu0 0.0
        %1175 = vmatprep.subr.mxu0 0.0
        %1176 = vmatpush1.xpose.msra.mxu0 0.0
        %1177 = vmatprep.subr.mxu0 0.0
        %1178 = vmatpush1.xpose.msra.mxu0 0.0
        %1179 = vmatprep.subr.mxu0 0.0
        %1180 = vmatpush1.xpose.msra.mxu0 0.0
        %1181 = vmatprep.subr.mxu0 0.0
        %1182 = vmatpush1.xpose.msra.mxu0 0.0
        %1183 = vmatprep.subr.mxu0 0.0
        %1184 = vmatpush1.xpose.msra.mxu0 0.0
        %1185 = vmatprep.subr.mxu0 0.0
        %1186 = vmatpush1.xpose.msra.mxu0 0.0
        %1187 = vmatprep.subr.mxu0 0.0
        %1188 = vmatpush1.xpose.msra.mxu0 0.0
        %1189 = vmatprep.subr.mxu0 0.0
        %1190 = vmatpush1.xpose.msra.mxu0 0.0
        %1191 = vmatprep.subr.mxu0 0.0
        %1192 = vmatpush1.xpose.msra.mxu0 0.0
        %1193 = vmatprep.subr.mxu0 0.0
        %1194 = vmatpush1.xpose.msra.mxu0 0.0
        %1195 = vmatprep.subr.mxu0 0.0
        %1196 = vmatpush1.xpose.msra.mxu0 0.0
        %1197 = vmatprep.subr.mxu0 0.0
        %1198 = vmatpush1.xpose.msra.mxu0 0.0
        %1199 = vmatprep.subr.mxu0 0.0
        %1200 = vmatpush1.xpose.msra.mxu0 0.0
        %1201 = vmatprep.mubr.f32.mxu0 0.0
        %1202 = vmatmul.mubr.f32.gmra.mrb[0].mxu0 %v1133
        %v1203 = vpop.f32.mrb[0].mxu0
        %v1204 = vadd.f32 0.0, %v1203
        %v1205 = vpop.f32.mrb[0].mxu0
        %1206 = vdwg.mxu0
        %v1207 = vmul.f32 %v1204, 0.35355338
        %v1208 = vsel %vm705, %v1207, -inf
        %1209 = vmax.xlane.f32.xlu0 %v1208
        %v1210 = vpop.xlane.xlu0 %1209
        %v1211 = vsub.f32 %v1207, %v1210
        %v1212 = vmul.f32 %v1211, 1.442695
        %v1213 = vpow.pop %v1212
        %v1214 = vsel %vm705, %v1213, 0.0
        %1215 = vadd.xlane.f32.xlu0 %v1214
        %v1216 = vpop.xlane.xlu0 %1215
        %v1217 = vrcp.pop %v1216
        %v1218 = vmul.f32 %v1213, %v1217
        %1219 = vrot.lane.b32.xlu0 %v693, 48
        %v1220 = vpop.permute.xlu0 %1219
        %v1223 = vsel %vm705, %v1218, 0
        %1225 = vmatprep.subr.mxu0 0.0
        %1226 = vmatpush1.msra.mxu0 %v1220
        %1227 = vmatprep.subr.mxu0 0.0
        %1228 = vmatpush1.msra.mxu0 0.0
        %1229 = vmatprep.subr.mxu0 0.0
        %1230 = vmatpush1.msra.mxu0 0.0
        %1231 = vmatprep.subr.mxu0 0.0
        %1232 = vmatpush1.msra.mxu0 0.0
        %1233 = vmatprep.subr.mxu0 0.0
        %1234 = vmatpush1.msra.mxu0 0.0
        %1235 = vmatprep.subr.mxu0 0.0
        %1236 = vmatpush1.msra.mxu0 0.0
        %1237 = vmatprep.subr.mxu0 0.0
        %1238 = vmatpush1.msra.mxu0 0.0
        %1239 = vmatprep.subr.mxu0 0.0
        %1240 = vmatpush1.msra.mxu0 0.0
        %1241 = vmatprep.subr.mxu0 0.0
        %1242 = vmatpush1.msra.mxu0 0.0
        %1243 = vmatprep.subr.mxu0 0.0
        %1244 = vmatpush1.msra.mxu0 0.0
        %1245 = vmatprep.subr.mxu0 0.0
        %1246 = vmatpush1.msra.mxu0 0.0
        %1247 = vmatprep.subr.mxu0 0.0
        %1248 = vmatpush1.msra.mxu0 0.0
        %1249 = vmatprep.subr.mxu0 0.0
        %1250 = vmatpush1.msra.mxu0 0.0
        %1251 = vmatprep.subr.mxu0 0.0
        %1252 = vmatpush1.msra.mxu0 0.0
        %1253 = vmatprep.subr.mxu0 0.0
        %1254 = vmatpush1.msra.mxu0 0.0
        %1255 = vmatprep.subr.mxu0 0.0
        %1256 = vmatpush1.msra.mxu0 0.0
        %1257 = vmatprep.subr.mxu0 0.0
        %1258 = vmatpush1.msra.mxu0 0.0
        %1259 = vmatprep.subr.mxu0 0.0
        %1260 = vmatpush1.msra.mxu0 0.0
        %1261 = vmatprep.subr.mxu0 0.0
        %1262 = vmatpush1.msra.mxu0 0.0
        %1263 = vmatprep.subr.mxu0 0.0
        %1264 = vmatpush1.msra.mxu0 0.0
        %1265 = vmatprep.subr.mxu0 0.0
        %1266 = vmatpush1.msra.mxu0 0.0
        %1267 = vmatprep.subr.mxu0 0.0
        %1268 = vmatpush1.msra.mxu0 0.0
        %1269 = vmatprep.subr.mxu0 0.0
        %1270 = vmatpush1.msra.mxu0 0.0
        %1271 = vmatprep.subr.mxu0 0.0
        %1272 = vmatpush1.msra.mxu0 0.0
        %1273 = vmatprep.subr.mxu0 0.0
        %1274 = vmatpush1.msra.mxu0 0.0
        %1275 = vmatprep.subr.mxu0 0.0
        %1276 = vmatpush1.msra.mxu0 0.0
        %1277 = vmatprep.subr.mxu0 0.0
        %1278 = vmatpush1.msra.mxu0 0.0
        %1279 = vmatprep.subr.mxu0 0.0
        %1280 = vmatpush1.msra.mxu0 0.0
        %1281 = vmatprep.subr.mxu0 0.0
        %1282 = vmatpush1.msra.mxu0 0.0
        %1283 = vmatprep.subr.mxu0 0.0
        %1284 = vmatpush1.msra.mxu0 0.0
        %1285 = vmatprep.subr.mxu0 0.0
        %1286 = vmatpush1.msra.mxu0 0.0
        %1287 = vmatprep.subr.mxu0 0.0
        %1288 = vmatpush1.msra.mxu0 0.0
        %1289 = vmatprep.mubr.f32.mxu0 0.0
        %1290 = vmatmul.mubr.f32.gmra.mrb[0].mxu0 %v1223
        %v1291 = vpop.f32.mrb[0].mxu0
        %v1292 = vadd.f32 0.0, %v1291
        %v1293 = vpop.f32.mrb[0].mxu0
        %1294 = vdwg.mxu0
        %v1295 = vpack.c.bf16 %v1292, %v1292
        %v1297 = vsel %vm705, %v1295, 0
        %v1300 = vsel %vm1039, %v700, 0
        %1302 = vmatprep.subr.bf16.mxu0 0
        %1303 = vmatpush1.bf16.msra.mxu0 %v1300
        %1304 = vmatprep.subr.bf16.mxu0 0
        %1305 = vmatpush1.bf16.msra.mxu0 0
        %1306 = vmatprep.subr.bf16.mxu0 0
        %1307 = vmatpush1.bf16.msra.mxu0 0
        %1308 = vmatprep.subr.bf16.mxu0 0
        %1309 = vmatpush1.bf16.msra.mxu0 0
        %1310 = vmatprep.subr.bf16.mxu0 0
        %1311 = vmatpush1.bf16.msra.mxu0 0
        %1312 = vmatprep.subr.bf16.mxu0 0
        %1313 = vmatpush1.bf16.msra.mxu0 0
        %1314 = vmatprep.subr.bf16.mxu0 0
        %1315 = vmatpush1.bf16.msra.mxu0 0
        %1316 = vmatprep.subr.bf16.mxu0 0
        %1317 = vmatpush1.bf16.msra.mxu0 0
        %1318 = vmatprep.subr.bf16.mxu0 0
        %1319 = vmatpush1.bf16.msra.mxu0 0
        %1320 = vmatprep.subr.bf16.mxu0 0
        %1321 = vmatpush1.bf16.msra.mxu0 0
        %1322 = vmatprep.subr.bf16.mxu0 0
        %1323 = vmatpush1.bf16.msra.mxu0 0
        %1324 = vmatprep.subr.bf16.mxu0 0
        %1325 = vmatpush1.bf16.msra.mxu0 0
        %1326 = vmatprep.subr.bf16.mxu0 0
        %1327 = vmatpush1.bf16.msra.mxu0 0
        %1328 = vmatprep.subr.bf16.mxu0 0
        %1329 = vmatpush1.bf16.msra.mxu0 0
        %1330 = vmatprep.subr.bf16.mxu0 0
        %1331 = vmatpush1.bf16.msra.mxu0 0
        %1332 = vmatprep.subr.bf16.mxu0 0
        %1333 = vmatpush1.bf16.msra.mxu0 0
        %1334 = vmatprep.mubr.bf16.mxu0 0
        %1335 = vmatmul.mubr.bf16.gmra.mrb[0].mxu0 %v1297
        %v1336 = vpop.f32.mrb[0].mxu0
        %v1337 = vadd.f32 0.0, %v1336
        %v1338 = vpop.f32.mrb[0].mxu0
        %v1339 = vpop.f32.mrb[0].mxu0
        %v1340 = vpop.f32.mrb[0].mxu0
        %1341 = vdwg.mxu0
        %v1342 = vadd.f32 %v1124, %v1337
        %1343 = vrot.lane.b32.xlu0 %v693, 104
        %v1344 = vpop.permute.xlu0 %1343
        %1345 = vrot.lane.b32.xlu0 %v693, 72
        %v1346 = vpop.permute.xlu0 %1345
        %v1347 = vsel %vm705, %v1344, 0
        %v1349 = vsel %vm705, %v1346, 0
        %1351 = vmatprep.subr.mxu0 0.0
        %1352 = vmatpush1.xpose.msra.mxu0 %v1349
        %1353 = vmatprep.subr.mxu0 0.0
        %1354 = vmatpush1.xpose.msra.mxu0 0.0
        %1355 = vmatprep.subr.mxu0 0.0
        %1356 = vmatpush1.xpose.msra.mxu0 0.0
        %1357 = vmatprep.subr.mxu0 0.0
        %1358 = vmatpush1.xpose.msra.mxu0 0.0
        %1359 = vmatprep.subr.mxu0 0.0
        %1360 = vmatpush1.xpose.msra.mxu0 0.0
        %1361 = vmatprep.subr.mxu0 0.0
        %1362 = vmatpush1.xpose.msra.mxu0 0.0
        %1363 = vmatprep.subr.mxu0 0.0
        %1364 = vmatpush1.xpose.msra.mxu0 0.0
        %1365 = vmatprep.subr.mxu0 0.0
        %1366 = vmatpush1.xpose.msra.mxu0 0.0
        %1367 = vmatprep.subr.mxu0 0.0
        %1368 = vmatpush1.xpose.msra.mxu0 0.0
        %1369 = vmatprep.subr.mxu0 0.0
        %1370 = vmatpush1.xpose.msra.mxu0 0.0
        %1371 = vmatprep.subr.mxu0 0.0
        %1372 = vmatpush1.xpose.msra.mxu0 0.0
        %1373 = vmatprep.subr.mxu0 0.0
        %1374 = vmatpush1.xpose.msra.mxu0 0.0
        %1375 = vmatprep.subr.mxu0 0.0
        %1376 = vmatpush1.xpose.msra.mxu0 0.0
        %1377 = vmatprep.subr.mxu0 0.0
        %1378 = vmatpush1.xpose.msra.mxu0 0.0
        %1379 = vmatprep.subr.mxu0 0.0
        %1380 = vmatpush1.xpose.msra.mxu0 0.0
        %1381 = vmatprep.subr.mxu0 0.0
        %1382 = vmatpush1.xpose.msra.mxu0 0.0
        %1383 = vmatprep.subr.mxu0 0.0
        %1384 = vmatpush1.xpose.msra.mxu0 0.0
        %1385 = vmatprep.subr.mxu0 0.0
        %1386 = vmatpush1.xpose.msra.mxu0 0.0
        %1387 = vmatprep.subr.mxu0 0.0
        %1388 = vmatpush1.xpose.msra.mxu0 0.0
        %1389 = vmatprep.subr.mxu0 0.0
        %1390 = vmatpush1.xpose.msra.mxu0 0.0
        %1391 = vmatprep.subr.mxu0 0.0
        %1392 = vmatpush1.xpose.msra.mxu0 0.0
        %1393 = vmatprep.subr.mxu0 0.0
        %1394 = vmatpush1.xpose.msra.mxu0 0.0
        %1395 = vmatprep.subr.mxu0 0.0
        %1396 = vmatpush1.xpose.msra.mxu0 0.0
        %1397 = vmatprep.subr.mxu0 0.0
        %1398 = vmatpush1.xpose.msra.mxu0 0.0
        %1399 = vmatprep.subr.mxu0 0.0
        %1400 = vmatpush1.xpose.msra.mxu0 0.0
        %1401 = vmatprep.subr.mxu0 0.0
        %1402 = vmatpush1.xpose.msra.mxu0 0.0
        %1403 = vmatprep.subr.mxu0 0.0
        %1404 = vmatpush1.xpose.msra.mxu0 0.0
        %1405 = vmatprep.subr.mxu0 0.0
        %1406 = vmatpush1.xpose.msra.mxu0 0.0
        %1407 = vmatprep.subr.mxu0 0.0
        %1408 = vmatpush1.xpose.msra.mxu0 0.0
        %1409 = vmatprep.subr.mxu0 0.0
        %1410 = vmatpush1.xpose.msra.mxu0 0.0
        %1411 = vmatprep.subr.mxu0 0.0
        %1412 = vmatpush1.xpose.msra.mxu0 0.0
        %1413 = vmatprep.subr.mxu0 0.0
        %1414 = vmatpush1.xpose.msra.mxu0 0.0
        %1415 = vmatprep.mubr.f32.mxu0 0.0
        %1416 = vmatmul.mubr.f32.gmra.mrb[0].mxu0 %v1347
        %v1417 = vpop.f32.mrb[0].mxu0
        %v1418 = vadd.f32 0.0, %v1417
        %v1419 = vpop.f32.mrb[0].mxu0
        %1420 = vdwg.mxu0
        %v1421 = vmul.f32 %v1418, 0.35355338
        %v1422 = vsel %vm705, %v1421, -inf
        %1423 = vmax.xlane.f32.xlu0 %v1422
        %v1424 = vpop.xlane.xlu0 %1423
        %v1425 = vsub.f32 %v1421, %v1424
        %v1426 = vmul.f32 %v1425, 1.442695
        %v1427 = vpow.pop %v1426
        %v1428 = vsel %vm705, %v1427, 0.0
        %1429 = vadd.xlane.f32.xlu0 %v1428
        %v1430 = vpop.xlane.xlu0 %1429
        %v1431 = vrcp.pop %v1430
        %v1432 = vmul.f32 %v1427, %v1431
        %1433 = vrot.lane.b32.xlu0 %v693, 40
        %v1434 = vpop.permute.xlu0 %1433
        %v1437 = vsel %vm705, %v1432, 0
        %1439 = vmatprep.subr.mxu0 0.0
        %1440 = vmatpush1.msra.mxu0 %v1434
        %1441 = vmatprep.subr.mxu0 0.0
        %1442 = vmatpush1.msra.mxu0 0.0
        %1443 = vmatprep.subr.mxu0 0.0
        %1444 = vmatpush1.msra.mxu0 0.0
        %1445 = vmatprep.subr.mxu0 0.0
        %1446 = vmatpush1.msra.mxu0 0.0
        %1447 = vmatprep.subr.mxu0 0.0
        %1448 = vmatpush1.msra.mxu0 0.0
        %1449 = vmatprep.subr.mxu0 0.0
        %1450 = vmatpush1.msra.mxu0 0.0
        %1451 = vmatprep.subr.mxu0 0.0
        %1452 = vmatpush1.msra.mxu0 0.0
        %1453 = vmatprep.subr.mxu0 0.0
        %1454 = vmatpush1.msra.mxu0 0.0
        %1455 = vmatprep.subr.mxu0 0.0
        %1456 = vmatpush1.msra.mxu0 0.0
        %1457 = vmatprep.subr.mxu0 0.0
        %1458 = vmatpush1.msra.mxu0 0.0
        %1459 = vmatprep.subr.mxu0 0.0
        %1460 = vmatpush1.msra.mxu0 0.0
        %1461 = vmatprep.subr.mxu0 0.0
        %1462 = vmatpush1.msra.mxu0 0.0
        %1463 = vmatprep.subr.mxu0 0.0
        %1464 = vmatpush1.msra.mxu0 0.0
        %1465 = vmatprep.subr.mxu0 0.0
        %1466 = vmatpush1.msra.mxu0 0.0
        %1467 = vmatprep.subr.mxu0 0.0
        %1468 = vmatpush1.msra.mxu0 0.0
        %1469 = vmatprep.subr.mxu0 0.0
        %1470 = vmatpush1.msra.mxu0 0.0
        %1471 = vmatprep.subr.mxu0 0.0
        %1472 = vmatpush1.msra.mxu0 0.0
        %1473 = vmatprep.subr.mxu0 0.0
        %1474 = vmatpush1.msra.mxu0 0.0
        %1475 = vmatprep.subr.mxu0 0.0
        %1476 = vmatpush1.msra.mxu0 0.0
        %1477 = vmatprep.subr.mxu0 0.0
        %1478 = vmatpush1.msra.mxu0 0.0
        %1479 = vmatprep.subr.mxu0 0.0
        %1480 = vmatpush1.msra.mxu0 0.0
        %1481 = vmatprep.subr.mxu0 0.0
        %1482 = vmatpush1.msra.mxu0 0.0
        %1483 = vmatprep.subr.mxu0 0.0
        %1484 = vmatpush1.msra.mxu0 0.0
        %1485 = vmatprep.subr.mxu0 0.0
        %1486 = vmatpush1.msra.mxu0 0.0
        %1487 = vmatprep.subr.mxu0 0.0
        %1488 = vmatpush1.msra.mxu0 0.0
        %1489 = vmatprep.subr.mxu0 0.0
        %1490 = vmatpush1.msra.mxu0 0.0
        %1491 = vmatprep.subr.mxu0 0.0
        %1492 = vmatpush1.msra.mxu0 0.0
        %1493 = vmatprep.subr.mxu0 0.0
        %1494 = vmatpush1.msra.mxu0 0.0
        %1495 = vmatprep.subr.mxu0 0.0
        %1496 = vmatpush1.msra.mxu0 0.0
        %1497 = vmatprep.subr.mxu0 0.0
        %1498 = vmatpush1.msra.mxu0 0.0
        %1499 = vmatprep.subr.mxu0 0.0
        %1500 = vmatpush1.msra.mxu0 0.0
        %1501 = vmatprep.subr.mxu0 0.0
        %1502 = vmatpush1.msra.mxu0 0.0
        %1503 = vmatprep.mubr.f32.mxu0 0.0
        %1504 = vmatmul.mubr.f32.gmra.mrb[0].mxu0 %v1437
        %v1505 = vpop.f32.mrb[0].mxu0
        %v1506 = vadd.f32 0.0, %v1505
        %v1507 = vpop.f32.mrb[0].mxu0
        %1508 = vdwg.mxu0
        %v1509 = vpack.c.bf16 %v1506, %v1506
        %v1511 = vsel %vm705, %v1509, 0
        %v1514 = vsel %vm1039, %v701, 0
        %1516 = vmatprep.subr.bf16.mxu0 0
        %1517 = vmatpush1.bf16.msra.mxu0 %v1514
        %1518 = vmatprep.subr.bf16.mxu0 0
        %1519 = vmatpush1.bf16.msra.mxu0 0
        %1520 = vmatprep.subr.bf16.mxu0 0
        %1521 = vmatpush1.bf16.msra.mxu0 0
        %1522 = vmatprep.subr.bf16.mxu0 0
        %1523 = vmatpush1.bf16.msra.mxu0 0
        %1524 = vmatprep.subr.bf16.mxu0 0
        %1525 = vmatpush1.bf16.msra.mxu0 0
        %1526 = vmatprep.subr.bf16.mxu0 0
        %1527 = vmatpush1.bf16.msra.mxu0 0
        %1528 = vmatprep.subr.bf16.mxu0 0
        %1529 = vmatpush1.bf16.msra.mxu0 0
        %1530 = vmatprep.subr.bf16.mxu0 0
        %1531 = vmatpush1.bf16.msra.mxu0 0
        %1532 = vmatprep.subr.bf16.mxu0 0
        %1533 = vmatpush1.bf16.msra.mxu0 0
        %1534 = vmatprep.subr.bf16.mxu0 0
        %1535 = vmatpush1.bf16.msra.mxu0 0
        %1536 = vmatprep.subr.bf16.mxu0 0
        %1537 = vmatpush1.bf16.msra.mxu0 0
        %1538 = vmatprep.subr.bf16.mxu0 0
        %1539 = vmatpush1.bf16.msra.mxu0 0
        %1540 = vmatprep.subr.bf16.mxu0 0
        %1541 = vmatpush1.bf16.msra.mxu0 0
        %1542 = vmatprep.subr.bf16.mxu0 0
        %1543 = vmatpush1.bf16.msra.mxu0 0
        %1544 = vmatprep.subr.bf16.mxu0 0
        %1545 = vmatpush1.bf16.msra.mxu0 0
        %1546 = vmatprep.subr.bf16.mxu0 0
        %1547 = vmatpush1.bf16.msra.mxu0 0
        %1548 = vmatprep.mubr.bf16.mxu0 0
        %1549 = vmatmul.mubr.bf16.gmra.mrb[0].mxu0 %v1511
        %v1550 = vpop.f32.mrb[0].mxu0
        %v1551 = vadd.f32 0.0, %v1550
        %v1552 = vpop.f32.mrb[0].mxu0
        %v1553 = vpop.f32.mrb[0].mxu0
        %v1554 = vpop.f32.mrb[0].mxu0
        %1555 = vdwg.mxu0
        %v1556 = vadd.f32 %v1342, %v1551
        %v1557 = vld [vmem:[%s596] sm:$0x1]
        %v1559 = vlaneseq
        %v1560 = vshrl.u32 %v1559, 7
        %v1561 = vsub.s32 0, %v1560
        %v1562 = vrot.slane %v1557, %v1561
        %v1564 = vadd.f32 %v1556, %v1562
        %v1565 = vadd.f32 %v629, %v1564
        %v1566 = vld [vmem:[%s599] sm:$0x1]
        %v1567 = vld [vmem:[%s602] sm:$0x1]
        %v1568 = vsel %vm654, %v1565, 0.0
        %1569 = vadd.xlane.f32.xlu0 %v1568
        %v1570 = vpop.xlane.xlu0 %1569
        %v1571 = vrcp.pop 32.0
        %v1572 = vmul.f32 %v1570, %v1571
        %v1573 = vsub.f32 %v1565, %v1572
        %v1574 = vmul.f32 %v1573, %v1573
        %v1575 = vsel %vm654, %v1574, 0.0
        %1576 = vadd.xlane.f32.xlu0 %v1575
        %v1577 = vpop.xlane.xlu0 %1576
        %v1578 = vmul.f32 %v1577, %v1571
        %v1579 = vadd.f32 %v1578, 1e-05
        %v1580 = vrsqrt.pop %v1579
        %v1581 = vmul.f32 %v1573, %v1580
        %v1583 = vlaneseq
        %v1584 = vshrl.u32 %v1583, 7
        %v1585 = vsub.s32 0, %v1584
        %v1586 = vrot.slane %v1566, %v1585
        %v1588 = vmul.f32 %v1581, %v1586
        %v1590 = vlaneseq
        %v1591 = vshrl.u32 %v1590, 7
        %v1592 = vsub.s32 0, %v1591
        %v1593 = vrot.slane %v1567, %v1592
        %v1595 = vadd.f32 %v1588, %v1593
        %v1596 = vpack.c.bf16 %v1595, %v1595
        %v1597 = vld [vmem:[%s607] sm:$0xff]
        %v1598 = vld [vmem:[%s607 + $0x8] sm:$0xff]
        %v1599 = vld [vmem:[%s607 + $0x10] sm:$0xff]
        %v1600 = vld [vmem:[%s607 + $0x18] sm:$0xff]
        %v1601 = vld [vmem:[%s607 + $0x20] sm:$0xff]
        %v1602 = vld [vmem:[%s607 + $0x28] sm:$0xff]
        %v1603 = vld [vmem:[%s607 + $0x30] sm:$0xff]
        %v1604 = vld [vmem:[%s607 + $0x38] sm:$0xff]
        %v1605 = vld [vmem:[%s607 + $0x40] sm:$0xff]
        %v1606 = vld [vmem:[%s607 + $0x48] sm:$0xff]
        %v1607 = vld [vmem:[%s607 + $0x50] sm:$0xff]
        %v1608 = vld [vmem:[%s607 + $0x58] sm:$0xff]
        %v1609 = vld [vmem:[%s607 + $0x60] sm:$0xff]
        %v1610 = vld [vmem:[%s607 + $0x68] sm:$0xff]
        %v1611 = vld [vmem:[%s607 + $0x70] sm:$0xff]
        %v1612 = vld [vmem:[%s607 + $0x78] sm:$0xff]
        %v1613 = vld [vmem:[%s607 + $0x80] sm:$0xff]
        %v1614 = vld [vmem:[%s607 + $0x88] sm:$0xff]
        %v1615 = vld [vmem:[%s607 + $0x90] sm:$0xff]
        %v1616 = vld [vmem:[%s607 + $0x98] sm:$0xff]
        %v1617 = vld [vmem:[%s607 + $0xa0] sm:$0xff]
        %v1618 = vld [vmem:[%s607 + $0xa8] sm:$0xff]
        %v1619 = vld [vmem:[%s607 + $0xb0] sm:$0xff]
        %v1620 = vld [vmem:[%s607 + $0xb8] sm:$0xff]
        %v1621 = vld [vmem:[%s607 + $0xc0] sm:$0xff]
        %v1622 = vld [vmem:[%s607 + $0xc8] sm:$0xff]
        %v1623 = vld [vmem:[%s607 + $0xd0] sm:$0xff]
        %v1624 = vld [vmem:[%s607 + $0xd8] sm:$0xff]
        %v1625 = vld [vmem:[%s607 + $0xe0] sm:$0xff]
        %v1626 = vld [vmem:[%s607 + $0xe8] sm:$0xff]
        %v1627 = vld [vmem:[%s607 + $0xf0] sm:$0xff]
        %v1628 = vld [vmem:[%s607 + $0xf8] sm:$0xff]
        %v1629 = vld [vmem:[%s611] sm:$0xff]
        %v1630 = vld [vmem:[%s611 + $0x8] sm:$0xff]
        %v1633 = vlaneseq
        %v1634 = vshrl.u32 %v1633, 7
        %v1635 = vsub.s32 0, %v1634
        %v1636 = vrot.slane %v1629, %v1635
        %v1637 = vlaneseq
        %v1638 = vshrl.u32 %v1637, 7
        %v1639 = vsub.s32 1, %v1638
        %v1640 = vrot.slane %v1629, %v1639
        %v1641 = vlaneseq
        %v1642 = vshrl.u32 %v1641, 7
        %v1643 = vsub.s32 2, %v1642
        %v1644 = vrot.slane %v1629, %v1643
        %v1645 = vlaneseq
        %v1646 = vshrl.u32 %v1645, 7
        %v1647 = vsub.s32 3, %v1646
        %v1648 = vrot.slane %v1629, %v1647
        %v1649 = vlaneseq
        %v1650 = vshrl.u32 %v1649, 7
        %v1651 = vsub.s32 4, %v1650
        %v1652 = vrot.slane %v1629, %v1651
        %v1653 = vlaneseq
        %v1654 = vshrl.u32 %v1653, 7
        %v1655 = vsub.s32 5, %v1654
        %v1656 = vrot.slane %v1629, %v1655
        %v1657 = vlaneseq
        %v1658 = vshrl.u32 %v1657, 7
        %v1659 = vsub.s32 6, %v1658
        %v1660 = vrot.slane %v1629, %v1659
        %v1661 = vlaneseq
        %v1662 = vshrl.u32 %v1661, 7
        %v1663 = vsub.s32 7, %v1662
        %v1664 = vrot.slane %v1629, %v1663
        %v1665 = vlaneseq
        %v1666 = vshrl.u32 %v1665, 7
        %v1667 = vsub.s32 0, %v1666
        %v1668 = vrot.slane %v1630, %v1667
        %v1669 = vlaneseq
        %v1670 = vshrl.u32 %v1669, 7
        %v1671 = vsub.s32 1, %v1670
        %v1672 = vrot.slane %v1630, %v1671
        %v1673 = vlaneseq
        %v1674 = vshrl.u32 %v1673, 7
        %v1675 = vsub.s32 2, %v1674
        %v1676 = vrot.slane %v1630, %v1675
        %v1677 = vlaneseq
        %v1678 = vshrl.u32 %v1677, 7
        %v1679 = vsub.s32 3, %v1678
        %v1680 = vrot.slane %v1630, %v1679
        %v1681 = vlaneseq
        %v1682 = vshrl.u32 %v1681, 7
        %v1683 = vsub.s32 4, %v1682
        %v1684 = vrot.slane %v1630, %v1683
        %v1685 = vlaneseq
        %v1686 = vshrl.u32 %v1685, 7
        %v1687 = vsub.s32 5, %v1686
        %v1688 = vrot.slane %v1630, %v1687
        %v1689 = vlaneseq
        %v1690 = vshrl.u32 %v1689, 7
        %v1691 = vsub.s32 6, %v1690
        %v1692 = vrot.slane %v1630, %v1691
        %v1693 = vlaneseq
        %v1694 = vshrl.u32 %v1693, 7
        %v1695 = vsub.s32 7, %v1694
        %v1696 = vrot.slane %v1630, %v1695
        %v1745 = vunpack.c.l.b16 %v1597
        %v1746 = vunpack.c.h.b16 %v1597
        %v1747 = vunpack.c.l.b16 %v1598
        %v1748 = vunpack.c.h.b16 %v1598
        %v1749 = vunpack.c.l.b16 %v1599
        %v1750 = vunpack.c.h.b16 %v1599
        %v1751 = vunpack.c.l.b16 %v1600
        %v1752 = vunpack.c.h.b16 %v1600
        %v1753 = vunpack.c.l.b16 %v1601
        %v1754 = vunpack.c.h.b16 %v1601
        %v1755 = vunpack.c.l.b16 %v1602
        %v1756 = vunpack.c.h.b16 %v1602
        %v1757 = vunpack.c.l.b16 %v1603
        %v1758 = vunpack.c.h.b16 %v1603
        %v1759 = vunpack.c.l.b16 %v1604
        %v1760 = vunpack.c.h.b16 %v1604
        %v1761 = vunpack.c.l.b16 %v1605
        %v1762 = vunpack.c.h.b16 %v1605
        %v1763 = vunpack.c.l.b16 %v1606
        %v1764 = vunpack.c.h.b16 %v1606
        %v1765 = vunpack.c.l.b16 %v1607
        %v1766 = vunpack.c.h.b16 %v1607
        %v1767 = vunpack.c.l.b16 %v1608
        %v1768 = vunpack.c.h.b16 %v1608
        %v1769 = vunpack.c.l.b16 %v1609
        %v1770 = vunpack.c.h.b16 %v1609
        %v1771 = vunpack.c.l.b16 %v1610
        %v1772 = vunpack.c.h.b16 %v1610
        %v1773 = vunpack.c.l.b16 %v1611
        %v1774 = vunpack.c.h.b16 %v1611
        %v1775 = vunpack.c.l.b16 %v1612
        %v1776 = vunpack.c.h.b16 %v1612
        %v1777 = vunpack.c.l.b16 %v1613
        %v1778 = vunpack.c.h.b16 %v1613
        %v1779 = vunpack.c.l.b16 %v1614
        %v1780 = vunpack.c.h.b16 %v1614
        %v1781 = vunpack.c.l.b16 %v1615
        %v1782 = vunpack.c.h.b16 %v1615
        %v1783 = vunpack.c.l.b16 %v1616
        %v1784 = vunpack.c.h.b16 %v1616
        %v1785 = vunpack.c.l.b16 %v1617
        %v1786 = vunpack.c.h.b16 %v1617
        %v1787 = vunpack.c.l.b16 %v1618
        %v1788 = vunpack.c.h.b16 %v1618
        %v1789 = vunpack.c.l.b16 %v1619
        %v1790 = vunpack.c.h.b16 %v1619
        %v1791 = vunpack.c.l.b16 %v1620
        %v1792 = vunpack.c.h.b16 %v1620
        %v1793 = vunpack.c.l.b16 %v1621
        %v1794 = vunpack.c.h.b16 %v1621
        %v1795 = vunpack.c.l.b16 %v1622
        %v1796 = vunpack.c.h.b16 %v1622
        %v1797 = vunpack.c.l.b16 %v1623
        %v1798 = vunpack.c.h.b16 %v1623
        %v1799 = vunpack.c.l.b16 %v1624
        %v1800 = vunpack.c.h.b16 %v1624
        %v1801 = vunpack.c.l.b16 %v1625
        %v1802 = vunpack.c.h.b16 %v1625
        %v1803 = vunpack.c.l.b16 %v1626
        %v1804 = vunpack.c.h.b16 %v1626
        %v1805 = vunpack.c.l.b16 %v1627
        %v1806 = vunpack.c.h.b16 %v1627
        %v1807 = vunpack.c.l.b16 %v1628
        %v1808 = vunpack.c.h.b16 %v1628
        %v1809 = vpack.c.b16 %v1761, %v1745
        %v1810 = vpack.c.b16 %v1762, %v1746
        %v1811 = vpack.c.b16 %v1763, %v1747
        %v1812 = vpack.c.b16 %v1764, %v1748
        %v1813 = vpack.c.b16 %v1765, %v1749
        %v1814 = vpack.c.b16 %v1766, %v1750
        %v1815 = vpack.c.b16 %v1767, %v1751
        %v1816 = vpack.c.b16 %v1768, %v1752
        %v1817 = vpack.c.b16 %v1769, %v1753
        %v1818 = vpack.c.b16 %v1770, %v1754
        %v1819 = vpack.c.b16 %v1771, %v1755
        %v1820 = vpack.c.b16 %v1772, %v1756
        %v1821 = vpack.c.b16 %v1773, %v1757
        %v1822 = vpack.c.b16 %v1774, %v1758
        %v1823 = vpack.c.b16 %v1775, %v1759
        %v1824 = vpack.c.b16 %v1776, %v1760
        %v1825 = vpack.c.b16 %v1793, %v1777
        %v1826 = vpack.c.b16 %v1794, %v1778
        %v1827 = vpack.c.b16 %v1795, %v1779
        %v1828 = vpack.c.b16 %v1796, %v1780
        %v1829 = vpack.c.b16 %v1797, %v1781
        %v1830 = vpack.c.b16 %v1798, %v1782
        %v1831 = vpack.c.b16 %v1799, %v1783
        %v1832 = vpack.c.b16 %v1800, %v1784
        %v1833 = vpack.c.b16 %v1801, %v1785
        %v1834 = vpack.c.b16 %v1802, %v1786
        %v1835 = vpack.c.b16 %v1803, %v1787
        %v1836 = vpack.c.b16 %v1804, %v1788
        %v1837 = vpack.c.b16 %v1805, %v1789
        %v1838 = vpack.c.b16 %v1806, %v1790
        %v1839 = vpack.c.b16 %v1807, %v1791
        %v1840 = vpack.c.b16 %v1808, %v1792
        %v1874 = vsel %vm654, %v1596, 0
        %1876 = vmatprep.subr.bf16.mxu0 %v1810
        %1877 = vmatpush1.bf16.msra.mxu0 %v1809
        %1878 = vmatprep.subr.bf16.mxu0 %v1826
        %1879 = vmatpush1.bf16.msra.mxu0 %v1825
        %1880 = vmatprep.subr.bf16.mxu0 0
        %1881 = vmatpush1.bf16.msra.mxu0 0
        %1882 = vmatprep.subr.bf16.mxu0 0
        %1883 = vmatpush1.bf16.msra.mxu0 0
        %1884 = vmatprep.subr.bf16.mxu0 0
        %1885 = vmatpush1.bf16.msra.mxu0 0
        %1886 = vmatprep.subr.bf16.mxu0 0
        %1887 = vmatpush1.bf16.msra.mxu0 0
        %1888 = vmatprep.subr.bf16.mxu0 0
        %1889 = vmatpush1.bf16.msra.mxu0 0
        %1890 = vmatprep.subr.bf16.mxu0 0
        %1891 = vmatpush1.bf16.msra.mxu0 0
        %1892 = vmatprep.subr.bf16.mxu0 0
        %1893 = vmatpush1.bf16.msra.mxu0 0
        %1894 = vmatprep.subr.bf16.mxu0 0
        %1895 = vmatpush1.bf16.msra.mxu0 0
        %1896 = vmatprep.subr.bf16.mxu0 0
        %1897 = vmatpush1.bf16.msra.mxu0 0
        %1898 = vmatprep.subr.bf16.mxu0 0
        %1899 = vmatpush1.bf16.msra.mxu0 0
        %1900 = vmatprep.subr.bf16.mxu0 0
        %1901 = vmatpush1.bf16.msra.mxu0 0
        %1902 = vmatprep.subr.bf16.mxu0 0
        %1903 = vmatpush1.bf16.msra.mxu0 0
        %1904 = vmatprep.subr.bf16.mxu0 0
        %1905 = vmatpush1.bf16.msra.mxu0 0
        %1906 = vmatprep.subr.bf16.mxu0 0
        %1907 = vmatpush1.bf16.msra.mxu0 0
        %1908 = vmatprep.mubr.bf16.mxu0 0
        %1909 = vmatmul.mubr.bf16.gmra.mrb[0].mxu0 %v1874
        %v1910 = vpop.f32.mrb[0].mxu0
        %v1911 = vadd.f32 %v1636, %v1910
        %v1912 = vpop.f32.mrb[0].mxu0
        %v1913 = vadd.f32 %v1640, %v1912
        %v1914 = vpop.f32.mrb[0].mxu0
        %v1915 = vpop.f32.mrb[0].mxu0
        %1916 = vdwg.mxu0
        %1917 = vmatprep.subr.bf16.mxu0 %v1812
        %1918 = vmatpush1.bf16.msra.mxu0 %v1811
        %1919 = vmatprep.subr.bf16.mxu0 %v1828
        %1920 = vmatpush1.bf16.msra.mxu0 %v1827
        %1921 = vmatprep.subr.bf16.mxu0 0
        %1922 = vmatpush1.bf16.msra.mxu0 0
        %1923 = vmatprep.subr.bf16.mxu0 0
        %1924 = vmatpush1.bf16.msra.mxu0 0
        %1925 = vmatprep.subr.bf16.mxu0 0
        %1926 = vmatpush1.bf16.msra.mxu0 0
        %1927 = vmatprep.subr.bf16.mxu0 0
        %1928 = vmatpush1.bf16.msra.mxu0 0
        %1929 = vmatprep.subr.bf16.mxu0 0
        %1930 = vmatpush1.bf16.msra.mxu0 0
        %1931 = vmatprep.subr.bf16.mxu0 0
        %1932 = vmatpush1.bf16.msra.mxu0 0
        %1933 = vmatprep.subr.bf16.mxu0 0
        %1934 = vmatpush1.bf16.msra.mxu0 0
        %1935 = vmatprep.subr.bf16.mxu0 0
        %1936 = vmatpush1.bf16.msra.mxu0 0
        %1937 = vmatprep.subr.bf16.mxu0 0
        %1938 = vmatpush1.bf16.msra.mxu0 0
        %1939 = vmatprep.subr.bf16.mxu0 0
        %1940 = vmatpush1.bf16.msra.mxu0 0
        %1941 = vmatprep.subr.bf16.mxu0 0
        %1942 = vmatpush1.bf16.msra.mxu0 0
        %1943 = vmatprep.subr.bf16.mxu0 0
        %1944 = vmatpush1.bf16.msra.mxu0 0
        %1945 = vmatprep.subr.bf16.mxu0 0
        %1946 = vmatpush1.bf16.msra.mxu0 0
        %1947 = vmatprep.subr.bf16.mxu0 0
        %1948 = vmatpush1.bf16.msra.mxu0 0
        %1949 = vmatprep.mubr.bf16.mxu0 0
        %1950 = vmatmul.mubr.bf16.gmra.mrb[0].mxu0 %v1874
        %v1951 = vpop.f32.mrb[0].mxu0
        %v1952 = vadd.f32 %v1644, %v1951
        %v1953 = vpop.f32.mrb[0].mxu0
        %v1954 = vadd.f32 %v1648, %v1953
        %v1955 = vpop.f32.mrb[0].mxu0
        %v1956 = vpop.f32.mrb[0].mxu0
        %1957 = vdwg.mxu0
        %1958 = vmatprep.subr.bf16.mxu0 %v1814
        %1959 = vmatpush1.bf16.msra.mxu0 %v1813
        %1960 = vmatprep.subr.bf16.mxu0 %v1830
        %1961 = vmatpush1.bf16.msra.mxu0 %v1829
        %1962 = vmatprep.subr.bf16.mxu0 0
        %1963 = vmatpush1.bf16.msra.mxu0 0
        %1964 = vmatprep.subr.bf16.mxu0 0
        %1965 = vmatpush1.bf16.msra.mxu0 0
        %1966 = vmatprep.subr.bf16.mxu0 0
        %1967 = vmatpush1.bf16.msra.mxu0 0
        %1968 = vmatprep.subr.bf16.mxu0 0
        %1969 = vmatpush1.bf16.msra.mxu0 0
        %1970 = vmatprep.subr.bf16.mxu0 0
        %1971 = vmatpush1.bf16.msra.mxu0 0
        %1972 = vmatprep.subr.bf16.mxu0 0
        %1973 = vmatpush1.bf16.msra.mxu0 0
        %1974 = vmatprep.subr.bf16.mxu0 0
        %1975 = vmatpush1.bf16.msra.mxu0 0
        %1976 = vmatprep.subr.bf16.mxu0 0
        %1977 = vmatpush1.bf16.msra.mxu0 0
        %1978 = vmatprep.subr.bf16.mxu0 0
        %1979 = vmatpush1.bf16.msra.mxu0 0
        %1980 = vmatprep.subr.bf16.mxu0 0
        %1981 = vmatpush1.bf16.msra.mxu0 0
        %1982 = vmatprep.subr.bf16.mxu0 0
        %1983 = vmatpush1.bf16.msra.mxu0 0
        %1984 = vmatprep.subr.bf16.mxu0 0
        %1985 = vmatpush1.bf16.msra.mxu0 0
        %1986 = vmatprep.subr.bf16.mxu0 0
        %1987 = vmatpush1.bf16.msra.mxu0 0
        %1988 = vmatprep.subr.bf16.mxu0 0
        %1989 = vmatpush1.bf16.msra.mxu0 0
        %1990 = vmatprep.mubr.bf16.mxu0 0
        %1991 = vmatmul.mubr.bf16.gmra.mrb[0].mxu0 %v1874
        %v1992 = vpop.f32.mrb[0].mxu0
        %v1993 = vadd.f32 %v1652, %v1992
        %v1994 = vpop.f32.mrb[0].mxu0
        %v1995 = vadd.f32 %v1656, %v1994
        %v1996 = vpop.f32.mrb[0].mxu0
        %v1997 = vpop.f32.mrb[0].mxu0
        %1998 = vdwg.mxu0
        %1999 = vmatprep.subr.bf16.mxu0 %v1816
        %2000 = vmatpush1.bf16.msra.mxu0 %v1815
        %2001 = vmatprep.subr.bf16.mxu0 %v1832
        %2002 = vmatpush1.bf16.msra.mxu0 %v1831
        %2003 = vmatprep.subr.bf16.mxu0 0
        %2004 = vmatpush1.bf16.msra.mxu0 0
        %2005 = vmatprep.subr.bf16.mxu0 0
        %2006 = vmatpush1.bf16.msra.mxu0 0
        %2007 = vmatprep.subr.bf16.mxu0 0
        %2008 = vmatpush1.bf16.msra.mxu0 0
        %2009 = vmatprep.subr.bf16.mxu0 0
        %2010 = vmatpush1.bf16.msra.mxu0 0
        %2011 = vmatprep.subr.bf16.mxu0 0
        %2012 = vmatpush1.bf16.msra.mxu0 0
        %2013 = vmatprep.subr.bf16.mxu0 0
        %2014 = vmatpush1.bf16.msra.mxu0 0
        %2015 = vmatprep.subr.bf16.mxu0 0
        %2016 = vmatpush1.bf16.msra.mxu0 0
        %2017 = vmatprep.subr.bf16.mxu0 0
        %2018 = vmatpush1.bf16.msra.mxu0 0
        %2019 = vmatprep.subr.bf16.mxu0 0
        %2020 = vmatpush1.bf16.msra.mxu0 0
        %2021 = vmatprep.subr.bf16.mxu0 0
        %2022 = vmatpush1.bf16.msra.mxu0 0
        %2023 = vmatprep.subr.bf16.mxu0 0
        %2024 = vmatpush1.bf16.msra.mxu0 0
        %2025 = vmatprep.subr.bf16.mxu0 0
        %2026 = vmatpush1.bf16.msra.mxu0 0
        %2027 = vmatprep.subr.bf16.mxu0 0
        %2028 = vmatpush1.bf16.msra.mxu0 0
        %2029 = vmatprep.subr.bf16.mxu0 0
        %2030 = vmatpush1.bf16.msra.mxu0 0
        %2031 = vmatprep.mubr.bf16.mxu0 0
        %2032 = vmatmul.mubr.bf16.gmra.mrb[0].mxu0 %v1874
        %v2033 = vpop.f32.mrb[0].mxu0
        %v2034 = vadd.f32 %v1660, %v2033
        %v2035 = vpop.f32.mrb[0].mxu0
        %v2036 = vadd.f32 %v1664, %v2035
        %v2037 = vpop.f32.mrb[0].mxu0
        %v2038 = vpop.f32.mrb[0].mxu0
        %2039 = vdwg.mxu0
        %2040 = vmatprep.subr.bf16.mxu0 %v1818
        %2041 = vmatpush1.bf16.msra.mxu0 %v1817
        %2042 = vmatprep.subr.bf16.mxu0 %v1834
        %2043 = vmatpush1.bf16.msra.mxu0 %v1833
        %2044 = vmatprep.subr.bf16.mxu0 0
        %2045 = vmatpush1.bf16.msra.mxu0 0
        %2046 = vmatprep.subr.bf16.mxu0 0
        %2047 = vmatpush1.bf16.msra.mxu0 0
        %2048 = vmatprep.subr.bf16.mxu0 0
        %2049 = vmatpush1.bf16.msra.mxu0 0
        %2050 = vmatprep.subr.bf16.mxu0 0
        %2051 = vmatpush1.bf16.msra.mxu0 0
        %2052 = vmatprep.subr.bf16.mxu0 0
        %2053 = vmatpush1.bf16.msra.mxu0 0
        %2054 = vmatprep.subr.bf16.mxu0 0
        %2055 = vmatpush1.bf16.msra.mxu0 0
        %2056 = vmatprep.subr.bf16.mxu0 0
        %2057 = vmatpush1.bf16.msra.mxu0 0
        %2058 = vmatprep.subr.bf16.mxu0 0
        %2059 = vmatpush1.bf16.msra.mxu0 0
        %2060 = vmatprep.subr.bf16.mxu0 0
        %2061 = vmatpush1.bf16.msra.mxu0 0
        %2062 = vmatprep.subr.bf16.mxu0 0
        %2063 = vmatpush1.bf16.msra.mxu0 0
        %2064 = vmatprep.subr.bf16.mxu0 0
        %2065 = vmatpush1.bf16.msra.mxu0 0
        %2066 = vmatprep.subr.bf16.mxu0 0
        %2067 = vmatpush1.bf16.msra.mxu0 0
        %2068 = vmatprep.subr.bf16.mxu0 0
        %2069 = vmatpush1.bf16.msra.mxu0 0
        %2070 = vmatprep.subr.bf16.mxu0 0
        %2071 = vmatpush1.bf16.msra.mxu0 0
        %2072 = vmatprep.mubr.bf16.mxu0 0
        %2073 = vmatmul.mubr.bf16.gmra.mrb[0].mxu0 %v1874
        %v2074 = vpop.f32.mrb[0].mxu0
        %v2075 = vadd.f32 %v1668, %v2074
        %v2076 = vpop.f32.mrb[0].mxu0
        %v2077 = vadd.f32 %v1672, %v2076
        %v2078 = vpop.f32.mrb[0].mxu0
        %v2079 = vpop.f32.mrb[0].mxu0
        %2080 = vdwg.mxu0
        %2081 = vmatprep.subr.bf16.mxu0 %v1820
        %2082 = vmatpush1.bf16.msra.mxu0 %v1819
        %2083 = vmatprep.subr.bf16.mxu0 %v1836
        %2084 = vmatpush1.bf16.msra.mxu0 %v1835
        %2085 = vmatprep.subr.bf16.mxu0 0
        %2086 = vmatpush1.bf16.msra.mxu0 0
        %2087 = vmatprep.subr.bf16.mxu0 0
        %2088 = vmatpush1.bf16.msra.mxu0 0
        %2089 = vmatprep.subr.bf16.mxu0 0
        %2090 = vmatpush1.bf16.msra.mxu0 0
        %2091 = vmatprep.subr.bf16.mxu0 0
        %2092 = vmatpush1.bf16.msra.mxu0 0
        %2093 = vmatprep.subr.bf16.mxu0 0
        %2094 = vmatpush1.bf16.msra.mxu0 0
        %2095 = vmatprep.subr.bf16.mxu0 0
        %2096 = vmatpush1.bf16.msra.mxu0 0
        %2097 = vmatprep.subr.bf16.mxu0 0
        %2098 = vmatpush1.bf16.msra.mxu0 0
        %2099 = vmatprep.subr.bf16.mxu0 0
        %2100 = vmatpush1.bf16.msra.mxu0 0
        %2101 = vmatprep.subr.bf16.mxu0 0
        %2102 = vmatpush1.bf16.msra.mxu0 0
        %2103 = vmatprep.subr.bf16.mxu0 0
        %2104 = vmatpush1.bf16.msra.mxu0 0
        %2105 = vmatprep.subr.bf16.mxu0 0
        %2106 = vmatpush1.bf16.msra.mxu0 0
        %2107 = vmatprep.subr.bf16.mxu0 0
        %2108 = vmatpush1.bf16.msra.mxu0 0
        %2109 = vmatprep.subr.bf16.mxu0 0
        %2110 = vmatpush1.bf16.msra.mxu0 0
        %2111 = vmatprep.subr.bf16.mxu0 0
        %2112 = vmatpush1.bf16.msra.mxu0 0
        %2113 = vmatprep.mubr.bf16.mxu0 0
        %2114 = vmatmul.mubr.bf16.gmra.mrb[0].mxu0 %v1874
        %v2115 = vpop.f32.mrb[0].mxu0
        %v2116 = vadd.f32 %v1676, %v2115
        %v2117 = vpop.f32.mrb[0].mxu0
        %v2118 = vadd.f32 %v1680, %v2117
        %v2119 = vpop.f32.mrb[0].mxu0
        %v2120 = vpop.f32.mrb[0].mxu0
        %2121 = vdwg.mxu0
        %2122 = vmatprep.subr.bf16.mxu0 %v1822
        %2123 = vmatpush1.bf16.msra.mxu0 %v1821
        %2124 = vmatprep.subr.bf16.mxu0 %v1838
        %2125 = vmatpush1.bf16.msra.mxu0 %v1837
        %2126 = vmatprep.subr.bf16.mxu0 0
        %2127 = vmatpush1.bf16.msra.mxu0 0
        %2128 = vmatprep.subr.bf16.mxu0 0
        %2129 = vmatpush1.bf16.msra.mxu0 0
        %2130 = vmatprep.subr.bf16.mxu0 0
        %2131 = vmatpush1.bf16.msra.mxu0 0
        %2132 = vmatprep.subr.bf16.mxu0 0
        %2133 = vmatpush1.bf16.msra.mxu0 0
        %2134 = vmatprep.subr.bf16.mxu0 0
        %2135 = vmatpush1.bf16.msra.mxu0 0
        %2136 = vmatprep.subr.bf16.mxu0 0
        %2137 = vmatpush1.bf16.msra.mxu0 0
        %2138 = vmatprep.subr.bf16.mxu0 0
        %2139 = vmatpush1.bf16.msra.mxu0 0
        %2140 = vmatprep.subr.bf16.mxu0 0
        %2141 = vmatpush1.bf16.msra.mxu0 0
        %2142 = vmatprep.subr.bf16.mxu0 0
        %2143 = vmatpush1.bf16.msra.mxu0 0
        %2144 = vmatprep.subr.bf16.mxu0 0
        %2145 = vmatpush1.bf16.msra.mxu0 0
        %2146 = vmatprep.subr.bf16.mxu0 0
        %2147 = vmatpush1.bf16.msra.mxu0 0
        %2148 = vmatprep.subr.bf16.mxu0 0
        %2149 = vmatpush1.bf16.msra.mxu0 0
        %2150 = vmatprep.subr.bf16.mxu0 0
        %2151 = vmatpush1.bf16.msra.mxu0 0
        %2152 = vmatprep.subr.bf16.mxu0 0
        %2153 = vmatpush1.bf16.msra.mxu0 0
        %2154 = vmatprep.mubr.bf16.mxu0 0
        %2155 = vmatmul.mubr.bf16.gmra.mrb[0].mxu0 %v1874
        %v2156 = vpop.f32.mrb[0].mxu0
        %v2157 = vadd.f32 %v1684, %v2156
        %v2158 = vpop.f32.mrb[0].mxu0
        %v2159 = vadd.f32 %v1688, %v2158
        %v2160 = vpop.f32.mrb[0].mxu0
        %v2161 = vpop.f32.mrb[0].mxu0
        %2162 = vdwg.mxu0
        %2163 = vmatprep.subr.bf16.mxu0 %v1824
        %2164 = vmatpush1.bf16.msra.mxu0 %v1823
        %2165 = vmatprep.subr.bf16.mxu0 %v1840
        %2166 = vmatpush1.bf16.msra.mxu0 %v1839
        %2167 = vmatprep.subr.bf16.mxu0 0
        %2168 = vmatpush1.bf16.msra.mxu0 0
        %2169 = vmatprep.subr.bf16.mxu0 0
        %2170 = vmatpush1.bf16.msra.mxu0 0
        %2171 = vmatprep.subr.bf16.mxu0 0
        %2172 = vmatpush1.bf16.msra.mxu0 0
        %2173 = vmatprep.subr.bf16.mxu0 0
        %2174 = vmatpush1.bf16.msra.mxu0 0
        %2175 = vmatprep.subr.bf16.mxu0 0
        %2176 = vmatpush1.bf16.msra.mxu0 0
        %2177 = vmatprep.subr.bf16.mxu0 0
        %2178 = vmatpush1.bf16.msra.mxu0 0
        %2179 = vmatprep.subr.bf16.mxu0 0
        %2180 = vmatpush1.bf16.msra.mxu0 0
        %2181 = vmatprep.subr.bf16.mxu0 0
        %2182 = vmatpush1.bf16.msra.mxu0 0
        %2183 = vmatprep.subr.bf16.mxu0 0
        %2184 = vmatpush1.bf16.msra.mxu0 0
        %2185 = vmatprep.subr.bf16.mxu0 0
        %2186 = vmatpush1.bf16.msra.mxu0 0
        %2187 = vmatprep.subr.bf16.mxu0 0
        %2188 = vmatpush1.bf16.msra.mxu0 0
        %2189 = vmatprep.subr.bf16.mxu0 0
        %2190 = vmatpush1.bf16.msra.mxu0 0
        %2191 = vmatprep.subr.bf16.mxu0 0
        %2192 = vmatpush1.bf16.msra.mxu0 0
        %2193 = vmatprep.subr.bf16.mxu0 0
        %2194 = vmatpush1.bf16.msra.mxu0 0
        %2195 = vmatprep.mubr.bf16.mxu0 0
        %2196 = vmatmul.mubr.bf16.gmra.mrb[0].mxu0 %v1874
        %v2197 = vpop.f32.mrb[0].mxu0
        %v2198 = vadd.f32 %v1692, %v2197
        %v2199 = vpop.f32.mrb[0].mxu0
        %v2200 = vadd.f32 %v1696, %v2199
        %v2201 = vpop.f32.mrb[0].mxu0
        %v2202 = vpop.f32.mrb[0].mxu0
        %2203 = vdwg.mxu0
        %v2204 = vmax.f32 %v1911, 0.0
        %v2205 = vmax.f32 %v1913, 0.0
        %v2206 = vmax.f32 %v1952, 0.0
        %v2207 = vmax.f32 %v1954, 0.0
        %v2208 = vmax.f32 %v1993, 0.0
        %v2209 = vmax.f32 %v1995, 0.0
        %v2210 = vmax.f32 %v2034, 0.0
        %v2211 = vmax.f32 %v2036, 0.0
        %v2212 = vmax.f32 %v2075, 0.0
        %v2213 = vmax.f32 %v2077, 0.0
        %v2214 = vmax.f32 %v2116, 0.0
        %v2215 = vmax.f32 %v2118, 0.0
        %v2216 = vmax.f32 %v2157, 0.0
        %v2217 = vmax.f32 %v2159, 0.0
        %v2218 = vmax.f32 %v2198, 0.0
        %v2219 = vmax.f32 %v2200, 0.0
        %v2220 = vpack.c.bf16 %v2204, %v2204
        %v2221 = vpack.c.bf16 %v2205, %v2205
        %v2222 = vpack.c.bf16 %v2206, %v2206
        %v2223 = vpack.c.bf16 %v2207, %v2207
        %v2224 = vpack.c.bf16 %v2208, %v2208
        %v2225 = vpack.c.bf16 %v2209, %v2209
        %v2226 = vpack.c.bf16 %v2210, %v2210
        %v2227 = vpack.c.bf16 %v2211, %v2211
        %v2228 = vpack.c.bf16 %v2212, %v2212
        %v2229 = vpack.c.bf16 %v2213, %v2213
        %v2230 = vpack.c.bf16 %v2214, %v2214
        %v2231 = vpack.c.bf16 %v2215, %v2215
        %v2232 = vpack.c.bf16 %v2216, %v2216
        %v2233 = vpack.c.bf16 %v2217, %v2217
        %v2234 = vpack.c.bf16 %v2218, %v2218
        %v2235 = vpack.c.bf16 %v2219, %v2219
        %v2236 = vld [vmem:[%s503] sm:$0xff]
        %v2237 = vld [vmem:[%s503 + $0x8] sm:$0xff]
        %v2238 = vld [vmem:[%s503 + $0x10] sm:$0xff]
        %v2239 = vld [vmem:[%s503 + $0x18] sm:$0xff]
        %v2240 = vld [vmem:[%s503 + $0x20] sm:$0xff]
        %v2241 = vld [vmem:[%s503 + $0x28] sm:$0xff]
        %v2242 = vld [vmem:[%s503 + $0x30] sm:$0xff]
        %v2243 = vld [vmem:[%s503 + $0x38] sm:$0xff]
        %v2244 = vld [vmem:[%s503 + $0x40] sm:$0xff]
        %v2245 = vld [vmem:[%s503 + $0x48] sm:$0xff]
        %v2246 = vld [vmem:[%s503 + $0x50] sm:$0xff]
        %v2247 = vld [vmem:[%s503 + $0x58] sm:$0xff]
        %v2248 = vld [vmem:[%s503 + $0x60] sm:$0xff]
        %v2249 = vld [vmem:[%s503 + $0x68] sm:$0xff]
        %v2250 = vld [vmem:[%s503 + $0x70] sm:$0xff]
        %v2251 = vld [vmem:[%s503 + $0x78] sm:$0xff]
        %v2252 = vld [vmem:[%s503 + $0x80] sm:$0xff]
        %v2253 = vld [vmem:[%s503 + $0x88] sm:$0xff]
        %v2254 = vld [vmem:[%s503 + $0x90] sm:$0xff]
        %v2255 = vld [vmem:[%s503 + $0x98] sm:$0xff]
        %v2256 = vld [vmem:[%s503 + $0xa0] sm:$0xff]
        %v2257 = vld [vmem:[%s503 + $0xa8] sm:$0xff]
        %v2258 = vld [vmem:[%s503 + $0xb0] sm:$0xff]
        %v2259 = vld [vmem:[%s503 + $0xb8] sm:$0xff]
        %v2260 = vld [vmem:[%s503 + $0xc0] sm:$0xff]
        %v2261 = vld [vmem:[%s503 + $0xc8] sm:$0xff]
        %v2262 = vld [vmem:[%s503 + $0xd0] sm:$0xff]
        %v2263 = vld [vmem:[%s503 + $0xd8] sm:$0xff]
        %v2264 = vld [vmem:[%s503 + $0xe0] sm:$0xff]
        %v2265 = vld [vmem:[%s503 + $0xe8] sm:$0xff]
        %v2266 = vld [vmem:[%s503 + $0xf0] sm:$0xff]
        %v2267 = vld [vmem:[%s503 + $0xf8] sm:$0xff]
        %v2268 = vld [vmem:[%s614] sm:$0x1]
        %v2270 = vlaneseq
        %v2271 = vshrl.u32 %v2270, 7
        %v2272 = vsub.s32 0, %v2271
        %v2273 = vrot.slane %v2268, %v2272
        %v2307 = vunpack.c.l.b16 %v2236
        %v2308 = vunpack.c.h.b16 %v2236
        %v2309 = vunpack.c.l.b16 %v2237
        %v2310 = vunpack.c.h.b16 %v2237
        %v2311 = vunpack.c.l.b16 %v2238
        %v2312 = vunpack.c.h.b16 %v2238
        %v2313 = vunpack.c.l.b16 %v2239
        %v2314 = vunpack.c.h.b16 %v2239
        %v2315 = vunpack.c.l.b16 %v2240
        %v2316 = vunpack.c.h.b16 %v2240
        %v2317 = vunpack.c.l.b16 %v2241
        %v2318 = vunpack.c.h.b16 %v2241
        %v2319 = vunpack.c.l.b16 %v2242
        %v2320 = vunpack.c.h.b16 %v2242
        %v2321 = vunpack.c.l.b16 %v2243
        %v2322 = vunpack.c.h.b16 %v2243
        %v2323 = vunpack.c.l.b16 %v2244
        %v2324 = vunpack.c.h.b16 %v2244
        %v2325 = vunpack.c.l.b16 %v2245
        %v2326 = vunpack.c.h.b16 %v2245
        %v2327 = vunpack.c.l.b16 %v2246
        %v2328 = vunpack.c.h.b16 %v2246
        %v2329 = vunpack.c.l.b16 %v2247
        %v2330 = vunpack.c.h.b16 %v2247
        %v2331 = vunpack.c.l.b16 %v2248
        %v2332 = vunpack.c.h.b16 %v2248
        %v2333 = vunpack.c.l.b16 %v2249
        %v2334 = vunpack.c.h.b16 %v2249
        %v2335 = vunpack.c.l.b16 %v2250
        %v2336 = vunpack.c.h.b16 %v2250
        %v2337 = vunpack.c.l.b16 %v2251
        %v2338 = vunpack.c.h.b16 %v2251
        %v2339 = vunpack.c.l.b16 %v2252
        %v2340 = vunpack.c.h.b16 %v2252
        %v2341 = vunpack.c.l.b16 %v2253
        %v2342 = vunpack.c.h.b16 %v2253
        %v2343 = vunpack.c.l.b16 %v2254
        %v2344 = vunpack.c.h.b16 %v2254
        %v2345 = vunpack.c.l.b16 %v2255
        %v2346 = vunpack.c.h.b16 %v2255
        %v2347 = vunpack.c.l.b16 %v2256
        %v2348 = vunpack.c.h.b16 %v2256
        %v2349 = vunpack.c.l.b16 %v2257
        %v2350 = vunpack.c.h.b16 %v2257
        %v2351 = vunpack.c.l.b16 %v2258
        %v2352 = vunpack.c.h.b16 %v2258
        %v2353 = vunpack.c.l.b16 %v2259
        %v2354 = vunpack.c.h.b16 %v2259
        %v2355 = vunpack.c.l.b16 %v2260
        %v2356 = vunpack.c.h.b16 %v2260
        %v2357 = vunpack.c.l.b16 %v2261
        %v2358 = vunpack.c.h.b16 %v2261
        %v2359 = vunpack.c.l.b16 %v2262
        %v2360 = vunpack.c.h.b16 %v2262
        %v2361 = vunpack.c.l.b16 %v2263
        %v2362 = vunpack.c.h.b16 %v2263
        %v2363 = vunpack.c.l.b16 %v2264
        %v2364 = vunpack.c.h.b16 %v2264
        %v2365 = vunpack.c.l.b16 %v2265
        %v2366 = vunpack.c.h.b16 %v2265
        %v2367 = vunpack.c.l.b16 %v2266
        %v2368 = vunpack.c.h.b16 %v2266
        %v2369 = vunpack.c.l.b16 %v2267
        %v2370 = vunpack.c.h.b16 %v2267
        %v2371 = vpack.c.b16 %v2323, %v2307
        %v2372 = vpack.c.b16 %v2324, %v2308
        %v2373 = vpack.c.b16 %v2325, %v2309
        %v2374 = vpack.c.b16 %v2326, %v2310
        %v2375 = vpack.c.b16 %v2327, %v2311
        %v2376 = vpack.c.b16 %v2328, %v2312
        %v2377 = vpack.c.b16 %v2329, %v2313
        %v2378 = vpack.c.b16 %v2330, %v2314
        %v2379 = vpack.c.b16 %v2331, %v2315
        %v2380 = vpack.c.b16 %v2332, %v2316
        %v2381 = vpack.c.b16 %v2333, %v2317
        %v2382 = vpack.c.b16 %v2334, %v2318
        %v2383 = vpack.c.b16 %v2335, %v2319
        %v2384 = vpack.c.b16 %v2336, %v2320
        %v2385 = vpack.c.b16 %v2337, %v2321
        %v2386 = vpack.c.b16 %v2338, %v2322
        %v2387 = vpack.c.b16 %v2355, %v2339
        %v2388 = vpack.c.b16 %v2356, %v2340
        %v2389 = vpack.c.b16 %v2357, %v2341
        %v2390 = vpack.c.b16 %v2358, %v2342
        %v2391 = vpack.c.b16 %v2359, %v2343
        %v2392 = vpack.c.b16 %v2360, %v2344
        %v2393 = vpack.c.b16 %v2361, %v2345
        %v2394 = vpack.c.b16 %v2362, %v2346
        %v2395 = vpack.c.b16 %v2363, %v2347
        %v2396 = vpack.c.b16 %v2364, %v2348
        %v2397 = vpack.c.b16 %v2365, %v2349
        %v2398 = vpack.c.b16 %v2366, %v2350
        %v2399 = vpack.c.b16 %v2367, %v2351
        %v2400 = vpack.c.b16 %v2368, %v2352
        %v2401 = vpack.c.b16 %v2369, %v2353
        %v2402 = vpack.c.b16 %v2370, %v2354
        %2435 = vmatprep.subr.bf16.mxu0 %v2372
        %2436 = vmatpush1.bf16.xpose.msra.mxu0 %v2371
        %2437 = vmatprep.subr.bf16.mxu0 %v2388
        %2438 = vmatpush1.bf16.xpose.msra.mxu0 %v2387
        %2439 = vmatprep.subr.bf16.mxu0 0
        %2440 = vmatpush1.bf16.xpose.msra.mxu0 0
        %2441 = vmatprep.subr.bf16.mxu0 0
        %2442 = vmatpush1.bf16.xpose.msra.mxu0 0
        %2443 = vmatprep.subr.bf16.mxu0 0
        %2444 = vmatpush1.bf16.xpose.msra.mxu0 0
        %2445 = vmatprep.subr.bf16.mxu0 0
        %2446 = vmatpush1.bf16.xpose.msra.mxu0 0
        %2447 = vmatprep.subr.bf16.mxu0 0
        %2448 = vmatpush1.bf16.xpose.msra.mxu0 0
        %2449 = vmatprep.subr.bf16.mxu0 0
        %2450 = vmatpush1.bf16.xpose.msra.mxu0 0
        %2451 = vmatprep.subr.bf16.mxu0 0
        %2452 = vmatpush1.bf16.xpose.msra.mxu0 0
        %2453 = vmatprep.subr.bf16.mxu0 0
        %2454 = vmatpush1.bf16.xpose.msra.mxu0 0
        %2455 = vmatprep.subr.bf16.mxu0 0
        %2456 = vmatpush1.bf16.xpose.msra.mxu0 0
        %2457 = vmatprep.subr.bf16.mxu0 0
        %2458 = vmatpush1.bf16.xpose.msra.mxu0 0
        %2459 = vmatprep.subr.bf16.mxu0 0
        %2460 = vmatpush1.bf16.xpose.msra.mxu0 0
        %2461 = vmatprep.subr.bf16.mxu0 0
        %2462 = vmatpush1.bf16.xpose.msra.mxu0 0
        %2463 = vmatprep.subr.bf16.mxu0 0
        %2464 = vmatpush1.bf16.xpose.msra.mxu0 0
        %2465 = vmatprep.subr.bf16.mxu0 0
        %2466 = vmatpush1.bf16.xpose.msra.mxu0 0
        %2467 = vmatprep.mubr.bf16.mxu0 %v2221
        %2468 = vmatmul.mubr.bf16.gmra.mrb[0].mxu0 %v2220
        %v2469 = vpop.f32.mrb[0].mxu0
        %v2470 = vadd.f32 %v2273, %v2469
        %v2471 = vpop.f32.mrb[0].mxu0
        %v2472 = vpop.f32.mrb[0].mxu0
        %v2473 = vpop.f32.mrb[0].mxu0
        %2474 = vdwg.mxu0
        %2475 = vmatprep.subr.bf16.mxu0 %v2374
        %2476 = vmatpush1.bf16.xpose.msra.mxu0 %v2373
        %2477 = vmatprep.subr.bf16.mxu0 %v2390
        %2478 = vmatpush1.bf16.xpose.msra.mxu0 %v2389
        %2479 = vmatprep.subr.bf16.mxu0 0
        %2480 = vmatpush1.bf16.xpose.msra.mxu0 0
        %2481 = vmatprep.subr.bf16.mxu0 0
        %2482 = vmatpush1.bf16.xpose.msra.mxu0 0
        %2483 = vmatprep.subr.bf16.mxu0 0
        %2484 = vmatpush1.bf16.xpose.msra.mxu0 0
        %2485 = vmatprep.subr.bf16.mxu0 0
        %2486 = vmatpush1.bf16.xpose.msra.mxu0 0
        %2487 = vmatprep.subr.bf16.mxu0 0
        %2488 = vmatpush1.bf16.xpose.msra.mxu0 0
        %2489 = vmatprep.subr.bf16.mxu0 0
        %2490 = vmatpush1.bf16.xpose.msra.mxu0 0
        %2491 = vmatprep.subr.bf16.mxu0 0
        %2492 = vmatpush1.bf16.xpose.msra.mxu0 0
        %2493 = vmatprep.subr.bf16.mxu0 0
        %2494 = vmatpush1.bf16.xpose.msra.mxu0 0
        %2495 = vmatprep.subr.bf16.mxu0 0
        %2496 = vmatpush1.bf16.xpose.msra.mxu0 0
        %2497 = vmatprep.subr.bf16.mxu0 0
        %2498 = vmatpush1.bf16.xpose.msra.mxu0 0
        %2499 = vmatprep.subr.bf16.mxu0 0
        %2500 = vmatpush1.bf16.xpose.msra.mxu0 0
        %2501 = vmatprep.subr.bf16.mxu0 0
        %2502 = vmatpush1.bf16.xpose.msra.mxu0 0
        %2503 = vmatprep.subr.bf16.mxu0 0
        %2504 = vmatpush1.bf16.xpose.msra.mxu0 0
        %2505 = vmatprep.subr.bf16.mxu0 0
        %2506 = vmatpush1.bf16.xpose.msra.mxu0 0
        %2507 = vmatprep.mubr.bf16.mxu0 %v2223
        %2508 = vmatmul.mubr.bf16.gmra.mrb[0].mxu0 %v2222
        %v2509 = vpop.f32.mrb[0].mxu0
        %v2510 = vadd.f32 %v2470, %v2509
        %v2511 = vpop.f32.mrb[0].mxu0
        %v2512 = vpop.f32.mrb[0].mxu0
        %v2513 = vpop.f32.mrb[0].mxu0
        %2514 = vdwg.mxu0
        %2515 = vmatprep.subr.bf16.mxu0 %v2376
        %2516 = vmatpush1.bf16.xpose.msra.mxu0 %v2375
        %2517 = vmatprep.subr.bf16.mxu0 %v2392
        %2518 = vmatpush1.bf16.xpose.msra.mxu0 %v2391
        %2519 = vmatprep.subr.bf16.mxu0 0
        %2520 = vmatpush1.bf16.xpose.msra.mxu0 0
        %2521 = vmatprep.subr.bf16.mxu0 0
        %2522 = vmatpush1.bf16.xpose.msra.mxu0 0
        %2523 = vmatprep.subr.bf16.mxu0 0
        %2524 = vmatpush1.bf16.xpose.msra.mxu0 0
        %2525 = vmatprep.subr.bf16.mxu0 0
        %2526 = vmatpush1.bf16.xpose.msra.mxu0 0
        %2527 = vmatprep.subr.bf16.mxu0 0
        %2528 = vmatpush1.bf16.xpose.msra.mxu0 0
        %2529 = vmatprep.subr.bf16.mxu0 0
        %2530 = vmatpush1.bf16.xpose.msra.mxu0 0
        %2531 = vmatprep.subr.bf16.mxu0 0
        %2532 = vmatpush1.bf16.xpose.msra.mxu0 0
        %2533 = vmatprep.subr.bf16.mxu0 0
        %2534 = vmatpush1.bf16.xpose.msra.mxu0 0
        %2535 = vmatprep.subr.bf16.mxu0 0
        %2536 = vmatpush1.bf16.xpose.msra.mxu0 0
        %2537 = vmatprep.subr.bf16.mxu0 0
        %2538 = vmatpush1.bf16.xpose.msra.mxu0 0
        %2539 = vmatprep.subr.bf16.mxu0 0
        %2540 = vmatpush1.bf16.xpose.msra.mxu0 0
        %2541 = vmatprep.subr.bf16.mxu0 0
        %2542 = vmatpush1.bf16.xpose.msra.mxu0 0
        %2543 = vmatprep.subr.bf16.mxu0 0
        %2544 = vmatpush1.bf16.xpose.msra.mxu0 0
        %2545 = vmatprep.subr.bf16.mxu0 0
        %2546 = vmatpush1.bf16.xpose.msra.mxu0 0
        %2547 = vmatprep.mubr.bf16.mxu0 %v2225
        %2548 = vmatmul.mubr.bf16.gmra.mrb[0].mxu0 %v2224
        %v2549 = vpop.f32.mrb[0].mxu0
        %v2550 = vadd.f32 %v2510, %v2549
        %v2551 = vpop.f32.mrb[0].mxu0
        %v2552 = vpop.f32.mrb[0].mxu0
        %v2553 = vpop.f32.mrb[0].mxu0
        %2554 = vdwg.mxu0
        %2555 = vmatprep.subr.bf16.mxu0 %v2378
        %2556 = vmatpush1.bf16.xpose.msra.mxu0 %v2377
        %2557 = vmatprep.subr.bf16.mxu0 %v2394
        %2558 = vmatpush1.bf16.xpose.msra.mxu0 %v2393
        %2559 = vmatprep.subr.bf16.mxu0 0
        %2560 = vmatpush1.bf16.xpose.msra.mxu0 0
        %2561 = vmatprep.subr.bf16.mxu0 0
        %2562 = vmatpush1.bf16.xpose.msra.mxu0 0
        %2563 = vmatprep.subr.bf16.mxu0 0
        %2564 = vmatpush1.bf16.xpose.msra.mxu0 0
        %2565 = vmatprep.subr.bf16.mxu0 0
        %2566 = vmatpush1.bf16.xpose.msra.mxu0 0
        %2567 = vmatprep.subr.bf16.mxu0 0
        %2568 = vmatpush1.bf16.xpose.msra.mxu0 0
        %2569 = vmatprep.subr.bf16.mxu0 0
        %2570 = vmatpush1.bf16.xpose.msra.mxu0 0
        %2571 = vmatprep.subr.bf16.mxu0 0
        %2572 = vmatpush1.bf16.xpose.msra.mxu0 0
        %2573 = vmatprep.subr.bf16.mxu0 0
        %2574 = vmatpush1.bf16.xpose.msra.mxu0 0
        %2575 = vmatprep.subr.bf16.mxu0 0
        %2576 = vmatpush1.bf16.xpose.msra.mxu0 0
        %2577 = vmatprep.subr.bf16.mxu0 0
        %2578 = vmatpush1.bf16.xpose.msra.mxu0 0
        %2579 = vmatprep.subr.bf16.mxu0 0
        %2580 = vmatpush1.bf16.xpose.msra.mxu0 0
        %2581 = vmatprep.subr.bf16.mxu0 0
        %2582 = vmatpush1.bf16.xpose.msra.mxu0 0
        %2583 = vmatprep.subr.bf16.mxu0 0
        %2584 = vmatpush1.bf16.xpose.msra.mxu0 0
        %2585 = vmatprep.subr.bf16.mxu0 0
        %2586 = vmatpush1.bf16.xpose.msra.mxu0 0
        %2587 = vmatprep.mubr.bf16.mxu0 %v2227
        %2588 = vmatmul.mubr.bf16.gmra.mrb[0].mxu0 %v2226
        %v2589 = vpop.f32.mrb[0].mxu0
        %v2590 = vadd.f32 %v2550, %v2589
        %v2591 = vpop.f32.mrb[0].mxu0
        %v2592 = vpop.f32.mrb[0].mxu0
        %v2593 = vpop.f32.mrb[0].mxu0
        %2594 = vdwg.mxu0
        %2595 = vmatprep.subr.bf16.mxu0 %v2380
        %2596 = vmatpush1.bf16.xpose.msra.mxu0 %v2379
        %2597 = vmatprep.subr.bf16.mxu0 %v2396
        %2598 = vmatpush1.bf16.xpose.msra.mxu0 %v2395
        %2599 = vmatprep.subr.bf16.mxu0 0
        %2600 = vmatpush1.bf16.xpose.msra.mxu0 0
        %2601 = vmatprep.subr.bf16.mxu0 0
        %2602 = vmatpush1.bf16.xpose.msra.mxu0 0
        %2603 = vmatprep.subr.bf16.mxu0 0
        %2604 = vmatpush1.bf16.xpose.msra.mxu0 0
        %2605 = vmatprep.subr.bf16.mxu0 0
        %2606 = vmatpush1.bf16.xpose.msra.mxu0 0
        %2607 = vmatprep.subr.bf16.mxu0 0
        %2608 = vmatpush1.bf16.xpose.msra.mxu0 0
        %2609 = vmatprep.subr.bf16.mxu0 0
        %2610 = vmatpush1.bf16.xpose.msra.mxu0 0
        %2611 = vmatprep.subr.bf16.mxu0 0
        %2612 = vmatpush1.bf16.xpose.msra.mxu0 0
        %2613 = vmatprep.subr.bf16.mxu0 0
        %2614 = vmatpush1.bf16.xpose.msra.mxu0 0
        %2615 = vmatprep.subr.bf16.mxu0 0
        %2616 = vmatpush1.bf16.xpose.msra.mxu0 0
        %2617 = vmatprep.subr.bf16.mxu0 0
        %2618 = vmatpush1.bf16.xpose.msra.mxu0 0
        %2619 = vmatprep.subr.bf16.mxu0 0
        %2620 = vmatpush1.bf16.xpose.msra.mxu0 0
        %2621 = vmatprep.subr.bf16.mxu0 0
        %2622 = vmatpush1.bf16.xpose.msra.mxu0 0
        %2623 = vmatprep.subr.bf16.mxu0 0
        %2624 = vmatpush1.bf16.xpose.msra.mxu0 0
        %2625 = vmatprep.subr.bf16.mxu0 0
        %2626 = vmatpush1.bf16.xpose.msra.mxu0 0
        %2627 = vmatprep.mubr.bf16.mxu0 %v2229
        %2628 = vmatmul.mubr.bf16.gmra.mrb[0].mxu0 %v2228
        %v2629 = vpop.f32.mrb[0].mxu0
        %v2630 = vadd.f32 %v2590, %v2629
        %v2631 = vpop.f32.mrb[0].mxu0
        %v2632 = vpop.f32.mrb[0].mxu0
        %v2633 = vpop.f32.mrb[0].mxu0
        %2634 = vdwg.mxu0
        %2635 = vmatprep.subr.bf16.mxu0 %v2382
        %2636 = vmatpush1.bf16.xpose.msra.mxu0 %v2381
        %2637 = vmatprep.subr.bf16.mxu0 %v2398
        %2638 = vmatpush1.bf16.xpose.msra.mxu0 %v2397
        %2639 = vmatprep.subr.bf16.mxu0 0
        %2640 = vmatpush1.bf16.xpose.msra.mxu0 0
        %2641 = vmatprep.subr.bf16.mxu0 0
        %2642 = vmatpush1.bf16.xpose.msra.mxu0 0
        %2643 = vmatprep.subr.bf16.mxu0 0
        %2644 = vmatpush1.bf16.xpose.msra.mxu0 0
        %2645 = vmatprep.subr.bf16.mxu0 0
        %2646 = vmatpush1.bf16.xpose.msra.mxu0 0
        %2647 = vmatprep.subr.bf16.mxu0 0
        %2648 = vmatpush1.bf16.xpose.msra.mxu0 0
        %2649 = vmatprep.subr.bf16.mxu0 0
        %2650 = vmatpush1.bf16.xpose.msra.mxu0 0
        %2651 = vmatprep.subr.bf16.mxu0 0
        %2652 = vmatpush1.bf16.xpose.msra.mxu0 0
        %2653 = vmatprep.subr.bf16.mxu0 0
        %2654 = vmatpush1.bf16.xpose.msra.mxu0 0
        %2655 = vmatprep.subr.bf16.mxu0 0
        %2656 = vmatpush1.bf16.xpose.msra.mxu0 0
        %2657 = vmatprep.subr.bf16.mxu0 0
        %2658 = vmatpush1.bf16.xpose.msra.mxu0 0
        %2659 = vmatprep.subr.bf16.mxu0 0
        %2660 = vmatpush1.bf16.xpose.msra.mxu0 0
        %2661 = vmatprep.subr.bf16.mxu0 0
        %2662 = vmatpush1.bf16.xpose.msra.mxu0 0
        %2663 = vmatprep.subr.bf16.mxu0 0
        %2664 = vmatpush1.bf16.xpose.msra.mxu0 0
        %2665 = vmatprep.subr.bf16.mxu0 0
        %2666 = vmatpush1.bf16.xpose.msra.mxu0 0
        %2667 = vmatprep.mubr.bf16.mxu0 %v2231
        %2668 = vmatmul.mubr.bf16.gmra.mrb[0].mxu0 %v2230
        %v2669 = vpop.f32.mrb[0].mxu0
        %v2670 = vadd.f32 %v2630, %v2669
        %v2671 = vpop.f32.mrb[0].mxu0
        %v2672 = vpop.f32.mrb[0].mxu0
        %v2673 = vpop.f32.mrb[0].mxu0
        %2674 = vdwg.mxu0
        %2675 = vmatprep.subr.bf16.mxu0 %v2384
        %2676 = vmatpush1.bf16.xpose.msra.mxu0 %v2383
        %2677 = vmatprep.subr.bf16.mxu0 %v2400
        %2678 = vmatpush1.bf16.xpose.msra.mxu0 %v2399
        %2679 = vmatprep.subr.bf16.mxu0 0
        %2680 = vmatpush1.bf16.xpose.msra.mxu0 0
        %2681 = vmatprep.subr.bf16.mxu0 0
        %2682 = vmatpush1.bf16.xpose.msra.mxu0 0
        %2683 = vmatprep.subr.bf16.mxu0 0
        %2684 = vmatpush1.bf16.xpose.msra.mxu0 0
        %2685 = vmatprep.subr.bf16.mxu0 0
        %2686 = vmatpush1.bf16.xpose.msra.mxu0 0
        %2687 = vmatprep.subr.bf16.mxu0 0
        %2688 = vmatpush1.bf16.xpose.msra.mxu0 0
        %2689 = vmatprep.subr.bf16.mxu0 0
        %2690 = vmatpush1.bf16.xpose.msra.mxu0 0
        %2691 = vmatprep.subr.bf16.mxu0 0
        %2692 = vmatpush1.bf16.xpose.msra.mxu0 0
        %2693 = vmatprep.subr.bf16.mxu0 0
        %2694 = vmatpush1.bf16.xpose.msra.mxu0 0
        %2695 = vmatprep.subr.bf16.mxu0 0
        %2696 = vmatpush1.bf16.xpose.msra.mxu0 0
        %2697 = vmatprep.subr.bf16.mxu0 0
        %2698 = vmatpush1.bf16.xpose.msra.mxu0 0
        %2699 = vmatprep.subr.bf16.mxu0 0
        %2700 = vmatpush1.bf16.xpose.msra.mxu0 0
        %2701 = vmatprep.subr.bf16.mxu0 0
        %2702 = vmatpush1.bf16.xpose.msra.mxu0 0
        %2703 = vmatprep.subr.bf16.mxu0 0
        %2704 = vmatpush1.bf16.xpose.msra.mxu0 0
        %2705 = vmatprep.subr.bf16.mxu0 0
        %2706 = vmatpush1.bf16.xpose.msra.mxu0 0
        %2707 = vmatprep.mubr.bf16.mxu0 %v2233
        %2708 = vmatmul.mubr.bf16.gmra.mrb[0].mxu0 %v2232
        %v2709 = vpop.f32.mrb[0].mxu0
        %v2710 = vadd.f32 %v2670, %v2709
        %v2711 = vpop.f32.mrb[0].mxu0
        %v2712 = vpop.f32.mrb[0].mxu0
        %v2713 = vpop.f32.mrb[0].mxu0
        %2714 = vdwg.mxu0
        %2715 = vmatprep.subr.bf16.mxu0 %v2386
        %2716 = vmatpush1.bf16.xpose.msra.mxu0 %v2385
        %2717 = vmatprep.subr.bf16.mxu0 %v2402
        %2718 = vmatpush1.bf16.xpose.msra.mxu0 %v2401
        %2719 = vmatprep.subr.bf16.mxu0 0
        %2720 = vmatpush1.bf16.xpose.msra.mxu0 0
        %2721 = vmatprep.subr.bf16.mxu0 0
        %2722 = vmatpush1.bf16.xpose.msra.mxu0 0
        %2723 = vmatprep.subr.bf16.mxu0 0
        %2724 = vmatpush1.bf16.xpose.msra.mxu0 0
        %2725 = vmatprep.subr.bf16.mxu0 0
        %2726 = vmatpush1.bf16.xpose.msra.mxu0 0
        %2727 = vmatprep.subr.bf16.mxu0 0
        %2728 = vmatpush1.bf16.xpose.msra.mxu0 0
        %2729 = vmatprep.subr.bf16.mxu0 0
        %2730 = vmatpush1.bf16.xpose.msra.mxu0 0
        %2731 = vmatprep.subr.bf16.mxu0 0
        %2732 = vmatpush1.bf16.xpose.msra.mxu0 0
        %2733 = vmatprep.subr.bf16.mxu0 0
        %2734 = vmatpush1.bf16.xpose.msra.mxu0 0
        %2735 = vmatprep.subr.bf16.mxu0 0
        %2736 = vmatpush1.bf16.xpose.msra.mxu0 0
        %2737 = vmatprep.subr.bf16.mxu0 0
        %2738 = vmatpush1.bf16.xpose.msra.mxu0 0
        %2739 = vmatprep.subr.bf16.mxu0 0
        %2740 = vmatpush1.bf16.xpose.msra.mxu0 0
        %2741 = vmatprep.subr.bf16.mxu0 0
        %2742 = vmatpush1.bf16.xpose.msra.mxu0 0
        %2743 = vmatprep.subr.bf16.mxu0 0
        %2744 = vmatpush1.bf16.xpose.msra.mxu0 0
        %2745 = vmatprep.subr.bf16.mxu0 0
        %2746 = vmatpush1.bf16.xpose.msra.mxu0 0
        %2747 = vmatprep.mubr.bf16.mxu0 %v2235
        %2748 = vmatmul.mubr.bf16.gmra.mrb[0].mxu0 %v2234
        %v2749 = vpop.f32.mrb[0].mxu0
        %v2750 = vadd.f32 %v2710, %v2749
        %v2751 = vpop.f32.mrb[0].mxu0
        %v2752 = vpop.f32.mrb[0].mxu0
        %v2753 = vpop.f32.mrb[0].mxu0
        %2754 = vdwg.mxu0
        %v2755 = vadd.f32 %v1595, %v2750
        %v2756 = vld [vmem:[%s617] sm:$0x1]
        %v2757 = vld [vmem:[%s620] sm:$0x1]
        %v2758 = vsel %vm654, %v2755, 0.0
        %2759 = vadd.xlane.f32.xlu0 %v2758
        %v2760 = vpop.xlane.xlu0 %2759
        %v2761 = vmul.f32 %v2760, %v1571
        %v2762 = vsub.f32 %v2755, %v2761
        %v2763 = vmul.f32 %v2762, %v2762
        %v2764 = vsel %vm654, %v2763, 0.0
        %2765 = vadd.xlane.f32.xlu0 %v2764
        %v2766 = vpop.xlane.xlu0 %2765
        %v2767 = vmul.f32 %v2766, %v1571
        %v2768 = vadd.f32 %v2767, 1e-05
        %v2769 = vrsqrt.pop %v2768
        %v2770 = vmul.f32 %v2762, %v2769
        %v2772 = vlaneseq
        %v2773 = vshrl.u32 %v2772, 7
        %v2774 = vsub.s32 0, %v2773
        %v2775 = vrot.slane %v2756, %v2774
        %v2777 = vmul.f32 %v2770, %v2775
        %v2779 = vlaneseq
        %v2780 = vshrl.u32 %v2779, 7
        %v2781 = vsub.s32 0, %v2780
        %v2782 = vrot.slane %v2757, %v2781
        %v2784 = vadd.f32 %v2777, %v2782
        %2785 = vst.msk [vmem:[#allocation2] sm:$0xff] %vm654, %v2784
        %p2786 = scmp.eq.s32.totalorder %s27, 1
        // Predicated region
        $region81: #{embedding_net_forward.4} parent=71 // pred_check
          %p2787 = pneg %p2786
        $region82: #{embedding_net_forward.4} parent=71 // pred_check_branch
          %2789 = sbr.rel (%p2787) target = $region84
        $region83: #{embedding_net_forward.4} parent=71 // pred_region
          %2790 = vst.msk [vmem:[%s13] sm:$0xff] %vm654, %v2784
        $region84: #{embedding_net_forward.4} parent=71 // pred_fallthru
          _
        // Predicated region
        $region85: #{embedding_net_forward.4} parent=71 // pred_check
          %p2791 = pneg %p373
        $region86: #{embedding_net_forward.4} parent=71 // pred_check_branch
          %2793 = sbr.rel (%p2791) target = $region88
        $region87: #{embedding_net_forward.4} parent=71 // pred_region
          _
        $region88: #{embedding_net_forward.4} parent=71 // pred_fallthru
          _
        // Predicated region
        $region89: #{embedding_net_forward.4} parent=71 // pred_check
          %p2794 = pneg %p373
        $region90: #{embedding_net_forward.4} parent=71 // pred_check_branch
          %2796 = sbr.rel (%p2794) target = $region92
        $region91: #{embedding_net_forward.4} parent=71 // pred_region
          _
        $region92: #{embedding_net_forward.4} parent=71 // pred_fallthru
          _
      $region72: #{embedding_net_forward.4} parent=5 // pred_fallthru
        _
      %p2797 = scmp.le.s32.totalorder 2, %s22
      // Predicated region
      $region93: #{embedding_net_forward.4} parent=5 // pred_check
        %p2798 = pneg %p2797
      $region94: #{embedding_net_forward.4} parent=5 // pred_check_branch
        %2800 = sbr.rel (%p2798) target = $region96
      $region95: #{embedding_net_forward.4} parent=5 // pred_region
        %s2801 = ssub.s32 %s22, 2
      $region96: #{embedding_net_forward.4} parent=5 // pred_fallthru
        _
    $region6: #{embedding_net_forward.4} parent=1 // loop_footer
      %s26 = sadd.s32 1, %s22
    $region7: #{embedding_net_forward.4} parent=1 // loop_footer_branch
      %21 = sbr.rel target = $region3
    $region8: #{embedding_net_forward.4} parent=1 // loop_exit
      _
    %2802 = vsyncpa [#allocation4], 1
    %s2803 = scalar_lea.sflag [#allocation4], 1
    %2804 = vsyncpa %s2803, 1

// kernel: embedding_net_forward.5
$region0: #{embedding_net_forward.5}
  #allocation0 [shape = 'u32[]', space=smem, size = 0x4, offset = 0x4, fixed_abs, tag = 'smem constant byte address 0x4 - core index']
  #allocation1 [shape = 'u32[144,128]{1,0:T(1,128)}', space=vmem, size = 0x12000, scoped, tag = 'internal scratch']
  #allocation2 [shape = 'f32[9,32]{1,0:T(8,128)}', space=vmem, size = 0x2000, scoped, tag = 'scratch operand']
  %s0 = inlined_call_operand.vmem [shape: f32[9,32], index: 0, kind: input, shape index: {}]
  %s1 = inlined_call_operand.vmem [shape: bf16[2,32,96], index: 1, kind: input, shape index: {}]
  %s2 = inlined_call_operand.vmem [shape: f32[2,1,96], index: 2, kind: input, shape index: {}]
  %s3 = inlined_call_operand.vmem [shape: bf16[2,32,32], index: 3, kind: input, shape index: {}]
  %s4 = inlined_call_operand.vmem [shape: f32[2,1,32], index: 4, kind: input, shape index: {}]
  %s5 = inlined_call_operand.vmem [shape: f32[2,1,32], index: 5, kind: input, shape index: {}]
  %s6 = inlined_call_operand.vmem [shape: f32[2,1,32], index: 6, kind: input, shape index: {}]
  %s7 = inlined_call_operand.vmem [shape: bf16[2,32,2048], index: 7, kind: input, shape index: {}]
  %s8 = inlined_call_operand.vmem [shape: f32[2,1,2048], index: 8, kind: input, shape index: {}]
  %s9 = inlined_call_operand.vmem [shape: bf16[2,32,2048], index: 9, kind: input, shape index: {}]
  %s10 = inlined_call_operand.vmem [shape: f32[2,1,32], index: 10, kind: input, shape index: {}]
  %s11 = inlined_call_operand.vmem [shape: f32[2,1,32], index: 11, kind: input, shape index: {}]
  %s12 = inlined_call_operand.vmem [shape: f32[2,1,32], index: 12, kind: input, shape index: {}]
  %s13 = inlined_call_operand.vmem [shape: f32[9,32], index: 13, kind: output, shape index: {}]
  %s14 = sld [smem:[#allocation0]]
  $region93: #{embedding_net_forward.5} parent=0
    _
  %s16 = ssub.s32 1, %s14
  %s17 = scalar_select 0, %s16, %s14
  loop: start=0, step=1, limit=4
  $region2: #{embedding_net_forward.5} parent=0 // loop_pre_header
    _
  $region3: #{embedding_net_forward.5} parent=0 // loop_header
    %s19 = sphi 0, %s23
    %p20 = scmp.ge.s32.totalorder %s19, 4
    %s27 = sphi 0, %s27
    %s29 = sphi 0, %s27
    %s30 = sphi 0, %s29
    %s44 = sphi 0, %s30
    %s50 = sphi 0, %s52
    %s53 = sphi 0, %s50
    %s54 = sphi 0, %s53
    %s70 = sphi 0, %s54
    %s76 = sphi 0, %s78
    %s79 = sphi 0, %s76
    %s80 = sphi 0, %s79
    %s96 = sphi 0, %s80
    %s102 = sphi 0, %s104
    %s105 = sphi 0, %s102
    %s106 = sphi 0, %s105
    %s122 = sphi 0, %s106
    %s128 = sphi 0, %s130
    %s131 = sphi 0, %s128
    %s132 = sphi 0, %s131
    %s148 = sphi 0, %s132
    %s154 = sphi 0, %s156
    %s157 = sphi 0, %s154
    %s158 = sphi 0, %s157
    %s174 = sphi 0, %s158
    %s180 = sphi 0, %s182
    %s183 = sphi 0, %s180
    %s184 = sphi 0, %s183
    %s200 = sphi 0, %s184
    %s206 = sphi 0, %s208
    %s209 = sphi 0, %s206
    %s210 = sphi 0, %s209
    %s226 = sphi 0, %s210
    %s232 = sphi 0, %s234
    %s235 = sphi 0, %s232
    %s236 = sphi 0, %s235
    %s252 = sphi 0, %s236
    %s258 = sphi 0, %s260
    %s261 = sphi 0, %s258
    %s262 = sphi 0, %s261
    %s278 = sphi 0, %s262
    %s284 = sphi 0, %s286
    %s287 = sphi 0, %s284
    %s288 = sphi 0, %s287
    %s304 = sphi 0, %s288
    %s310 = sphi 0, %s312
    %s313 = sphi 0, %s310
    %s314 = sphi 0, %s313
    %s330 = sphi 0, %s314
    %s336 = sphi 0, %s338
    %s339 = sphi 0, %s336
    %s340 = sphi 0, %s339
    %s356 = sphi 0, %s340
    %s360 = sphi 0, %s360
    %s362 = sphi 0, %s360
    %s363 = sphi 0, %s362
    %s377 = sphi 0, %s363
  $region4: #{embedding_net_forward.5} parent=0 // loop_header_branch
    %22 = sbr.rel (%p20) target = $region8
  $region5: #{embedding_net_forward.5} parent=0 // loop_body
    %s24 = ssub.s32 %s19, 1
    %s25 = ssub.s32 %s19, 2
    %s26 = sadd.s32 %s19, 1
    %s28 = sadd.s32 %s27, 1
    %p31 = scmp.eq.s32.totalorder %s19, 1
    %p32 = scmp.ne.s32.totalorder %s27, %s29
    %p33 = scmp.eq.s32.totalorder %s19, 0
    %p34 = por %p32, %p33
    %p35 = scmp.ne.s32.totalorder %s27, %s29
    %p36 = scmp.eq.s32.totalorder %s24, 1
    %p37 = por %p35, %p36
    %p38 = scmp.ne.s32.totalorder %s29, %s30
    %p39 = scmp.eq.s32.totalorder %s24, 0
    %p40 = por %p38, %p39
    %p41 = scmp.ne.s32.totalorder %s29, %s30
    %p42 = scmp.eq.s32.totalorder %s25, 1
    %p43 = por %p41, %p42
    %p45 = scmp.ne.s32.totalorder %s30, %s44
    %p46 = scmp.eq.s32.totalorder %s25, 0
    %p47 = por %p45, %p46
    %s48 = ssub.s32 %s19, %s26
    %p49 = scmp.eq.s32.totalorder %s48, 0
    %s51 = sadd.s32 %s50, 1
    %s52 = scalar_select %p49, %s50, %s51
    %p55 = pneg %p49
    %p56 = scmp.eq.s32.totalorder %s19, 1
    %p57 = por %p55, %p56
    %p58 = scmp.ne.s32.totalorder %s50, %s53
    %p59 = scmp.eq.s32.totalorder %s19, 0
    %p60 = por %p58, %p59
    %p61 = scmp.ne.s32.totalorder %s50, %s53
    %p62 = scmp.eq.s32.totalorder %s24, 1
    %p63 = por %p61, %p62
    %p64 = scmp.ne.s32.totalorder %s53, %s54
    %p65 = scmp.eq.s32.totalorder %s24, 0
    %p66 = por %p64, %p65
    %p67 = scmp.ne.s32.totalorder %s53, %s54
    %p68 = scmp.eq.s32.totalorder %s25, 1
    %p69 = por %p67, %p68
    %p71 = scmp.ne.s32.totalorder %s54, %s70
    %p72 = scmp.eq.s32.totalorder %s25, 0
    %p73 = por %p71, %p72
    %s74 = ssub.s32 %s19, %s26
    %p75 = scmp.eq.s32.totalorder %s74, 0
    %s77 = sadd.s32 %s76, 1
    %s78 = scalar_select %p75, %s76, %s77
    %p81 = pneg %p75
    %p82 = scmp.eq.s32.totalorder %s19, 1
    %p83 = por %p81, %p82
    %p84 = scmp.ne.s32.totalorder %s76, %s79
    %p85 = scmp.eq.s32.totalorder %s19, 0
    %p86 = por %p84, %p85
    %p87 = scmp.ne.s32.totalorder %s76, %s79
    %p88 = scmp.eq.s32.totalorder %s24, 1
    %p89 = por %p87, %p88
    %p90 = scmp.ne.s32.totalorder %s79, %s80
    %p91 = scmp.eq.s32.totalorder %s24, 0
    %p92 = por %p90, %p91
    %p93 = scmp.ne.s32.totalorder %s79, %s80
    %p94 = scmp.eq.s32.totalorder %s25, 1
    %p95 = por %p93, %p94
    %p97 = scmp.ne.s32.totalorder %s80, %s96
    %p98 = scmp.eq.s32.totalorder %s25, 0
    %p99 = por %p97, %p98
    %s100 = ssub.s32 %s19, %s26
    %p101 = scmp.eq.s32.totalorder %s100, 0
    %s103 = sadd.s32 %s102, 1
    %s104 = scalar_select %p101, %s102, %s103
    %p107 = pneg %p101
    %p108 = scmp.eq.s32.totalorder %s19, 1
    %p109 = por %p107, %p108
    %p110 = scmp.ne.s32.totalorder %s102, %s105
    %p111 = scmp.eq.s32.totalorder %s19, 0
    %p112 = por %p110, %p111
    %p113 = scmp.ne.s32.totalorder %s102, %s105
    %p114 = scmp.eq.s32.totalorder %s24, 1
    %p115 = por %p113, %p114
    %p116 = scmp.ne.s32.totalorder %s105, %s106
    %p117 = scmp.eq.s32.totalorder %s24, 0
    %p118 = por %p116, %p117
    %p119 = scmp.ne.s32.totalorder %s105, %s106
    %p120 = scmp.eq.s32.totalorder %s25, 1
    %p121 = por %p119, %p120
    %p123 = scmp.ne.s32.totalorder %s106, %s122
    %p124 = scmp.eq.s32.totalorder %s25, 0
    %p125 = por %p123, %p124
    %s126 = ssub.s32 %s19, %s26
    %p127 = scmp.eq.s32.totalorder %s126, 0
    %s129 = sadd.s32 %s128, 1
    %s130 = scalar_select %p127, %s128, %s129
    %p133 = pneg %p127
    %p134 = scmp.eq.s32.totalorder %s19, 1
    %p135 = por %p133, %p134
    %p136 = scmp.ne.s32.totalorder %s128, %s131
    %p137 = scmp.eq.s32.totalorder %s19, 0
    %p138 = por %p136, %p137
    %p139 = scmp.ne.s32.totalorder %s128, %s131
    %p140 = scmp.eq.s32.totalorder %s24, 1
    %p141 = por %p139, %p140
    %p142 = scmp.ne.s32.totalorder %s131, %s132
    %p143 = scmp.eq.s32.totalorder %s24, 0
    %p144 = por %p142, %p143
    %p145 = scmp.ne.s32.totalorder %s131, %s132
    %p146 = scmp.eq.s32.totalorder %s25, 1
    %p147 = por %p145, %p146
    %p149 = scmp.ne.s32.totalorder %s132, %s148
    %p150 = scmp.eq.s32.totalorder %s25, 0
    %p151 = por %p149, %p150
    %s152 = ssub.s32 %s19, %s26
    %p153 = scmp.eq.s32.totalorder %s152, 0
    %s155 = sadd.s32 %s154, 1
    %s156 = scalar_select %p153, %s154, %s155
    %p159 = pneg %p153
    %p160 = scmp.eq.s32.totalorder %s19, 1
    %p161 = por %p159, %p160
    %p162 = scmp.ne.s32.totalorder %s154, %s157
    %p163 = scmp.eq.s32.totalorder %s19, 0
    %p164 = por %p162, %p163
    %p165 = scmp.ne.s32.totalorder %s154, %s157
    %p166 = scmp.eq.s32.totalorder %s24, 1
    %p167 = por %p165, %p166
    %p168 = scmp.ne.s32.totalorder %s157, %s158
    %p169 = scmp.eq.s32.totalorder %s24, 0
    %p170 = por %p168, %p169
    %p171 = scmp.ne.s32.totalorder %s157, %s158
    %p172 = scmp.eq.s32.totalorder %s25, 1
    %p173 = por %p171, %p172
    %p175 = scmp.ne.s32.totalorder %s158, %s174
    %p176 = scmp.eq.s32.totalorder %s25, 0
    %p177 = por %p175, %p176
    %s178 = ssub.s32 %s19, %s26
    %p179 = scmp.eq.s32.totalorder %s178, 0
    %s181 = sadd.s32 %s180, 1
    %s182 = scalar_select %p179, %s180, %s181
    %p185 = pneg %p179
    %p186 = scmp.eq.s32.totalorder %s19, 1
    %p187 = por %p185, %p186
    %p188 = scmp.ne.s32.totalorder %s180, %s183
    %p189 = scmp.eq.s32.totalorder %s19, 0
    %p190 = por %p188, %p189
    %p191 = scmp.ne.s32.totalorder %s180, %s183
    %p192 = scmp.eq.s32.totalorder %s24, 1
    %p193 = por %p191, %p192
    %p194 = scmp.ne.s32.totalorder %s183, %s184
    %p195 = scmp.eq.s32.totalorder %s24, 0
    %p196 = por %p194, %p195
    %p197 = scmp.ne.s32.totalorder %s183, %s184
    %p198 = scmp.eq.s32.totalorder %s25, 1
    %p199 = por %p197, %p198
    %p201 = scmp.ne.s32.totalorder %s184, %s200
    %p202 = scmp.eq.s32.totalorder %s25, 0
    %p203 = por %p201, %p202
    %s204 = ssub.s32 %s19, %s26
    %p205 = scmp.eq.s32.totalorder %s204, 0
    %s207 = sadd.s32 %s206, 1
    %s208 = scalar_select %p205, %s206, %s207
    %p211 = pneg %p205
    %p212 = scmp.eq.s32.totalorder %s19, 1
    %p213 = por %p211, %p212
    %p214 = scmp.ne.s32.totalorder %s206, %s209
    %p215 = scmp.eq.s32.totalorder %s19, 0
    %p216 = por %p214, %p215
    %p217 = scmp.ne.s32.totalorder %s206, %s209
    %p218 = scmp.eq.s32.totalorder %s24, 1
    %p219 = por %p217, %p218
    %p220 = scmp.ne.s32.totalorder %s209, %s210
    %p221 = scmp.eq.s32.totalorder %s24, 0
    %p222 = por %p220, %p221
    %p223 = scmp.ne.s32.totalorder %s209, %s210
    %p224 = scmp.eq.s32.totalorder %s25, 1
    %p225 = por %p223, %p224
    %p227 = scmp.ne.s32.totalorder %s210, %s226
    %p228 = scmp.eq.s32.totalorder %s25, 0
    %p229 = por %p227, %p228
    %s230 = ssub.s32 %s19, %s26
    %p231 = scmp.eq.s32.totalorder %s230, 0
    %s233 = sadd.s32 %s232, 1
    %s234 = scalar_select %p231, %s232, %s233
    %p237 = pneg %p231
    %p238 = scmp.eq.s32.totalorder %s19, 1
    %p239 = por %p237, %p238
    %p240 = scmp.ne.s32.totalorder %s232, %s235
    %p241 = scmp.eq.s32.totalorder %s19, 0
    %p242 = por %p240, %p241
    %p243 = scmp.ne.s32.totalorder %s232, %s235
    %p244 = scmp.eq.s32.totalorder %s24, 1
    %p245 = por %p243, %p244
    %p246 = scmp.ne.s32.totalorder %s235, %s236
    %p247 = scmp.eq.s32.totalorder %s24, 0
    %p248 = por %p246, %p247
    %p249 = scmp.ne.s32.totalorder %s235, %s236
    %p250 = scmp.eq.s32.totalorder %s25, 1
    %p251 = por %p249, %p250
    %p253 = scmp.ne.s32.totalorder %s236, %s252
    %p254 = scmp.eq.s32.totalorder %s25, 0
    %p255 = por %p253, %p254
    %s256 = ssub.s32 %s19, %s26
    %p257 = scmp.eq.s32.totalorder %s256, 0
    %s259 = sadd.s32 %s258, 1
    %s260 = scalar_select %p257, %s258, %s259
    %p263 = pneg %p257
    %p264 = scmp.eq.s32.totalorder %s19, 1
    %p265 = por %p263, %p264
    %p266 = scmp.ne.s32.totalorder %s258, %s261
    %p267 = scmp.eq.s32.totalorder %s19, 0
    %p268 = por %p266, %p267
    %p269 = scmp.ne.s32.totalorder %s258, %s261
    %p270 = scmp.eq.s32.totalorder %s24, 1
    %p271 = por %p269, %p270
    %p272 = scmp.ne.s32.totalorder %s261, %s262
    %p273 = scmp.eq.s32.totalorder %s24, 0
    %p274 = por %p272, %p273
    %p275 = scmp.ne.s32.totalorder %s261, %s262
    %p276 = scmp.eq.s32.totalorder %s25, 1
    %p277 = por %p275, %p276
    %p279 = scmp.ne.s32.totalorder %s262, %s278
    %p280 = scmp.eq.s32.totalorder %s25, 0
    %p281 = por %p279, %p280
    %s282 = ssub.s32 %s19, %s26
    %p283 = scmp.eq.s32.totalorder %s282, 0
    %s285 = sadd.s32 %s284, 1
    %s286 = scalar_select %p283, %s284, %s285
    %p289 = pneg %p283
    %p290 = scmp.eq.s32.totalorder %s19, 1
    %p291 = por %p289, %p290
    %p292 = scmp.ne.s32.totalorder %s284, %s287
    %p293 = scmp.eq.s32.totalorder %s19, 0
    %p294 = por %p292, %p293
    %p295 = scmp.ne.s32.totalorder %s284, %s287
    %p296 = scmp.eq.s32.totalorder %s24, 1
    %p297 = por %p295, %p296
    %p298 = scmp.ne.s32.totalorder %s287, %s288
    %p299 = scmp.eq.s32.totalorder %s24, 0
    %p300 = por %p298, %p299
    %p301 = scmp.ne.s32.totalorder %s287, %s288
    %p302 = scmp.eq.s32.totalorder %s25, 1
    %p303 = por %p301, %p302
    %p305 = scmp.ne.s32.totalorder %s288, %s304
    %p306 = scmp.eq.s32.totalorder %s25, 0
    %p307 = por %p305, %p306
    %s308 = ssub.s32 %s19, %s26
    %p309 = scmp.eq.s32.totalorder %s308, 0
    %s311 = sadd.s32 %s310, 1
    %s312 = scalar_select %p309, %s310, %s311
    %p315 = pneg %p309
    %p316 = scmp.eq.s32.totalorder %s19, 1
    %p317 = por %p315, %p316
    %p318 = scmp.ne.s32.totalorder %s310, %s313
    %p319 = scmp.eq.s32.totalorder %s19, 0
    %p320 = por %p318, %p319
    %p321 = scmp.ne.s32.totalorder %s310, %s313
    %p322 = scmp.eq.s32.totalorder %s24, 1
    %p323 = por %p321, %p322
    %p324 = scmp.ne.s32.totalorder %s313, %s314
    %p325 = scmp.eq.s32.totalorder %s24, 0
    %p326 = por %p324, %p325
    %p327 = scmp.ne.s32.totalorder %s313, %s314
    %p328 = scmp.eq.s32.totalorder %s25, 1
    %p329 = por %p327, %p328
    %p331 = scmp.ne.s32.totalorder %s314, %s330
    %p332 = scmp.eq.s32.totalorder %s25, 0
    %p333 = por %p331, %p332
    %s334 = ssub.s32 %s19, %s26
    %p335 = scmp.eq.s32.totalorder %s334, 0
    %s337 = sadd.s32 %s336, 1
    %s338 = scalar_select %p335, %s336, %s337
    %p341 = pneg %p335
    %p342 = scmp.eq.s32.totalorder %s19, 1
    %p343 = por %p341, %p342
    %p344 = scmp.ne.s32.totalorder %s336, %s339
    %p345 = scmp.eq.s32.totalorder %s19, 0
    %p346 = por %p344, %p345
    %p347 = scmp.ne.s32.totalorder %s336, %s339
    %p348 = scmp.eq.s32.totalorder %s24, 1
    %p349 = por %p347, %p348
    %p350 = scmp.ne.s32.totalorder %s339, %s340
    %p351 = scmp.eq.s32.totalorder %s24, 0
    %p352 = por %p350, %p351
    %p353 = scmp.ne.s32.totalorder %s339, %s340
    %p354 = scmp.eq.s32.totalorder %s25, 1
    %p355 = por %p353, %p354
    %p357 = scmp.ne.s32.totalorder %s340, %s356
    %p358 = scmp.eq.s32.totalorder %s25, 0
    %p359 = por %p357, %p358
    %s361 = sadd.s32 %s360, 1
    %p364 = scmp.eq.s32.totalorder %s19, 1
    %p365 = scmp.ne.s32.totalorder %s360, %s362
    %p366 = scmp.eq.s32.totalorder %s19, 0
    %p367 = por %p365, %p366
    %p368 = scmp.ne.s32.totalorder %s360, %s362
    %p369 = scmp.eq.s32.totalorder %s24, 1
    %p370 = por %p368, %p369
    %p371 = scmp.ne.s32.totalorder %s362, %s363
    %p372 = scmp.eq.s32.totalorder %s24, 0
    %p373 = por %p371, %p372
    %p374 = scmp.ne.s32.totalorder %s362, %s363
    %p375 = scmp.eq.s32.totalorder %s25, 1
    %p376 = por %p374, %p375
    %p378 = scmp.ne.s32.totalorder %s363, %s377
    %p379 = scmp.eq.s32.totalorder %s25, 0
    %p380 = por %p378, %p379
    %p381 = scmp.le.s32.totalorder 1, %s19
    %p382 = scmp.lt.s32.totalorder %s19, 3
    %p383 = pnand %p381, %p382
    %p384 = pneg %p383
    // Predicated region
    $region9: #{embedding_net_forward.5} parent=5 // pred_check
      _
    $region10: #{embedding_net_forward.5} parent=5 // pred_check_branch
      %386 = sbr.rel (%p383) target = $region12
    $region11: #{embedding_net_forward.5} parent=5 // pred_region
      %s387 = ssub.s32 %s19, 1
      // Predicated region
      $region13: #{embedding_net_forward.5} parent=11 // pred_check
        %p388 = pneg %p40
      $region14: #{embedding_net_forward.5} parent=11 // pred_check_branch
        %390 = sbr.rel (%p388) target = $region16
      $region15: #{embedding_net_forward.5} parent=11 // pred_region
        _
      $region16: #{embedding_net_forward.5} parent=11 // pred_fallthru
        _
    $region12: #{embedding_net_forward.5} parent=5 // pred_fallthru
      _
    %p391 = scmp.lt.s32.totalorder %s19, 2
    // Predicated region
    $region17: #{embedding_net_forward.5} parent=5 // pred_check
      %p392 = pneg %p391
    $region18: #{embedding_net_forward.5} parent=5 // pred_check_branch
      %394 = sbr.rel (%p392) target = $region20
    $region19: #{embedding_net_forward.5} parent=5 // pred_region
      // Predicated region
      $region21: #{embedding_net_forward.5} parent=19 // pred_check
        %p395 = pneg %p60
      $region22: #{embedding_net_forward.5} parent=19 // pred_check_branch
        %397 = sbr.rel (%p395) target = $region24
      $region23: #{embedding_net_forward.5} parent=19 // pred_region
        %p398 = scmp.lt.s32.totalorder %s19, 1
        %s399 = scalar_select %p398, %s19, 1
        %s400 = smul.addr %s399, 4
        %s401 = smul.addr %s400, 4
        %s402 = scalar_lea.vmem %s1, %s401
      $region24: #{embedding_net_forward.5} parent=19 // pred_fallthru
        _
      // Predicated region
      $region25: #{embedding_net_forward.5} parent=19 // pred_check
        %p403 = pneg %p86
      $region26: #{embedding_net_forward.5} parent=19 // pred_check_branch
        %405 = sbr.rel (%p403) target = $region28
      $region27: #{embedding_net_forward.5} parent=19 // pred_region
        %p406 = scmp.lt.s32.totalorder %s19, 1
        %s407 = scalar_select %p406, %s19, 1
        %s408 = scalar_lea.vmem %s2, %s407
      $region28: #{embedding_net_forward.5} parent=19 // pred_fallthru
        _
      // Predicated region
      $region29: #{embedding_net_forward.5} parent=19 // pred_check
        %p409 = pneg %p112
      $region30: #{embedding_net_forward.5} parent=19 // pred_check_branch
        %411 = sbr.rel (%p409) target = $region32
      $region31: #{embedding_net_forward.5} parent=19 // pred_region
        %p412 = scmp.lt.s32.totalorder %s19, 1
        %s413 = scalar_select %p412, %s19, 1
        %s414 = smul.addr %s413, 4
        %s415 = smul.addr %s414, 4
        %s416 = scalar_lea.vmem %s3, %s415
      $region32: #{embedding_net_forward.5} parent=19 // pred_fallthru
        _
      // Predicated region
      $region33: #{embedding_net_forward.5} parent=19 // pred_check
        %p417 = pneg %p138
      $region34: #{embedding_net_forward.5} parent=19 // pred_check_branch
        %419 = sbr.rel (%p417) target = $region36
      $region35: #{embedding_net_forward.5} parent=19 // pred_region
        %p420 = scmp.lt.s32.totalorder %s19, 1
        %s421 = scalar_select %p420, %s19, 1
        %s422 = scalar_lea.vmem %s4, %s421
      $region36: #{embedding_net_forward.5} parent=19 // pred_fallthru
        _
      // Predicated region
      $region37: #{embedding_net_forward.5} parent=19 // pred_check
        %p423 = pneg %p164
      $region38: #{embedding_net_forward.5} parent=19 // pred_check_branch
        %425 = sbr.rel (%p423) target = $region40
      $region39: #{embedding_net_forward.5} parent=19 // pred_region
        %p426 = scmp.lt.s32.totalorder %s19, 1
        %s427 = scalar_select %p426, %s19, 1
        %s428 = scalar_lea.vmem %s5, %s427
      $region40: #{embedding_net_forward.5} parent=19 // pred_fallthru
        _
      // Predicated region
      $region41: #{embedding_net_forward.5} parent=19 // pred_check
        %p429 = pneg %p190
      $region42: #{embedding_net_forward.5} parent=19 // pred_check_branch
        %431 = sbr.rel (%p429) target = $region44
      $region43: #{embedding_net_forward.5} parent=19 // pred_region
        %p432 = scmp.lt.s32.totalorder %s19, 1
        %s433 = scalar_select %p432, %s19, 1
        %s434 = scalar_lea.vmem %s6, %s433
      $region44: #{embedding_net_forward.5} parent=19 // pred_fallthru
        _
      // Predicated region
      $region45: #{embedding_net_forward.5} parent=19 // pred_check
        %p435 = pneg %p216
      $region46: #{embedding_net_forward.5} parent=19 // pred_check_branch
        %437 = sbr.rel (%p435) target = $region48
      $region47: #{embedding_net_forward.5} parent=19 // pred_region
        %p438 = scmp.lt.s32.totalorder %s19, 1
        %s439 = scalar_select %p438, %s19, 1
        %s440 = smul.addr %s439, 64
        %s441 = smul.addr %s440, 4
        %s442 = scalar_lea.vmem %s7, %s441
      $region48: #{embedding_net_forward.5} parent=19 // pred_fallthru
        _
      // Predicated region
      $region49: #{embedding_net_forward.5} parent=19 // pred_check
        %p443 = pneg %p242
      $region50: #{embedding_net_forward.5} parent=19 // pred_check_branch
        %445 = sbr.rel (%p443) target = $region52
      $region51: #{embedding_net_forward.5} parent=19 // pred_region
        %p446 = scmp.lt.s32.totalorder %s19, 1
        %s447 = scalar_select %p446, %s19, 1
        %s448 = smul.addr %s447, 16
        %s449 = scalar_lea.vmem %s8, %s448
      $region52: #{embedding_net_forward.5} parent=19 // pred_fallthru
        _
      // Predicated region
      $region53: #{embedding_net_forward.5} parent=19 // pred_check
        %p450 = pneg %p268
      $region54: #{embedding_net_forward.5} parent=19 // pred_check_branch
        %452 = sbr.rel (%p450) target = $region56
      $region55: #{embedding_net_forward.5} parent=19 // pred_region
        %p453 = scmp.lt.s32.totalorder %s19, 1
        %s454 = scalar_select %p453, %s19, 1
        %s455 = smul.addr %s454, 64
        %s456 = smul.addr %s455, 4
        %s457 = scalar_lea.vmem %s9, %s456
      $region56: #{embedding_net_forward.5} parent=19 // pred_fallthru
        _
      // Predicated region
      $region57: #{embedding_net_forward.5} parent=19 // pred_check
        %p458 = pneg %p294
      $region58: #{embedding_net_forward.5} parent=19 // pred_check_branch
        %460 = sbr.rel (%p458) target = $region60
      $region59: #{embedding_net_forward.5} parent=19 // pred_region
        %p461 = scmp.lt.s32.totalorder %s19, 1
        %s462 = scalar_select %p461, %s19, 1
        %s463 = scalar_lea.vmem %s10, %s462
      $region60: #{embedding_net_forward.5} parent=19 // pred_fallthru
        _
      // Predicated region
      $region61: #{embedding_net_forward.5} parent=19 // pred_check
        %p464 = pneg %p320
      $region62: #{embedding_net_forward.5} parent=19 // pred_check_branch
        %466 = sbr.rel (%p464) target = $region64
      $region63: #{embedding_net_forward.5} parent=19 // pred_region
        %p467 = scmp.lt.s32.totalorder %s19, 1
        %s468 = scalar_select %p467, %s19, 1
        %s469 = scalar_lea.vmem %s11, %s468
      $region64: #{embedding_net_forward.5} parent=19 // pred_fallthru
        _
      // Predicated region
      $region65: #{embedding_net_forward.5} parent=19 // pred_check
        %p470 = pneg %p346
      $region66: #{embedding_net_forward.5} parent=19 // pred_check_branch
        %472 = sbr.rel (%p470) target = $region68
      $region67: #{embedding_net_forward.5} parent=19 // pred_region
        %p473 = scmp.lt.s32.totalorder %s19, 1
        %s474 = scalar_select %p473, %s19, 1
        %s475 = scalar_lea.vmem %s12, %s474
      $region68: #{embedding_net_forward.5} parent=19 // pred_fallthru
        _
    $region20: #{embedding_net_forward.5} parent=5 // pred_fallthru
      _
    %p476 = scmp.le.s32.totalorder 1, %s19
    %p477 = scmp.lt.s32.totalorder %s19, 3
    %p478 = pnand %p476, %p477
    %p479 = pneg %p478
    // Predicated region
    $region69: #{embedding_net_forward.5} parent=5 // pred_check
      _
    $region70: #{embedding_net_forward.5} parent=5 // pred_check_branch
      %481 = sbr.rel (%p478) target = $region72
    $region71: #{embedding_net_forward.5} parent=5 // pred_region
      %s482 = ssub.s32 %s19, 1
      %p483 = pneg %p40
      %p484 = pneg %p37
      %p485 = scmp.lt.s32.totalorder %s24, 1
      %s486 = scalar_select %p485, %s24, 1
      %s487 = smul.addr %s486, 4
      %s488 = smul.addr %s487, 4
      %s489 = scalar_lea.vmem %s1, %s488
      %p490 = pneg %p66
      %p491 = pneg %p63
      %p492 = scmp.lt.s32.totalorder %s24, 1
      %s493 = scalar_select %p492, %s24, 1
      %s494 = scalar_lea.vmem %s2, %s493
      %p495 = pneg %p92
      %p496 = pneg %p89
      %p497 = scmp.lt.s32.totalorder %s24, 1
      %s498 = scalar_select %p497, %s24, 1
      %s499 = smul.addr %s498, 4
      %s500 = smul.addr %s499, 4
      %s501 = scalar_lea.vmem %s3, %s500
      %p502 = pneg %p118
      %p503 = pneg %p115
      %p504 = scmp.lt.s32.totalorder %s24, 1
      %s505 = scalar_select %p504, %s24, 1
      %s506 = scalar_lea.vmem %s4, %s505
      %p507 = pneg %p144
      %p508 = pneg %p141
      %p509 = scmp.lt.s32.totalorder %s24, 1
      %s510 = scalar_select %p509, %s24, 1
      %s511 = scalar_lea.vmem %s5, %s510
      %p512 = pneg %p170
      %p513 = pneg %p167
      %p514 = scmp.lt.s32.totalorder %s24, 1
      %s515 = scalar_select %p514, %s24, 1
      %s516 = scalar_lea.vmem %s6, %s515
      %p517 = pneg %p196
      %p518 = pneg %p193
      %p519 = scmp.lt.s32.totalorder %s24, 1
      %s520 = scalar_select %p519, %s24, 1
      %s521 = smul.addr %s520, 64
      %s522 = smul.addr %s521, 4
      %s523 = scalar_lea.vmem %s7, %s522
      %p524 = pneg %p222
      %p525 = pneg %p219
      %p526 = scmp.lt.s32.totalorder %s24, 1
      %s527 = scalar_select %p526, %s24, 1
      %s528 = smul.addr %s527, 16
      %s529 = scalar_lea.vmem %s8, %s528
      %p530 = pneg %p248
      %p531 = pneg %p245
      %p532 = scmp.lt.s32.totalorder %s24, 1
      %s533 = scalar_select %p532, %s24, 1
      %s534 = smul.addr %s533, 64
      %s535 = smul.addr %s534, 4
      %s536 = scalar_lea.vmem %s9, %s535
      %p537 = pneg %p274
      %p538 = pneg %p271
      %p539 = scmp.lt.s32.totalorder %s24, 1
      %s540 = scalar_select %p539, %s24, 1
      %s541 = scalar_lea.vmem %s10, %s540
      %p542 = pneg %p300
      %p543 = pneg %p297
      %p544 = scmp.lt.s32.totalorder %s24, 1
      %s545 = scalar_select %p544, %s24, 1
      %s546 = scalar_lea.vmem %s11, %s545
      %p547 = pneg %p326
      %p548 = pneg %p323
      %p549 = scmp.lt.s32.totalorder %s24, 1
      %s550 = scalar_select %p549, %s24, 1
      %s551 = scalar_lea.vmem %s12, %s550
      %p552 = pneg %p352
      %p553 = pneg %p349
      %p554 = pneg %p373
      %p555 = pneg %p370
      %p556 = scmp.lt.s32.totalorder %s24, 1
      %s557 = scalar_select %p556, %s24, 1
      %s558 = smul.addr %s557, 4
      %s559 = smul.addr %s558, 4
      %s560 = scalar_lea.vmem %s1, %s559
      %p561 = scmp.lt.s32.totalorder %s24, 1
      %s562 = scalar_select %p561, %s24, 1
      %s563 = scalar_lea.vmem %s2, %s562
      %p564 = scmp.lt.s32.totalorder %s24, 1
      %s565 = scalar_select %p564, %s24, 1
      %s566 = smul.addr %s565, 4
      %s567 = smul.addr %s566, 4
      %s568 = scalar_lea.vmem %s3, %s567
      %p569 = scmp.lt.s32.totalorder %s24, 1
      %s570 = scalar_select %p569, %s24, 1
      %s571 = scalar_lea.vmem %s4, %s570
      %p572 = scmp.lt.s32.totalorder %s24, 1
      %s573 = scalar_select %p572, %s24, 1
      %s574 = scalar_lea.vmem %s5, %s573
      %p575 = scmp.lt.s32.totalorder %s24, 1
      %s576 = scalar_select %p575, %s24, 1
      %s577 = scalar_lea.vmem %s6, %s576
      %p578 = scmp.lt.s32.totalorder %s24, 1
      %s579 = scalar_select %p578, %s24, 1
      %s580 = smul.addr %s579, 64
      %s581 = smul.addr %s580, 4
      %s582 = scalar_lea.vmem %s7, %s581
      %p583 = scmp.lt.s32.totalorder %s24, 1
      %s584 = scalar_select %p583, %s24, 1
      %s585 = smul.addr %s584, 16
      %s586 = scalar_lea.vmem %s8, %s585
      %p587 = scmp.lt.s32.totalorder %s24, 1
      %s588 = scalar_select %p587, %s24, 1
      %s589 = smul.addr %s588, 64
      %s590 = smul.addr %s589, 4
      %s591 = scalar_lea.vmem %s9, %s590
      %p592 = scmp.lt.s32.totalorder %s24, 1
      %s593 = scalar_select %p592, %s24, 1
      %s594 = scalar_lea.vmem %s10, %s593
      %p595 = scmp.lt.s32.totalorder %s24, 1
      %s596 = scalar_select %p595, %s24, 1
      %s597 = scalar_lea.vmem %s11, %s596
      %p598 = scmp.lt.s32.totalorder %s24, 1
      %s599 = scalar_select %p598, %s24, 1
      %s600 = scalar_lea.vmem %s12, %s599
      %p602 = scmp.eq.s32.totalorder %s24, 0
      // Predicated region
      $region73: #{embedding_net_forward.5} parent=71 // pred_check
        %p603 = pneg %p602
      $region74: #{embedding_net_forward.5} parent=71 // pred_check_branch
        %605 = sbr.rel (%p603) target = $region76
      $region75: #{embedding_net_forward.5} parent=71 // pred_region
        %v606 = vld [vmem:[%s0] sm:$0xff]
        %v607 = vld [vmem:[%s0 + $0x8] sm:$0x1]
        %vm608 = vcmask 261120
        %609 = vst.msk [vmem:[#allocation2] sm:$0xff] %vm608, %v606
        %vm610 = vcmask 253952
        %611 = vst.msk [vmem:[#allocation2 + $0x8] sm:$0x1] %vm610, %v607
      $region76: #{embedding_net_forward.5} parent=71 // pred_fallthru
        _
      %v612 = vld [vmem:[#allocation2] sm:$0xff]
      %v613 = vld [vmem:[#allocation2 + $0x8] sm:$0x1]
      %v614 = vpack.c.bf16 %v613, %v612
      %v615 = vld [vmem:[%s560] sm:$0xf]
      %v616 = vld [vmem:[%s560 + $0x4] sm:$0xf]
      %v617 = vld [vmem:[%s560 + $0x8] sm:$0xf]
      %v618 = vld [vmem:[%s560 + $0xc] sm:$0xf]
      %v619 = vld [vmem:[%s563] sm:$0x1]
      %v621 = vlaneseq
      %v622 = vshrl.u32 %v621, 7
      %v623 = vsub.s32 0, %v622
      %v624 = vrot.slane %v619, %v623
      %v630 = vunpack.c.l.b16 %v615
      %v631 = vunpack.c.l.b16 %v616
      %v632 = vunpack.c.l.b16 %v617
      %v633 = vunpack.c.l.b16 %v618
      %v634 = vpack.c.b16 %v631, %v630
      %v635 = vpack.c.b16 %v633, %v632
      %vm638 = vcmask 261120
      %v640 = vsel %vm638, %v614, 0
      %642 = vmatprep.subr.bf16.mxu0 0
      %643 = vmatpush1.bf16.msra.mxu0 %v634
      %644 = vmatprep.subr.bf16.mxu0 0
      %645 = vmatpush1.bf16.msra.mxu0 %v635
      %646 = vmatprep.subr.bf16.mxu0 0
      %647 = vmatpush1.bf16.msra.mxu0 0
      %648 = vmatprep.subr.bf16.mxu0 0
      %649 = vmatpush1.bf16.msra.mxu0 0
      %650 = vmatprep.subr.bf16.mxu0 0
      %651 = vmatpush1.bf16.msra.mxu0 0
      %652 = vmatprep.subr.bf16.mxu0 0
      %653 = vmatpush1.bf16.msra.mxu0 0
      %654 = vmatprep.subr.bf16.mxu0 0
      %655 = vmatpush1.bf16.msra.mxu0 0
      %656 = vmatprep.subr.bf16.mxu0 0
      %657 = vmatpush1.bf16.msra.mxu0 0
      %658 = vmatprep.subr.bf16.mxu0 0
      %659 = vmatpush1.bf16.msra.mxu0 0
      %660 = vmatprep.subr.bf16.mxu0 0
      %661 = vmatpush1.bf16.msra.mxu0 0
      %662 = vmatprep.subr.bf16.mxu0 0
      %663 = vmatpush1.bf16.msra.mxu0 0
      %664 = vmatprep.subr.bf16.mxu0 0
      %665 = vmatpush1.bf16.msra.mxu0 0
      %666 = vmatprep.subr.bf16.mxu0 0
      %667 = vmatpush1.bf16.msra.mxu0 0
      %668 = vmatprep.subr.bf16.mxu0 0
      %669 = vmatpush1.bf16.msra.mxu0 0
      %670 = vmatprep.subr.bf16.mxu0 0
      %671 = vmatpush1.bf16.msra.mxu0 0
      %672 = vmatprep.subr.bf16.mxu0 0
      %673 = vmatpush1.bf16.msra.mxu0 0
      %674 = vmatprep.mubr.bf16.mxu0 0
      %675 = vmatmul.mubr.bf16.gmra.mrb[0].mxu0 %v640
      %v676 = vpop.f32.mrb[0].mxu0
      %v677 = vadd.f32 %v624, %v676
      %v678 = vpop.f32.mrb[0].mxu0
      %v679 = vpop.f32.mrb[0].mxu0
      %v680 = vadd.f32 %v624, %v679
      %v681 = vpop.f32.mrb[0].mxu0
      %682 = vdwg.mxu0
      %v683 = vld [vmem:[%s568] sm:$0xf]
      %v684 = vld [vmem:[%s568 + $0x4] sm:$0xf]
      %v685 = vld [vmem:[%s568 + $0x8] sm:$0xf]
      %v686 = vld [vmem:[%s568 + $0xc] sm:$0xf]
      %689 = vrot.lane.b32.xlu0 %v677, 96
      %v690 = vpop.permute.xlu0 %689
      %691 = vrot.lane.b32.xlu0 %v680, 96
      %v692 = vpop.permute.xlu0 %691
      %vm693 = vcmask 64512
      %v694 = vsel %vm693, %v677, 0
      %v696 = vsel %vm693, %v680, 0
      %v698 = vsel %vm693, %v690, 0
      %v700 = vsel %vm693, %v692, 0
      %702 = vmatprep.subr.mxu0 0.0
      %703 = vmatpush1.xpose.msra.mxu0 %v698
      %704 = vmatprep.subr.mxu0 0.0
      %705 = vmatpush1.xpose.msra.mxu0 %v700
      %706 = vmatprep.subr.mxu0 0.0
      %707 = vmatpush1.xpose.msra.mxu0 0.0
      %708 = vmatprep.subr.mxu0 0.0
      %709 = vmatpush1.xpose.msra.mxu0 0.0
      %710 = vmatprep.subr.mxu0 0.0
      %711 = vmatpush1.xpose.msra.mxu0 0.0
      %712 = vmatprep.subr.mxu0 0.0
      %713 = vmatpush1.xpose.msra.mxu0 0.0
      %714 = vmatprep.subr.mxu0 0.0
      %715 = vmatpush1.xpose.msra.mxu0 0.0
      %716 = vmatprep.subr.mxu0 0.0
      %717 = vmatpush1.xpose.msra.mxu0 0.0
      %718 = vmatprep.subr.mxu0 0.0
      %719 = vmatpush1.xpose.msra.mxu0 0.0
      %720 = vmatprep.subr.mxu0 0.0
      %721 = vmatpush1.xpose.msra.mxu0 0.0
      %722 = vmatprep.subr.mxu0 0.0
      %723 = vmatpush1.xpose.msra.mxu0 0.0
      %724 = vmatprep.subr.mxu0 0.0
      %725 = vmatpush1.xpose.msra.mxu0 0.0
      %726 = vmatprep.subr.mxu0 0.0
      %727 = vmatpush1.xpose.msra.mxu0 0.0
      %728 = vmatprep.subr.mxu0 0.0
      %729 = vmatpush1.xpose.msra.mxu0 0.0
      %730 = vmatprep.subr.mxu0 0.0
      %731 = vmatpush1.xpose.msra.mxu0 0.0
      %732 = vmatprep.subr.mxu0 0.0
      %733 = vmatpush1.xpose.msra.mxu0 0.0
      %734 = vmatprep.subr.mxu0 0.0
      %735 = vmatpush1.xpose.msra.mxu0 0.0
      %736 = vmatprep.subr.mxu0 0.0
      %737 = vmatpush1.xpose.msra.mxu0 0.0
      %738 = vmatprep.subr.mxu0 0.0
      %739 = vmatpush1.xpose.msra.mxu0 0.0
      %740 = vmatprep.subr.mxu0 0.0
      %741 = vmatpush1.xpose.msra.mxu0 0.0
      %742 = vmatprep.subr.mxu0 0.0
      %743 = vmatpush1.xpose.msra.mxu0 0.0
      %744 = vmatprep.subr.mxu0 0.0
      %745 = vmatpush1.xpose.msra.mxu0 0.0
      %746 = vmatprep.subr.mxu0 0.0
      %747 = vmatpush1.xpose.msra.mxu0 0.0
      %748 = vmatprep.subr.mxu0 0.0
      %749 = vmatpush1.xpose.msra.mxu0 0.0
      %750 = vmatprep.subr.mxu0 0.0
      %751 = vmatpush1.xpose.msra.mxu0 0.0
      %752 = vmatprep.subr.mxu0 0.0
      %753 = vmatpush1.xpose.msra.mxu0 0.0
      %754 = vmatprep.subr.mxu0 0.0
      %755 = vmatpush1.xpose.msra.mxu0 0.0
      %756 = vmatprep.subr.mxu0 0.0
      %757 = vmatpush1.xpose.msra.mxu0 0.0
      %758 = vmatprep.subr.mxu0 0.0
      %759 = vmatpush1.xpose.msra.mxu0 0.0
      %760 = vmatprep.subr.mxu0 0.0
      %761 = vmatpush1.xpose.msra.mxu0 0.0
      %762 = vmatprep.subr.mxu0 0.0
      %763 = vmatpush1.xpose.msra.mxu0 0.0
      %764 = vmatprep.subr.mxu0 0.0
      %765 = vmatpush1.xpose.msra.mxu0 0.0
      %766 = vmatprep.mubr.f32.mxu0 0.0
      %767 = vmatmul.mubr.f32.gmra.mrb[0].mxu0 %v694
      %v768 = vpop.f32.mrb[0].mxu0
      %v769 = vadd.f32 0.0, %v768
      %v770 = vpop.f32.mrb[0].mxu0
      %771 = vmatprep.mubr.f32.mxu0 0.0
      %772 = vmatmul.mubr.f32.gmra.mrb[0].mxu0 %v696
      %v773 = vpop.f32.mrb[0].mxu0
      %v774 = vadd.f32 0.0, %v773
      %v775 = vpop.f32.mrb[0].mxu0
      %776 = vdwg.mxu0
      %v777 = vmul.f32 %v769, 0.35355338
      %v778 = vmul.f32 %v774, 0.35355338
      %vm779 = vcmask 72704
      %v780 = vsel %vm779, %v777, -inf
      %781 = vmax.xlane.f32.xlu0 %v780
      %v782 = vpop.xlane.xlu0 %781
      %vm783 = vcmask 65536
      %v784 = vsel %vm783, %v778, -inf
      %785 = vmax.xlane.f32.xlu0 %v784
      %v786 = vpop.xlane.xlu0 %785
      %v787 = vsub.f32 %v777, %v782
      %v788 = vsub.f32 %v778, %v786
      %v789 = vmul.f32 %v787, 1.442695
      %v790 = vpow.pop %v789
      %v791 = vmul.f32 %v788, 1.442695
      %v792 = vpow.pop %v791
      %v793 = vsel %vm779, %v790, 0.0
      %794 = vadd.xlane.f32.xlu0 %v793
      %v795 = vpop.xlane.xlu0 %794
      %v796 = vsel %vm783, %v792, 0.0
      %797 = vadd.xlane.f32.xlu0 %v796
      %v798 = vpop.xlane.xlu0 %797
      %v799 = vrcp.pop %v795
      %v800 = vrcp.pop %v798
      %v801 = vmul.f32 %v790, %v799
      %v802 = vmul.f32 %v792, %v800
      %803 = vrot.lane.b32.xlu0 %v677, 64
      %v804 = vpop.permute.xlu0 %803
      %805 = vrot.lane.b32.xlu0 %v680, 64
      %v806 = vpop.permute.xlu0 %805
      %v809 = vsel %vm779, %v801, 0
      %v812 = vsel %vm779, %v802, 0
      %vm814 = vcmask 1040384
      %v815 = vsel %vm814, %v806, 0
      %817 = vmatprep.subr.mxu0 0.0
      %818 = vmatpush1.msra.mxu0 %v804
      %819 = vmatprep.subr.mxu0 0.0
      %820 = vmatpush1.msra.mxu0 %v815
      %821 = vmatprep.subr.mxu0 0.0
      %822 = vmatpush1.msra.mxu0 0.0
      %823 = vmatprep.subr.mxu0 0.0
      %824 = vmatpush1.msra.mxu0 0.0
      %825 = vmatprep.subr.mxu0 0.0
      %826 = vmatpush1.msra.mxu0 0.0
      %827 = vmatprep.subr.mxu0 0.0
      %828 = vmatpush1.msra.mxu0 0.0
      %829 = vmatprep.subr.mxu0 0.0
      %830 = vmatpush1.msra.mxu0 0.0
      %831 = vmatprep.subr.mxu0 0.0
      %832 = vmatpush1.msra.mxu0 0.0
      %833 = vmatprep.subr.mxu0 0.0
      %834 = vmatpush1.msra.mxu0 0.0
      %835 = vmatprep.subr.mxu0 0.0
      %836 = vmatpush1.msra.mxu0 0.0
      %837 = vmatprep.subr.mxu0 0.0
      %838 = vmatpush1.msra.mxu0 0.0
      %839 = vmatprep.subr.mxu0 0.0
      %840 = vmatpush1.msra.mxu0 0.0
      %841 = vmatprep.subr.mxu0 0.0
      %842 = vmatpush1.msra.mxu0 0.0
      %843 = vmatprep.subr.mxu0 0.0
      %844 = vmatpush1.msra.mxu0 0.0
      %845 = vmatprep.subr.mxu0 0.0
      %846 = vmatpush1.msra.mxu0 0.0
      %847 = vmatprep.subr.mxu0 0.0
      %848 = vmatpush1.msra.mxu0 0.0
      %849 = vmatprep.subr.mxu0 0.0
      %850 = vmatpush1.msra.mxu0 0.0
      %851 = vmatprep.subr.mxu0 0.0
      %852 = vmatpush1.msra.mxu0 0.0
      %853 = vmatprep.subr.mxu0 0.0
      %854 = vmatpush1.msra.mxu0 0.0
      %855 = vmatprep.subr.mxu0 0.0
      %856 = vmatpush1.msra.mxu0 0.0
      %857 = vmatprep.subr.mxu0 0.0
      %858 = vmatpush1.msra.mxu0 0.0
      %859 = vmatprep.subr.mxu0 0.0
      %860 = vmatpush1.msra.mxu0 0.0
      %861 = vmatprep.subr.mxu0 0.0
      %862 = vmatpush1.msra.mxu0 0.0
      %863 = vmatprep.subr.mxu0 0.0
      %864 = vmatpush1.msra.mxu0 0.0
      %865 = vmatprep.subr.mxu0 0.0
      %866 = vmatpush1.msra.mxu0 0.0
      %867 = vmatprep.subr.mxu0 0.0
      %868 = vmatpush1.msra.mxu0 0.0
      %869 = vmatprep.subr.mxu0 0.0
      %870 = vmatpush1.msra.mxu0 0.0
      %871 = vmatprep.subr.mxu0 0.0
      %872 = vmatpush1.msra.mxu0 0.0
      %873 = vmatprep.subr.mxu0 0.0
      %874 = vmatpush1.msra.mxu0 0.0
      %875 = vmatprep.subr.mxu0 0.0
      %876 = vmatpush1.msra.mxu0 0.0
      %877 = vmatprep.subr.mxu0 0.0
      %878 = vmatpush1.msra.mxu0 0.0
      %879 = vmatprep.subr.mxu0 0.0
      %880 = vmatpush1.msra.mxu0 0.0
      %881 = vmatprep.mubr.f32.mxu0 0.0
      %882 = vmatmul.mubr.f32.gmra.mrb[0].mxu0 %v809
      %v883 = vpop.f32.mrb[0].mxu0
      %v884 = vadd.f32 0.0, %v883
      %v885 = vpop.f32.mrb[0].mxu0
      %886 = vmatprep.mubr.f32.mxu0 0.0
      %887 = vmatmul.mubr.f32.gmra.mrb[0].mxu0 %v812
      %v888 = vpop.f32.mrb[0].mxu0
      %v889 = vadd.f32 0.0, %v888
      %v890 = vpop.f32.mrb[0].mxu0
      %891 = vdwg.mxu0
      %v892 = vpack.c.bf16 %v889, %v884
      %893 = vrot.lane.b32.xlu0 %v677, 120
      %v894 = vpop.permute.xlu0 %893
      %895 = vrot.lane.b32.xlu0 %v680, 120
      %v896 = vpop.permute.xlu0 %895
      %897 = vrot.lane.b32.xlu0 %v677, 88
      %v898 = vpop.permute.xlu0 %897
      %899 = vrot.lane.b32.xlu0 %v680, 88
      %v900 = vpop.permute.xlu0 %899
      %v901 = vsel %vm693, %v894, 0
      %v903 = vsel %vm693, %v896, 0
      %v905 = vsel %vm693, %v898, 0
      %v907 = vsel %vm693, %v900, 0
      %909 = vmatprep.subr.mxu0 0.0
      %910 = vmatpush1.xpose.msra.mxu0 %v905
      %911 = vmatprep.subr.mxu0 0.0
      %912 = vmatpush1.xpose.msra.mxu0 %v907
      %913 = vmatprep.subr.mxu0 0.0
      %914 = vmatpush1.xpose.msra.mxu0 0.0
      %915 = vmatprep.subr.mxu0 0.0
      %916 = vmatpush1.xpose.msra.mxu0 0.0
      %917 = vmatprep.subr.mxu0 0.0
      %918 = vmatpush1.xpose.msra.mxu0 0.0
      %919 = vmatprep.subr.mxu0 0.0
      %920 = vmatpush1.xpose.msra.mxu0 0.0
      %921 = vmatprep.subr.mxu0 0.0
      %922 = vmatpush1.xpose.msra.mxu0 0.0
      %923 = vmatprep.subr.mxu0 0.0
      %924 = vmatpush1.xpose.msra.mxu0 0.0
      %925 = vmatprep.subr.mxu0 0.0
      %926 = vmatpush1.xpose.msra.mxu0 0.0
      %927 = vmatprep.subr.mxu0 0.0
      %928 = vmatpush1.xpose.msra.mxu0 0.0
      %929 = vmatprep.subr.mxu0 0.0
      %930 = vmatpush1.xpose.msra.mxu0 0.0
      %931 = vmatprep.subr.mxu0 0.0
      %932 = vmatpush1.xpose.msra.mxu0 0.0
      %933 = vmatprep.subr.mxu0 0.0
      %934 = vmatpush1.xpose.msra.mxu0 0.0
      %935 = vmatprep.subr.mxu0 0.0
      %936 = vmatpush1.xpose.msra.mxu0 0.0
      %937 = vmatprep.subr.mxu0 0.0
      %938 = vmatpush1.xpose.msra.mxu0 0.0
      %939 = vmatprep.subr.mxu0 0.0
      %940 = vmatpush1.xpose.msra.mxu0 0.0
      %941 = vmatprep.subr.mxu0 0.0
      %942 = vmatpush1.xpose.msra.mxu0 0.0
      %943 = vmatprep.subr.mxu0 0.0
      %944 = vmatpush1.xpose.msra.mxu0 0.0
      %945 = vmatprep.subr.mxu0 0.0
      %946 = vmatpush1.xpose.msra.mxu0 0.0
      %947 = vmatprep.subr.mxu0 0.0
      %948 = vmatpush1.xpose.msra.mxu0 0.0
      %949 = vmatprep.subr.mxu0 0.0
      %950 = vmatpush1.xpose.msra.mxu0 0.0
      %951 = vmatprep.subr.mxu0 0.0
      %952 = vmatpush1.xpose.msra.mxu0 0.0
      %953 = vmatprep.subr.mxu0 0.0
      %954 = vmatpush1.xpose.msra.mxu0 0.0
      %955 = vmatprep.subr.mxu0 0.0
      %956 = vmatpush1.xpose.msra.mxu0 0.0
      %957 = vmatprep.subr.mxu0 0.0
      %958 = vmatpush1.xpose.msra.mxu0 0.0
      %959 = vmatprep.subr.mxu0 0.0
      %960 = vmatpush1.xpose.msra.mxu0 0.0
      %961 = vmatprep.subr.mxu0 0.0
      %962 = vmatpush1.xpose.msra.mxu0 0.0
      %963 = vmatprep.subr.mxu0 0.0
      %964 = vmatpush1.xpose.msra.mxu0 0.0
      %965 = vmatprep.subr.mxu0 0.0
      %966 = vmatpush1.xpose.msra.mxu0 0.0
      %967 = vmatprep.subr.mxu0 0.0
      %968 = vmatpush1.xpose.msra.mxu0 0.0
      %969 = vmatprep.subr.mxu0 0.0
      %970 = vmatpush1.xpose.msra.mxu0 0.0
      %971 = vmatprep.subr.mxu0 0.0
      %972 = vmatpush1.xpose.msra.mxu0 0.0
      %973 = vmatprep.mubr.f32.mxu0 0.0
      %974 = vmatmul.mubr.f32.gmra.mrb[0].mxu0 %v901
      %v975 = vpop.f32.mrb[0].mxu0
      %v976 = vadd.f32 0.0, %v975
      %v977 = vpop.f32.mrb[0].mxu0
      %978 = vmatprep.mubr.f32.mxu0 0.0
      %979 = vmatmul.mubr.f32.gmra.mrb[0].mxu0 %v903
      %v980 = vpop.f32.mrb[0].mxu0
      %v981 = vadd.f32 0.0, %v980
      %v982 = vpop.f32.mrb[0].mxu0
      %983 = vdwg.mxu0
      %v984 = vmul.f32 %v976, 0.35355338
      %v985 = vmul.f32 %v981, 0.35355338
      %v986 = vsel %vm779, %v984, -inf
      %987 = vmax.xlane.f32.xlu0 %v986
      %v988 = vpop.xlane.xlu0 %987
      %v989 = vsel %vm783, %v985, -inf
      %990 = vmax.xlane.f32.xlu0 %v989
      %v991 = vpop.xlane.xlu0 %990
      %v992 = vsub.f32 %v984, %v988
      %v993 = vsub.f32 %v985, %v991
      %v994 = vmul.f32 %v992, 1.442695
      %v995 = vpow.pop %v994
      %v996 = vmul.f32 %v993, 1.442695
      %v997 = vpow.pop %v996
      %v998 = vsel %vm779, %v995, 0.0
      %999 = vadd.xlane.f32.xlu0 %v998
      %v1000 = vpop.xlane.xlu0 %999
      %v1001 = vsel %vm783, %v997, 0.0
      %1002 = vadd.xlane.f32.xlu0 %v1001
      %v1003 = vpop.xlane.xlu0 %1002
      %v1004 = vrcp.pop %v1000
      %v1005 = vrcp.pop %v1003
      %v1006 = vmul.f32 %v995, %v1004
      %v1007 = vmul.f32 %v997, %v1005
      %1008 = vrot.lane.b32.xlu0 %v677, 56
      %v1009 = vpop.permute.xlu0 %1008
      %1010 = vrot.lane.b32.xlu0 %v680, 56
      %v1011 = vpop.permute.xlu0 %1010
      %v1014 = vsel %vm779, %v1006, 0
      %v1017 = vsel %vm779, %v1007, 0
      %v1019 = vsel %vm814, %v1011, 0
      %1021 = vmatprep.subr.mxu0 0.0
      %1022 = vmatpush1.msra.mxu0 %v1009
      %1023 = vmatprep.subr.mxu0 0.0
      %1024 = vmatpush1.msra.mxu0 %v1019
      %1025 = vmatprep.subr.mxu0 0.0
      %1026 = vmatpush1.msra.mxu0 0.0
      %1027 = vmatprep.subr.mxu0 0.0
      %1028 = vmatpush1.msra.mxu0 0.0
      %1029 = vmatprep.subr.mxu0 0.0
      %1030 = vmatpush1.msra.mxu0 0.0
      %1031 = vmatprep.subr.mxu0 0.0
      %1032 = vmatpush1.msra.mxu0 0.0
      %1033 = vmatprep.subr.mxu0 0.0
      %1034 = vmatpush1.msra.mxu0 0.0
      %1035 = vmatprep.subr.mxu0 0.0
      %1036 = vmatpush1.msra.mxu0 0.0
      %1037 = vmatprep.subr.mxu0 0.0
      %1038 = vmatpush1.msra.mxu0 0.0
      %1039 = vmatprep.subr.mxu0 0.0
      %1040 = vmatpush1.msra.mxu0 0.0
      %1041 = vmatprep.subr.mxu0 0.0
      %1042 = vmatpush1.msra.mxu0 0.0
      %1043 = vmatprep.subr.mxu0 0.0
      %1044 = vmatpush1.msra.mxu0 0.0
      %1045 = vmatprep.subr.mxu0 0.0
      %1046 = vmatpush1.msra.mxu0 0.0
      %1047 = vmatprep.subr.mxu0 0.0
      %1048 = vmatpush1.msra.mxu0 0.0
      %1049 = vmatprep.subr.mxu0 0.0
      %1050 = vmatpush1.msra.mxu0 0.0
      %1051 = vmatprep.subr.mxu0 0.0
      %1052 = vmatpush1.msra.mxu0 0.0
      %1053 = vmatprep.subr.mxu0 0.0
      %1054 = vmatpush1.msra.mxu0 0.0
      %1055 = vmatprep.subr.mxu0 0.0
      %1056 = vmatpush1.msra.mxu0 0.0
      %1057 = vmatprep.subr.mxu0 0.0
      %1058 = vmatpush1.msra.mxu0 0.0
      %1059 = vmatprep.subr.mxu0 0.0
      %1060 = vmatpush1.msra.mxu0 0.0
      %1061 = vmatprep.subr.mxu0 0.0
      %1062 = vmatpush1.msra.mxu0 0.0
      %1063 = vmatprep.subr.mxu0 0.0
      %1064 = vmatpush1.msra.mxu0 0.0
      %1065 = vmatprep.subr.mxu0 0.0
      %1066 = vmatpush1.msra.mxu0 0.0
      %1067 = vmatprep.subr.mxu0 0.0
      %1068 = vmatpush1.msra.mxu0 0.0
      %1069 = vmatprep.subr.mxu0 0.0
      %1070 = vmatpush1.msra.mxu0 0.0
      %1071 = vmatprep.subr.mxu0 0.0
      %1072 = vmatpush1.msra.mxu0 0.0
      %1073 = vmatprep.subr.mxu0 0.0
      %1074 = vmatpush1.msra.mxu0 0.0
      %1075 = vmatprep.subr.mxu0 0.0
      %1076 = vmatpush1.msra.mxu0 0.0
      %1077 = vmatprep.subr.mxu0 0.0
      %1078 = vmatpush1.msra.mxu0 0.0
      %1079 = vmatprep.subr.mxu0 0.0
      %1080 = vmatpush1.msra.mxu0 0.0
      %1081 = vmatprep.subr.mxu0 0.0
      %1082 = vmatpush1.msra.mxu0 0.0
      %1083 = vmatprep.subr.mxu0 0.0
      %1084 = vmatpush1.msra.mxu0 0.0
      %1085 = vmatprep.mubr.f32.mxu0 0.0
      %1086 = vmatmul.mubr.f32.gmra.mrb[0].mxu0 %v1014
      %v1087 = vpop.f32.mrb[0].mxu0
      %v1088 = vadd.f32 0.0, %v1087
      %v1089 = vpop.f32.mrb[0].mxu0
      %1090 = vmatprep.mubr.f32.mxu0 0.0
      %1091 = vmatmul.mubr.f32.gmra.mrb[0].mxu0 %v1017
      %v1092 = vpop.f32.mrb[0].mxu0
      %v1093 = vadd.f32 0.0, %v1092
      %v1094 = vpop.f32.mrb[0].mxu0
      %1095 = vdwg.mxu0
      %v1096 = vpack.c.bf16 %v1093, %v1088
      %v1098 = vsel %vm693, %v1096, 0
      %vm1100 = vcmask 1043456
      %v1102 = vsel %vm1100, %v684, 0
      %1104 = vmatprep.subr.bf16.mxu0 0
      %1105 = vmatpush1.bf16.msra.mxu0 %v1102
      %1106 = vmatprep.subr.bf16.mxu0 0
      %1107 = vmatpush1.bf16.msra.mxu0 0
      %1108 = vmatprep.subr.bf16.mxu0 0
      %1109 = vmatpush1.bf16.msra.mxu0 0
      %1110 = vmatprep.subr.bf16.mxu0 0
      %1111 = vmatpush1.bf16.msra.mxu0 0
      %1112 = vmatprep.subr.bf16.mxu0 0
      %1113 = vmatpush1.bf16.msra.mxu0 0
      %1114 = vmatprep.subr.bf16.mxu0 0
      %1115 = vmatpush1.bf16.msra.mxu0 0
      %1116 = vmatprep.subr.bf16.mxu0 0
      %1117 = vmatpush1.bf16.msra.mxu0 0
      %1118 = vmatprep.subr.bf16.mxu0 0
      %1119 = vmatpush1.bf16.msra.mxu0 0
      %1120 = vmatprep.subr.bf16.mxu0 0
      %1121 = vmatpush1.bf16.msra.mxu0 0
      %1122 = vmatprep.subr.bf16.mxu0 0
      %1123 = vmatpush1.bf16.msra.mxu0 0
      %1124 = vmatprep.subr.bf16.mxu0 0
      %1125 = vmatpush1.bf16.msra.mxu0 0
      %1126 = vmatprep.subr.bf16.mxu0 0
      %1127 = vmatpush1.bf16.msra.mxu0 0
      %1128 = vmatprep.subr.bf16.mxu0 0
      %1129 = vmatpush1.bf16.msra.mxu0 0
      %1130 = vmatprep.subr.bf16.mxu0 0
      %1131 = vmatpush1.bf16.msra.mxu0 0
      %1132 = vmatprep.subr.bf16.mxu0 0
      %1133 = vmatpush1.bf16.msra.mxu0 0
      %1134 = vmatprep.subr.bf16.mxu0 0
      %1135 = vmatpush1.bf16.msra.mxu0 0
      %1136 = vmatprep.mubr.bf16.mxu0 0
      %1137 = vmatmul.mubr.bf16.gmra.mrb[0].mxu0 %v1098
      %v1138 = vpop.f32.mrb[0].mxu0
      %v1139 = vadd.f32 0.0, %v1138
      %v1140 = vpop.f32.mrb[0].mxu0
      %v1141 = vpop.f32.mrb[0].mxu0
      %v1142 = vadd.f32 0.0, %v1141
      %v1143 = vpop.f32.mrb[0].mxu0
      %1144 = vdwg.mxu0
      %v1146 = vsel %vm693, %v892, 0
      %v1149 = vsel %vm1100, %v683, 0
      %1151 = vmatprep.subr.bf16.mxu0 0
      %1152 = vmatpush1.bf16.msra.mxu0 %v1149
      %1153 = vmatprep.subr.bf16.mxu0 0
      %1154 = vmatpush1.bf16.msra.mxu0 0
      %1155 = vmatprep.subr.bf16.mxu0 0
      %1156 = vmatpush1.bf16.msra.mxu0 0
      %1157 = vmatprep.subr.bf16.mxu0 0
      %1158 = vmatpush1.bf16.msra.mxu0 0
      %1159 = vmatprep.subr.bf16.mxu0 0
      %1160 = vmatpush1.bf16.msra.mxu0 0
      %1161 = vmatprep.subr.bf16.mxu0 0
      %1162 = vmatpush1.bf16.msra.mxu0 0
      %1163 = vmatprep.subr.bf16.mxu0 0
      %1164 = vmatpush1.bf16.msra.mxu0 0
      %1165 = vmatprep.subr.bf16.mxu0 0
      %1166 = vmatpush1.bf16.msra.mxu0 0
      %1167 = vmatprep.subr.bf16.mxu0 0
      %1168 = vmatpush1.bf16.msra.mxu0 0
      %1169 = vmatprep.subr.bf16.mxu0 0
      %1170 = vmatpush1.bf16.msra.mxu0 0
      %1171 = vmatprep.subr.bf16.mxu0 0
      %1172 = vmatpush1.bf16.msra.mxu0 0
      %1173 = vmatprep.subr.bf16.mxu0 0
      %1174 = vmatpush1.bf16.msra.mxu0 0
      %1175 = vmatprep.subr.bf16.mxu0 0
      %1176 = vmatpush1.bf16.msra.mxu0 0
      %1177 = vmatprep.subr.bf16.mxu0 0
      %1178 = vmatpush1.bf16.msra.mxu0 0
      %1179 = vmatprep.subr.bf16.mxu0 0
      %1180 = vmatpush1.bf16.msra.mxu0 0
      %1181 = vmatprep.subr.bf16.mxu0 0
      %1182 = vmatpush1.bf16.msra.mxu0 0
      %1183 = vmatprep.mubr.bf16.mxu0 0
      %1184 = vmatmul.mubr.bf16.gmra.mrb[0].mxu0 %v1146
      %v1185 = vpop.f32.mrb[0].mxu0
      %v1186 = vadd.f32 %v1139, %v1185
      %v1187 = vpop.f32.mrb[0].mxu0
      %v1188 = vpop.f32.mrb[0].mxu0
      %v1189 = vadd.f32 %v1142, %v1188
      %v1190 = vpop.f32.mrb[0].mxu0
      %1191 = vdwg.mxu0
      %1192 = vrot.lane.b32.xlu0 %v677, 112
      %v1193 = vpop.permute.xlu0 %1192
      %1194 = vrot.lane.b32.xlu0 %v680, 112
      %v1195 = vpop.permute.xlu0 %1194
      %1196 = vrot.lane.b32.xlu0 %v677, 80
      %v1197 = vpop.permute.xlu0 %1196
      %1198 = vrot.lane.b32.xlu0 %v680, 80
      %v1199 = vpop.permute.xlu0 %1198
      %v1200 = vsel %vm693, %v1193, 0
      %v1202 = vsel %vm693, %v1195, 0
      %v1204 = vsel %vm693, %v1197, 0
      %v1206 = vsel %vm693, %v1199, 0
      %1208 = vmatprep.subr.mxu0 0.0
      %1209 = vmatpush1.xpose.msra.mxu0 %v1204
      %1210 = vmatprep.subr.mxu0 0.0
      %1211 = vmatpush1.xpose.msra.mxu0 %v1206
      %1212 = vmatprep.subr.mxu0 0.0
      %1213 = vmatpush1.xpose.msra.mxu0 0.0
      %1214 = vmatprep.subr.mxu0 0.0
      %1215 = vmatpush1.xpose.msra.mxu0 0.0
      %1216 = vmatprep.subr.mxu0 0.0
      %1217 = vmatpush1.xpose.msra.mxu0 0.0
      %1218 = vmatprep.subr.mxu0 0.0
      %1219 = vmatpush1.xpose.msra.mxu0 0.0
      %1220 = vmatprep.subr.mxu0 0.0
      %1221 = vmatpush1.xpose.msra.mxu0 0.0
      %1222 = vmatprep.subr.mxu0 0.0
      %1223 = vmatpush1.xpose.msra.mxu0 0.0
      %1224 = vmatprep.subr.mxu0 0.0
      %1225 = vmatpush1.xpose.msra.mxu0 0.0
      %1226 = vmatprep.subr.mxu0 0.0
      %1227 = vmatpush1.xpose.msra.mxu0 0.0
      %1228 = vmatprep.subr.mxu0 0.0
      %1229 = vmatpush1.xpose.msra.mxu0 0.0
      %1230 = vmatprep.subr.mxu0 0.0
      %1231 = vmatpush1.xpose.msra.mxu0 0.0
      %1232 = vmatprep.subr.mxu0 0.0
      %1233 = vmatpush1.xpose.msra.mxu0 0.0
      %1234 = vmatprep.subr.mxu0 0.0
      %1235 = vmatpush1.xpose.msra.mxu0 0.0
      %1236 = vmatprep.subr.mxu0 0.0
      %1237 = vmatpush1.xpose.msra.mxu0 0.0
      %1238 = vmatprep.subr.mxu0 0.0
      %1239 = vmatpush1.xpose.msra.mxu0 0.0
      %1240 = vmatprep.subr.mxu0 0.0
      %1241 = vmatpush1.xpose.msra.mxu0 0.0
      %1242 = vmatprep.subr.mxu0 0.0
      %1243 = vmatpush1.xpose.msra.mxu0 0.0
      %1244 = vmatprep.subr.mxu0 0.0
      %1245 = vmatpush1.xpose.msra.mxu0 0.0
      %1246 = vmatprep.subr.mxu0 0.0
      %1247 = vmatpush1.xpose.msra.mxu0 0.0
      %1248 = vmatprep.subr.mxu0 0.0
      %1249 = vmatpush1.xpose.msra.mxu0 0.0
      %1250 = vmatprep.subr.mxu0 0.0
      %1251 = vmatpush1.xpose.msra.mxu0 0.0
      %1252 = vmatprep.subr.mxu0 0.0
      %1253 = vmatpush1.xpose.msra.mxu0 0.0
      %1254 = vmatprep.subr.mxu0 0.0
      %1255 = vmatpush1.xpose.msra.mxu0 0.0
      %1256 = vmatprep.subr.mxu0 0.0
      %1257 = vmatpush1.xpose.msra.mxu0 0.0
      %1258 = vmatprep.subr.mxu0 0.0
      %1259 = vmatpush1.xpose.msra.mxu0 0.0
      %1260 = vmatprep.subr.mxu0 0.0
      %1261 = vmatpush1.xpose.msra.mxu0 0.0
      %1262 = vmatprep.subr.mxu0 0.0
      %1263 = vmatpush1.xpose.msra.mxu0 0.0
      %1264 = vmatprep.subr.mxu0 0.0
      %1265 = vmatpush1.xpose.msra.mxu0 0.0
      %1266 = vmatprep.subr.mxu0 0.0
      %1267 = vmatpush1.xpose.msra.mxu0 0.0
      %1268 = vmatprep.subr.mxu0 0.0
      %1269 = vmatpush1.xpose.msra.mxu0 0.0
      %1270 = vmatprep.subr.mxu0 0.0
      %1271 = vmatpush1.xpose.msra.mxu0 0.0
      %1272 = vmatprep.mubr.f32.mxu0 0.0
      %1273 = vmatmul.mubr.f32.gmra.mrb[0].mxu0 %v1200
      %v1274 = vpop.f32.mrb[0].mxu0
      %v1275 = vadd.f32 0.0, %v1274
      %v1276 = vpop.f32.mrb[0].mxu0
      %1277 = vmatprep.mubr.f32.mxu0 0.0
      %1278 = vmatmul.mubr.f32.gmra.mrb[0].mxu0 %v1202
      %v1279 = vpop.f32.mrb[0].mxu0
      %v1280 = vadd.f32 0.0, %v1279
      %v1281 = vpop.f32.mrb[0].mxu0
      %1282 = vdwg.mxu0
      %v1283 = vmul.f32 %v1275, 0.35355338
      %v1284 = vmul.f32 %v1280, 0.35355338
      %v1285 = vsel %vm779, %v1283, -inf
      %1286 = vmax.xlane.f32.xlu0 %v1285
      %v1287 = vpop.xlane.xlu0 %1286
      %v1288 = vsel %vm783, %v1284, -inf
      %1289 = vmax.xlane.f32.xlu0 %v1288
      %v1290 = vpop.xlane.xlu0 %1289
      %v1291 = vsub.f32 %v1283, %v1287
      %v1292 = vsub.f32 %v1284, %v1290
      %v1293 = vmul.f32 %v1291, 1.442695
      %v1294 = vpow.pop %v1293
      %v1295 = vmul.f32 %v1292, 1.442695
      %v1296 = vpow.pop %v1295
      %v1297 = vsel %vm779, %v1294, 0.0
      %1298 = vadd.xlane.f32.xlu0 %v1297
      %v1299 = vpop.xlane.xlu0 %1298
      %v1300 = vsel %vm783, %v1296, 0.0
      %1301 = vadd.xlane.f32.xlu0 %v1300
      %v1302 = vpop.xlane.xlu0 %1301
      %v1303 = vrcp.pop %v1299
      %v1304 = vrcp.pop %v1302
      %v1305 = vmul.f32 %v1294, %v1303
      %v1306 = vmul.f32 %v1296, %v1304
      %1307 = vrot.lane.b32.xlu0 %v677, 48
      %v1308 = vpop.permute.xlu0 %1307
      %1309 = vrot.lane.b32.xlu0 %v680, 48
      %v1310 = vpop.permute.xlu0 %1309
      %v1313 = vsel %vm779, %v1305, 0
      %v1316 = vsel %vm779, %v1306, 0
      %v1318 = vsel %vm814, %v1310, 0
      %1320 = vmatprep.subr.mxu0 0.0
      %1321 = vmatpush1.msra.mxu0 %v1308
      %1322 = vmatprep.subr.mxu0 0.0
      %1323 = vmatpush1.msra.mxu0 %v1318
      %1324 = vmatprep.subr.mxu0 0.0
      %1325 = vmatpush1.msra.mxu0 0.0
      %1326 = vmatprep.subr.mxu0 0.0
      %1327 = vmatpush1.msra.mxu0 0.0
      %1328 = vmatprep.subr.mxu0 0.0
      %1329 = vmatpush1.msra.mxu0 0.0
      %1330 = vmatprep.subr.mxu0 0.0
      %1331 = vmatpush1.msra.mxu0 0.0
      %1332 = vmatprep.subr.mxu0 0.0
      %1333 = vmatpush1.msra.mxu0 0.0
      %1334 = vmatprep.subr.mxu0 0.0
      %1335 = vmatpush1.msra.mxu0 0.0
      %1336 = vmatprep.subr.mxu0 0.0
      %1337 = vmatpush1.msra.mxu0 0.0
      %1338 = vmatprep.subr.mxu0 0.0
      %1339 = vmatpush1.msra.mxu0 0.0
      %1340 = vmatprep.subr.mxu0 0.0
      %1341 = vmatpush1.msra.mxu0 0.0
      %1342 = vmatprep.subr.mxu0 0.0
      %1343 = vmatpush1.msra.mxu0 0.0
      %1344 = vmatprep.subr.mxu0 0.0
      %1345 = vmatpush1.msra.mxu0 0.0
      %1346 = vmatprep.subr.mxu0 0.0
      %1347 = vmatpush1.msra.mxu0 0.0
      %1348 = vmatprep.subr.mxu0 0.0
      %1349 = vmatpush1.msra.mxu0 0.0
      %1350 = vmatprep.subr.mxu0 0.0
      %1351 = vmatpush1.msra.mxu0 0.0
      %1352 = vmatprep.subr.mxu0 0.0
      %1353 = vmatpush1.msra.mxu0 0.0
      %1354 = vmatprep.subr.mxu0 0.0
      %1355 = vmatpush1.msra.mxu0 0.0
      %1356 = vmatprep.subr.mxu0 0.0
      %1357 = vmatpush1.msra.mxu0 0.0
      %1358 = vmatprep.subr.mxu0 0.0
      %1359 = vmatpush1.msra.mxu0 0.0
      %1360 = vmatprep.subr.mxu0 0.0
      %1361 = vmatpush1.msra.mxu0 0.0
      %1362 = vmatprep.subr.mxu0 0.0
      %1363 = vmatpush1.msra.mxu0 0.0
      %1364 = vmatprep.subr.mxu0 0.0
      %1365 = vmatpush1.msra.mxu0 0.0
      %1366 = vmatprep.subr.mxu0 0.0
      %1367 = vmatpush1.msra.mxu0 0.0
      %1368 = vmatprep.subr.mxu0 0.0
      %1369 = vmatpush1.msra.mxu0 0.0
      %1370 = vmatprep.subr.mxu0 0.0
      %1371 = vmatpush1.msra.mxu0 0.0
      %1372 = vmatprep.subr.mxu0 0.0
      %1373 = vmatpush1.msra.mxu0 0.0
      %1374 = vmatprep.subr.mxu0 0.0
      %1375 = vmatpush1.msra.mxu0 0.0
      %1376 = vmatprep.subr.mxu0 0.0
      %1377 = vmatpush1.msra.mxu0 0.0
      %1378 = vmatprep.subr.mxu0 0.0
      %1379 = vmatpush1.msra.mxu0 0.0
      %1380 = vmatprep.subr.mxu0 0.0
      %1381 = vmatpush1.msra.mxu0 0.0
      %1382 = vmatprep.subr.mxu0 0.0
      %1383 = vmatpush1.msra.mxu0 0.0
      %1384 = vmatprep.mubr.f32.mxu0 0.0
      %1385 = vmatmul.mubr.f32.gmra.mrb[0].mxu0 %v1313
      %v1386 = vpop.f32.mrb[0].mxu0
      %v1387 = vadd.f32 0.0, %v1386
      %v1388 = vpop.f32.mrb[0].mxu0
      %1389 = vmatprep.mubr.f32.mxu0 0.0
      %1390 = vmatmul.mubr.f32.gmra.mrb[0].mxu0 %v1316
      %v1391 = vpop.f32.mrb[0].mxu0
      %v1392 = vadd.f32 0.0, %v1391
      %v1393 = vpop.f32.mrb[0].mxu0
      %1394 = vdwg.mxu0
      %v1395 = vpack.c.bf16 %v1392, %v1387
      %v1397 = vsel %vm693, %v1395, 0
      %v1400 = vsel %vm1100, %v685, 0
      %1402 = vmatprep.subr.bf16.mxu0 0
      %1403 = vmatpush1.bf16.msra.mxu0 %v1400
      %1404 = vmatprep.subr.bf16.mxu0 0
      %1405 = vmatpush1.bf16.msra.mxu0 0
      %1406 = vmatprep.subr.bf16.mxu0 0
      %1407 = vmatpush1.bf16.msra.mxu0 0
      %1408 = vmatprep.subr.bf16.mxu0 0
      %1409 = vmatpush1.bf16.msra.mxu0 0
      %1410 = vmatprep.subr.bf16.mxu0 0
      %1411 = vmatpush1.bf16.msra.mxu0 0
      %1412 = vmatprep.subr.bf16.mxu0 0
      %1413 = vmatpush1.bf16.msra.mxu0 0
      %1414 = vmatprep.subr.bf16.mxu0 0
      %1415 = vmatpush1.bf16.msra.mxu0 0
      %1416 = vmatprep.subr.bf16.mxu0 0
      %1417 = vmatpush1.bf16.msra.mxu0 0
      %1418 = vmatprep.subr.bf16.mxu0 0
      %1419 = vmatpush1.bf16.msra.mxu0 0
      %1420 = vmatprep.subr.bf16.mxu0 0
      %1421 = vmatpush1.bf16.msra.mxu0 0
      %1422 = vmatprep.subr.bf16.mxu0 0
      %1423 = vmatpush1.bf16.msra.mxu0 0
      %1424 = vmatprep.subr.bf16.mxu0 0
      %1425 = vmatpush1.bf16.msra.mxu0 0
      %1426 = vmatprep.subr.bf16.mxu0 0
      %1427 = vmatpush1.bf16.msra.mxu0 0
      %1428 = vmatprep.subr.bf16.mxu0 0
      %1429 = vmatpush1.bf16.msra.mxu0 0
      %1430 = vmatprep.subr.bf16.mxu0 0
      %1431 = vmatpush1.bf16.msra.mxu0 0
      %1432 = vmatprep.subr.bf16.mxu0 0
      %1433 = vmatpush1.bf16.msra.mxu0 0
      %1434 = vmatprep.mubr.bf16.mxu0 0
      %1435 = vmatmul.mubr.bf16.gmra.mrb[0].mxu0 %v1397
      %v1436 = vpop.f32.mrb[0].mxu0
      %v1437 = vadd.f32 0.0, %v1436
      %v1438 = vpop.f32.mrb[0].mxu0
      %v1439 = vpop.f32.mrb[0].mxu0
      %v1440 = vadd.f32 0.0, %v1439
      %v1441 = vpop.f32.mrb[0].mxu0
      %1442 = vdwg.mxu0
      %v1443 = vadd.f32 %v1186, %v1437
      %v1444 = vadd.f32 %v1189, %v1440
      %1445 = vrot.lane.b32.xlu0 %v677, 104
      %v1446 = vpop.permute.xlu0 %1445
      %1447 = vrot.lane.b32.xlu0 %v680, 104
      %v1448 = vpop.permute.xlu0 %1447
      %1449 = vrot.lane.b32.xlu0 %v677, 72
      %v1450 = vpop.permute.xlu0 %1449
      %1451 = vrot.lane.b32.xlu0 %v680, 72
      %v1452 = vpop.permute.xlu0 %1451
      %v1453 = vsel %vm693, %v1446, 0
      %v1455 = vsel %vm693, %v1448, 0
      %v1457 = vsel %vm693, %v1450, 0
      %v1459 = vsel %vm693, %v1452, 0
      %1461 = vmatprep.subr.mxu0 0.0
      %1462 = vmatpush1.xpose.msra.mxu0 %v1457
      %1463 = vmatprep.subr.mxu0 0.0
      %1464 = vmatpush1.xpose.msra.mxu0 %v1459
      %1465 = vmatprep.subr.mxu0 0.0
      %1466 = vmatpush1.xpose.msra.mxu0 0.0
      %1467 = vmatprep.subr.mxu0 0.0
      %1468 = vmatpush1.xpose.msra.mxu0 0.0
      %1469 = vmatprep.subr.mxu0 0.0
      %1470 = vmatpush1.xpose.msra.mxu0 0.0
      %1471 = vmatprep.subr.mxu0 0.0
      %1472 = vmatpush1.xpose.msra.mxu0 0.0
      %1473 = vmatprep.subr.mxu0 0.0
      %1474 = vmatpush1.xpose.msra.mxu0 0.0
      %1475 = vmatprep.subr.mxu0 0.0
      %1476 = vmatpush1.xpose.msra.mxu0 0.0
      %1477 = vmatprep.subr.mxu0 0.0
      %1478 = vmatpush1.xpose.msra.mxu0 0.0
      %1479 = vmatprep.subr.mxu0 0.0
      %1480 = vmatpush1.xpose.msra.mxu0 0.0
      %1481 = vmatprep.subr.mxu0 0.0
      %1482 = vmatpush1.xpose.msra.mxu0 0.0
      %1483 = vmatprep.subr.mxu0 0.0
      %1484 = vmatpush1.xpose.msra.mxu0 0.0
      %1485 = vmatprep.subr.mxu0 0.0
      %1486 = vmatpush1.xpose.msra.mxu0 0.0
      %1487 = vmatprep.subr.mxu0 0.0
      %1488 = vmatpush1.xpose.msra.mxu0 0.0
      %1489 = vmatprep.subr.mxu0 0.0
      %1490 = vmatpush1.xpose.msra.mxu0 0.0
      %1491 = vmatprep.subr.mxu0 0.0
      %1492 = vmatpush1.xpose.msra.mxu0 0.0
      %1493 = vmatprep.subr.mxu0 0.0
      %1494 = vmatpush1.xpose.msra.mxu0 0.0
      %1495 = vmatprep.subr.mxu0 0.0
      %1496 = vmatpush1.xpose.msra.mxu0 0.0
      %1497 = vmatprep.subr.mxu0 0.0
      %1498 = vmatpush1.xpose.msra.mxu0 0.0
      %1499 = vmatprep.subr.mxu0 0.0
      %1500 = vmatpush1.xpose.msra.mxu0 0.0
      %1501 = vmatprep.subr.mxu0 0.0
      %1502 = vmatpush1.xpose.msra.mxu0 0.0
      %1503 = vmatprep.subr.mxu0 0.0
      %1504 = vmatpush1.xpose.msra.mxu0 0.0
      %1505 = vmatprep.subr.mxu0 0.0
      %1506 = vmatpush1.xpose.msra.mxu0 0.0
      %1507 = vmatprep.subr.mxu0 0.0
      %1508 = vmatpush1.xpose.msra.mxu0 0.0
      %1509 = vmatprep.subr.mxu0 0.0
      %1510 = vmatpush1.xpose.msra.mxu0 0.0
      %1511 = vmatprep.subr.mxu0 0.0
      %1512 = vmatpush1.xpose.msra.mxu0 0.0
      %1513 = vmatprep.subr.mxu0 0.0
      %1514 = vmatpush1.xpose.msra.mxu0 0.0
      %1515 = vmatprep.subr.mxu0 0.0
      %1516 = vmatpush1.xpose.msra.mxu0 0.0
      %1517 = vmatprep.subr.mxu0 0.0
      %1518 = vmatpush1.xpose.msra.mxu0 0.0
      %1519 = vmatprep.subr.mxu0 0.0
      %1520 = vmatpush1.xpose.msra.mxu0 0.0
      %1521 = vmatprep.subr.mxu0 0.0
      %1522 = vmatpush1.xpose.msra.mxu0 0.0
      %1523 = vmatprep.subr.mxu0 0.0
      %1524 = vmatpush1.xpose.msra.mxu0 0.0
      %1525 = vmatprep.mubr.f32.mxu0 0.0
      %1526 = vmatmul.mubr.f32.gmra.mrb[0].mxu0 %v1453
      %v1527 = vpop.f32.mrb[0].mxu0
      %v1528 = vadd.f32 0.0, %v1527
      %v1529 = vpop.f32.mrb[0].mxu0
      %1530 = vmatprep.mubr.f32.mxu0 0.0
      %1531 = vmatmul.mubr.f32.gmra.mrb[0].mxu0 %v1455
      %v1532 = vpop.f32.mrb[0].mxu0
      %v1533 = vadd.f32 0.0, %v1532
      %v1534 = vpop.f32.mrb[0].mxu0
      %1535 = vdwg.mxu0
      %v1536 = vmul.f32 %v1528, 0.35355338
      %v1537 = vmul.f32 %v1533, 0.35355338
      %v1538 = vsel %vm779, %v1536, -inf
      %1539 = vmax.xlane.f32.xlu0 %v1538
      %v1540 = vpop.xlane.xlu0 %1539
      %v1541 = vsel %vm783, %v1537, -inf
      %1542 = vmax.xlane.f32.xlu0 %v1541
      %v1543 = vpop.xlane.xlu0 %1542
      %v1544 = vsub.f32 %v1536, %v1540
      %v1545 = vsub.f32 %v1537, %v1543
      %v1546 = vmul.f32 %v1544, 1.442695
      %v1547 = vpow.pop %v1546
      %v1548 = vmul.f32 %v1545, 1.442695
      %v1549 = vpow.pop %v1548
      %v1550 = vsel %vm779, %v1547, 0.0
      %1551 = vadd.xlane.f32.xlu0 %v1550
      %v1552 = vpop.xlane.xlu0 %1551
      %v1553 = vsel %vm783, %v1549, 0.0
      %1554 = vadd.xlane.f32.xlu0 %v1553
      %v1555 = vpop.xlane.xlu0 %1554
      %v1556 = vrcp.pop %v1552
      %v1557 = vrcp.pop %v1555
      %v1558 = vmul.f32 %v1547, %v1556
      %v1559 = vmul.f32 %v1549, %v1557
      %1560 = vrot.lane.b32.xlu0 %v677, 40
      %v1561 = vpop.permute.xlu0 %1560
      %1562 = vrot.lane.b32.xlu0 %v680, 40
      %v1563 = vpop.permute.xlu0 %1562
      %v1566 = vsel %vm779, %v1558, 0
      %v1569 = vsel %vm779, %v1559, 0
      %v1571 = vsel %vm814, %v1563, 0
      %1573 = vmatprep.subr.mxu0 0.0
      %1574 = vmatpush1.msra.mxu0 %v1561
      %1575 = vmatprep.subr.mxu0 0.0
      %1576 = vmatpush1.msra.mxu0 %v1571
      %1577 = vmatprep.subr.mxu0 0.0
      %1578 = vmatpush1.msra.mxu0 0.0
      %1579 = vmatprep.subr.mxu0 0.0
      %1580 = vmatpush1.msra.mxu0 0.0
      %1581 = vmatprep.subr.mxu0 0.0
      %1582 = vmatpush1.msra.mxu0 0.0
      %1583 = vmatprep.subr.mxu0 0.0
      %1584 = vmatpush1.msra.mxu0 0.0
      %1585 = vmatprep.subr.mxu0 0.0
      %1586 = vmatpush1.msra.mxu0 0.0
      %1587 = vmatprep.subr.mxu0 0.0
      %1588 = vmatpush1.msra.mxu0 0.0
      %1589 = vmatprep.subr.mxu0 0.0
      %1590 = vmatpush1.msra.mxu0 0.0
      %1591 = vmatprep.subr.mxu0 0.0
      %1592 = vmatpush1.msra.mxu0 0.0
      %1593 = vmatprep.subr.mxu0 0.0
      %1594 = vmatpush1.msra.mxu0 0.0
      %1595 = vmatprep.subr.mxu0 0.0
      %1596 = vmatpush1.msra.mxu0 0.0
      %1597 = vmatprep.subr.mxu0 0.0
      %1598 = vmatpush1.msra.mxu0 0.0
      %1599 = vmatprep.subr.mxu0 0.0
      %1600 = vmatpush1.msra.mxu0 0.0
      %1601 = vmatprep.subr.mxu0 0.0
      %1602 = vmatpush1.msra.mxu0 0.0
      %1603 = vmatprep.subr.mxu0 0.0
      %1604 = vmatpush1.msra.mxu0 0.0
      %1605 = vmatprep.subr.mxu0 0.0
      %1606 = vmatpush1.msra.mxu0 0.0
      %1607 = vmatprep.subr.mxu0 0.0
      %1608 = vmatpush1.msra.mxu0 0.0
      %1609 = vmatprep.subr.mxu0 0.0
      %1610 = vmatpush1.msra.mxu0 0.0
      %1611 = vmatprep.subr.mxu0 0.0
      %1612 = vmatpush1.msra.mxu0 0.0
      %1613 = vmatprep.subr.mxu0 0.0
      %1614 = vmatpush1.msra.mxu0 0.0
      %1615 = vmatprep.subr.mxu0 0.0
      %1616 = vmatpush1.msra.mxu0 0.0
      %1617 = vmatprep.subr.mxu0 0.0
      %1618 = vmatpush1.msra.mxu0 0.0
      %1619 = vmatprep.subr.mxu0 0.0
      %1620 = vmatpush1.msra.mxu0 0.0
      %1621 = vmatprep.subr.mxu0 0.0
      %1622 = vmatpush1.msra.mxu0 0.0
      %1623 = vmatprep.subr.mxu0 0.0
      %1624 = vmatpush1.msra.mxu0 0.0
      %1625 = vmatprep.subr.mxu0 0.0
      %1626 = vmatpush1.msra.mxu0 0.0
      %1627 = vmatprep.subr.mxu0 0.0
      %1628 = vmatpush1.msra.mxu0 0.0
      %1629 = vmatprep.subr.mxu0 0.0
      %1630 = vmatpush1.msra.mxu0 0.0
      %1631 = vmatprep.subr.mxu0 0.0
      %1632 = vmatpush1.msra.mxu0 0.0
      %1633 = vmatprep.subr.mxu0 0.0
      %1634 = vmatpush1.msra.mxu0 0.0
      %1635 = vmatprep.subr.mxu0 0.0
      %1636 = vmatpush1.msra.mxu0 0.0
      %1637 = vmatprep.mubr.f32.mxu0 0.0
      %1638 = vmatmul.mubr.f32.gmra.mrb[0].mxu0 %v1566
      %v1639 = vpop.f32.mrb[0].mxu0
      %v1640 = vadd.f32 0.0, %v1639
      %v1641 = vpop.f32.mrb[0].mxu0
      %1642 = vmatprep.mubr.f32.mxu0 0.0
      %1643 = vmatmul.mubr.f32.gmra.mrb[0].mxu0 %v1569
      %v1644 = vpop.f32.mrb[0].mxu0
      %v1645 = vadd.f32 0.0, %v1644
      %v1646 = vpop.f32.mrb[0].mxu0
      %1647 = vdwg.mxu0
      %v1648 = vpack.c.bf16 %v1645, %v1640
      %v1650 = vsel %vm693, %v1648, 0
      %v1653 = vsel %vm1100, %v686, 0
      %1655 = vmatprep.subr.bf16.mxu0 0
      %1656 = vmatpush1.bf16.msra.mxu0 %v1653
      %1657 = vmatprep.subr.bf16.mxu0 0
      %1658 = vmatpush1.bf16.msra.mxu0 0
      %1659 = vmatprep.subr.bf16.mxu0 0
      %1660 = vmatpush1.bf16.msra.mxu0 0
      %1661 = vmatprep.subr.bf16.mxu0 0
      %1662 = vmatpush1.bf16.msra.mxu0 0
      %1663 = vmatprep.subr.bf16.mxu0 0
      %1664 = vmatpush1.bf16.msra.mxu0 0
      %1665 = vmatprep.subr.bf16.mxu0 0
      %1666 = vmatpush1.bf16.msra.mxu0 0
      %1667 = vmatprep.subr.bf16.mxu0 0
      %1668 = vmatpush1.bf16.msra.mxu0 0
      %1669 = vmatprep.subr.bf16.mxu0 0
      %1670 = vmatpush1.bf16.msra.mxu0 0
      %1671 = vmatprep.subr.bf16.mxu0 0
      %1672 = vmatpush1.bf16.msra.mxu0 0
      %1673 = vmatprep.subr.bf16.mxu0 0
      %1674 = vmatpush1.bf16.msra.mxu0 0
      %1675 = vmatprep.subr.bf16.mxu0 0
      %1676 = vmatpush1.bf16.msra.mxu0 0
      %1677 = vmatprep.subr.bf16.mxu0 0
      %1678 = vmatpush1.bf16.msra.mxu0 0
      %1679 = vmatprep.subr.bf16.mxu0 0
      %1680 = vmatpush1.bf16.msra.mxu0 0
      %1681 = vmatprep.subr.bf16.mxu0 0
      %1682 = vmatpush1.bf16.msra.mxu0 0
      %1683 = vmatprep.subr.bf16.mxu0 0
      %1684 = vmatpush1.bf16.msra.mxu0 0
      %1685 = vmatprep.subr.bf16.mxu0 0
      %1686 = vmatpush1.bf16.msra.mxu0 0
      %1687 = vmatprep.mubr.bf16.mxu0 0
      %1688 = vmatmul.mubr.bf16.gmra.mrb[0].mxu0 %v1650
      %v1689 = vpop.f32.mrb[0].mxu0
      %v1690 = vadd.f32 0.0, %v1689
      %v1691 = vpop.f32.mrb[0].mxu0
      %v1692 = vpop.f32.mrb[0].mxu0
      %v1693 = vadd.f32 0.0, %v1692
      %v1694 = vpop.f32.mrb[0].mxu0
      %1695 = vdwg.mxu0
      %v1696 = vadd.f32 %v1443, %v1690
      %v1697 = vadd.f32 %v1444, %v1693
      %v1698 = vld [vmem:[%s571] sm:$0x1]
      %v1700 = vlaneseq
      %v1701 = vshrl.u32 %v1700, 7
      %v1702 = vsub.s32 0, %v1701
      %v1703 = vrot.slane %v1698, %v1702
      %v1705 = vadd.f32 %v1696, %v1703
      %v1706 = vadd.f32 %v1697, %v1703
      %v1707 = vadd.f32 %v612, %v1705
      %v1708 = vadd.f32 %v613, %v1706
      %v1709 = vld [vmem:[%s574] sm:$0x1]
      %v1710 = vld [vmem:[%s577] sm:$0x1]
      %v1711 = vsel %vm638, %v1707, 0.0
      %1712 = vadd.xlane.f32.xlu0 %v1711
      %v1713 = vpop.xlane.xlu0 %1712
      %vm1714 = vcmask 253952
      %v1715 = vsel %vm1714, %v1708, 0.0
      %1716 = vadd.xlane.f32.xlu0 %v1715
      %v1717 = vpop.xlane.xlu0 %1716
      %v1718 = vrcp.pop 32.0
      %v1719 = vmul.f32 %v1713, %v1718
      %v1720 = vmul.f32 %v1717, %v1718
      %v1721 = vsub.f32 %v1707, %v1719
      %v1722 = vsub.f32 %v1708, %v1720
      %v1723 = vmul.f32 %v1721, %v1721
      %v1724 = vmul.f32 %v1722, %v1722
      %v1725 = vsel %vm638, %v1723, 0.0
      %1726 = vadd.xlane.f32.xlu0 %v1725
      %v1727 = vpop.xlane.xlu0 %1726
      %v1728 = vsel %vm1714, %v1724, 0.0
      %1729 = vadd.xlane.f32.xlu0 %v1728
      %v1730 = vpop.xlane.xlu0 %1729
      %v1731 = vmul.f32 %v1727, %v1718
      %v1732 = vmul.f32 %v1730, %v1718
      %v1733 = vadd.f32 %v1731, 1e-05
      %v1734 = vadd.f32 %v1732, 1e-05
      %v1735 = vrsqrt.pop %v1733
      %v1736 = vrsqrt.pop %v1734
      %v1737 = vmul.f32 %v1721, %v1735
      %v1738 = vmul.f32 %v1722, %v1736
      %v1740 = vlaneseq
      %v1741 = vshrl.u32 %v1740, 7
      %v1742 = vsub.s32 0, %v1741
      %v1743 = vrot.slane %v1709, %v1742
      %v1745 = vmul.f32 %v1737, %v1743
      %v1746 = vmul.f32 %v1738, %v1743
      %v1748 = vlaneseq
      %v1749 = vshrl.u32 %v1748, 7
      %v1750 = vsub.s32 0, %v1749
      %v1751 = vrot.slane %v1710, %v1750
      %v1753 = vadd.f32 %v1745, %v1751
      %v1754 = vadd.f32 %v1746, %v1751
      %v1755 = vpack.c.bf16 %v1754, %v1753
      %v1756 = vld [vmem:[%s582] sm:$0xff]
      %v1757 = vld [vmem:[%s582 + $0x8] sm:$0xff]
      %v1758 = vld [vmem:[%s582 + $0x10] sm:$0xff]
      %v1759 = vld [vmem:[%s582 + $0x18] sm:$0xff]
      %v1760 = vld [vmem:[%s582 + $0x20] sm:$0xff]
      %v1761 = vld [vmem:[%s582 + $0x28] sm:$0xff]
      %v1762 = vld [vmem:[%s582 + $0x30] sm:$0xff]
      %v1763 = vld [vmem:[%s582 + $0x38] sm:$0xff]
      %v1764 = vld [vmem:[%s582 + $0x40] sm:$0xff]
      %v1765 = vld [vmem:[%s582 + $0x48] sm:$0xff]
      %v1766 = vld [vmem:[%s582 + $0x50] sm:$0xff]
      %v1767 = vld [vmem:[%s582 + $0x58] sm:$0xff]
      %v1768 = vld [vmem:[%s582 + $0x60] sm:$0xff]
      %v1769 = vld [vmem:[%s582 + $0x68] sm:$0xff]
      %v1770 = vld [vmem:[%s582 + $0x70] sm:$0xff]
      %v1771 = vld [vmem:[%s582 + $0x78] sm:$0xff]
      %v1772 = vld [vmem:[%s582 + $0x80] sm:$0xff]
      %v1773 = vld [vmem:[%s582 + $0x88] sm:$0xff]
      %v1774 = vld [vmem:[%s582 + $0x90] sm:$0xff]
      %v1775 = vld [vmem:[%s582 + $0x98] sm:$0xff]
      %v1776 = vld [vmem:[%s582 + $0xa0] sm:$0xff]
      %v1777 = vld [vmem:[%s582 + $0xa8] sm:$0xff]
      %v1778 = vld [vmem:[%s582 + $0xb0] sm:$0xff]
      %v1779 = vld [vmem:[%s582 + $0xb8] sm:$0xff]
      %v1780 = vld [vmem:[%s582 + $0xc0] sm:$0xff]
      %v1781 = vld [vmem:[%s582 + $0xc8] sm:$0xff]
      %v1782 = vld [vmem:[%s582 + $0xd0] sm:$0xff]
      %v1783 = vld [vmem:[%s582 + $0xd8] sm:$0xff]
      %v1784 = vld [vmem:[%s582 + $0xe0] sm:$0xff]
      %v1785 = vld [vmem:[%s582 + $0xe8] sm:$0xff]
      %v1786 = vld [vmem:[%s582 + $0xf0] sm:$0xff]
      %v1787 = vld [vmem:[%s582 + $0xf8] sm:$0xff]
      %v1788 = vld [vmem:[%s586] sm:$0xff]
      %v1789 = vld [vmem:[%s586 + $0x8] sm:$0xff]
      %v1792 = vlaneseq
      %v1793 = vshrl.u32 %v1792, 7
      %v1794 = vsub.s32 0, %v1793
      %v1795 = vrot.slane %v1788, %v1794
      %v1796 = vlaneseq
      %v1797 = vshrl.u32 %v1796, 7
      %v1798 = vsub.s32 1, %v1797
      %v1799 = vrot.slane %v1788, %v1798
      %v1800 = vlaneseq
      %v1801 = vshrl.u32 %v1800, 7
      %v1802 = vsub.s32 2, %v1801
      %v1803 = vrot.slane %v1788, %v1802
      %v1804 = vlaneseq
      %v1805 = vshrl.u32 %v1804, 7
      %v1806 = vsub.s32 3, %v1805
      %v1807 = vrot.slane %v1788, %v1806
      %v1808 = vlaneseq
      %v1809 = vshrl.u32 %v1808, 7
      %v1810 = vsub.s32 4, %v1809
      %v1811 = vrot.slane %v1788, %v1810
      %v1812 = vlaneseq
      %v1813 = vshrl.u32 %v1812, 7
      %v1814 = vsub.s32 5, %v1813
      %v1815 = vrot.slane %v1788, %v1814
      %v1816 = vlaneseq
      %v1817 = vshrl.u32 %v1816, 7
      %v1818 = vsub.s32 6, %v1817
      %v1819 = vrot.slane %v1788, %v1818
      %v1820 = vlaneseq
      %v1821 = vshrl.u32 %v1820, 7
      %v1822 = vsub.s32 7, %v1821
      %v1823 = vrot.slane %v1788, %v1822
      %v1824 = vlaneseq
      %v1825 = vshrl.u32 %v1824, 7
      %v1826 = vsub.s32 0, %v1825
      %v1827 = vrot.slane %v1789, %v1826
      %v1828 = vlaneseq
      %v1829 = vshrl.u32 %v1828, 7
      %v1830 = vsub.s32 1, %v1829
      %v1831 = vrot.slane %v1789, %v1830
      %v1832 = vlaneseq
      %v1833 = vshrl.u32 %v1832, 7
      %v1834 = vsub.s32 2, %v1833
      %v1835 = vrot.slane %v1789, %v1834
      %v1836 = vlaneseq
      %v1837 = vshrl.u32 %v1836, 7
      %v1838 = vsub.s32 3, %v1837
      %v1839 = vrot.slane %v1789, %v1838
      %v1840 = vlaneseq
      %v1841 = vshrl.u32 %v1840, 7
      %v1842 = vsub.s32 4, %v1841
      %v1843 = vrot.slane %v1789, %v1842
      %v1844 = vlaneseq
      %v1845 = vshrl.u32 %v1844, 7
      %v1846 = vsub.s32 5, %v1845
      %v1847 = vrot.slane %v1789, %v1846
      %v1848 = vlaneseq
      %v1849 = vshrl.u32 %v1848, 7
      %v1850 = vsub.s32 6, %v1849
      %v1851 = vrot.slane %v1789, %v1850
      %v1852 = vlaneseq
      %v1853 = vshrl.u32 %v1852, 7
      %v1854 = vsub.s32 7, %v1853
      %v1855 = vrot.slane %v1789, %v1854
      %v1904 = vunpack.c.l.b16 %v1756
      %v1905 = vunpack.c.h.b16 %v1756
      %v1906 = vunpack.c.l.b16 %v1757
      %v1907 = vunpack.c.h.b16 %v1757
      %v1908 = vunpack.c.l.b16 %v1758
      %v1909 = vunpack.c.h.b16 %v1758
      %v1910 = vunpack.c.l.b16 %v1759
      %v1911 = vunpack.c.h.b16 %v1759
      %v1912 = vunpack.c.l.b16 %v1760
      %v1913 = vunpack.c.h.b16 %v1760
      %v1914 = vunpack.c.l.b16 %v1761
      %v1915 = vunpack.c.h.b16 %v1761
      %v1916 = vunpack.c.l.b16 %v1762
      %v1917 = vunpack.c.h.b16 %v1762
      %v1918 = vunpack.c.l.b16 %v1763
      %v1919 = vunpack.c.h.b16 %v1763
      %v1920 = vunpack.c.l.b16 %v1764
      %v1921 = vunpack.c.h.b16 %v1764
      %v1922 = vunpack.c.l.b16 %v1765
      %v1923 = vunpack.c.h.b16 %v1765
      %v1924 = vunpack.c.l.b16 %v1766
      %v1925 = vunpack.c.h.b16 %v1766
      %v1926 = vunpack.c.l.b16 %v1767
      %v1927 = vunpack.c.h.b16 %v1767
      %v1928 = vunpack.c.l.b16 %v1768
      %v1929 = vunpack.c.h.b16 %v1768
      %v1930 = vunpack.c.l.b16 %v1769
      %v1931 = vunpack.c.h.b16 %v1769
      %v1932 = vunpack.c.l.b16 %v1770
      %v1933 = vunpack.c.h.b16 %v1770
      %v1934 = vunpack.c.l.b16 %v1771
      %v1935 = vunpack.c.h.b16 %v1771
      %v1936 = vunpack.c.l.b16 %v1772
      %v1937 = vunpack.c.h.b16 %v1772
      %v1938 = vunpack.c.l.b16 %v1773
      %v1939 = vunpack.c.h.b16 %v1773
      %v1940 = vunpack.c.l.b16 %v1774
      %v1941 = vunpack.c.h.b16 %v1774
      %v1942 = vunpack.c.l.b16 %v1775
      %v1943 = vunpack.c.h.b16 %v1775
      %v1944 = vunpack.c.l.b16 %v1776
      %v1945 = vunpack.c.h.b16 %v1776
      %v1946 = vunpack.c.l.b16 %v1777
      %v1947 = vunpack.c.h.b16 %v1777
      %v1948 = vunpack.c.l.b16 %v1778
      %v1949 = vunpack.c.h.b16 %v1778
      %v1950 = vunpack.c.l.b16 %v1779
      %v1951 = vunpack.c.h.b16 %v1779
      %v1952 = vunpack.c.l.b16 %v1780
      %v1953 = vunpack.c.h.b16 %v1780
      %v1954 = vunpack.c.l.b16 %v1781
      %v1955 = vunpack.c.h.b16 %v1781
      %v1956 = vunpack.c.l.b16 %v1782
      %v1957 = vunpack.c.h.b16 %v1782
      %v1958 = vunpack.c.l.b16 %v1783
      %v1959 = vunpack.c.h.b16 %v1783
      %v1960 = vunpack.c.l.b16 %v1784
      %v1961 = vunpack.c.h.b16 %v1784
      %v1962 = vunpack.c.l.b16 %v1785
      %v1963 = vunpack.c.h.b16 %v1785
      %v1964 = vunpack.c.l.b16 %v1786
      %v1965 = vunpack.c.h.b16 %v1786
      %v1966 = vunpack.c.l.b16 %v1787
      %v1967 = vunpack.c.h.b16 %v1787
      %v1968 = vpack.c.b16 %v1920, %v1904
      %v1969 = vpack.c.b16 %v1921, %v1905
      %v1970 = vpack.c.b16 %v1922, %v1906
      %v1971 = vpack.c.b16 %v1923, %v1907
      %v1972 = vpack.c.b16 %v1924, %v1908
      %v1973 = vpack.c.b16 %v1925, %v1909
      %v1974 = vpack.c.b16 %v1926, %v1910
      %v1975 = vpack.c.b16 %v1927, %v1911
      %v1976 = vpack.c.b16 %v1928, %v1912
      %v1977 = vpack.c.b16 %v1929, %v1913
      %v1978 = vpack.c.b16 %v1930, %v1914
      %v1979 = vpack.c.b16 %v1931, %v1915
      %v1980 = vpack.c.b16 %v1932, %v1916
      %v1981 = vpack.c.b16 %v1933, %v1917
      %v1982 = vpack.c.b16 %v1934, %v1918
      %v1983 = vpack.c.b16 %v1935, %v1919
      %v1984 = vpack.c.b16 %v1952, %v1936
      %v1985 = vpack.c.b16 %v1953, %v1937
      %v1986 = vpack.c.b16 %v1954, %v1938
      %v1987 = vpack.c.b16 %v1955, %v1939
      %v1988 = vpack.c.b16 %v1956, %v1940
      %v1989 = vpack.c.b16 %v1957, %v1941
      %v1990 = vpack.c.b16 %v1958, %v1942
      %v1991 = vpack.c.b16 %v1959, %v1943
      %v1992 = vpack.c.b16 %v1960, %v1944
      %v1993 = vpack.c.b16 %v1961, %v1945
      %v1994 = vpack.c.b16 %v1962, %v1946
      %v1995 = vpack.c.b16 %v1963, %v1947
      %v1996 = vpack.c.b16 %v1964, %v1948
      %v1997 = vpack.c.b16 %v1965, %v1949
      %v1998 = vpack.c.b16 %v1966, %v1950
      %v1999 = vpack.c.b16 %v1967, %v1951
      %v2033 = vsel %vm638, %v1755, 0
      %2035 = vmatprep.subr.bf16.mxu0 %v1969
      %2036 = vmatpush1.bf16.msra.mxu0 %v1968
      %2037 = vmatprep.subr.bf16.mxu0 %v1985
      %2038 = vmatpush1.bf16.msra.mxu0 %v1984
      %2039 = vmatprep.subr.bf16.mxu0 0
      %2040 = vmatpush1.bf16.msra.mxu0 0
      %2041 = vmatprep.subr.bf16.mxu0 0
      %2042 = vmatpush1.bf16.msra.mxu0 0
      %2043 = vmatprep.subr.bf16.mxu0 0
      %2044 = vmatpush1.bf16.msra.mxu0 0
      %2045 = vmatprep.subr.bf16.mxu0 0
      %2046 = vmatpush1.bf16.msra.mxu0 0
      %2047 = vmatprep.subr.bf16.mxu0 0
      %2048 = vmatpush1.bf16.msra.mxu0 0
      %2049 = vmatprep.subr.bf16.mxu0 0
      %2050 = vmatpush1.bf16.msra.mxu0 0
      %2051 = vmatprep.subr.bf16.mxu0 0
      %2052 = vmatpush1.bf16.msra.mxu0 0
      %2053 = vmatprep.subr.bf16.mxu0 0
      %2054 = vmatpush1.bf16.msra.mxu0 0
      %2055 = vmatprep.subr.bf16.mxu0 0
      %2056 = vmatpush1.bf16.msra.mxu0 0
      %2057 = vmatprep.subr.bf16.mxu0 0
      %2058 = vmatpush1.bf16.msra.mxu0 0
      %2059 = vmatprep.subr.bf16.mxu0 0
      %2060 = vmatpush1.bf16.msra.mxu0 0
      %2061 = vmatprep.subr.bf16.mxu0 0
      %2062 = vmatpush1.bf16.msra.mxu0 0
      %2063 = vmatprep.subr.bf16.mxu0 0
      %2064 = vmatpush1.bf16.msra.mxu0 0
      %2065 = vmatprep.subr.bf16.mxu0 0
      %2066 = vmatpush1.bf16.msra.mxu0 0
      %2067 = vmatprep.mubr.bf16.mxu0 0
      %2068 = vmatmul.mubr.bf16.gmra.mrb[0].mxu0 %v2033
      %v2069 = vpop.f32.mrb[0].mxu0
      %v2070 = vadd.f32 %v1795, %v2069
      %v2071 = vpop.f32.mrb[0].mxu0
      %v2072 = vadd.f32 %v1799, %v2071
      %v2073 = vpop.f32.mrb[0].mxu0
      %v2074 = vadd.f32 %v1795, %v2073
      %v2075 = vpop.f32.mrb[0].mxu0
      %v2076 = vadd.f32 %v1799, %v2075
      %2077 = vdwg.mxu0
      %2078 = vmatprep.subr.bf16.mxu0 %v1971
      %2079 = vmatpush1.bf16.msra.mxu0 %v1970
      %2080 = vmatprep.subr.bf16.mxu0 %v1987
      %2081 = vmatpush1.bf16.msra.mxu0 %v1986
      %2082 = vmatprep.subr.bf16.mxu0 0
      %2083 = vmatpush1.bf16.msra.mxu0 0
      %2084 = vmatprep.subr.bf16.mxu0 0
      %2085 = vmatpush1.bf16.msra.mxu0 0
      %2086 = vmatprep.subr.bf16.mxu0 0
      %2087 = vmatpush1.bf16.msra.mxu0 0
      %2088 = vmatprep.subr.bf16.mxu0 0
      %2089 = vmatpush1.bf16.msra.mxu0 0
      %2090 = vmatprep.subr.bf16.mxu0 0
      %2091 = vmatpush1.bf16.msra.mxu0 0
      %2092 = vmatprep.subr.bf16.mxu0 0
      %2093 = vmatpush1.bf16.msra.mxu0 0
      %2094 = vmatprep.subr.bf16.mxu0 0
      %2095 = vmatpush1.bf16.msra.mxu0 0
      %2096 = vmatprep.subr.bf16.mxu0 0
      %2097 = vmatpush1.bf16.msra.mxu0 0
      %2098 = vmatprep.subr.bf16.mxu0 0
      %2099 = vmatpush1.bf16.msra.mxu0 0
      %2100 = vmatprep.subr.bf16.mxu0 0
      %2101 = vmatpush1.bf16.msra.mxu0 0
      %2102 = vmatprep.subr.bf16.mxu0 0
      %2103 = vmatpush1.bf16.msra.mxu0 0
      %2104 = vmatprep.subr.bf16.mxu0 0
      %2105 = vmatpush1.bf16.msra.mxu0 0
      %2106 = vmatprep.subr.bf16.mxu0 0
      %2107 = vmatpush1.bf16.msra.mxu0 0
      %2108 = vmatprep.subr.bf16.mxu0 0
      %2109 = vmatpush1.bf16.msra.mxu0 0
      %2110 = vmatprep.mubr.bf16.mxu0 0
      %2111 = vmatmul.mubr.bf16.gmra.mrb[0].mxu0 %v2033
      %v2112 = vpop.f32.mrb[0].mxu0
      %v2113 = vadd.f32 %v1803, %v2112
      %v2114 = vpop.f32.mrb[0].mxu0
      %v2115 = vadd.f32 %v1807, %v2114
      %v2116 = vpop.f32.mrb[0].mxu0
      %v2117 = vadd.f32 %v1803, %v2116
      %v2118 = vpop.f32.mrb[0].mxu0
      %v2119 = vadd.f32 %v1807, %v2118
      %2120 = vdwg.mxu0
      %2121 = vmatprep.subr.bf16.mxu0 %v1973
      %2122 = vmatpush1.bf16.msra.mxu0 %v1972
      %2123 = vmatprep.subr.bf16.mxu0 %v1989
      %2124 = vmatpush1.bf16.msra.mxu0 %v1988
      %2125 = vmatprep.subr.bf16.mxu0 0
      %2126 = vmatpush1.bf16.msra.mxu0 0
      %2127 = vmatprep.subr.bf16.mxu0 0
      %2128 = vmatpush1.bf16.msra.mxu0 0
      %2129 = vmatprep.subr.bf16.mxu0 0
      %2130 = vmatpush1.bf16.msra.mxu0 0
      %2131 = vmatprep.subr.bf16.mxu0 0
      %2132 = vmatpush1.bf16.msra.mxu0 0
      %2133 = vmatprep.subr.bf16.mxu0 0
      %2134 = vmatpush1.bf16.msra.mxu0 0
      %2135 = vmatprep.subr.bf16.mxu0 0
      %2136 = vmatpush1.bf16.msra.mxu0 0
      %2137 = vmatprep.subr.bf16.mxu0 0
      %2138 = vmatpush1.bf16.msra.mxu0 0
      %2139 = vmatprep.subr.bf16.mxu0 0
      %2140 = vmatpush1.bf16.msra.mxu0 0
      %2141 = vmatprep.subr.bf16.mxu0 0
      %2142 = vmatpush1.bf16.msra.mxu0 0
      %2143 = vmatprep.subr.bf16.mxu0 0
      %2144 = vmatpush1.bf16.msra.mxu0 0
      %2145 = vmatprep.subr.bf16.mxu0 0
      %2146 = vmatpush1.bf16.msra.mxu0 0
      %2147 = vmatprep.subr.bf16.mxu0 0
      %2148 = vmatpush1.bf16.msra.mxu0 0
      %2149 = vmatprep.subr.bf16.mxu0 0
      %2150 = vmatpush1.bf16.msra.mxu0 0
      %2151 = vmatprep.subr.bf16.mxu0 0
      %2152 = vmatpush1.bf16.msra.mxu0 0
      %2153 = vmatprep.mubr.bf16.mxu0 0
      %2154 = vmatmul.mubr.bf16.gmra.mrb[0].mxu0 %v2033
      %v2155 = vpop.f32.mrb[0].mxu0
      %v2156 = vadd.f32 %v1811, %v2155
      %v2157 = vpop.f32.mrb[0].mxu0
      %v2158 = vadd.f32 %v1815, %v2157
      %v2159 = vpop.f32.mrb[0].mxu0
      %v2160 = vadd.f32 %v1811, %v2159
      %v2161 = vpop.f32.mrb[0].mxu0
      %v2162 = vadd.f32 %v1815, %v2161
      %2163 = vdwg.mxu0
      %2164 = vmatprep.subr.bf16.mxu0 %v1975
      %2165 = vmatpush1.bf16.msra.mxu0 %v1974
      %2166 = vmatprep.subr.bf16.mxu0 %v1991
      %2167 = vmatpush1.bf16.msra.mxu0 %v1990
      %2168 = vmatprep.subr.bf16.mxu0 0
      %2169 = vmatpush1.bf16.msra.mxu0 0
      %2170 = vmatprep.subr.bf16.mxu0 0
      %2171 = vmatpush1.bf16.msra.mxu0 0
      %2172 = vmatprep.subr.bf16.mxu0 0
      %2173 = vmatpush1.bf16.msra.mxu0 0
      %2174 = vmatprep.subr.bf16.mxu0 0
      %2175 = vmatpush1.bf16.msra.mxu0 0
      %2176 = vmatprep.subr.bf16.mxu0 0
      %2177 = vmatpush1.bf16.msra.mxu0 0
      %2178 = vmatprep.subr.bf16.mxu0 0
      %2179 = vmatpush1.bf16.msra.mxu0 0
      %2180 = vmatprep.subr.bf16.mxu0 0
      %2181 = vmatpush1.bf16.msra.mxu0 0
      %2182 = vmatprep.subr.bf16.mxu0 0
      %2183 = vmatpush1.bf16.msra.mxu0 0
      %2184 = vmatprep.subr.bf16.mxu0 0
      %2185 = vmatpush1.bf16.msra.mxu0 0
      %2186 = vmatprep.subr.bf16.mxu0 0
      %2187 = vmatpush1.bf16.msra.mxu0 0
      %2188 = vmatprep.subr.bf16.mxu0 0
      %2189 = vmatpush1.bf16.msra.mxu0 0
      %2190 = vmatprep.subr.bf16.mxu0 0
      %2191 = vmatpush1.bf16.msra.mxu0 0
      %2192 = vmatprep.subr.bf16.mxu0 0
      %2193 = vmatpush1.bf16.msra.mxu0 0
      %2194 = vmatprep.subr.bf16.mxu0 0
      %2195 = vmatpush1.bf16.msra.mxu0 0
      %2196 = vmatprep.mubr.bf16.mxu0 0
      %2197 = vmatmul.mubr.bf16.gmra.mrb[0].mxu0 %v2033
      %v2198 = vpop.f32.mrb[0].mxu0
      %v2199 = vadd.f32 %v1819, %v2198
      %v2200 = vpop.f32.mrb[0].mxu0
      %v2201 = vadd.f32 %v1823, %v2200
      %v2202 = vpop.f32.mrb[0].mxu0
      %v2203 = vadd.f32 %v1819, %v2202
      %v2204 = vpop.f32.mrb[0].mxu0
      %v2205 = vadd.f32 %v1823, %v2204
      %2206 = vdwg.mxu0
      %2207 = vmatprep.subr.bf16.mxu0 %v1977
      %2208 = vmatpush1.bf16.msra.mxu0 %v1976
      %2209 = vmatprep.subr.bf16.mxu0 %v1993
      %2210 = vmatpush1.bf16.msra.mxu0 %v1992
      %2211 = vmatprep.subr.bf16.mxu0 0
      %2212 = vmatpush1.bf16.msra.mxu0 0
      %2213 = vmatprep.subr.bf16.mxu0 0
      %2214 = vmatpush1.bf16.msra.mxu0 0
      %2215 = vmatprep.subr.bf16.mxu0 0
      %2216 = vmatpush1.bf16.msra.mxu0 0
      %2217 = vmatprep.subr.bf16.mxu0 0
      %2218 = vmatpush1.bf16.msra.mxu0 0
      %2219 = vmatprep.subr.bf16.mxu0 0
      %2220 = vmatpush1.bf16.msra.mxu0 0
      %2221 = vmatprep.subr.bf16.mxu0 0
      %2222 = vmatpush1.bf16.msra.mxu0 0
      %2223 = vmatprep.subr.bf16.mxu0 0
      %2224 = vmatpush1.bf16.msra.mxu0 0
      %2225 = vmatprep.subr.bf16.mxu0 0
      %2226 = vmatpush1.bf16.msra.mxu0 0
      %2227 = vmatprep.subr.bf16.mxu0 0
      %2228 = vmatpush1.bf16.msra.mxu0 0
      %2229 = vmatprep.subr.bf16.mxu0 0
      %2230 = vmatpush1.bf16.msra.mxu0 0
      %2231 = vmatprep.subr.bf16.mxu0 0
      %2232 = vmatpush1.bf16.msra.mxu0 0
      %2233 = vmatprep.subr.bf16.mxu0 0
      %2234 = vmatpush1.bf16.msra.mxu0 0
      %2235 = vmatprep.subr.bf16.mxu0 0
      %2236 = vmatpush1.bf16.msra.mxu0 0
      %2237 = vmatprep.subr.bf16.mxu0 0
      %2238 = vmatpush1.bf16.msra.mxu0 0
      %2239 = vmatprep.mubr.bf16.mxu0 0
      %2240 = vmatmul.mubr.bf16.gmra.mrb[0].mxu0 %v2033
      %v2241 = vpop.f32.mrb[0].mxu0
      %v2242 = vadd.f32 %v1827, %v2241
      %v2243 = vpop.f32.mrb[0].mxu0
      %v2244 = vadd.f32 %v1831, %v2243
      %v2245 = vpop.f32.mrb[0].mxu0
      %v2246 = vadd.f32 %v1827, %v2245
      %v2247 = vpop.f32.mrb[0].mxu0
      %v2248 = vadd.f32 %v1831, %v2247
      %2249 = vdwg.mxu0
      %2250 = vmatprep.subr.bf16.mxu0 %v1979
      %2251 = vmatpush1.bf16.msra.mxu0 %v1978
      %2252 = vmatprep.subr.bf16.mxu0 %v1995
      %2253 = vmatpush1.bf16.msra.mxu0 %v1994
      %2254 = vmatprep.subr.bf16.mxu0 0
      %2255 = vmatpush1.bf16.msra.mxu0 0
      %2256 = vmatprep.subr.bf16.mxu0 0
      %2257 = vmatpush1.bf16.msra.mxu0 0
      %2258 = vmatprep.subr.bf16.mxu0 0
      %2259 = vmatpush1.bf16.msra.mxu0 0
      %2260 = vmatprep.subr.bf16.mxu0 0
      %2261 = vmatpush1.bf16.msra.mxu0 0
      %2262 = vmatprep.subr.bf16.mxu0 0
      %2263 = vmatpush1.bf16.msra.mxu0 0
      %2264 = vmatprep.subr.bf16.mxu0 0
      %2265 = vmatpush1.bf16.msra.mxu0 0
      %2266 = vmatprep.subr.bf16.mxu0 0
      %2267 = vmatpush1.bf16.msra.mxu0 0
      %2268 = vmatprep.subr.bf16.mxu0 0
      %2269 = vmatpush1.bf16.msra.mxu0 0
      %2270 = vmatprep.subr.bf16.mxu0 0
      %2271 = vmatpush1.bf16.msra.mxu0 0
      %2272 = vmatprep.subr.bf16.mxu0 0
      %2273 = vmatpush1.bf16.msra.mxu0 0
      %2274 = vmatprep.subr.bf16.mxu0 0
      %2275 = vmatpush1.bf16.msra.mxu0 0
      %2276 = vmatprep.subr.bf16.mxu0 0
      %2277 = vmatpush1.bf16.msra.mxu0 0
      %2278 = vmatprep.subr.bf16.mxu0 0
      %2279 = vmatpush1.bf16.msra.mxu0 0
      %2280 = vmatprep.subr.bf16.mxu0 0
      %2281 = vmatpush1.bf16.msra.mxu0 0
      %2282 = vmatprep.mubr.bf16.mxu0 0
      %2283 = vmatmul.mubr.bf16.gmra.mrb[0].mxu0 %v2033
      %v2284 = vpop.f32.mrb[0].mxu0
      %v2285 = vadd.f32 %v1835, %v2284
      %v2286 = vpop.f32.mrb[0].mxu0
      %v2287 = vadd.f32 %v1839, %v2286
      %v2288 = vpop.f32.mrb[0].mxu0
      %v2289 = vadd.f32 %v1835, %v2288
      %v2290 = vpop.f32.mrb[0].mxu0
      %v2291 = vadd.f32 %v1839, %v2290
      %2292 = vdwg.mxu0
      %2293 = vmatprep.subr.bf16.mxu0 %v1981
      %2294 = vmatpush1.bf16.msra.mxu0 %v1980
      %2295 = vmatprep.subr.bf16.mxu0 %v1997
      %2296 = vmatpush1.bf16.msra.mxu0 %v1996
      %2297 = vmatprep.subr.bf16.mxu0 0
      %2298 = vmatpush1.bf16.msra.mxu0 0
      %2299 = vmatprep.subr.bf16.mxu0 0
      %2300 = vmatpush1.bf16.msra.mxu0 0
      %2301 = vmatprep.subr.bf16.mxu0 0
      %2302 = vmatpush1.bf16.msra.mxu0 0
      %2303 = vmatprep.subr.bf16.mxu0 0
      %2304 = vmatpush1.bf16.msra.mxu0 0
      %2305 = vmatprep.subr.bf16.mxu0 0
      %2306 = vmatpush1.bf16.msra.mxu0 0
      %2307 = vmatprep.subr.bf16.mxu0 0
      %2308 = vmatpush1.bf16.msra.mxu0 0
      %2309 = vmatprep.subr.bf16.mxu0 0
      %2310 = vmatpush1.bf16.msra.mxu0 0
      %2311 = vmatprep.subr.bf16.mxu0 0
      %2312 = vmatpush1.bf16.msra.mxu0 0
      %2313 = vmatprep.subr.bf16.mxu0 0
      %2314 = vmatpush1.bf16.msra.mxu0 0
      %2315 = vmatprep.subr.bf16.mxu0 0
      %2316 = vmatpush1.bf16.msra.mxu0 0
      %2317 = vmatprep.subr.bf16.mxu0 0
      %2318 = vmatpush1.bf16.msra.mxu0 0
      %2319 = vmatprep.subr.bf16.mxu0 0
      %2320 = vmatpush1.bf16.msra.mxu0 0
      %2321 = vmatprep.subr.bf16.mxu0 0
      %2322 = vmatpush1.bf16.msra.mxu0 0
      %2323 = vmatprep.subr.bf16.mxu0 0
      %2324 = vmatpush1.bf16.msra.mxu0 0
      %2325 = vmatprep.mubr.bf16.mxu0 0
      %2326 = vmatmul.mubr.bf16.gmra.mrb[0].mxu0 %v2033
      %v2327 = vpop.f32.mrb[0].mxu0
      %v2328 = vadd.f32 %v1843, %v2327
      %v2329 = vpop.f32.mrb[0].mxu0
      %v2330 = vadd.f32 %v1847, %v2329
      %v2331 = vpop.f32.mrb[0].mxu0
      %v2332 = vadd.f32 %v1843, %v2331
      %v2333 = vpop.f32.mrb[0].mxu0
      %v2334 = vadd.f32 %v1847, %v2333
      %2335 = vdwg.mxu0
      %2336 = vmatprep.subr.bf16.mxu0 %v1983
      %2337 = vmatpush1.bf16.msra.mxu0 %v1982
      %2338 = vmatprep.subr.bf16.mxu0 %v1999
      %2339 = vmatpush1.bf16.msra.mxu0 %v1998
      %2340 = vmatprep.subr.bf16.mxu0 0
      %2341 = vmatpush1.bf16.msra.mxu0 0
      %2342 = vmatprep.subr.bf16.mxu0 0
      %2343 = vmatpush1.bf16.msra.mxu0 0
      %2344 = vmatprep.subr.bf16.mxu0 0
      %2345 = vmatpush1.bf16.msra.mxu0 0
      %2346 = vmatprep.subr.bf16.mxu0 0
      %2347 = vmatpush1.bf16.msra.mxu0 0
      %2348 = vmatprep.subr.bf16.mxu0 0
      %2349 = vmatpush1.bf16.msra.mxu0 0
      %2350 = vmatprep.subr.bf16.mxu0 0
      %2351 = vmatpush1.bf16.msra.mxu0 0
      %2352 = vmatprep.subr.bf16.mxu0 0
      %2353 = vmatpush1.bf16.msra.mxu0 0
      %2354 = vmatprep.subr.bf16.mxu0 0
      %2355 = vmatpush1.bf16.msra.mxu0 0
      %2356 = vmatprep.subr.bf16.mxu0 0
      %2357 = vmatpush1.bf16.msra.mxu0 0
      %2358 = vmatprep.subr.bf16.mxu0 0
      %2359 = vmatpush1.bf16.msra.mxu0 0
      %2360 = vmatprep.subr.bf16.mxu0 0
      %2361 = vmatpush1.bf16.msra.mxu0 0
      %2362 = vmatprep.subr.bf16.mxu0 0
      %2363 = vmatpush1.bf16.msra.mxu0 0
      %2364 = vmatprep.subr.bf16.mxu0 0
      %2365 = vmatpush1.bf16.msra.mxu0 0
      %2366 = vmatprep.subr.bf16.mxu0 0
      %2367 = vmatpush1.bf16.msra.mxu0 0
      %2368 = vmatprep.mubr.bf16.mxu0 0
      %2369 = vmatmul.mubr.bf16.gmra.mrb[0].mxu0 %v2033
      %v2370 = vpop.f32.mrb[0].mxu0
      %v2371 = vadd.f32 %v1851, %v2370
      %v2372 = vpop.f32.mrb[0].mxu0
      %v2373 = vadd.f32 %v1855, %v2372
      %v2374 = vpop.f32.mrb[0].mxu0
      %v2375 = vadd.f32 %v1851, %v2374
      %v2376 = vpop.f32.mrb[0].mxu0
      %v2377 = vadd.f32 %v1855, %v2376
      %2378 = vdwg.mxu0
      %v2379 = vmax.f32 %v2070, 0.0
      %v2380 = vmax.f32 %v2072, 0.0
      %v2381 = vmax.f32 %v2113, 0.0
      %v2382 = vmax.f32 %v2115, 0.0
      %v2383 = vmax.f32 %v2156, 0.0
      %v2384 = vmax.f32 %v2158, 0.0
      %v2385 = vmax.f32 %v2199, 0.0
      %v2386 = vmax.f32 %v2201, 0.0
      %v2387 = vmax.f32 %v2242, 0.0
      %v2388 = vmax.f32 %v2244, 0.0
      %v2389 = vmax.f32 %v2285, 0.0
      %v2390 = vmax.f32 %v2287, 0.0
      %v2391 = vmax.f32 %v2328, 0.0
      %v2392 = vmax.f32 %v2330, 0.0
      %v2393 = vmax.f32 %v2371, 0.0
      %v2394 = vmax.f32 %v2373, 0.0
      %v2395 = vmax.f32 %v2074, 0.0
      %v2396 = vmax.f32 %v2076, 0.0
      %v2397 = vmax.f32 %v2117, 0.0
      %v2398 = vmax.f32 %v2119, 0.0
      %v2399 = vmax.f32 %v2160, 0.0
      %v2400 = vmax.f32 %v2162, 0.0
      %v2401 = vmax.f32 %v2203, 0.0
      %v2402 = vmax.f32 %v2205, 0.0
      %v2403 = vmax.f32 %v2246, 0.0
      %v2404 = vmax.f32 %v2248, 0.0
      %v2405 = vmax.f32 %v2289, 0.0
      %v2406 = vmax.f32 %v2291, 0.0
      %v2407 = vmax.f32 %v2332, 0.0
      %v2408 = vmax.f32 %v2334, 0.0
      %v2409 = vmax.f32 %v2375, 0.0
      %v2410 = vmax.f32 %v2377, 0.0
      %v2411 = vpack.c.bf16 %v2395, %v2379
      %v2412 = vpack.c.bf16 %v2396, %v2380
      %v2413 = vpack.c.bf16 %v2397, %v2381
      %v2414 = vpack.c.bf16 %v2398, %v2382
      %v2415 = vpack.c.bf16 %v2399, %v2383
      %v2416 = vpack.c.bf16 %v2400, %v2384
      %v2417 = vpack.c.bf16 %v2401, %v2385
      %v2418 = vpack.c.bf16 %v2402, %v2386
      %v2419 = vpack.c.bf16 %v2403, %v2387
      %v2420 = vpack.c.bf16 %v2404, %v2388
      %v2421 = vpack.c.bf16 %v2405, %v2389
      %v2422 = vpack.c.bf16 %v2406, %v2390
      %v2423 = vpack.c.bf16 %v2407, %v2391
      %v2424 = vpack.c.bf16 %v2408, %v2392
      %v2425 = vpack.c.bf16 %v2409, %v2393
      %v2426 = vpack.c.bf16 %v2410, %v2394
      %v2427 = vld [vmem:[%s591] sm:$0xff]
      %v2428 = vld [vmem:[%s591 + $0x8] sm:$0xff]
      %v2429 = vld [vmem:[%s591 + $0x10] sm:$0xff]
      %v2430 = vld [vmem:[%s591 + $0x18] sm:$0xff]
      %v2431 = vld [vmem:[%s591 + $0x20] sm:$0xff]
      %v2432 = vld [vmem:[%s591 + $0x28] sm:$0xff]
      %v2433 = vld [vmem:[%s591 + $0x30] sm:$0xff]
      %v2434 = vld [vmem:[%s591 + $0x38] sm:$0xff]
      %v2435 = vld [vmem:[%s591 + $0x40] sm:$0xff]
      %v2436 = vld [vmem:[%s591 + $0x48] sm:$0xff]
      %v2437 = vld [vmem:[%s591 + $0x50] sm:$0xff]
      %v2438 = vld [vmem:[%s591 + $0x58] sm:$0xff]
      %v2439 = vld [vmem:[%s591 + $0x60] sm:$0xff]
      %v2440 = vld [vmem:[%s591 + $0x68] sm:$0xff]
      %v2441 = vld [vmem:[%s591 + $0x70] sm:$0xff]
      %v2442 = vld [vmem:[%s591 + $0x78] sm:$0xff]
      %v2443 = vld [vmem:[%s591 + $0x80] sm:$0xff]
      %v2444 = vld [vmem:[%s591 + $0x88] sm:$0xff]
      %v2445 = vld [vmem:[%s591 + $0x90] sm:$0xff]
      %v2446 = vld [vmem:[%s591 + $0x98] sm:$0xff]
      %v2447 = vld [vmem:[%s591 + $0xa0] sm:$0xff]
      %v2448 = vld [vmem:[%s591 + $0xa8] sm:$0xff]
      %v2449 = vld [vmem:[%s591 + $0xb0] sm:$0xff]
      %v2450 = vld [vmem:[%s591 + $0xb8] sm:$0xff]
      %v2451 = vld [vmem:[%s591 + $0xc0] sm:$0xff]
      %v2452 = vld [vmem:[%s591 + $0xc8] sm:$0xff]
      %v2453 = vld [vmem:[%s591 + $0xd0] sm:$0xff]
      %v2454 = vld [vmem:[%s591 + $0xd8] sm:$0xff]
      %v2455 = vld [vmem:[%s591 + $0xe0] sm:$0xff]
      %v2456 = vld [vmem:[%s591 + $0xe8] sm:$0xff]
      %v2457 = vld [vmem:[%s591 + $0xf0] sm:$0xff]
      %v2458 = vld [vmem:[%s591 + $0xf8] sm:$0xff]
      %v2459 = vld [vmem:[%s594] sm:$0x1]
      %v2461 = vlaneseq
      %v2462 = vshrl.u32 %v2461, 7
      %v2463 = vsub.s32 0, %v2462
      %v2464 = vrot.slane %v2459, %v2463
      %v2498 = vunpack.c.l.b16 %v2427
      %v2499 = vunpack.c.h.b16 %v2427
      %v2500 = vunpack.c.l.b16 %v2428
      %v2501 = vunpack.c.h.b16 %v2428
      %v2502 = vunpack.c.l.b16 %v2429
      %v2503 = vunpack.c.h.b16 %v2429
      %v2504 = vunpack.c.l.b16 %v2430
      %v2505 = vunpack.c.h.b16 %v2430
      %v2506 = vunpack.c.l.b16 %v2431
      %v2507 = vunpack.c.h.b16 %v2431
      %v2508 = vunpack.c.l.b16 %v2432
      %v2509 = vunpack.c.h.b16 %v2432
      %v2510 = vunpack.c.l.b16 %v2433
      %v2511 = vunpack.c.h.b16 %v2433
      %v2512 = vunpack.c.l.b16 %v2434
      %v2513 = vunpack.c.h.b16 %v2434
      %v2514 = vunpack.c.l.b16 %v2435
      %v2515 = vunpack.c.h.b16 %v2435
      %v2516 = vunpack.c.l.b16 %v2436
      %v2517 = vunpack.c.h.b16 %v2436
      %v2518 = vunpack.c.l.b16 %v2437
      %v2519 = vunpack.c.h.b16 %v2437
      %v2520 = vunpack.c.l.b16 %v2438
      %v2521 = vunpack.c.h.b16 %v2438
      %v2522 = vunpack.c.l.b16 %v2439
      %v2523 = vunpack.c.h.b16 %v2439
      %v2524 = vunpack.c.l.b16 %v2440
      %v2525 = vunpack.c.h.b16 %v2440
      %v2526 = vunpack.c.l.b16 %v2441
      %v2527 = vunpack.c.h.b16 %v2441
      %v2528 = vunpack.c.l.b16 %v2442
      %v2529 = vunpack.c.h.b16 %v2442
      %v2530 = vunpack.c.l.b16 %v2443
      %v2531 = vunpack.c.h.b16 %v2443
      %v2532 = vunpack.c.l.b16 %v2444
      %v2533 = vunpack.c.h.b16 %v2444
      %v2534 = vunpack.c.l.b16 %v2445
      %v2535 = vunpack.c.h.b16 %v2445
      %v2536 = vunpack.c.l.b16 %v2446
      %v2537 = vunpack.c.h.b16 %v2446
      %v2538 = vunpack.c.l.b16 %v2447
      %v2539 = vunpack.c.h.b16 %v2447
      %v2540 = vunpack.c.l.b16 %v2448
      %v2541 = vunpack.c.h.b16 %v2448
      %v2542 = vunpack.c.l.b16 %v2449
      %v2543 = vunpack.c.h.b16 %v2449
      %v2544 = vunpack.c.l.b16 %v2450
      %v2545 = vunpack.c.h.b16 %v2450
      %v2546 = vunpack.c.l.b16 %v2451
      %v2547 = vunpack.c.h.b16 %v2451
      %v2548 = vunpack.c.l.b16 %v2452
      %v2549 = vunpack.c.h.b16 %v2452
      %v2550 = vunpack.c.l.b16 %v2453
      %v2551 = vunpack.c.h.b16 %v2453
      %v2552 = vunpack.c.l.b16 %v2454
      %v2553 = vunpack.c.h.b16 %v2454
      %v2554 = vunpack.c.l.b16 %v2455
      %v2555 = vunpack.c.h.b16 %v2455
      %v2556 = vunpack.c.l.b16 %v2456
      %v2557 = vunpack.c.h.b16 %v2456
      %v2558 = vunpack.c.l.b16 %v2457
      %v2559 = vunpack.c.h.b16 %v2457
      %v2560 = vunpack.c.l.b16 %v2458
      %v2561 = vunpack.c.h.b16 %v2458
      %v2562 = vpack.c.b16 %v2514, %v2498
      %v2563 = vpack.c.b16 %v2515, %v2499
      %v2564 = vpack.c.b16 %v2516, %v2500
      %v2565 = vpack.c.b16 %v2517, %v2501
      %v2566 = vpack.c.b16 %v2518, %v2502
      %v2567 = vpack.c.b16 %v2519, %v2503
      %v2568 = vpack.c.b16 %v2520, %v2504
      %v2569 = vpack.c.b16 %v2521, %v2505
      %v2570 = vpack.c.b16 %v2522, %v2506
      %v2571 = vpack.c.b16 %v2523, %v2507
      %v2572 = vpack.c.b16 %v2524, %v2508
      %v2573 = vpack.c.b16 %v2525, %v2509
      %v2574 = vpack.c.b16 %v2526, %v2510
      %v2575 = vpack.c.b16 %v2527, %v2511
      %v2576 = vpack.c.b16 %v2528, %v2512
      %v2577 = vpack.c.b16 %v2529, %v2513
      %v2578 = vpack.c.b16 %v2546, %v2530
      %v2579 = vpack.c.b16 %v2547, %v2531
      %v2580 = vpack.c.b16 %v2548, %v2532
      %v2581 = vpack.c.b16 %v2549, %v2533
      %v2582 = vpack.c.b16 %v2550, %v2534
      %v2583 = vpack.c.b16 %v2551, %v2535
      %v2584 = vpack.c.b16 %v2552, %v2536
      %v2585 = vpack.c.b16 %v2553, %v2537
      %v2586 = vpack.c.b16 %v2554, %v2538
      %v2587 = vpack.c.b16 %v2555, %v2539
      %v2588 = vpack.c.b16 %v2556, %v2540
      %v2589 = vpack.c.b16 %v2557, %v2541
      %v2590 = vpack.c.b16 %v2558, %v2542
      %v2591 = vpack.c.b16 %v2559, %v2543
      %v2592 = vpack.c.b16 %v2560, %v2544
      %v2593 = vpack.c.b16 %v2561, %v2545
      %2626 = vmatprep.subr.bf16.mxu0 %v2563
      %2627 = vmatpush1.bf16.xpose.msra.mxu0 %v2562
      %2628 = vmatprep.subr.bf16.mxu0 %v2579
      %2629 = vmatpush1.bf16.xpose.msra.mxu0 %v2578
      %2630 = vmatprep.subr.bf16.mxu0 0
      %2631 = vmatpush1.bf16.xpose.msra.mxu0 0
      %2632 = vmatprep.subr.bf16.mxu0 0
      %2633 = vmatpush1.bf16.xpose.msra.mxu0 0
      %2634 = vmatprep.subr.bf16.mxu0 0
      %2635 = vmatpush1.bf16.xpose.msra.mxu0 0
      %2636 = vmatprep.subr.bf16.mxu0 0
      %2637 = vmatpush1.bf16.xpose.msra.mxu0 0
      %2638 = vmatprep.subr.bf16.mxu0 0
      %2639 = vmatpush1.bf16.xpose.msra.mxu0 0
      %2640 = vmatprep.subr.bf16.mxu0 0
      %2641 = vmatpush1.bf16.xpose.msra.mxu0 0
      %2642 = vmatprep.subr.bf16.mxu0 0
      %2643 = vmatpush1.bf16.xpose.msra.mxu0 0
      %2644 = vmatprep.subr.bf16.mxu0 0
      %2645 = vmatpush1.bf16.xpose.msra.mxu0 0
      %2646 = vmatprep.subr.bf16.mxu0 0
      %2647 = vmatpush1.bf16.xpose.msra.mxu0 0
      %2648 = vmatprep.subr.bf16.mxu0 0
      %2649 = vmatpush1.bf16.xpose.msra.mxu0 0
      %2650 = vmatprep.subr.bf16.mxu0 0
      %2651 = vmatpush1.bf16.xpose.msra.mxu0 0
      %2652 = vmatprep.subr.bf16.mxu0 0
      %2653 = vmatpush1.bf16.xpose.msra.mxu0 0
      %2654 = vmatprep.subr.bf16.mxu0 0
      %2655 = vmatpush1.bf16.xpose.msra.mxu0 0
      %2656 = vmatprep.subr.bf16.mxu0 0
      %2657 = vmatpush1.bf16.xpose.msra.mxu0 0
      %2658 = vmatprep.mubr.bf16.mxu0 %v2412
      %2659 = vmatmul.mubr.bf16.gmra.mrb[0].mxu0 %v2411
      %v2660 = vpop.f32.mrb[0].mxu0
      %v2661 = vadd.f32 %v2464, %v2660
      %v2662 = vpop.f32.mrb[0].mxu0
      %v2663 = vpop.f32.mrb[0].mxu0
      %v2664 = vadd.f32 %v2464, %v2663
      %v2665 = vpop.f32.mrb[0].mxu0
      %2666 = vdwg.mxu0
      %2667 = vmatprep.subr.bf16.mxu0 %v2565
      %2668 = vmatpush1.bf16.xpose.msra.mxu0 %v2564
      %2669 = vmatprep.subr.bf16.mxu0 %v2581
      %2670 = vmatpush1.bf16.xpose.msra.mxu0 %v2580
      %2671 = vmatprep.subr.bf16.mxu0 0
      %2672 = vmatpush1.bf16.xpose.msra.mxu0 0
      %2673 = vmatprep.subr.bf16.mxu0 0
      %2674 = vmatpush1.bf16.xpose.msra.mxu0 0
      %2675 = vmatprep.subr.bf16.mxu0 0
      %2676 = vmatpush1.bf16.xpose.msra.mxu0 0
      %2677 = vmatprep.subr.bf16.mxu0 0
      %2678 = vmatpush1.bf16.xpose.msra.mxu0 0
      %2679 = vmatprep.subr.bf16.mxu0 0
      %2680 = vmatpush1.bf16.xpose.msra.mxu0 0
      %2681 = vmatprep.subr.bf16.mxu0 0
      %2682 = vmatpush1.bf16.xpose.msra.mxu0 0
      %2683 = vmatprep.subr.bf16.mxu0 0
      %2684 = vmatpush1.bf16.xpose.msra.mxu0 0
      %2685 = vmatprep.subr.bf16.mxu0 0
      %2686 = vmatpush1.bf16.xpose.msra.mxu0 0
      %2687 = vmatprep.subr.bf16.mxu0 0
      %2688 = vmatpush1.bf16.xpose.msra.mxu0 0
      %2689 = vmatprep.subr.bf16.mxu0 0
      %2690 = vmatpush1.bf16.xpose.msra.mxu0 0
      %2691 = vmatprep.subr.bf16.mxu0 0
      %2692 = vmatpush1.bf16.xpose.msra.mxu0 0
      %2693 = vmatprep.subr.bf16.mxu0 0
      %2694 = vmatpush1.bf16.xpose.msra.mxu0 0
      %2695 = vmatprep.subr.bf16.mxu0 0
      %2696 = vmatpush1.bf16.xpose.msra.mxu0 0
      %2697 = vmatprep.subr.bf16.mxu0 0
      %2698 = vmatpush1.bf16.xpose.msra.mxu0 0
      %2699 = vmatprep.mubr.bf16.mxu0 %v2414
      %2700 = vmatmul.mubr.bf16.gmra.mrb[0].mxu0 %v2413
      %v2701 = vpop.f32.mrb[0].mxu0
      %v2702 = vadd.f32 %v2661, %v2701
      %v2703 = vpop.f32.mrb[0].mxu0
      %v2704 = vpop.f32.mrb[0].mxu0
      %v2705 = vadd.f32 %v2664, %v2704
      %v2706 = vpop.f32.mrb[0].mxu0
      %2707 = vdwg.mxu0
      %2708 = vmatprep.subr.bf16.mxu0 %v2567
      %2709 = vmatpush1.bf16.xpose.msra.mxu0 %v2566
      %2710 = vmatprep.subr.bf16.mxu0 %v2583
      %2711 = vmatpush1.bf16.xpose.msra.mxu0 %v2582
      %2712 = vmatprep.subr.bf16.mxu0 0
      %2713 = vmatpush1.bf16.xpose.msra.mxu0 0
      %2714 = vmatprep.subr.bf16.mxu0 0
      %2715 = vmatpush1.bf16.xpose.msra.mxu0 0
      %2716 = vmatprep.subr.bf16.mxu0 0
      %2717 = vmatpush1.bf16.xpose.msra.mxu0 0
      %2718 = vmatprep.subr.bf16.mxu0 0
      %2719 = vmatpush1.bf16.xpose.msra.mxu0 0
      %2720 = vmatprep.subr.bf16.mxu0 0
      %2721 = vmatpush1.bf16.xpose.msra.mxu0 0
      %2722 = vmatprep.subr.bf16.mxu0 0
      %2723 = vmatpush1.bf16.xpose.msra.mxu0 0
      %2724 = vmatprep.subr.bf16.mxu0 0
      %2725 = vmatpush1.bf16.xpose.msra.mxu0 0
      %2726 = vmatprep.subr.bf16.mxu0 0
      %2727 = vmatpush1.bf16.xpose.msra.mxu0 0
      %2728 = vmatprep.subr.bf16.mxu0 0
      %2729 = vmatpush1.bf16.xpose.msra.mxu0 0
      %2730 = vmatprep.subr.bf16.mxu0 0
      %2731 = vmatpush1.bf16.xpose.msra.mxu0 0
      %2732 = vmatprep.subr.bf16.mxu0 0
      %2733 = vmatpush1.bf16.xpose.msra.mxu0 0
      %2734 = vmatprep.subr.bf16.mxu0 0
      %2735 = vmatpush1.bf16.xpose.msra.mxu0 0
      %2736 = vmatprep.subr.bf16.mxu0 0
      %2737 = vmatpush1.bf16.xpose.msra.mxu0 0
      %2738 = vmatprep.subr.bf16.mxu0 0
      %2739 = vmatpush1.bf16.xpose.msra.mxu0 0
      %2740 = vmatprep.mubr.bf16.mxu0 %v2416
      %2741 = vmatmul.mubr.bf16.gmra.mrb[0].mxu0 %v2415
      %v2742 = vpop.f32.mrb[0].mxu0
      %v2743 = vadd.f32 %v2702, %v2742
      %v2744 = vpop.f32.mrb[0].mxu0
      %v2745 = vpop.f32.mrb[0].mxu0
      %v2746 = vadd.f32 %v2705, %v2745
      %v2747 = vpop.f32.mrb[0].mxu0
      %2748 = vdwg.mxu0
      %2749 = vmatprep.subr.bf16.mxu0 %v2569
      %2750 = vmatpush1.bf16.xpose.msra.mxu0 %v2568
      %2751 = vmatprep.subr.bf16.mxu0 %v2585
      %2752 = vmatpush1.bf16.xpose.msra.mxu0 %v2584
      %2753 = vmatprep.subr.bf16.mxu0 0
      %2754 = vmatpush1.bf16.xpose.msra.mxu0 0
      %2755 = vmatprep.subr.bf16.mxu0 0
      %2756 = vmatpush1.bf16.xpose.msra.mxu0 0
      %2757 = vmatprep.subr.bf16.mxu0 0
      %2758 = vmatpush1.bf16.xpose.msra.mxu0 0
      %2759 = vmatprep.subr.bf16.mxu0 0
      %2760 = vmatpush1.bf16.xpose.msra.mxu0 0
      %2761 = vmatprep.subr.bf16.mxu0 0
      %2762 = vmatpush1.bf16.xpose.msra.mxu0 0
      %2763 = vmatprep.subr.bf16.mxu0 0
      %2764 = vmatpush1.bf16.xpose.msra.mxu0 0
      %2765 = vmatprep.subr.bf16.mxu0 0
      %2766 = vmatpush1.bf16.xpose.msra.mxu0 0
      %2767 = vmatprep.subr.bf16.mxu0 0
      %2768 = vmatpush1.bf16.xpose.msra.mxu0 0
      %2769 = vmatprep.subr.bf16.mxu0 0
      %2770 = vmatpush1.bf16.xpose.msra.mxu0 0
      %2771 = vmatprep.subr.bf16.mxu0 0
      %2772 = vmatpush1.bf16.xpose.msra.mxu0 0
      %2773 = vmatprep.subr.bf16.mxu0 0
      %2774 = vmatpush1.bf16.xpose.msra.mxu0 0
      %2775 = vmatprep.subr.bf16.mxu0 0
      %2776 = vmatpush1.bf16.xpose.msra.mxu0 0
      %2777 = vmatprep.subr.bf16.mxu0 0
      %2778 = vmatpush1.bf16.xpose.msra.mxu0 0
      %2779 = vmatprep.subr.bf16.mxu0 0
      %2780 = vmatpush1.bf16.xpose.msra.mxu0 0
      %2781 = vmatprep.mubr.bf16.mxu0 %v2418
      %2782 = vmatmul.mubr.bf16.gmra.mrb[0].mxu0 %v2417
      %v2783 = vpop.f32.mrb[0].mxu0
      %v2784 = vadd.f32 %v2743, %v2783
      %v2785 = vpop.f32.mrb[0].mxu0
      %v2786 = vpop.f32.mrb[0].mxu0
      %v2787 = vadd.f32 %v2746, %v2786
      %v2788 = vpop.f32.mrb[0].mxu0
      %2789 = vdwg.mxu0
      %2790 = vmatprep.subr.bf16.mxu0 %v2571
      %2791 = vmatpush1.bf16.xpose.msra.mxu0 %v2570
      %2792 = vmatprep.subr.bf16.mxu0 %v2587
      %2793 = vmatpush1.bf16.xpose.msra.mxu0 %v2586
      %2794 = vmatprep.subr.bf16.mxu0 0
      %2795 = vmatpush1.bf16.xpose.msra.mxu0 0
      %2796 = vmatprep.subr.bf16.mxu0 0
      %2797 = vmatpush1.bf16.xpose.msra.mxu0 0
      %2798 = vmatprep.subr.bf16.mxu0 0
      %2799 = vmatpush1.bf16.xpose.msra.mxu0 0
      %2800 = vmatprep.subr.bf16.mxu0 0
      %2801 = vmatpush1.bf16.xpose.msra.mxu0 0
      %2802 = vmatprep.subr.bf16.mxu0 0
      %2803 = vmatpush1.bf16.xpose.msra.mxu0 0
      %2804 = vmatprep.subr.bf16.mxu0 0
      %2805 = vmatpush1.bf16.xpose.msra.mxu0 0
      %2806 = vmatprep.subr.bf16.mxu0 0
      %2807 = vmatpush1.bf16.xpose.msra.mxu0 0
      %2808 = vmatprep.subr.bf16.mxu0 0
      %2809 = vmatpush1.bf16.xpose.msra.mxu0 0
      %2810 = vmatprep.subr.bf16.mxu0 0
      %2811 = vmatpush1.bf16.xpose.msra.mxu0 0
      %2812 = vmatprep.subr.bf16.mxu0 0
      %2813 = vmatpush1.bf16.xpose.msra.mxu0 0
      %2814 = vmatprep.subr.bf16.mxu0 0
      %2815 = vmatpush1.bf16.xpose.msra.mxu0 0
      %2816 = vmatprep.subr.bf16.mxu0 0
      %2817 = vmatpush1.bf16.xpose.msra.mxu0 0
      %2818 = vmatprep.subr.bf16.mxu0 0
      %2819 = vmatpush1.bf16.xpose.msra.mxu0 0
      %2820 = vmatprep.subr.bf16.mxu0 0
      %2821 = vmatpush1.bf16.xpose.msra.mxu0 0
      %2822 = vmatprep.mubr.bf16.mxu0 %v2420
      %2823 = vmatmul.mubr.bf16.gmra.mrb[0].mxu0 %v2419
      %v2824 = vpop.f32.mrb[0].mxu0
      %v2825 = vadd.f32 %v2784, %v2824
      %v2826 = vpop.f32.mrb[0].mxu0
      %v2827 = vpop.f32.mrb[0].mxu0
      %v2828 = vadd.f32 %v2787, %v2827
      %v2829 = vpop.f32.mrb[0].mxu0
      %2830 = vdwg.mxu0
      %2831 = vmatprep.subr.bf16.mxu0 %v2573
      %2832 = vmatpush1.bf16.xpose.msra.mxu0 %v2572
      %2833 = vmatprep.subr.bf16.mxu0 %v2589
      %2834 = vmatpush1.bf16.xpose.msra.mxu0 %v2588
      %2835 = vmatprep.subr.bf16.mxu0 0
      %2836 = vmatpush1.bf16.xpose.msra.mxu0 0
      %2837 = vmatprep.subr.bf16.mxu0 0
      %2838 = vmatpush1.bf16.xpose.msra.mxu0 0
      %2839 = vmatprep.subr.bf16.mxu0 0
      %2840 = vmatpush1.bf16.xpose.msra.mxu0 0
      %2841 = vmatprep.subr.bf16.mxu0 0
      %2842 = vmatpush1.bf16.xpose.msra.mxu0 0
      %2843 = vmatprep.subr.bf16.mxu0 0
      %2844 = vmatpush1.bf16.xpose.msra.mxu0 0
      %2845 = vmatprep.subr.bf16.mxu0 0
      %2846 = vmatpush1.bf16.xpose.msra.mxu0 0
      %2847 = vmatprep.subr.bf16.mxu0 0
      %2848 = vmatpush1.bf16.xpose.msra.mxu0 0
      %2849 = vmatprep.subr.bf16.mxu0 0
      %2850 = vmatpush1.bf16.xpose.msra.mxu0 0
      %2851 = vmatprep.subr.bf16.mxu0 0
      %2852 = vmatpush1.bf16.xpose.msra.mxu0 0
      %2853 = vmatprep.subr.bf16.mxu0 0
      %2854 = vmatpush1.bf16.xpose.msra.mxu0 0
      %2855 = vmatprep.subr.bf16.mxu0 0
      %2856 = vmatpush1.bf16.xpose.msra.mxu0 0
      %2857 = vmatprep.subr.bf16.mxu0 0
      %2858 = vmatpush1.bf16.xpose.msra.mxu0 0
      %2859 = vmatprep.subr.bf16.mxu0 0
      %2860 = vmatpush1.bf16.xpose.msra.mxu0 0
      %2861 = vmatprep.subr.bf16.mxu0 0
      %2862 = vmatpush1.bf16.xpose.msra.mxu0 0
      %2863 = vmatprep.mubr.bf16.mxu0 %v2422
      %2864 = vmatmul.mubr.bf16.gmra.mrb[0].mxu0 %v2421
      %v2865 = vpop.f32.mrb[0].mxu0
      %v2866 = vadd.f32 %v2825, %v2865
      %v2867 = vpop.f32.mrb[0].mxu0
      %v2868 = vpop.f32.mrb[0].mxu0
      %v2869 = vadd.f32 %v2828, %v2868
      %v2870 = vpop.f32.mrb[0].mxu0
      %2871 = vdwg.mxu0
      %2872 = vmatprep.subr.bf16.mxu0 %v2575
      %2873 = vmatpush1.bf16.xpose.msra.mxu0 %v2574
      %2874 = vmatprep.subr.bf16.mxu0 %v2591
      %2875 = vmatpush1.bf16.xpose.msra.mxu0 %v2590
      %2876 = vmatprep.subr.bf16.mxu0 0
      %2877 = vmatpush1.bf16.xpose.msra.mxu0 0
      %2878 = vmatprep.subr.bf16.mxu0 0
      %2879 = vmatpush1.bf16.xpose.msra.mxu0 0
      %2880 = vmatprep.subr.bf16.mxu0 0
      %2881 = vmatpush1.bf16.xpose.msra.mxu0 0
      %2882 = vmatprep.subr.bf16.mxu0 0
      %2883 = vmatpush1.bf16.xpose.msra.mxu0 0
      %2884 = vmatprep.subr.bf16.mxu0 0
      %2885 = vmatpush1.bf16.xpose.msra.mxu0 0
      %2886 = vmatprep.subr.bf16.mxu0 0
      %2887 = vmatpush1.bf16.xpose.msra.mxu0 0
      %2888 = vmatprep.subr.bf16.mxu0 0
      %2889 = vmatpush1.bf16.xpose.msra.mxu0 0
      %2890 = vmatprep.subr.bf16.mxu0 0
      %2891 = vmatpush1.bf16.xpose.msra.mxu0 0
      %2892 = vmatprep.subr.bf16.mxu0 0
      %2893 = vmatpush1.bf16.xpose.msra.mxu0 0
      %2894 = vmatprep.subr.bf16.mxu0 0
      %2895 = vmatpush1.bf16.xpose.msra.mxu0 0
      %2896 = vmatprep.subr.bf16.mxu0 0
      %2897 = vmatpush1.bf16.xpose.msra.mxu0 0
      %2898 = vmatprep.subr.bf16.mxu0 0
      %2899 = vmatpush1.bf16.xpose.msra.mxu0 0
      %2900 = vmatprep.subr.bf16.mxu0 0
      %2901 = vmatpush1.bf16.xpose.msra.mxu0 0
      %2902 = vmatprep.subr.bf16.mxu0 0
      %2903 = vmatpush1.bf16.xpose.msra.mxu0 0
      %2904 = vmatprep.mubr.bf16.mxu0 %v2424
      %2905 = vmatmul.mubr.bf16.gmra.mrb[0].mxu0 %v2423
      %v2906 = vpop.f32.mrb[0].mxu0
      %v2907 = vadd.f32 %v2866, %v2906
      %v2908 = vpop.f32.mrb[0].mxu0
      %v2909 = vpop.f32.mrb[0].mxu0
      %v2910 = vadd.f32 %v2869, %v2909
      %v2911 = vpop.f32.mrb[0].mxu0
      %2912 = vdwg.mxu0
      %2913 = vmatprep.subr.bf16.mxu0 %v2577
      %2914 = vmatpush1.bf16.xpose.msra.mxu0 %v2576
      %2915 = vmatprep.subr.bf16.mxu0 %v2593
      %2916 = vmatpush1.bf16.xpose.msra.mxu0 %v2592
      %2917 = vmatprep.subr.bf16.mxu0 0
      %2918 = vmatpush1.bf16.xpose.msra.mxu0 0
      %2919 = vmatprep.subr.bf16.mxu0 0
      %2920 = vmatpush1.bf16.xpose.msra.mxu0 0
      %2921 = vmatprep.subr.bf16.mxu0 0
      %2922 = vmatpush1.bf16.xpose.msra.mxu0 0
      %2923 = vmatprep.subr.bf16.mxu0 0
      %2924 = vmatpush1.bf16.xpose.msra.mxu0 0
      %2925 = vmatprep.subr.bf16.mxu0 0
      %2926 = vmatpush1.bf16.xpose.msra.mxu0 0
      %2927 = vmatprep.subr.bf16.mxu0 0
      %2928 = vmatpush1.bf16.xpose.msra.mxu0 0
      %2929 = vmatprep.subr.bf16.mxu0 0
      %2930 = vmatpush1.bf16.xpose.msra.mxu0 0
      %2931 = vmatprep.subr.bf16.mxu0 0
      %2932 = vmatpush1.bf16.xpose.msra.mxu0 0
      %2933 = vmatprep.subr.bf16.mxu0 0
      %2934 = vmatpush1.bf16.xpose.msra.mxu0 0
      %2935 = vmatprep.subr.bf16.mxu0 0
      %2936 = vmatpush1.bf16.xpose.msra.mxu0 0
      %2937 = vmatprep.subr.bf16.mxu0 0
      %2938 = vmatpush1.bf16.xpose.msra.mxu0 0
      %2939 = vmatprep.subr.bf16.mxu0 0
      %2940 = vmatpush1.bf16.xpose.msra.mxu0 0
      %2941 = vmatprep.subr.bf16.mxu0 0
      %2942 = vmatpush1.bf16.xpose.msra.mxu0 0
      %2943 = vmatprep.subr.bf16.mxu0 0
      %2944 = vmatpush1.bf16.xpose.msra.mxu0 0
      %2945 = vmatprep.mubr.bf16.mxu0 %v2426
      %2946 = vmatmul.mubr.bf16.gmra.mrb[0].mxu0 %v2425
      %v2947 = vpop.f32.mrb[0].mxu0
      %v2948 = vadd.f32 %v2907, %v2947
      %v2949 = vpop.f32.mrb[0].mxu0
      %v2950 = vpop.f32.mrb[0].mxu0
      %v2951 = vadd.f32 %v2910, %v2950
      %v2952 = vpop.f32.mrb[0].mxu0
      %2953 = vdwg.mxu0
      %v2954 = vadd.f32 %v1753, %v2948
      %v2955 = vadd.f32 %v1754, %v2951
      %v2956 = vld [vmem:[%s597] sm:$0x1]
      %v2957 = vld [vmem:[%s600] sm:$0x1]
      %v2958 = vsel %vm638, %v2954, 0.0
      %2959 = vadd.xlane.f32.xlu0 %v2958
      %v2960 = vpop.xlane.xlu0 %2959
      %v2961 = vsel %vm1714, %v2955, 0.0
      %2962 = vadd.xlane.f32.xlu0 %v2961
      %v2963 = vpop.xlane.xlu0 %2962
      %v2964 = vmul.f32 %v2960, %v1718
      %v2965 = vmul.f32 %v2963, %v1718
      %v2966 = vsub.f32 %v2954, %v2964
      %v2967 = vsub.f32 %v2955, %v2965
      %v2968 = vmul.f32 %v2966, %v2966
      %v2969 = vmul.f32 %v2967, %v2967
      %v2970 = vsel %vm638, %v2968, 0.0
      %2971 = vadd.xlane.f32.xlu0 %v2970
      %v2972 = vpop.xlane.xlu0 %2971
      %v2973 = vsel %vm1714, %v2969, 0.0
      %2974 = vadd.xlane.f32.xlu0 %v2973
      %v2975 = vpop.xlane.xlu0 %2974
      %v2976 = vmul.f32 %v2972, %v1718
      %v2977 = vmul.f32 %v2975, %v1718
      %v2978 = vadd.f32 %v2976, 1e-05
      %v2979 = vadd.f32 %v2977, 1e-05
      %v2980 = vrsqrt.pop %v2978
      %v2981 = vrsqrt.pop %v2979
      %v2982 = vmul.f32 %v2966, %v2980
      %v2983 = vmul.f32 %v2967, %v2981
      %v2985 = vlaneseq
      %v2986 = vshrl.u32 %v2985, 7
      %v2987 = vsub.s32 0, %v2986
      %v2988 = vrot.slane %v2956, %v2987
      %v2990 = vmul.f32 %v2982, %v2988
      %v2991 = vmul.f32 %v2983, %v2988
      %v2993 = vlaneseq
      %v2994 = vshrl.u32 %v2993, 7
      %v2995 = vsub.s32 0, %v2994
      %v2996 = vrot.slane %v2957, %v2995
      %v2998 = vadd.f32 %v2990, %v2996
      %v2999 = vadd.f32 %v2991, %v2996
      %3000 = vst.msk [vmem:[#allocation2] sm:$0xff] %vm638, %v2998
      %3001 = vst.msk [vmem:[#allocation2 + $0x8] sm:$0x1] %vm1714, %v2999
      %p3002 = scmp.eq.s32.totalorder %s24, 1
      // Predicated region
      $region77: #{embedding_net_forward.5} parent=71 // pred_check
        %p3003 = pneg %p3002
      $region78: #{embedding_net_forward.5} parent=71 // pred_check_branch
        %3005 = sbr.rel (%p3003) target = $region80
      $region79: #{embedding_net_forward.5} parent=71 // pred_region
        %3006 = vst.msk [vmem:[%s13] sm:$0xff] %vm638, %v2998
        %3007 = vst.msk [vmem:[%s13 + $0x8] sm:$0x1] %vm1714, %v2999
      $region80: #{embedding_net_forward.5} parent=71 // pred_fallthru
        _
      // Predicated region
      $region81: #{embedding_net_forward.5} parent=71 // pred_check
        %p3008 = pneg %p370
      $region82: #{embedding_net_forward.5} parent=71 // pred_check_branch
        %3010 = sbr.rel (%p3008) target = $region84
      $region83: #{embedding_net_forward.5} parent=71 // pred_region
        _
      $region84: #{embedding_net_forward.5} parent=71 // pred_fallthru
        _
      // Predicated region
      $region85: #{embedding_net_forward.5} parent=71 // pred_check
        %p3011 = pneg %p370
      $region86: #{embedding_net_forward.5} parent=71 // pred_check_branch
        %3013 = sbr.rel (%p3011) target = $region88
      $region87: #{embedding_net_forward.5} parent=71 // pred_region
        _
      $region88: #{embedding_net_forward.5} parent=71 // pred_fallthru
        _
    $region72: #{embedding_net_forward.5} parent=5 // pred_fallthru
      _
    %p3014 = scmp.le.s32.totalorder 2, %s19
    // Predicated region
    $region89: #{embedding_net_forward.5} parent=5 // pred_check
      %p3015 = pneg %p3014
    $region90: #{embedding_net_forward.5} parent=5 // pred_check_branch
      %3017 = sbr.rel (%p3015) target = $region92
    $region91: #{embedding_net_forward.5} parent=5 // pred_region
      %s3018 = ssub.s32 %s19, 2
    $region92: #{embedding_net_forward.5} parent=5 // pred_fallthru
      _
  $region6: #{embedding_net_forward.5} parent=0 // loop_footer
    %s23 = sadd.s32 1, %s19
  $region7: #{embedding_net_forward.5} parent=0 // loop_footer_branch
    %18 = sbr.rel target = $region3
  $region8: #{embedding_net_forward.5} parent=0 // loop_exit
    _

</llo_original>
